<compile_context>
chip_gen: v6e
topology: v6e:2x2x1
jax: 0.10.0
libtpu: 0.0.40
codegen_flags: <defaults>
</compile_context>

<pallas_src>
import functools

import jax
import jax.numpy as jnp
from jax.experimental import pallas as pl
from jax.experimental.pallas import tpu as pltpu


# ----------------------------------------------------------------------------
# Pallas kernels
# ----------------------------------------------------------------------------
def _matmul_bias_relu_kernel(x_ref, w_ref, b_ref, o_ref):
    """o = relu(x @ w + b) for one M-tile (bf16 operands, f32 accumulate)."""
    y = jnp.dot(x_ref[...], w_ref[...], preferred_element_type=jnp.float32)
    o_ref[...] = jnp.maximum(y + b_ref[...], 0.0).astype(o_ref.dtype)


def _fc_head_kernel(x_ref, w1_ref, b1_ref, w2_ref, b2_ref, o_ref):
    """Fused FC head for one batch tile, reduction over hidden-dim tiles:
         out = b2 + sum_t relu(x @ w1[:, t] + b1[t]) @ w2[t, :]
    Output block is resident across the trailing (arbitrary) grid axis, so we
    init at t==0 and accumulate straight into o_ref (P3 pattern)."""
    t = pl.program_id(1)

    @pl.when(t == 0)
    def _init():
        o_ref[...] = jnp.broadcast_to(b2_ref[...], o_ref.shape)

    h = jnp.dot(x_ref[...], w1_ref[...], preferred_element_type=jnp.float32)
    h = jnp.maximum(h + b1_ref[...], 0.0)
    o_ref[...] += jnp.dot(h.astype(w2_ref.dtype), w2_ref[...],
                          preferred_element_type=jnp.float32)


# ----------------------------------------------------------------------------
# Pallas call wrappers
# ----------------------------------------------------------------------------
def _row_tiling(m_rows, max_tile=1024):
    """Ceil-div tiling of `m_rows` grouped rows: returns (padded_rows, tile, steps)
    with tile a multiple of 8 and padded_rows = tile * steps >= m_rows."""
    steps = -(-m_rows // max_tile)
    tm = -(-m_rows // steps)
    tm = -(-tm // 8) * 8
    return tm * steps, tm, steps


def conv_matmul_relu_packed(patches, wbd, bias, kin, out_dtype=jnp.bfloat16):
    """relu(patches @ W + b) with lane-dense output.

    `wbd` is the block-diagonal weight kron(I_g, W) of shape [g*K, g*OC] with
    g*OC == 128, prepared once at init.  Viewing the row-major patch matrix
    [M, K] as [M/g, g*K] (free) makes the kernel a plain (tm, g*K) @ (g*K, 128)
    matmul whose output rows are full 128-lane -> unmasked stores.  The result
    viewed back as [M, OC] is bit-identical to the ungrouped matmul.
    patches:[M,K]  wbd:[g*K,128]  bias:[1,128]  ->  [M, OC]
    """
    M, K = patches.shape
    assert K == kin
    gk, N = wbd.shape
    g = gk // K
    oc = N // g

    m_grp = -(-M // g)                              # grouped rows (ceil)
    m_grp_pad, tm, steps = _row_tiling(m_grp)
    m_pad = m_grp_pad * g
    if m_pad != M:
        patches = jnp.pad(patches, ((0, m_pad - M), (0, 0)))
    xg = patches.reshape(m_grp_pad, g * K)          # free contiguous view

    out = pl.pallas_call(
        _matmul_bias_relu_kernel,
        out_shape=jax.ShapeDtypeStruct((m_grp_pad, N), out_dtype),
        grid_spec=pltpu.PrefetchScalarGridSpec(
            num_scalar_prefetch=0,
            grid=(steps,),
            in_specs=[
                pl.BlockSpec((tm, g * K), lambda i: (i, 0)),  # grouped patch rows
                pl.BlockSpec((g * K, N), lambda i: (0, 0)),   # block-diag W (resident)
                pl.BlockSpec((1, N), lambda i: (0, 0)),       # tiled bias (resident)
            ],
            out_specs=pl.BlockSpec((tm, N), lambda i: (i, 0)),
        ),
        compiler_params=pltpu.CompilerParams(
            dimension_semantics=("parallel",),
        ),
    )(xg, wbd, bias)

    y = out.reshape(m_pad, oc)                      # free contiguous view back
    if m_pad != M:
        y = y[:M]
    return y


def _choose_batch_tile(b, cap=256):
    """Largest divisor of b that is a multiple of 8 and <= cap; else full b."""
    if b <= cap:
        return b
    for t in range(cap, 7, -1):
        if t % 8 == 0 and b % t == 0:
            return t
    return b


def fc_head(x, w1, b1, w2, b2, *, tn=256):
    """Fused relu(x @ w1 + b1) @ w2 + b2 in a single pallas_call.
    Grid = (batch tiles [parallel], hidden tiles [arbitrary reduction]).
    x:[B,3136]bf16  w1:[3136,512]bf16  b1:[1,512]f32
    w2:[512,Npad]bf16 (QA zero-padded to 128)  b2:[1,Npad]f32  ->  [B,Npad]f32."""
    B, K = x.shape
    H = w1.shape[1]
    N = w2.shape[1]
    assert H % tn == 0
    tb = _choose_batch_tile(B)
    return pl.pallas_call(
        _fc_head_kernel,
        out_shape=jax.ShapeDtypeStruct((B, N), jnp.float32),
        grid_spec=pltpu.PrefetchScalarGridSpec(
            num_scalar_prefetch=0,
            grid=(B // tb, H // tn),
            in_specs=[
                pl.BlockSpec((tb, K), lambda b, t: (b, 0)),    # activations (per b-tile)
                pl.BlockSpec((K, tn), lambda b, t: (0, t)),    # f1w hidden-tile
                pl.BlockSpec((1, tn), lambda b, t: (0, t)),    # f1b hidden-tile
                pl.BlockSpec((tn, N), lambda b, t: (t, 0)),    # f2w hidden-tile
                pl.BlockSpec((1, N), lambda b, t: (0, 0)),     # f2b (resident)
            ],
            out_specs=pl.BlockSpec((tb, N), lambda b, t: (b, 0)),
        ),
        compiler_params=pltpu.CompilerParams(
            dimension_semantics=("parallel", "arbitrary"),
        ),
    )(x, w1, b1, w2, b2)


# ----------------------------------------------------------------------------
# Conv2d(+ReLU) = NHWC im2col (XLA glue) + lane-packed Pallas matmul kernel.
# ----------------------------------------------------------------------------
def _im2col_nhwc(x, kh, kw, stride):
    """x: [B,H,W,C] -> ([B*OH*OW, kh*kw*C], OH, OW); feature order (kh, kw, C)."""
    B, H, W, C = x.shape
    oh = (H - kh) // stride + 1
    ow = (W - kw) // stride + 1
    cols = []
    for i in range(kh):
        for j in range(kw):
            cols.append(x[:, i:i + stride * oh:stride, j:j + stride * ow:stride, :])
    p = jnp.stack(cols, axis=3)                       # [B, oh, ow, kh*kw, C]
    return p.reshape(B * oh * ow, kh * kw * C), oh, ow


def conv2d_relu_nhwc(x, wbd, bias, kh, kw, stride):
    """x: [B,H,W,C] NHWC bf16, wbd: [g*kh*kw*C, 128] block-diag (prepped), bias:[1,128]."""
    B, _, _, C = x.shape
    patches, oh, ow = _im2col_nhwc(x, kh, kw, stride)
    y = conv_matmul_relu_packed(patches, wbd, bias, kh * kw * C)   # [B*oh*ow, OC]
    return y.reshape(B, oh, ow, -1)                                # stays NHWC (free)


# ----------------------------------------------------------------------------
# Parameters: PyTorch-style init, then one-time prep into kernel-ready layout.
# ----------------------------------------------------------------------------
def init_params(key, n_actions, n_quantiles):
    def unif(k, shape, fan_in):
        bound = 1.0 / float(fan_in) ** 0.5
        return jax.random.uniform(k, shape, jnp.float32, -bound, bound)

    ks = jax.random.split(key, 10)
    out_dim = n_quantiles * n_actions
    return {
        "c1w": unif(ks[0], (32, 4, 8, 8), 4 * 8 * 8),
        "c1b": unif(ks[1], (32,), 4 * 8 * 8),
        "c2w": unif(ks[2], (64, 32, 4, 4), 32 * 4 * 4),
        "c2b": unif(ks[3], (64,), 32 * 4 * 4),
        "c3w": unif(ks[4], (64, 64, 3, 3), 64 * 3 * 3),
        "c3b": unif(ks[5], (64,), 64 * 3 * 3),
        "f1w": unif(ks[6], (3136, 512), 3136),     # rows in PyTorch (C,H,W) order
        "f1b": unif(ks[7], (512,), 3136),
        "f2w": unif(ks[8], (512, out_dim), 512),
        "f2b": unif(ks[9], (512,) and (out_dim,), 512),
    }


def prepare_params(raw, n_quantiles, n_actions, wdtype=jnp.bfloat16):
    """One-time (hoisted) weight prep:
      * conv OIHW -> [kh*kw*C, OC] matmul form -> block-diag kron(I_g, W) with
        g = 128 // OC so conv outputs are full 128-lane rows; biases tiled to 128.
      * f1w rows permuted from PyTorch (C,H,W) flatten order to the NHWC (H,W,C)
        order this conv stack produces.
      * f2w / f2b zero-padded from QA to a multiple of 128 output columns.
      * matmul weights cast to bf16 (f32 accumulation in the kernels); biases f32.
    """
    def conv_pack(w, b):
        ocn, c, kh, kw = w.shape
        wm = jnp.transpose(w, (2, 3, 1, 0)).reshape(kh * kw * c, ocn)   # (kh,kw,C)->OC
        g = max(1, 128 // ocn)
        wbd = jnp.kron(jnp.eye(g, dtype=wm.dtype), wm).astype(wdtype)   # [g*K, g*OC]
        bt = jnp.tile(b, g).reshape(1, g * ocn).astype(jnp.float32)
        return wbd, bt

    c1w, c1b = conv_pack(raw["c1w"], raw["c1b"])
    c2w, c2b = conv_pack(raw["c2w"], raw["c2b"])
    c3w, c3b = conv_pack(raw["c3w"], raw["c3b"])

    # PyTorch flat index = c*49 + h*7 + w  ->  our flat index = h*448 + w*64 + c
    f1w = raw["f1w"].reshape(64, 7, 7, -1).transpose(1, 2, 0, 3).reshape(3136, -1)

    qa = n_quantiles * n_actions
    qa_pad = -(-qa // 128) * 128
    f2w = jnp.zeros((raw["f2w"].shape[0], qa_pad), jnp.float32).at[:, :qa].set(raw["f2w"])
    f2b = jnp.zeros((1, qa_pad), jnp.float32).at[0, :qa].set(raw["f2b"])

    return {
        "c1w": c1w, "c1b": c1b,
        "c2w": c2w, "c2b": c2b,
        "c3w": c3w, "c3b": c3b,
        "f1w": f1w.astype(wdtype), "f1b": raw["f1b"].reshape(1, -1).astype(jnp.float32),
        "f2w": f2w.astype(wdtype), "f2b": f2b,
    }


# ----------------------------------------------------------------------------
# Forward pass
# ----------------------------------------------------------------------------
@functools.partial(jax.jit, static_argnums=(2, 3))
def atari_qr_forward(params, state, n_quantiles, n_actions):
    """state: NCHW float32 [B, 4, 84, 84] -> quantile values [B, Q, A] (f32)."""
    x = jnp.transpose(state, (0, 2, 3, 1)).astype(jnp.bfloat16)       # NCHW->NHWC + bf16 once
    x = conv2d_relu_nhwc(x, params["c1w"], params["c1b"], 8, 8, 4)    # [B,20,20,32]
    x = conv2d_relu_nhwc(x, params["c2w"], params["c2b"], 4, 4, 2)    # [B, 9, 9,64]
    x = conv2d_relu_nhwc(x, params["c3w"], params["c3b"], 3, 3, 1)    # [B, 7, 7,64]
    B = state.shape[0]
    flat = x.reshape(B, -1)                     # [B,3136] (H,W,C order; f1w pre-permuted)
    q = fc_head(flat, params["f1w"], params["f1b"], params["f2w"], params["f2b"])
    qa = n_quantiles * n_actions
    return q[:, :qa].reshape(B, n_quantiles, n_actions)               # [B, Q, A]


if __name__ == "__main__":
    # TODO(synk): AtariDQNFeatures/QNetwork bodies were not shown; the canonical
    # Nature-DQN conv stack + Linear-ReLU-Linear head (implied by the 3136/512 dims)
    # is implemented here.  84x84 input is required by the hardcoded 3136 = 64*7*7.
    n_actions, n_quantiles, batch = 4, 8, 2

    key = jax.random.PRNGKey(0)
    pkey, xkey = jax.random.split(key)
    params = prepare_params(init_params(pkey, n_actions, n_quantiles),
                            n_quantiles, n_actions)                   # hoisted once
    state = jax.random.uniform(xkey, (batch, 4, 84, 84), jnp.float32)

    out = atari_qr_forward(params, state, n_quantiles, n_actions)
    out = jax.block_until_ready(out)
    assert out.shape == (batch, n_quantiles, n_actions), out.shape
    assert out.dtype == jnp.float32
    assert bool(jnp.all(jnp.isfinite(out)))
    print("KERNEL_OK")
</pallas_src>

<mosaic_0001>
module attributes {stable_mosaic.version = 11 : i64} {
  func.func @_matmul_bias_relu_kernel(%arg0: i32, %arg1: memref<200x1024xbf16, #tpu.memory_space<vmem>>, %arg2: memref<1024x128xbf16, #tpu.memory_space<vmem>>, %arg3: memref<1x128xf32, #tpu.memory_space<vmem>>, %arg4: memref<200x128xbf16, #tpu.memory_space<vmem>>) attributes {dimension_semantics = [#tpu.dimension_semantics<parallel>], iteration_bounds = array<i64: 1>, scalar_prefetch = 0 : i64, scratch_operands = 0 : i64, tpu.core_type = #tpu.core_type<tc>, window_params = [{transform_indices = @transform_0, window_bounds = array<i64: 200, 1024>}, {pipeline_mode = #tpu.pipeline_mode<synchronous>, transform_indices = @transform_1, window_bounds = array<i64: 1024, 128>}, {pipeline_mode = #tpu.pipeline_mode<synchronous>, transform_indices = @transform_2, window_bounds = array<i64: 1, 128>}, {transform_indices = @transform_3, window_bounds = array<i64: 200, 128>}]} {
    %c0 = arith.constant 0 : index
    %c0_0 = arith.constant 0 : index
    %0 = vector.load %arg1[%c0, %c0_0] : memref<200x1024xbf16, #tpu.memory_space<vmem>>, vector<200x1024xbf16>
    %c0_1 = arith.constant 0 : index
    %c0_2 = arith.constant 0 : index
    %1 = vector.load %arg2[%c0_1, %c0_2] : memref<1024x128xbf16, #tpu.memory_space<vmem>>, vector<1024x128xbf16>
    %cst = arith.constant dense<0.000000e+00> : vector<200x128xf32>
    %2 = tpu.matmul %0, %1, %cst {dimension_numbers = #tpu.dot_dimension_numbers<[1], [0], [0], [1], [0, 0, 1, 1], [], []>} : vector<200x1024xbf16>, vector<1024x128xbf16>, vector<200x128xf32> -> vector<200x128xf32>
    %c0_3 = arith.constant 0 : index
    %c0_4 = arith.constant 0 : index
    %3 = vector.load %arg3[%c0_3, %c0_4] : memref<1x128xf32, #tpu.memory_space<vmem>>, vector<1x128xf32>
    %4 = vector.broadcast %3 : vector<1x128xf32> to vector<200x128xf32>
    %5 = arith.addf %2, %4 : vector<200x128xf32>
    %cst_5 = arith.constant 0.000000e+00 : f32
    %6 = vector.broadcast %cst_5 : f32 to vector<200x128xf32>
    %7 = arith.maximumf %5, %6 : vector<200x128xf32>
    %8 = arith.truncf %7 : vector<200x128xf32> to vector<200x128xbf16>
    %c0_6 = arith.constant 0 : index
    %c0_7 = arith.constant 0 : index
    %9 = vector.load %arg4[%c0_6, %c0_7] : memref<200x128xbf16, #tpu.memory_space<vmem>>, vector<200x128xbf16>
    tpu.vector_store %arg4[%c0_6, %c0_7], %8 {strides = array<i32>} : memref<200x128xbf16, #tpu.memory_space<vmem>>, vector<200x128xbf16>,
    return
  }
  func.func @transform_0(%arg0: i32) -> (i32, i32) {
    %c0_i32 = arith.constant 0 : i32
    %c0_i32_0 = arith.constant 0 : i32
    return %arg0, %c0_i32 : i32, i32
  }
  func.func @transform_1(%arg0: i32) -> (i32, i32) {
    %c0_i32 = arith.constant 0 : i32
    %c0_i32_0 = arith.constant 0 : i32
    %c0_i32_1 = arith.constant 0 : i32
    return %c0_i32, %c0_i32_0 : i32, i32
  }
  func.func @transform_2(%arg0: i32) -> (i32, i32) {
    %c0_i32 = arith.constant 0 : i32
    %c0_i32_0 = arith.constant 0 : i32
    %c0_i32_1 = arith.constant 0 : i32
    return %c0_i32, %c0_i32_0 : i32, i32
  }
  func.func @transform_3(%arg0: i32) -> (i32, i32) {
    %c0_i32 = arith.constant 0 : i32
    %c0_i32_0 = arith.constant 0 : i32
    return %arg0, %c0_i32 : i32, i32
  }
}

module attributes {stable_mosaic.version = 11 : i64} {
  func.func @_matmul_bias_relu_kernel(%arg0: i32, %arg1: memref<88x1024xbf16, #tpu.memory_space<vmem>>, %arg2: memref<1024x128xbf16, #tpu.memory_space<vmem>>, %arg3: memref<1x128xf32, #tpu.memory_space<vmem>>, %arg4: memref<88x128xbf16, #tpu.memory_space<vmem>>) attributes {dimension_semantics = [#tpu.dimension_semantics<parallel>], iteration_bounds = array<i64: 1>, scalar_prefetch = 0 : i64, scratch_operands = 0 : i64, tpu.core_type = #tpu.core_type<tc>, window_params = [{transform_indices = @transform_0, window_bounds = array<i64: 88, 1024>}, {pipeline_mode = #tpu.pipeline_mode<synchronous>, transform_indices = @transform_1, window_bounds = array<i64: 1024, 128>}, {pipeline_mode = #tpu.pipeline_mode<synchronous>, transform_indices = @transform_2, window_bounds = array<i64: 1, 128>}, {transform_indices = @transform_3, window_bounds = array<i64: 88, 128>}]} {
    %c0 = arith.constant 0 : index
    %c0_0 = arith.constant 0 : index
    %0 = vector.load %arg1[%c0, %c0_0] : memref<88x1024xbf16, #tpu.memory_space<vmem>>, vector<88x1024xbf16>
    %c0_1 = arith.constant 0 : index
    %c0_2 = arith.constant 0 : index
    %1 = vector.load %arg2[%c0_1, %c0_2] : memref<1024x128xbf16, #tpu.memory_space<vmem>>, vector<1024x128xbf16>
    %cst = arith.constant dense<0.000000e+00> : vector<88x128xf32>
    %2 = tpu.matmul %0, %1, %cst {dimension_numbers = #tpu.dot_dimension_numbers<[1], [0], [0], [1], [0, 0, 1, 1], [], []>} : vector<88x1024xbf16>, vector<1024x128xbf16>, vector<88x128xf32> -> vector<88x128xf32>
    %c0_3 = arith.constant 0 : index
    %c0_4 = arith.constant 0 : index
    %3 = vector.load %arg3[%c0_3, %c0_4] : memref<1x128xf32, #tpu.memory_space<vmem>>, vector<1x128xf32>
    %4 = vector.broadcast %3 : vector<1x128xf32> to vector<88x128xf32>
    %5 = arith.addf %2, %4 : vector<88x128xf32>
    %cst_5 = arith.constant 0.000000e+00 : f32
    %6 = vector.broadcast %cst_5 : f32 to vector<88x128xf32>
    %7 = arith.maximumf %5, %6 : vector<88x128xf32>
    %8 = arith.truncf %7 : vector<88x128xf32> to vector<88x128xbf16>
    %c0_6 = arith.constant 0 : index
    %c0_7 = arith.constant 0 : index
    %9 = vector.load %arg4[%c0_6, %c0_7] : memref<88x128xbf16, #tpu.memory_space<vmem>>, vector<88x128xbf16>
    tpu.vector_store %arg4[%c0_6, %c0_7], %8 {strides = array<i32>} : memref<88x128xbf16, #tpu.memory_space<vmem>>, vector<88x128xbf16>,
    return
  }
  func.func @transform_0(%arg0: i32) -> (i32, i32) {
    %c0_i32 = arith.constant 0 : i32
    %c0_i32_0 = arith.constant 0 : i32
    return %arg0, %c0_i32 : i32, i32
  }
  func.func @transform_1(%arg0: i32) -> (i32, i32) {
    %c0_i32 = arith.constant 0 : i32
    %c0_i32_0 = arith.constant 0 : i32
    %c0_i32_1 = arith.constant 0 : i32
    return %c0_i32, %c0_i32_0 : i32, i32
  }
  func.func @transform_2(%arg0: i32) -> (i32, i32) {
    %c0_i32 = arith.constant 0 : i32
    %c0_i32_0 = arith.constant 0 : i32
    %c0_i32_1 = arith.constant 0 : i32
    return %c0_i32, %c0_i32_0 : i32, i32
  }
  func.func @transform_3(%arg0: i32) -> (i32, i32) {
    %c0_i32 = arith.constant 0 : i32
    %c0_i32_0 = arith.constant 0 : i32
    return %arg0, %c0_i32 : i32, i32
  }
}

module attributes {stable_mosaic.version = 11 : i64} {
  func.func @_matmul_bias_relu_kernel(%arg0: i32, %arg1: memref<56x1152xbf16, #tpu.memory_space<vmem>>, %arg2: memref<1152x128xbf16, #tpu.memory_space<vmem>>, %arg3: memref<1x128xf32, #tpu.memory_space<vmem>>, %arg4: memref<56x128xbf16, #tpu.memory_space<vmem>>) attributes {dimension_semantics = [#tpu.dimension_semantics<parallel>], iteration_bounds = array<i64: 1>, scalar_prefetch = 0 : i64, scratch_operands = 0 : i64, tpu.core_type = #tpu.core_type<tc>, window_params = [{transform_indices = @transform_0, window_bounds = array<i64: 56, 1152>}, {pipeline_mode = #tpu.pipeline_mode<synchronous>, transform_indices = @transform_1, window_bounds = array<i64: 1152, 128>}, {pipeline_mode = #tpu.pipeline_mode<synchronous>, transform_indices = @transform_2, window_bounds = array<i64: 1, 128>}, {transform_indices = @transform_3, window_bounds = array<i64: 56, 128>}]} {
    %c0 = arith.constant 0 : index
    %c0_0 = arith.constant 0 : index
    %0 = vector.load %arg1[%c0, %c0_0] : memref<56x1152xbf16, #tpu.memory_space<vmem>>, vector<56x1152xbf16>
    %c0_1 = arith.constant 0 : index
    %c0_2 = arith.constant 0 : index
    %1 = vector.load %arg2[%c0_1, %c0_2] : memref<1152x128xbf16, #tpu.memory_space<vmem>>, vector<1152x128xbf16>
    %cst = arith.constant dense<0.000000e+00> : vector<56x128xf32>
    %2 = tpu.matmul %0, %1, %cst {dimension_numbers = #tpu.dot_dimension_numbers<[1], [0], [0], [1], [0, 0, 1, 1], [], []>} : vector<56x1152xbf16>, vector<1152x128xbf16>, vector<56x128xf32> -> vector<56x128xf32>
    %c0_3 = arith.constant 0 : index
    %c0_4 = arith.constant 0 : index
    %3 = vector.load %arg3[%c0_3, %c0_4] : memref<1x128xf32, #tpu.memory_space<vmem>>, vector<1x128xf32>
    %4 = vector.broadcast %3 : vector<1x128xf32> to vector<56x128xf32>
    %5 = arith.addf %2, %4 : vector<56x128xf32>
    %cst_5 = arith.constant 0.000000e+00 : f32
    %6 = vector.broadcast %cst_5 : f32 to vector<56x128xf32>
    %7 = arith.maximumf %5, %6 : vector<56x128xf32>
    %8 = arith.truncf %7 : vector<56x128xf32> to vector<56x128xbf16>
    %c0_6 = arith.constant 0 : index
    %c0_7 = arith.constant 0 : index
    %9 = vector.load %arg4[%c0_6, %c0_7] : memref<56x128xbf16, #tpu.memory_space<vmem>>, vector<56x128xbf16>
    tpu.vector_store %arg4[%c0_6, %c0_7], %8 {strides = array<i32>} : memref<56x128xbf16, #tpu.memory_space<vmem>>, vector<56x128xbf16>,
    return
  }
  func.func @transform_0(%arg0: i32) -> (i32, i32) {
    %c0_i32 = arith.constant 0 : i32
    %c0_i32_0 = arith.constant 0 : i32
    return %arg0, %c0_i32 : i32, i32
  }
  func.func @transform_1(%arg0: i32) -> (i32, i32) {
    %c0_i32 = arith.constant 0 : i32
    %c0_i32_0 = arith.constant 0 : i32
    %c0_i32_1 = arith.constant 0 : i32
    return %c0_i32, %c0_i32_0 : i32, i32
  }
  func.func @transform_2(%arg0: i32) -> (i32, i32) {
    %c0_i32 = arith.constant 0 : i32
    %c0_i32_0 = arith.constant 0 : i32
    %c0_i32_1 = arith.constant 0 : i32
    return %c0_i32, %c0_i32_0 : i32, i32
  }
  func.func @transform_3(%arg0: i32) -> (i32, i32) {
    %c0_i32 = arith.constant 0 : i32
    %c0_i32_0 = arith.constant 0 : i32
    return %arg0, %c0_i32 : i32, i32
  }
}

module attributes {stable_mosaic.version = 11 : i64} {
  func.func @_fc_head_kernel(%arg0: i32, %arg1: i32, %arg2: memref<2x3136xbf16, #tpu.memory_space<vmem>>, %arg3: memref<3136x256xbf16, #tpu.memory_space<vmem>>, %arg4: memref<1x256xf32, #tpu.memory_space<vmem>>, %arg5: memref<256x128xbf16, #tpu.memory_space<vmem>>, %arg6: memref<1x128xf32, #tpu.memory_space<vmem>>, %arg7: memref<2x128xf32, #tpu.memory_space<vmem>>) attributes {dimension_semantics = [#tpu.dimension_semantics<parallel>, #tpu.dimension_semantics<arbitrary>], iteration_bounds = array<i64: 1, 2>, scalar_prefetch = 0 : i64, scratch_operands = 0 : i64, tpu.core_type = #tpu.core_type<tc>, window_params = [{transform_indices = @transform_0, window_bounds = array<i64: 2, 3136>}, {transform_indices = @transform_1, window_bounds = array<i64: 3136, 256>}, {transform_indices = @transform_2, window_bounds = array<i64: 1, 256>}, {transform_indices = @transform_3, window_bounds = array<i64: 256, 128>}, {pipeline_mode = #tpu.pipeline_mode<synchronous>, transform_indices = @transform_4, window_bounds = array<i64: 1, 128>}, {transform_indices = @transform_5, window_bounds = array<i64: 2, 128>}]} {
    %c0_i32 = arith.constant 0 : i32
    %0 = arith.cmpi eq, %arg1, %c0_i32 : i32
    %1 = arith.extui %0 : i1 to i32
    %c0_i32_0 = arith.constant 0 : i32
    %2 = arith.cmpi ne, %1, %c0_i32_0 : i32
    scf.if %2 {
      %c0_14 = arith.constant 0 : index
      %c0_15 = arith.constant 0 : index
      %17 = vector.load %arg6[%c0_14, %c0_15] : memref<1x128xf32, #tpu.memory_space<vmem>>, vector<1x128xf32>
      %18 = vector.shape_cast %17 : vector<1x128xf32> to vector<1x128xf32>
      %19 = vector.broadcast %18 : vector<1x128xf32> to vector<2x128xf32>
      %c0_16 = arith.constant 0 : index
      %c0_17 = arith.constant 0 : index
      %20 = vector.load %arg7[%c0_16, %c0_17] : memref<2x128xf32, #tpu.memory_space<vmem>>, vector<2x128xf32>
      tpu.vector_store %arg7[%c0_16, %c0_17], %19 {strides = array<i32>} : memref<2x128xf32, #tpu.memory_space<vmem>>, vector<2x128xf32>,
    } else {
    }
    %c0 = arith.constant 0 : index
    %c0_1 = arith.constant 0 : index
    %3 = vector.load %arg2[%c0, %c0_1] : memref<2x3136xbf16, #tpu.memory_space<vmem>>, vector<2x3136xbf16>
    %c0_2 = arith.constant 0 : index
    %c0_3 = arith.constant 0 : index
    %4 = vector.load %arg3[%c0_2, %c0_3] : memref<3136x256xbf16, #tpu.memory_space<vmem>>, vector<3136x256xbf16>
    %cst = arith.constant dense<0.000000e+00> : vector<2x256xf32>
    %5 = tpu.matmul %3, %4, %cst {dimension_numbers = #tpu.dot_dimension_numbers<[1], [0], [0], [1], [0, 0, 1, 1], [], []>} : vector<2x3136xbf16>, vector<3136x256xbf16>, vector<2x256xf32> -> vector<2x256xf32>
    %c0_4 = arith.constant 0 : index
    %c0_5 = arith.constant 0 : index
    %6 = vector.load %arg4[%c0_4, %c0_5] : memref<1x256xf32, #tpu.memory_space<vmem>>, vector<1x256xf32>
    %7 = vector.broadcast %6 : vector<1x256xf32> to vector<2x256xf32>
    %8 = arith.addf %5, %7 : vector<2x256xf32>
    %cst_6 = arith.constant 0.000000e+00 : f32
    %9 = vector.broadcast %cst_6 : f32 to vector<2x256xf32>
    %10 = arith.maximumf %8, %9 : vector<2x256xf32>
    %c0_7 = arith.constant 0 : index
    %c0_8 = arith.constant 0 : index
    %11 = vector.load %arg7[%c0_7, %c0_8] : memref<2x128xf32, #tpu.memory_space<vmem>>, vector<2x128xf32>
    %12 = arith.truncf %10 : vector<2x256xf32> to vector<2x256xbf16>
    %c0_9 = arith.constant 0 : index
    %c0_10 = arith.constant 0 : index
    %13 = vector.load %arg5[%c0_9, %c0_10] : memref<256x128xbf16, #tpu.memory_space<vmem>>, vector<256x128xbf16>
    %cst_11 = arith.constant dense<0.000000e+00> : vector<2x128xf32>
    %14 = tpu.matmul %12, %13, %cst_11 {dimension_numbers = #tpu.dot_dimension_numbers<[1], [0], [0], [1], [0, 0, 1, 1], [], []>} : vector<2x256xbf16>, vector<256x128xbf16>, vector<2x128xf32> -> vector<2x128xf32>
    %15 = arith.addf %11, %14 : vector<2x128xf32>
    %c0_12 = arith.constant 0 : index
    %c0_13 = arith.constant 0 : index
    %16 = vector.load %arg7[%c0_12, %c0_13] : memref<2x128xf32, #tpu.memory_space<vmem>>, vector<2x128xf32>
    tpu.vector_store %arg7[%c0_12, %c0_13], %15 {strides = array<i32>} : memref<2x128xf32, #tpu.memory_space<vmem>>, vector<2x128xf32>,
    return
  }
  func.func @transform_0(%arg0: i32, %arg1: i32) -> (i32, i32) {
    %c0_i32 = arith.constant 0 : i32
    %c0_i32_0 = arith.constant 0 : i32
    return %arg0, %c0_i32 : i32, i32
  }
  func.func @transform_1(%arg0: i32, %arg1: i32) -> (i32, i32) {
    %c0_i32 = arith.constant 0 : i32
    %c0_i32_0 = arith.constant 0 : i32
    return %c0_i32, %arg1 : i32, i32
  }
  func.func @transform_2(%arg0: i32, %arg1: i32) -> (i32, i32) {
    %c0_i32 = arith.constant 0 : i32
    %c0_i32_0 = arith.constant 0 : i32
    return %c0_i32, %arg1 : i32, i32
  }
  func.func @transform_3(%arg0: i32, %arg1: i32) -> (i32, i32) {
    %c0_i32 = arith.constant 0 : i32
    %c0_i32_0 = arith.constant 0 : i32
    return %arg1, %c0_i32 : i32, i32
  }
  func.func @transform_4(%arg0: i32, %arg1: i32) -> (i32, i32) {
    %c0_i32 = arith.constant 0 : i32
    %c0_i32_0 = arith.constant 0 : i32
    %c0_i32_1 = arith.constant 0 : i32
    return %c0_i32, %c0_i32_0 : i32, i32
  }
  func.func @transform_5(%arg0: i32, %arg1: i32) -> (i32, i32) {
    %c0_i32 = arith.constant 0 : i32
    %c0_i32_0 = arith.constant 0 : i32
    return %arg0, %c0_i32 : i32, i32
  }
}

</mosaic_0001>

<llo_original>
// kernel: atari_qr_forward.4
$region0: #{atari_qr_forward.4}
  #allocation0 [shape = 'u32[]', space=smem, size = 0x4, offset = 0x4, fixed_abs, tag = 'smem constant byte address 0x4 - core index']
  #allocation1 [shape = 'u32[144,128]{1,0:T(1,128)}', space=vmem, size = 0x12000, scoped, tag = 'internal scratch']
  %s0 = inlined_call_operand.vmem [shape: bf16[200,1024], index: 0, kind: input, shape index: {}]
  %s1 = inlined_call_operand.vmem [shape: bf16[1024,128], index: 1, kind: input, shape index: {}]
  %s2 = inlined_call_operand.vmem [shape: f32[1,128], index: 2, kind: input, shape index: {}]
  %s3 = inlined_call_operand.vmem [shape: bf16[200,128], index: 3, kind: output, shape index: {}]
  %s4 = sld [smem:[#allocation0]]
  $region22: #{atari_qr_forward.4} parent=0
    _
  %s6 = ssub.s32 1, %s4
  %s7 = scalar_select 0, %s6, %s4
  // Predicated region
  $region2: #{atari_qr_forward.4} parent=0 // pred_check
    _
  $region3: #{atari_qr_forward.4} parent=0 // pred_check_branch
    %9 = sbr.rel (0) target = $region5
  $region4: #{atari_qr_forward.4} parent=0 // pred_region
    _
  $region5: #{atari_qr_forward.4} parent=0 // pred_fallthru
    _
  // Predicated region
  $region6: #{atari_qr_forward.4} parent=0 // pred_check
    _
  $region7: #{atari_qr_forward.4} parent=0 // pred_check_branch
    %11 = sbr.rel (0) target = $region9
  $region8: #{atari_qr_forward.4} parent=0 // pred_region
    _
  $region9: #{atari_qr_forward.4} parent=0 // pred_fallthru
    _
  // Predicated region
  $region10: #{atari_qr_forward.4} parent=0 // pred_check
    _
  $region11: #{atari_qr_forward.4} parent=0 // pred_check_branch
    %13 = sbr.rel (0) target = $region13
  $region12: #{atari_qr_forward.4} parent=0 // pred_region
    _
  $region13: #{atari_qr_forward.4} parent=0 // pred_fallthru
    _
  %v15 = vld [vmem:[%s0] sm:$0xff]
  %v16 = vld [vmem:[%s0 + $0x8] sm:$0xff]
  %v17 = vld [vmem:[%s0 + $0x10] sm:$0xff]
  %v18 = vld [vmem:[%s0 + $0x18] sm:$0xff]
  %v19 = vld [vmem:[%s0 + $0x20] sm:$0xff]
  %v20 = vld [vmem:[%s0 + $0x28] sm:$0xff]
  %v21 = vld [vmem:[%s0 + $0x30] sm:$0xff]
  %v22 = vld [vmem:[%s0 + $0x38] sm:$0xff]
  %v23 = vld [vmem:[%s0 + $0x40] sm:$0xff]
  %v24 = vld [vmem:[%s0 + $0x48] sm:$0xff]
  %v25 = vld [vmem:[%s0 + $0x50] sm:$0xff]
  %v26 = vld [vmem:[%s0 + $0x58] sm:$0xff]
  %v27 = vld [vmem:[%s0 + $0x60] sm:$0xff]
  %v28 = vld [vmem:[%s0 + $0x68] sm:$0xff]
  %v29 = vld [vmem:[%s0 + $0x70] sm:$0xff]
  %v30 = vld [vmem:[%s0 + $0x78] sm:$0xff]
  %v31 = vld [vmem:[%s0 + $0x80] sm:$0xff]
  %v32 = vld [vmem:[%s0 + $0x88] sm:$0xff]
  %v33 = vld [vmem:[%s0 + $0x90] sm:$0xff]
  %v34 = vld [vmem:[%s0 + $0x98] sm:$0xff]
  %v35 = vld [vmem:[%s0 + $0xa0] sm:$0xff]
  %v36 = vld [vmem:[%s0 + $0xa8] sm:$0xff]
  %v37 = vld [vmem:[%s0 + $0xb0] sm:$0xff]
  %v38 = vld [vmem:[%s0 + $0xb8] sm:$0xff]
  %v39 = vld [vmem:[%s0 + $0xc0] sm:$0xff]
  %v40 = vld [vmem:[%s0 + $0xc8] sm:$0xff]
  %v41 = vld [vmem:[%s0 + $0xd0] sm:$0xff]
  %v42 = vld [vmem:[%s0 + $0xd8] sm:$0xff]
  %v43 = vld [vmem:[%s0 + $0xe0] sm:$0xff]
  %v44 = vld [vmem:[%s0 + $0xe8] sm:$0xff]
  %v45 = vld [vmem:[%s0 + $0xf0] sm:$0xff]
  %v46 = vld [vmem:[%s0 + $0xf8] sm:$0xff]
  %v47 = vld [vmem:[%s0 + $0x100] sm:$0xff]
  %v48 = vld [vmem:[%s0 + $0x108] sm:$0xff]
  %v49 = vld [vmem:[%s0 + $0x110] sm:$0xff]
  %v50 = vld [vmem:[%s0 + $0x118] sm:$0xff]
  %v51 = vld [vmem:[%s0 + $0x120] sm:$0xff]
  %v52 = vld [vmem:[%s0 + $0x128] sm:$0xff]
  %v53 = vld [vmem:[%s0 + $0x130] sm:$0xff]
  %v54 = vld [vmem:[%s0 + $0x138] sm:$0xff]
  %v55 = vld [vmem:[%s0 + $0x140] sm:$0xff]
  %v56 = vld [vmem:[%s0 + $0x148] sm:$0xff]
  %v57 = vld [vmem:[%s0 + $0x150] sm:$0xff]
  %v58 = vld [vmem:[%s0 + $0x158] sm:$0xff]
  %v59 = vld [vmem:[%s0 + $0x160] sm:$0xff]
  %v60 = vld [vmem:[%s0 + $0x168] sm:$0xff]
  %v61 = vld [vmem:[%s0 + $0x170] sm:$0xff]
  %v62 = vld [vmem:[%s0 + $0x178] sm:$0xff]
  %v63 = vld [vmem:[%s0 + $0x180] sm:$0xff]
  %v64 = vld [vmem:[%s0 + $0x188] sm:$0xff]
  %v65 = vld [vmem:[%s0 + $0x190] sm:$0xff]
  %v66 = vld [vmem:[%s0 + $0x198] sm:$0xff]
  %v67 = vld [vmem:[%s0 + $0x1a0] sm:$0xff]
  %v68 = vld [vmem:[%s0 + $0x1a8] sm:$0xff]
  %v69 = vld [vmem:[%s0 + $0x1b0] sm:$0xff]
  %v70 = vld [vmem:[%s0 + $0x1b8] sm:$0xff]
  %v71 = vld [vmem:[%s0 + $0x1c0] sm:$0xff]
  %v72 = vld [vmem:[%s0 + $0x1c8] sm:$0xff]
  %v73 = vld [vmem:[%s0 + $0x1d0] sm:$0xff]
  %v74 = vld [vmem:[%s0 + $0x1d8] sm:$0xff]
  %v75 = vld [vmem:[%s0 + $0x1e0] sm:$0xff]
  %v76 = vld [vmem:[%s0 + $0x1e8] sm:$0xff]
  %v77 = vld [vmem:[%s0 + $0x1f0] sm:$0xff]
  %v78 = vld [vmem:[%s0 + $0x1f8] sm:$0xff]
  %v79 = vld [vmem:[%s0 + $0x200] sm:$0xff]
  %v80 = vld [vmem:[%s0 + $0x208] sm:$0xff]
  %v81 = vld [vmem:[%s0 + $0x210] sm:$0xff]
  %v82 = vld [vmem:[%s0 + $0x218] sm:$0xff]
  %v83 = vld [vmem:[%s0 + $0x220] sm:$0xff]
  %v84 = vld [vmem:[%s0 + $0x228] sm:$0xff]
  %v85 = vld [vmem:[%s0 + $0x230] sm:$0xff]
  %v86 = vld [vmem:[%s0 + $0x238] sm:$0xff]
  %v87 = vld [vmem:[%s0 + $0x240] sm:$0xff]
  %v88 = vld [vmem:[%s0 + $0x248] sm:$0xff]
  %v89 = vld [vmem:[%s0 + $0x250] sm:$0xff]
  %v90 = vld [vmem:[%s0 + $0x258] sm:$0xff]
  %v91 = vld [vmem:[%s0 + $0x260] sm:$0xff]
  %v92 = vld [vmem:[%s0 + $0x268] sm:$0xff]
  %v93 = vld [vmem:[%s0 + $0x270] sm:$0xff]
  %v94 = vld [vmem:[%s0 + $0x278] sm:$0xff]
  %v95 = vld [vmem:[%s0 + $0x280] sm:$0xff]
  %v96 = vld [vmem:[%s0 + $0x288] sm:$0xff]
  %v97 = vld [vmem:[%s0 + $0x290] sm:$0xff]
  %v98 = vld [vmem:[%s0 + $0x298] sm:$0xff]
  %v99 = vld [vmem:[%s0 + $0x2a0] sm:$0xff]
  %v100 = vld [vmem:[%s0 + $0x2a8] sm:$0xff]
  %v101 = vld [vmem:[%s0 + $0x2b0] sm:$0xff]
  %v102 = vld [vmem:[%s0 + $0x2b8] sm:$0xff]
  %v103 = vld [vmem:[%s0 + $0x2c0] sm:$0xff]
  %v104 = vld [vmem:[%s0 + $0x2c8] sm:$0xff]
  %v105 = vld [vmem:[%s0 + $0x2d0] sm:$0xff]
  %v106 = vld [vmem:[%s0 + $0x2d8] sm:$0xff]
  %v107 = vld [vmem:[%s0 + $0x2e0] sm:$0xff]
  %v108 = vld [vmem:[%s0 + $0x2e8] sm:$0xff]
  %v109 = vld [vmem:[%s0 + $0x2f0] sm:$0xff]
  %v110 = vld [vmem:[%s0 + $0x2f8] sm:$0xff]
  %v111 = vld [vmem:[%s0 + $0x300] sm:$0xff]
  %v112 = vld [vmem:[%s0 + $0x308] sm:$0xff]
  %v113 = vld [vmem:[%s0 + $0x310] sm:$0xff]
  %v114 = vld [vmem:[%s0 + $0x318] sm:$0xff]
  %v115 = vld [vmem:[%s1] sm:$0xf]
  %v116 = vld [vmem:[%s1 + $0x4] sm:$0xf]
  %v117 = vld [vmem:[%s1 + $0x8] sm:$0xf]
  %v118 = vld [vmem:[%s1 + $0xc] sm:$0xf]
  %v119 = vld [vmem:[%s1 + $0x10] sm:$0xf]
  %v120 = vld [vmem:[%s1 + $0x14] sm:$0xf]
  %v121 = vld [vmem:[%s1 + $0x18] sm:$0xf]
  %v122 = vld [vmem:[%s1 + $0x1c] sm:$0xf]
  %v123 = vld [vmem:[%s1 + $0x20] sm:$0xf]
  %v124 = vld [vmem:[%s1 + $0x24] sm:$0xf]
  %v125 = vld [vmem:[%s1 + $0x28] sm:$0xf]
  %v126 = vld [vmem:[%s1 + $0x2c] sm:$0xf]
  %v127 = vld [vmem:[%s1 + $0x30] sm:$0xf]
  %v128 = vld [vmem:[%s1 + $0x34] sm:$0xf]
  %v129 = vld [vmem:[%s1 + $0x38] sm:$0xf]
  %v130 = vld [vmem:[%s1 + $0x3c] sm:$0xf]
  %v131 = vld [vmem:[%s1 + $0x40] sm:$0xf]
  %v132 = vld [vmem:[%s1 + $0x44] sm:$0xf]
  %v133 = vld [vmem:[%s1 + $0x48] sm:$0xf]
  %v134 = vld [vmem:[%s1 + $0x4c] sm:$0xf]
  %v135 = vld [vmem:[%s1 + $0x50] sm:$0xf]
  %v136 = vld [vmem:[%s1 + $0x54] sm:$0xf]
  %v137 = vld [vmem:[%s1 + $0x58] sm:$0xf]
  %v138 = vld [vmem:[%s1 + $0x5c] sm:$0xf]
  %v139 = vld [vmem:[%s1 + $0x60] sm:$0xf]
  %v140 = vld [vmem:[%s1 + $0x64] sm:$0xf]
  %v141 = vld [vmem:[%s1 + $0x68] sm:$0xf]
  %v142 = vld [vmem:[%s1 + $0x6c] sm:$0xf]
  %v143 = vld [vmem:[%s1 + $0x70] sm:$0xf]
  %v144 = vld [vmem:[%s1 + $0x74] sm:$0xf]
  %v145 = vld [vmem:[%s1 + $0x78] sm:$0xf]
  %v146 = vld [vmem:[%s1 + $0x7c] sm:$0xf]
  %v147 = vld [vmem:[%s1 + $0x80] sm:$0xf]
  %v148 = vld [vmem:[%s1 + $0x84] sm:$0xf]
  %v149 = vld [vmem:[%s1 + $0x88] sm:$0xf]
  %v150 = vld [vmem:[%s1 + $0x8c] sm:$0xf]
  %v151 = vld [vmem:[%s1 + $0x90] sm:$0xf]
  %v152 = vld [vmem:[%s1 + $0x94] sm:$0xf]
  %v153 = vld [vmem:[%s1 + $0x98] sm:$0xf]
  %v154 = vld [vmem:[%s1 + $0x9c] sm:$0xf]
  %v155 = vld [vmem:[%s1 + $0xa0] sm:$0xf]
  %v156 = vld [vmem:[%s1 + $0xa4] sm:$0xf]
  %v157 = vld [vmem:[%s1 + $0xa8] sm:$0xf]
  %v158 = vld [vmem:[%s1 + $0xac] sm:$0xf]
  %v159 = vld [vmem:[%s1 + $0xb0] sm:$0xf]
  %v160 = vld [vmem:[%s1 + $0xb4] sm:$0xf]
  %v161 = vld [vmem:[%s1 + $0xb8] sm:$0xf]
  %v162 = vld [vmem:[%s1 + $0xbc] sm:$0xf]
  %v163 = vld [vmem:[%s1 + $0xc0] sm:$0xf]
  %v164 = vld [vmem:[%s1 + $0xc4] sm:$0xf]
  %v165 = vld [vmem:[%s1 + $0xc8] sm:$0xf]
  %v166 = vld [vmem:[%s1 + $0xcc] sm:$0xf]
  %v167 = vld [vmem:[%s1 + $0xd0] sm:$0xf]
  %v168 = vld [vmem:[%s1 + $0xd4] sm:$0xf]
  %v169 = vld [vmem:[%s1 + $0xd8] sm:$0xf]
  %v170 = vld [vmem:[%s1 + $0xdc] sm:$0xf]
  %v171 = vld [vmem:[%s1 + $0xe0] sm:$0xf]
  %v172 = vld [vmem:[%s1 + $0xe4] sm:$0xf]
  %v173 = vld [vmem:[%s1 + $0xe8] sm:$0xf]
  %v174 = vld [vmem:[%s1 + $0xec] sm:$0xf]
  %v175 = vld [vmem:[%s1 + $0xf0] sm:$0xf]
  %v176 = vld [vmem:[%s1 + $0xf4] sm:$0xf]
  %v177 = vld [vmem:[%s1 + $0xf8] sm:$0xf]
  %v178 = vld [vmem:[%s1 + $0xfc] sm:$0xf]
  %v179 = vld [vmem:[%s1 + $0x100] sm:$0xf]
  %v180 = vld [vmem:[%s1 + $0x104] sm:$0xf]
  %v181 = vld [vmem:[%s1 + $0x108] sm:$0xf]
  %v182 = vld [vmem:[%s1 + $0x10c] sm:$0xf]
  %v183 = vld [vmem:[%s1 + $0x110] sm:$0xf]
  %v184 = vld [vmem:[%s1 + $0x114] sm:$0xf]
  %v185 = vld [vmem:[%s1 + $0x118] sm:$0xf]
  %v186 = vld [vmem:[%s1 + $0x11c] sm:$0xf]
  %v187 = vld [vmem:[%s1 + $0x120] sm:$0xf]
  %v188 = vld [vmem:[%s1 + $0x124] sm:$0xf]
  %v189 = vld [vmem:[%s1 + $0x128] sm:$0xf]
  %v190 = vld [vmem:[%s1 + $0x12c] sm:$0xf]
  %v191 = vld [vmem:[%s1 + $0x130] sm:$0xf]
  %v192 = vld [vmem:[%s1 + $0x134] sm:$0xf]
  %v193 = vld [vmem:[%s1 + $0x138] sm:$0xf]
  %v194 = vld [vmem:[%s1 + $0x13c] sm:$0xf]
  %v195 = vld [vmem:[%s1 + $0x140] sm:$0xf]
  %v196 = vld [vmem:[%s1 + $0x144] sm:$0xf]
  %v197 = vld [vmem:[%s1 + $0x148] sm:$0xf]
  %v198 = vld [vmem:[%s1 + $0x14c] sm:$0xf]
  %v199 = vld [vmem:[%s1 + $0x150] sm:$0xf]
  %v200 = vld [vmem:[%s1 + $0x154] sm:$0xf]
  %v201 = vld [vmem:[%s1 + $0x158] sm:$0xf]
  %v202 = vld [vmem:[%s1 + $0x15c] sm:$0xf]
  %v203 = vld [vmem:[%s1 + $0x160] sm:$0xf]
  %v204 = vld [vmem:[%s1 + $0x164] sm:$0xf]
  %v205 = vld [vmem:[%s1 + $0x168] sm:$0xf]
  %v206 = vld [vmem:[%s1 + $0x16c] sm:$0xf]
  %v207 = vld [vmem:[%s1 + $0x170] sm:$0xf]
  %v208 = vld [vmem:[%s1 + $0x174] sm:$0xf]
  %v209 = vld [vmem:[%s1 + $0x178] sm:$0xf]
  %v210 = vld [vmem:[%s1 + $0x17c] sm:$0xf]
  %v211 = vld [vmem:[%s1 + $0x180] sm:$0xf]
  %v212 = vld [vmem:[%s1 + $0x184] sm:$0xf]
  %v213 = vld [vmem:[%s1 + $0x188] sm:$0xf]
  %v214 = vld [vmem:[%s1 + $0x18c] sm:$0xf]
  %v215 = vld [vmem:[%s1 + $0x190] sm:$0xf]
  %v216 = vld [vmem:[%s1 + $0x194] sm:$0xf]
  %v217 = vld [vmem:[%s1 + $0x198] sm:$0xf]
  %v218 = vld [vmem:[%s1 + $0x19c] sm:$0xf]
  %v219 = vld [vmem:[%s1 + $0x1a0] sm:$0xf]
  %v220 = vld [vmem:[%s1 + $0x1a4] sm:$0xf]
  %v221 = vld [vmem:[%s1 + $0x1a8] sm:$0xf]
  %v222 = vld [vmem:[%s1 + $0x1ac] sm:$0xf]
  %v223 = vld [vmem:[%s1 + $0x1b0] sm:$0xf]
  %v224 = vld [vmem:[%s1 + $0x1b4] sm:$0xf]
  %v225 = vld [vmem:[%s1 + $0x1b8] sm:$0xf]
  %v226 = vld [vmem:[%s1 + $0x1bc] sm:$0xf]
  %v227 = vld [vmem:[%s1 + $0x1c0] sm:$0xf]
  %v228 = vld [vmem:[%s1 + $0x1c4] sm:$0xf]
  %v229 = vld [vmem:[%s1 + $0x1c8] sm:$0xf]
  %v230 = vld [vmem:[%s1 + $0x1cc] sm:$0xf]
  %v231 = vld [vmem:[%s1 + $0x1d0] sm:$0xf]
  %v232 = vld [vmem:[%s1 + $0x1d4] sm:$0xf]
  %v233 = vld [vmem:[%s1 + $0x1d8] sm:$0xf]
  %v234 = vld [vmem:[%s1 + $0x1dc] sm:$0xf]
  %v235 = vld [vmem:[%s1 + $0x1e0] sm:$0xf]
  %v236 = vld [vmem:[%s1 + $0x1e4] sm:$0xf]
  %v237 = vld [vmem:[%s1 + $0x1e8] sm:$0xf]
  %v238 = vld [vmem:[%s1 + $0x1ec] sm:$0xf]
  %v239 = vld [vmem:[%s1 + $0x1f0] sm:$0xf]
  %v240 = vld [vmem:[%s1 + $0x1f4] sm:$0xf]
  %v241 = vld [vmem:[%s1 + $0x1f8] sm:$0xf]
  %v242 = vld [vmem:[%s1 + $0x1fc] sm:$0xf]
  %v243 = vld [vmem:[%s2] sm:$0x1]
  %v245 = vlaneseq
  %v246 = vshrl.u32 %v245, 7
  %v247 = vsub.s32 0, %v246
  %v248 = vrot.slane %v243, %v247
  %v350 = vunpack.c.l.b16 %v15
  %v351 = vunpack.c.h.b16 %v15
  %v352 = vunpack.c.l.b16 %v16
  %v353 = vunpack.c.h.b16 %v16
  %v354 = vunpack.c.l.b16 %v17
  %v355 = vunpack.c.h.b16 %v17
  %v356 = vunpack.c.l.b16 %v18
  %v357 = vunpack.c.h.b16 %v18
  %v358 = vunpack.c.l.b16 %v19
  %v359 = vunpack.c.h.b16 %v19
  %v360 = vunpack.c.l.b16 %v20
  %v361 = vunpack.c.h.b16 %v20
  %v362 = vunpack.c.l.b16 %v21
  %v363 = vunpack.c.h.b16 %v21
  %v364 = vunpack.c.l.b16 %v22
  %v365 = vunpack.c.h.b16 %v22
  %v366 = vunpack.c.l.b16 %v23
  %v367 = vunpack.c.h.b16 %v23
  %v368 = vunpack.c.l.b16 %v24
  %v369 = vunpack.c.h.b16 %v24
  %v370 = vunpack.c.l.b16 %v25
  %v371 = vunpack.c.h.b16 %v25
  %v372 = vunpack.c.l.b16 %v26
  %v373 = vunpack.c.h.b16 %v26
  %v374 = vunpack.c.l.b16 %v27
  %v375 = vunpack.c.h.b16 %v27
  %v376 = vunpack.c.l.b16 %v28
  %v377 = vunpack.c.h.b16 %v28
  %v378 = vunpack.c.l.b16 %v29
  %v379 = vunpack.c.h.b16 %v29
  %v380 = vunpack.c.l.b16 %v30
  %v381 = vunpack.c.h.b16 %v30
  %v382 = vunpack.c.l.b16 %v31
  %v383 = vunpack.c.h.b16 %v31
  %v384 = vunpack.c.l.b16 %v32
  %v385 = vunpack.c.h.b16 %v32
  %v386 = vunpack.c.l.b16 %v33
  %v387 = vunpack.c.h.b16 %v33
  %v388 = vunpack.c.l.b16 %v34
  %v389 = vunpack.c.h.b16 %v34
  %v390 = vunpack.c.l.b16 %v35
  %v391 = vunpack.c.h.b16 %v35
  %v392 = vunpack.c.l.b16 %v36
  %v393 = vunpack.c.h.b16 %v36
  %v394 = vunpack.c.l.b16 %v37
  %v395 = vunpack.c.h.b16 %v37
  %v396 = vunpack.c.l.b16 %v38
  %v397 = vunpack.c.h.b16 %v38
  %v398 = vunpack.c.l.b16 %v39
  %v399 = vunpack.c.h.b16 %v39
  %v400 = vunpack.c.l.b16 %v40
  %v401 = vunpack.c.h.b16 %v40
  %v402 = vunpack.c.l.b16 %v41
  %v403 = vunpack.c.h.b16 %v41
  %v404 = vunpack.c.l.b16 %v42
  %v405 = vunpack.c.h.b16 %v42
  %v406 = vunpack.c.l.b16 %v43
  %v407 = vunpack.c.h.b16 %v43
  %v408 = vunpack.c.l.b16 %v44
  %v409 = vunpack.c.h.b16 %v44
  %v410 = vunpack.c.l.b16 %v45
  %v411 = vunpack.c.h.b16 %v45
  %v412 = vunpack.c.l.b16 %v46
  %v413 = vunpack.c.h.b16 %v46
  %v414 = vunpack.c.l.b16 %v47
  %v415 = vunpack.c.h.b16 %v47
  %v416 = vunpack.c.l.b16 %v48
  %v417 = vunpack.c.h.b16 %v48
  %v418 = vunpack.c.l.b16 %v49
  %v419 = vunpack.c.h.b16 %v49
  %v420 = vunpack.c.l.b16 %v50
  %v421 = vunpack.c.h.b16 %v50
  %v422 = vunpack.c.l.b16 %v51
  %v423 = vunpack.c.h.b16 %v51
  %v424 = vunpack.c.l.b16 %v52
  %v425 = vunpack.c.h.b16 %v52
  %v426 = vunpack.c.l.b16 %v53
  %v427 = vunpack.c.h.b16 %v53
  %v428 = vunpack.c.l.b16 %v54
  %v429 = vunpack.c.h.b16 %v54
  %v430 = vunpack.c.l.b16 %v55
  %v431 = vunpack.c.h.b16 %v55
  %v432 = vunpack.c.l.b16 %v56
  %v433 = vunpack.c.h.b16 %v56
  %v434 = vunpack.c.l.b16 %v57
  %v435 = vunpack.c.h.b16 %v57
  %v436 = vunpack.c.l.b16 %v58
  %v437 = vunpack.c.h.b16 %v58
  %v438 = vunpack.c.l.b16 %v59
  %v439 = vunpack.c.h.b16 %v59
  %v440 = vunpack.c.l.b16 %v60
  %v441 = vunpack.c.h.b16 %v60
  %v442 = vunpack.c.l.b16 %v61
  %v443 = vunpack.c.h.b16 %v61
  %v444 = vunpack.c.l.b16 %v62
  %v445 = vunpack.c.h.b16 %v62
  %v446 = vunpack.c.l.b16 %v63
  %v447 = vunpack.c.h.b16 %v63
  %v448 = vunpack.c.l.b16 %v64
  %v449 = vunpack.c.h.b16 %v64
  %v450 = vunpack.c.l.b16 %v65
  %v451 = vunpack.c.h.b16 %v65
  %v452 = vunpack.c.l.b16 %v66
  %v453 = vunpack.c.h.b16 %v66
  %v454 = vunpack.c.l.b16 %v67
  %v455 = vunpack.c.h.b16 %v67
  %v456 = vunpack.c.l.b16 %v68
  %v457 = vunpack.c.h.b16 %v68
  %v458 = vunpack.c.l.b16 %v69
  %v459 = vunpack.c.h.b16 %v69
  %v460 = vunpack.c.l.b16 %v70
  %v461 = vunpack.c.h.b16 %v70
  %v462 = vunpack.c.l.b16 %v71
  %v463 = vunpack.c.h.b16 %v71
  %v464 = vunpack.c.l.b16 %v72
  %v465 = vunpack.c.h.b16 %v72
  %v466 = vunpack.c.l.b16 %v73
  %v467 = vunpack.c.h.b16 %v73
  %v468 = vunpack.c.l.b16 %v74
  %v469 = vunpack.c.h.b16 %v74
  %v470 = vunpack.c.l.b16 %v75
  %v471 = vunpack.c.h.b16 %v75
  %v472 = vunpack.c.l.b16 %v76
  %v473 = vunpack.c.h.b16 %v76
  %v474 = vunpack.c.l.b16 %v77
  %v475 = vunpack.c.h.b16 %v77
  %v476 = vunpack.c.l.b16 %v78
  %v477 = vunpack.c.h.b16 %v78
  %v478 = vunpack.c.l.b16 %v79
  %v479 = vunpack.c.h.b16 %v79
  %v480 = vunpack.c.l.b16 %v80
  %v481 = vunpack.c.h.b16 %v80
  %v482 = vunpack.c.l.b16 %v81
  %v483 = vunpack.c.h.b16 %v81
  %v484 = vunpack.c.l.b16 %v82
  %v485 = vunpack.c.h.b16 %v82
  %v486 = vunpack.c.l.b16 %v83
  %v487 = vunpack.c.h.b16 %v83
  %v488 = vunpack.c.l.b16 %v84
  %v489 = vunpack.c.h.b16 %v84
  %v490 = vunpack.c.l.b16 %v85
  %v491 = vunpack.c.h.b16 %v85
  %v492 = vunpack.c.l.b16 %v86
  %v493 = vunpack.c.h.b16 %v86
  %v494 = vunpack.c.l.b16 %v87
  %v495 = vunpack.c.h.b16 %v87
  %v496 = vunpack.c.l.b16 %v88
  %v497 = vunpack.c.h.b16 %v88
  %v498 = vunpack.c.l.b16 %v89
  %v499 = vunpack.c.h.b16 %v89
  %v500 = vunpack.c.l.b16 %v90
  %v501 = vunpack.c.h.b16 %v90
  %v502 = vunpack.c.l.b16 %v91
  %v503 = vunpack.c.h.b16 %v91
  %v504 = vunpack.c.l.b16 %v92
  %v505 = vunpack.c.h.b16 %v92
  %v506 = vunpack.c.l.b16 %v93
  %v507 = vunpack.c.h.b16 %v93
  %v508 = vunpack.c.l.b16 %v94
  %v509 = vunpack.c.h.b16 %v94
  %v510 = vunpack.c.l.b16 %v95
  %v511 = vunpack.c.h.b16 %v95
  %v512 = vunpack.c.l.b16 %v96
  %v513 = vunpack.c.h.b16 %v96
  %v514 = vunpack.c.l.b16 %v97
  %v515 = vunpack.c.h.b16 %v97
  %v516 = vunpack.c.l.b16 %v98
  %v517 = vunpack.c.h.b16 %v98
  %v518 = vunpack.c.l.b16 %v99
  %v519 = vunpack.c.h.b16 %v99
  %v520 = vunpack.c.l.b16 %v100
  %v521 = vunpack.c.h.b16 %v100
  %v522 = vunpack.c.l.b16 %v101
  %v523 = vunpack.c.h.b16 %v101
  %v524 = vunpack.c.l.b16 %v102
  %v525 = vunpack.c.h.b16 %v102
  %v526 = vunpack.c.l.b16 %v103
  %v527 = vunpack.c.h.b16 %v103
  %v528 = vunpack.c.l.b16 %v104
  %v529 = vunpack.c.h.b16 %v104
  %v530 = vunpack.c.l.b16 %v105
  %v531 = vunpack.c.h.b16 %v105
  %v532 = vunpack.c.l.b16 %v106
  %v533 = vunpack.c.h.b16 %v106
  %v534 = vunpack.c.l.b16 %v107
  %v535 = vunpack.c.h.b16 %v107
  %v536 = vunpack.c.l.b16 %v108
  %v537 = vunpack.c.h.b16 %v108
  %v538 = vunpack.c.l.b16 %v109
  %v539 = vunpack.c.h.b16 %v109
  %v540 = vunpack.c.l.b16 %v110
  %v541 = vunpack.c.h.b16 %v110
  %v542 = vunpack.c.l.b16 %v111
  %v543 = vunpack.c.h.b16 %v111
  %v544 = vunpack.c.l.b16 %v112
  %v545 = vunpack.c.h.b16 %v112
  %v546 = vunpack.c.l.b16 %v113
  %v547 = vunpack.c.h.b16 %v113
  %v548 = vunpack.c.l.b16 %v114
  %v549 = vunpack.c.h.b16 %v114
  %v550 = vpack.c.b16 %v358, %v350
  %v551 = vpack.c.b16 %v359, %v351
  %v552 = vpack.c.b16 %v360, %v352
  %v553 = vpack.c.b16 %v361, %v353
  %v554 = vpack.c.b16 %v362, %v354
  %v555 = vpack.c.b16 %v363, %v355
  %v556 = vpack.c.b16 %v364, %v356
  %v557 = vpack.c.b16 %v365, %v357
  %v558 = vpack.c.b16 %v374, %v366
  %v559 = vpack.c.b16 %v375, %v367
  %v560 = vpack.c.b16 %v376, %v368
  %v561 = vpack.c.b16 %v377, %v369
  %v562 = vpack.c.b16 %v378, %v370
  %v563 = vpack.c.b16 %v379, %v371
  %v564 = vpack.c.b16 %v380, %v372
  %v565 = vpack.c.b16 %v381, %v373
  %v566 = vpack.c.b16 %v390, %v382
  %v567 = vpack.c.b16 %v391, %v383
  %v568 = vpack.c.b16 %v392, %v384
  %v569 = vpack.c.b16 %v393, %v385
  %v570 = vpack.c.b16 %v394, %v386
  %v571 = vpack.c.b16 %v395, %v387
  %v572 = vpack.c.b16 %v396, %v388
  %v573 = vpack.c.b16 %v397, %v389
  %v574 = vpack.c.b16 %v406, %v398
  %v575 = vpack.c.b16 %v407, %v399
  %v576 = vpack.c.b16 %v408, %v400
  %v577 = vpack.c.b16 %v409, %v401
  %v578 = vpack.c.b16 %v410, %v402
  %v579 = vpack.c.b16 %v411, %v403
  %v580 = vpack.c.b16 %v412, %v404
  %v581 = vpack.c.b16 %v413, %v405
  %v582 = vpack.c.b16 %v422, %v414
  %v583 = vpack.c.b16 %v423, %v415
  %v584 = vpack.c.b16 %v424, %v416
  %v585 = vpack.c.b16 %v425, %v417
  %v586 = vpack.c.b16 %v426, %v418
  %v587 = vpack.c.b16 %v427, %v419
  %v588 = vpack.c.b16 %v428, %v420
  %v589 = vpack.c.b16 %v429, %v421
  %v590 = vpack.c.b16 %v438, %v430
  %v591 = vpack.c.b16 %v439, %v431
  %v592 = vpack.c.b16 %v440, %v432
  %v593 = vpack.c.b16 %v441, %v433
  %v594 = vpack.c.b16 %v442, %v434
  %v595 = vpack.c.b16 %v443, %v435
  %v596 = vpack.c.b16 %v444, %v436
  %v597 = vpack.c.b16 %v445, %v437
  %v598 = vpack.c.b16 %v454, %v446
  %v599 = vpack.c.b16 %v455, %v447
  %v600 = vpack.c.b16 %v456, %v448
  %v601 = vpack.c.b16 %v457, %v449
  %v602 = vpack.c.b16 %v458, %v450
  %v603 = vpack.c.b16 %v459, %v451
  %v604 = vpack.c.b16 %v460, %v452
  %v605 = vpack.c.b16 %v461, %v453
  %v606 = vpack.c.b16 %v470, %v462
  %v607 = vpack.c.b16 %v471, %v463
  %v608 = vpack.c.b16 %v472, %v464
  %v609 = vpack.c.b16 %v473, %v465
  %v610 = vpack.c.b16 %v474, %v466
  %v611 = vpack.c.b16 %v475, %v467
  %v612 = vpack.c.b16 %v476, %v468
  %v613 = vpack.c.b16 %v477, %v469
  %v614 = vpack.c.b16 %v486, %v478
  %v615 = vpack.c.b16 %v487, %v479
  %v616 = vpack.c.b16 %v488, %v480
  %v617 = vpack.c.b16 %v489, %v481
  %v618 = vpack.c.b16 %v490, %v482
  %v619 = vpack.c.b16 %v491, %v483
  %v620 = vpack.c.b16 %v492, %v484
  %v621 = vpack.c.b16 %v493, %v485
  %v622 = vpack.c.b16 %v502, %v494
  %v623 = vpack.c.b16 %v503, %v495
  %v624 = vpack.c.b16 %v504, %v496
  %v625 = vpack.c.b16 %v505, %v497
  %v626 = vpack.c.b16 %v506, %v498
  %v627 = vpack.c.b16 %v507, %v499
  %v628 = vpack.c.b16 %v508, %v500
  %v629 = vpack.c.b16 %v509, %v501
  %v630 = vpack.c.b16 %v518, %v510
  %v631 = vpack.c.b16 %v519, %v511
  %v632 = vpack.c.b16 %v520, %v512
  %v633 = vpack.c.b16 %v521, %v513
  %v634 = vpack.c.b16 %v522, %v514
  %v635 = vpack.c.b16 %v523, %v515
  %v636 = vpack.c.b16 %v524, %v516
  %v637 = vpack.c.b16 %v525, %v517
  %v638 = vpack.c.b16 %v534, %v526
  %v639 = vpack.c.b16 %v535, %v527
  %v640 = vpack.c.b16 %v536, %v528
  %v641 = vpack.c.b16 %v537, %v529
  %v642 = vpack.c.b16 %v538, %v530
  %v643 = vpack.c.b16 %v539, %v531
  %v644 = vpack.c.b16 %v540, %v532
  %v645 = vpack.c.b16 %v541, %v533
  %v646 = vpack.c.b16 %v542, %v542
  %v647 = vpack.c.b16 %v543, %v543
  %v648 = vpack.c.b16 %v544, %v544
  %v649 = vpack.c.b16 %v545, %v545
  %v650 = vpack.c.b16 %v546, %v546
  %v651 = vpack.c.b16 %v547, %v547
  %v652 = vpack.c.b16 %v548, %v548
  %v653 = vpack.c.b16 %v549, %v549
  %v886 = vunpack.c.l.b16 %v115
  %v887 = vunpack.c.l.b16 %v116
  %v888 = vunpack.c.l.b16 %v117
  %v889 = vunpack.c.l.b16 %v118
  %v890 = vunpack.c.l.b16 %v119
  %v891 = vunpack.c.l.b16 %v120
  %v892 = vunpack.c.l.b16 %v121
  %v893 = vunpack.c.l.b16 %v122
  %v894 = vunpack.c.l.b16 %v123
  %v895 = vunpack.c.l.b16 %v124
  %v896 = vunpack.c.l.b16 %v125
  %v897 = vunpack.c.l.b16 %v126
  %v898 = vunpack.c.l.b16 %v127
  %v899 = vunpack.c.l.b16 %v128
  %v900 = vunpack.c.l.b16 %v129
  %v901 = vunpack.c.l.b16 %v130
  %v902 = vunpack.c.l.b16 %v131
  %v903 = vunpack.c.l.b16 %v132
  %v904 = vunpack.c.l.b16 %v133
  %v905 = vunpack.c.l.b16 %v134
  %v906 = vunpack.c.l.b16 %v135
  %v907 = vunpack.c.l.b16 %v136
  %v908 = vunpack.c.l.b16 %v137
  %v909 = vunpack.c.l.b16 %v138
  %v910 = vunpack.c.l.b16 %v139
  %v911 = vunpack.c.l.b16 %v140
  %v912 = vunpack.c.l.b16 %v141
  %v913 = vunpack.c.l.b16 %v142
  %v914 = vunpack.c.l.b16 %v143
  %v915 = vunpack.c.l.b16 %v144
  %v916 = vunpack.c.l.b16 %v145
  %v917 = vunpack.c.l.b16 %v146
  %v918 = vunpack.c.l.b16 %v147
  %v919 = vunpack.c.l.b16 %v148
  %v920 = vunpack.c.l.b16 %v149
  %v921 = vunpack.c.l.b16 %v150
  %v922 = vunpack.c.l.b16 %v151
  %v923 = vunpack.c.l.b16 %v152
  %v924 = vunpack.c.l.b16 %v153
  %v925 = vunpack.c.l.b16 %v154
  %v926 = vunpack.c.l.b16 %v155
  %v927 = vunpack.c.l.b16 %v156
  %v928 = vunpack.c.l.b16 %v157
  %v929 = vunpack.c.l.b16 %v158
  %v930 = vunpack.c.l.b16 %v159
  %v931 = vunpack.c.l.b16 %v160
  %v932 = vunpack.c.l.b16 %v161
  %v933 = vunpack.c.l.b16 %v162
  %v934 = vunpack.c.l.b16 %v163
  %v935 = vunpack.c.l.b16 %v164
  %v936 = vunpack.c.l.b16 %v165
  %v937 = vunpack.c.l.b16 %v166
  %v938 = vunpack.c.l.b16 %v167
  %v939 = vunpack.c.l.b16 %v168
  %v940 = vunpack.c.l.b16 %v169
  %v941 = vunpack.c.l.b16 %v170
  %v942 = vunpack.c.l.b16 %v171
  %v943 = vunpack.c.l.b16 %v172
  %v944 = vunpack.c.l.b16 %v173
  %v945 = vunpack.c.l.b16 %v174
  %v946 = vunpack.c.l.b16 %v175
  %v947 = vunpack.c.l.b16 %v176
  %v948 = vunpack.c.l.b16 %v177
  %v949 = vunpack.c.l.b16 %v178
  %v950 = vunpack.c.l.b16 %v179
  %v951 = vunpack.c.l.b16 %v180
  %v952 = vunpack.c.l.b16 %v181
  %v953 = vunpack.c.l.b16 %v182
  %v954 = vunpack.c.l.b16 %v183
  %v955 = vunpack.c.l.b16 %v184
  %v956 = vunpack.c.l.b16 %v185
  %v957 = vunpack.c.l.b16 %v186
  %v958 = vunpack.c.l.b16 %v187
  %v959 = vunpack.c.l.b16 %v188
  %v960 = vunpack.c.l.b16 %v189
  %v961 = vunpack.c.l.b16 %v190
  %v962 = vunpack.c.l.b16 %v191
  %v963 = vunpack.c.l.b16 %v192
  %v964 = vunpack.c.l.b16 %v193
  %v965 = vunpack.c.l.b16 %v194
  %v966 = vunpack.c.l.b16 %v195
  %v967 = vunpack.c.l.b16 %v196
  %v968 = vunpack.c.l.b16 %v197
  %v969 = vunpack.c.l.b16 %v198
  %v970 = vunpack.c.l.b16 %v199
  %v971 = vunpack.c.l.b16 %v200
  %v972 = vunpack.c.l.b16 %v201
  %v973 = vunpack.c.l.b16 %v202
  %v974 = vunpack.c.l.b16 %v203
  %v975 = vunpack.c.l.b16 %v204
  %v976 = vunpack.c.l.b16 %v205
  %v977 = vunpack.c.l.b16 %v206
  %v978 = vunpack.c.l.b16 %v207
  %v979 = vunpack.c.l.b16 %v208
  %v980 = vunpack.c.l.b16 %v209
  %v981 = vunpack.c.l.b16 %v210
  %v982 = vunpack.c.l.b16 %v211
  %v983 = vunpack.c.l.b16 %v212
  %v984 = vunpack.c.l.b16 %v213
  %v985 = vunpack.c.l.b16 %v214
  %v986 = vunpack.c.l.b16 %v215
  %v987 = vunpack.c.l.b16 %v216
  %v988 = vunpack.c.l.b16 %v217
  %v989 = vunpack.c.l.b16 %v218
  %v990 = vunpack.c.l.b16 %v219
  %v991 = vunpack.c.l.b16 %v220
  %v992 = vunpack.c.l.b16 %v221
  %v993 = vunpack.c.l.b16 %v222
  %v994 = vunpack.c.l.b16 %v223
  %v995 = vunpack.c.l.b16 %v224
  %v996 = vunpack.c.l.b16 %v225
  %v997 = vunpack.c.l.b16 %v226
  %v998 = vunpack.c.l.b16 %v227
  %v999 = vunpack.c.l.b16 %v228
  %v1000 = vunpack.c.l.b16 %v229
  %v1001 = vunpack.c.l.b16 %v230
  %v1002 = vunpack.c.l.b16 %v231
  %v1003 = vunpack.c.l.b16 %v232
  %v1004 = vunpack.c.l.b16 %v233
  %v1005 = vunpack.c.l.b16 %v234
  %v1006 = vunpack.c.l.b16 %v235
  %v1007 = vunpack.c.l.b16 %v236
  %v1008 = vunpack.c.l.b16 %v237
  %v1009 = vunpack.c.l.b16 %v238
  %v1010 = vunpack.c.l.b16 %v239
  %v1011 = vunpack.c.l.b16 %v240
  %v1012 = vunpack.c.l.b16 %v241
  %v1013 = vunpack.c.l.b16 %v242
  %v1014 = vpack.c.b16 %v887, %v886
  %v1015 = vpack.c.b16 %v889, %v888
  %v1016 = vpack.c.b16 %v891, %v890
  %v1017 = vpack.c.b16 %v893, %v892
  %v1018 = vpack.c.b16 %v895, %v894
  %v1019 = vpack.c.b16 %v897, %v896
  %v1020 = vpack.c.b16 %v899, %v898
  %v1021 = vpack.c.b16 %v901, %v900
  %v1022 = vpack.c.b16 %v903, %v902
  %v1023 = vpack.c.b16 %v905, %v904
  %v1024 = vpack.c.b16 %v907, %v906
  %v1025 = vpack.c.b16 %v909, %v908
  %v1026 = vpack.c.b16 %v911, %v910
  %v1027 = vpack.c.b16 %v913, %v912
  %v1028 = vpack.c.b16 %v915, %v914
  %v1029 = vpack.c.b16 %v917, %v916
  %v1030 = vpack.c.b16 %v919, %v918
  %v1031 = vpack.c.b16 %v921, %v920
  %v1032 = vpack.c.b16 %v923, %v922
  %v1033 = vpack.c.b16 %v925, %v924
  %v1034 = vpack.c.b16 %v927, %v926
  %v1035 = vpack.c.b16 %v929, %v928
  %v1036 = vpack.c.b16 %v931, %v930
  %v1037 = vpack.c.b16 %v933, %v932
  %v1038 = vpack.c.b16 %v935, %v934
  %v1039 = vpack.c.b16 %v937, %v936
  %v1040 = vpack.c.b16 %v939, %v938
  %v1041 = vpack.c.b16 %v941, %v940
  %v1042 = vpack.c.b16 %v943, %v942
  %v1043 = vpack.c.b16 %v945, %v944
  %v1044 = vpack.c.b16 %v947, %v946
  %v1045 = vpack.c.b16 %v949, %v948
  %v1046 = vpack.c.b16 %v951, %v950
  %v1047 = vpack.c.b16 %v953, %v952
  %v1048 = vpack.c.b16 %v955, %v954
  %v1049 = vpack.c.b16 %v957, %v956
  %v1050 = vpack.c.b16 %v959, %v958
  %v1051 = vpack.c.b16 %v961, %v960
  %v1052 = vpack.c.b16 %v963, %v962
  %v1053 = vpack.c.b16 %v965, %v964
  %v1054 = vpack.c.b16 %v967, %v966
  %v1055 = vpack.c.b16 %v969, %v968
  %v1056 = vpack.c.b16 %v971, %v970
  %v1057 = vpack.c.b16 %v973, %v972
  %v1058 = vpack.c.b16 %v975, %v974
  %v1059 = vpack.c.b16 %v977, %v976
  %v1060 = vpack.c.b16 %v979, %v978
  %v1061 = vpack.c.b16 %v981, %v980
  %v1062 = vpack.c.b16 %v983, %v982
  %v1063 = vpack.c.b16 %v985, %v984
  %v1064 = vpack.c.b16 %v987, %v986
  %v1065 = vpack.c.b16 %v989, %v988
  %v1066 = vpack.c.b16 %v991, %v990
  %v1067 = vpack.c.b16 %v993, %v992
  %v1068 = vpack.c.b16 %v995, %v994
  %v1069 = vpack.c.b16 %v997, %v996
  %v1070 = vpack.c.b16 %v999, %v998
  %v1071 = vpack.c.b16 %v1001, %v1000
  %v1072 = vpack.c.b16 %v1003, %v1002
  %v1073 = vpack.c.b16 %v1005, %v1004
  %v1074 = vpack.c.b16 %v1007, %v1006
  %v1075 = vpack.c.b16 %v1009, %v1008
  %v1076 = vpack.c.b16 %v1011, %v1010
  %v1077 = vpack.c.b16 %v1013, %v1012
  %1142 = vmatprep.subr.bf16.mxu0 0
  %1143 = vmatpush1.bf16.msra.mxu0 %v1021
  %1144 = vmatprep.subr.bf16.mxu0 0
  %1145 = vmatpush1.bf16.msra.mxu0 %v1020
  %1146 = vmatprep.subr.bf16.mxu0 0
  %1147 = vmatpush1.bf16.msra.mxu0 %v1019
  %1148 = vmatprep.subr.bf16.mxu0 0
  %1149 = vmatpush1.bf16.msra.mxu0 %v1018
  %1150 = vmatprep.subr.bf16.mxu0 0
  %1151 = vmatpush1.bf16.msra.mxu0 %v1017
  %1152 = vmatprep.subr.bf16.mxu0 0
  %1153 = vmatpush1.bf16.msra.mxu0 %v1016
  %1154 = vmatprep.subr.bf16.mxu0 0
  %1155 = vmatpush1.bf16.msra.mxu0 %v1015
  %1156 = vmatprep.subr.bf16.mxu0 0
  %1157 = vmatpush1.bf16.msra.mxu0 %v1014
  %1158 = vmatprep.subr.bf16.mxu0 0
  %1159 = vmatpush2.bf16.msra.mxu0 %v1029
  %1160 = vmatprep.subr.bf16.mxu0 0
  %1161 = vmatpush2.bf16.msra.mxu0 %v1028
  %1162 = vmatprep.subr.bf16.mxu0 0
  %1163 = vmatpush2.bf16.msra.mxu0 %v1027
  %1164 = vmatprep.subr.bf16.mxu0 0
  %1165 = vmatpush2.bf16.msra.mxu0 %v1026
  %1166 = vmatprep.subr.bf16.mxu0 0
  %1167 = vmatpush2.bf16.msra.mxu0 %v1025
  %1168 = vmatprep.subr.bf16.mxu0 0
  %1169 = vmatpush2.bf16.msra.mxu0 %v1024
  %1170 = vmatprep.subr.bf16.mxu0 0
  %1171 = vmatpush2.bf16.msra.mxu0 %v1023
  %1172 = vmatprep.subr.bf16.mxu0 0
  %1173 = vmatpush2.bf16.msra.mxu0 %v1022
  %1174 = vmatprep.mubr.bf16.mxu0 %v551
  %1175 = vmatmul.mubr.bf16.gmra.mxu0 %v550
  %v1176 = vpop.f32.mrf.mxu0
  %v1177 = vadd.f32 %v248, %v1176
  %v1178 = vpop.f32.mrf.mxu0
  %v1179 = vpop.f32.mrf.mxu0
  %v1180 = vadd.f32 %v248, %v1179
  %v1181 = vpop.f32.mrf.mxu0
  %1182 = vmatprep.mubr.bf16.mxu0 %v559
  %1183 = vmatmul.mubr.bf16.gmra.mxu0 %v558
  %v1184 = vpop.f32.mrf.mxu0
  %v1185 = vadd.f32 %v248, %v1184
  %v1186 = vpop.f32.mrf.mxu0
  %v1187 = vpop.f32.mrf.mxu0
  %v1188 = vadd.f32 %v248, %v1187
  %v1189 = vpop.f32.mrf.mxu0
  %1190 = vmatprep.mubr.bf16.mxu0 %v567
  %1191 = vmatmul.mubr.bf16.gmra.mxu0 %v566
  %v1192 = vpop.f32.mrf.mxu0
  %v1193 = vadd.f32 %v248, %v1192
  %v1194 = vpop.f32.mrf.mxu0
  %v1195 = vpop.f32.mrf.mxu0
  %v1196 = vadd.f32 %v248, %v1195
  %v1197 = vpop.f32.mrf.mxu0
  %1198 = vmatprep.mubr.bf16.mxu0 %v575
  %1199 = vmatmul.mubr.bf16.gmra.mxu0 %v574
  %v1200 = vpop.f32.mrf.mxu0
  %v1201 = vadd.f32 %v248, %v1200
  %v1202 = vpop.f32.mrf.mxu0
  %v1203 = vpop.f32.mrf.mxu0
  %v1204 = vadd.f32 %v248, %v1203
  %v1205 = vpop.f32.mrf.mxu0
  %1206 = vmatprep.mubr.bf16.mxu0 %v583
  %1207 = vmatmul.mubr.bf16.gmra.mxu0 %v582
  %v1208 = vpop.f32.mrf.mxu0
  %v1209 = vadd.f32 %v248, %v1208
  %v1210 = vpop.f32.mrf.mxu0
  %v1211 = vpop.f32.mrf.mxu0
  %v1212 = vadd.f32 %v248, %v1211
  %v1213 = vpop.f32.mrf.mxu0
  %1214 = vmatprep.mubr.bf16.mxu0 %v591
  %1215 = vmatmul.mubr.bf16.gmra.mxu0 %v590
  %v1216 = vpop.f32.mrf.mxu0
  %v1217 = vadd.f32 %v248, %v1216
  %v1218 = vpop.f32.mrf.mxu0
  %v1219 = vpop.f32.mrf.mxu0
  %v1220 = vadd.f32 %v248, %v1219
  %v1221 = vpop.f32.mrf.mxu0
  %1222 = vmatprep.mubr.bf16.mxu0 %v599
  %1223 = vmatmul.mubr.bf16.gmra.mxu0 %v598
  %v1224 = vpop.f32.mrf.mxu0
  %v1225 = vadd.f32 %v248, %v1224
  %v1226 = vpop.f32.mrf.mxu0
  %v1227 = vpop.f32.mrf.mxu0
  %v1228 = vadd.f32 %v248, %v1227
  %v1229 = vpop.f32.mrf.mxu0
  %1230 = vmatprep.mubr.bf16.mxu0 %v607
  %1231 = vmatmul.mubr.bf16.gmra.mxu0 %v606
  %v1232 = vpop.f32.mrf.mxu0
  %v1233 = vadd.f32 %v248, %v1232
  %v1234 = vpop.f32.mrf.mxu0
  %v1235 = vpop.f32.mrf.mxu0
  %v1236 = vadd.f32 %v248, %v1235
  %v1237 = vpop.f32.mrf.mxu0
  %1238 = vmatprep.mubr.bf16.mxu0 %v615
  %1239 = vmatmul.mubr.bf16.gmra.mxu0 %v614
  %v1240 = vpop.f32.mrf.mxu0
  %v1241 = vadd.f32 %v248, %v1240
  %v1242 = vpop.f32.mrf.mxu0
  %v1243 = vpop.f32.mrf.mxu0
  %v1244 = vadd.f32 %v248, %v1243
  %v1245 = vpop.f32.mrf.mxu0
  %1246 = vmatprep.mubr.bf16.mxu0 %v623
  %1247 = vmatmul.mubr.bf16.gmra.mxu0 %v622
  %v1248 = vpop.f32.mrf.mxu0
  %v1249 = vadd.f32 %v248, %v1248
  %v1250 = vpop.f32.mrf.mxu0
  %v1251 = vpop.f32.mrf.mxu0
  %v1252 = vadd.f32 %v248, %v1251
  %v1253 = vpop.f32.mrf.mxu0
  %1254 = vmatprep.mubr.bf16.mxu0 %v631
  %1255 = vmatmul.mubr.bf16.gmra.mxu0 %v630
  %v1256 = vpop.f32.mrf.mxu0
  %v1257 = vadd.f32 %v248, %v1256
  %v1258 = vpop.f32.mrf.mxu0
  %v1259 = vpop.f32.mrf.mxu0
  %v1260 = vadd.f32 %v248, %v1259
  %v1261 = vpop.f32.mrf.mxu0
  %1262 = vmatprep.mubr.bf16.mxu0 %v639
  %1263 = vmatmul.mubr.bf16.gmra.mxu0 %v638
  %v1264 = vpop.f32.mrf.mxu0
  %v1265 = vadd.f32 %v248, %v1264
  %v1266 = vpop.f32.mrf.mxu0
  %v1267 = vpop.f32.mrf.mxu0
  %v1268 = vadd.f32 %v248, %v1267
  %v1269 = vpop.f32.mrf.mxu0
  %1270 = vmatprep.mubr.bf16.mxu0 %v647
  %1271 = vmatmul.mubr.bf16.gmra.mxu0 %v646
  %v1272 = vpop.f32.mrf.mxu0
  %v1273 = vadd.f32 %v248, %v1272
  %v1274 = vpop.f32.mrf.mxu0
  %v1275 = vpop.f32.mrf.mxu0
  %v1276 = vpop.f32.mrf.mxu0
  %1277 = vdwg.mxu0
  %1278 = vmatprep.subr.bf16.mxu0 0
  %1279 = vmatpush1.bf16.msra.mxu0 %v1037
  %1280 = vmatprep.subr.bf16.mxu0 0
  %1281 = vmatpush1.bf16.msra.mxu0 %v1036
  %1282 = vmatprep.subr.bf16.mxu0 0
  %1283 = vmatpush1.bf16.msra.mxu0 %v1035
  %1284 = vmatprep.subr.bf16.mxu0 0
  %1285 = vmatpush1.bf16.msra.mxu0 %v1034
  %1286 = vmatprep.subr.bf16.mxu0 0
  %1287 = vmatpush1.bf16.msra.mxu0 %v1033
  %1288 = vmatprep.subr.bf16.mxu0 0
  %1289 = vmatpush1.bf16.msra.mxu0 %v1032
  %1290 = vmatprep.subr.bf16.mxu0 0
  %1291 = vmatpush1.bf16.msra.mxu0 %v1031
  %1292 = vmatprep.subr.bf16.mxu0 0
  %1293 = vmatpush1.bf16.msra.mxu0 %v1030
  %1294 = vmatprep.subr.bf16.mxu0 0
  %1295 = vmatpush2.bf16.msra.mxu0 %v1045
  %1296 = vmatprep.subr.bf16.mxu0 0
  %1297 = vmatpush2.bf16.msra.mxu0 %v1044
  %1298 = vmatprep.subr.bf16.mxu0 0
  %1299 = vmatpush2.bf16.msra.mxu0 %v1043
  %1300 = vmatprep.subr.bf16.mxu0 0
  %1301 = vmatpush2.bf16.msra.mxu0 %v1042
  %1302 = vmatprep.subr.bf16.mxu0 0
  %1303 = vmatpush2.bf16.msra.mxu0 %v1041
  %1304 = vmatprep.subr.bf16.mxu0 0
  %1305 = vmatpush2.bf16.msra.mxu0 %v1040
  %1306 = vmatprep.subr.bf16.mxu0 0
  %1307 = vmatpush2.bf16.msra.mxu0 %v1039
  %1308 = vmatprep.subr.bf16.mxu0 0
  %1309 = vmatpush2.bf16.msra.mxu0 %v1038
  %1310 = vmatprep.mubr.bf16.mxu0 %v553
  %1311 = vmatmul.mubr.bf16.gmra.mxu0 %v552
  %v1312 = vpop.f32.mrf.mxu0
  %v1313 = vadd.f32 %v1177, %v1312
  %v1314 = vpop.f32.mrf.mxu0
  %v1315 = vpop.f32.mrf.mxu0
  %v1316 = vadd.f32 %v1180, %v1315
  %v1317 = vpop.f32.mrf.mxu0
  %1318 = vmatprep.mubr.bf16.mxu0 %v561
  %1319 = vmatmul.mubr.bf16.gmra.mxu0 %v560
  %v1320 = vpop.f32.mrf.mxu0
  %v1321 = vadd.f32 %v1185, %v1320
  %v1322 = vpop.f32.mrf.mxu0
  %v1323 = vpop.f32.mrf.mxu0
  %v1324 = vadd.f32 %v1188, %v1323
  %v1325 = vpop.f32.mrf.mxu0
  %1326 = vmatprep.mubr.bf16.mxu0 %v569
  %1327 = vmatmul.mubr.bf16.gmra.mxu0 %v568
  %v1328 = vpop.f32.mrf.mxu0
  %v1329 = vadd.f32 %v1193, %v1328
  %v1330 = vpop.f32.mrf.mxu0
  %v1331 = vpop.f32.mrf.mxu0
  %v1332 = vadd.f32 %v1196, %v1331
  %v1333 = vpop.f32.mrf.mxu0
  %1334 = vmatprep.mubr.bf16.mxu0 %v577
  %1335 = vmatmul.mubr.bf16.gmra.mxu0 %v576
  %v1336 = vpop.f32.mrf.mxu0
  %v1337 = vadd.f32 %v1201, %v1336
  %v1338 = vpop.f32.mrf.mxu0
  %v1339 = vpop.f32.mrf.mxu0
  %v1340 = vadd.f32 %v1204, %v1339
  %v1341 = vpop.f32.mrf.mxu0
  %1342 = vmatprep.mubr.bf16.mxu0 %v585
  %1343 = vmatmul.mubr.bf16.gmra.mxu0 %v584
  %v1344 = vpop.f32.mrf.mxu0
  %v1345 = vadd.f32 %v1209, %v1344
  %v1346 = vpop.f32.mrf.mxu0
  %v1347 = vpop.f32.mrf.mxu0
  %v1348 = vadd.f32 %v1212, %v1347
  %v1349 = vpop.f32.mrf.mxu0
  %1350 = vmatprep.mubr.bf16.mxu0 %v593
  %1351 = vmatmul.mubr.bf16.gmra.mxu0 %v592
  %v1352 = vpop.f32.mrf.mxu0
  %v1353 = vadd.f32 %v1217, %v1352
  %v1354 = vpop.f32.mrf.mxu0
  %v1355 = vpop.f32.mrf.mxu0
  %v1356 = vadd.f32 %v1220, %v1355
  %v1357 = vpop.f32.mrf.mxu0
  %1358 = vmatprep.mubr.bf16.mxu0 %v601
  %1359 = vmatmul.mubr.bf16.gmra.mxu0 %v600
  %v1360 = vpop.f32.mrf.mxu0
  %v1361 = vadd.f32 %v1225, %v1360
  %v1362 = vpop.f32.mrf.mxu0
  %v1363 = vpop.f32.mrf.mxu0
  %v1364 = vadd.f32 %v1228, %v1363
  %v1365 = vpop.f32.mrf.mxu0
  %1366 = vmatprep.mubr.bf16.mxu0 %v609
  %1367 = vmatmul.mubr.bf16.gmra.mxu0 %v608
  %v1368 = vpop.f32.mrf.mxu0
  %v1369 = vadd.f32 %v1233, %v1368
  %v1370 = vpop.f32.mrf.mxu0
  %v1371 = vpop.f32.mrf.mxu0
  %v1372 = vadd.f32 %v1236, %v1371
  %v1373 = vpop.f32.mrf.mxu0
  %1374 = vmatprep.mubr.bf16.mxu0 %v617
  %1375 = vmatmul.mubr.bf16.gmra.mxu0 %v616
  %v1376 = vpop.f32.mrf.mxu0
  %v1377 = vadd.f32 %v1241, %v1376
  %v1378 = vpop.f32.mrf.mxu0
  %v1379 = vpop.f32.mrf.mxu0
  %v1380 = vadd.f32 %v1244, %v1379
  %v1381 = vpop.f32.mrf.mxu0
  %1382 = vmatprep.mubr.bf16.mxu0 %v625
  %1383 = vmatmul.mubr.bf16.gmra.mxu0 %v624
  %v1384 = vpop.f32.mrf.mxu0
  %v1385 = vadd.f32 %v1249, %v1384
  %v1386 = vpop.f32.mrf.mxu0
  %v1387 = vpop.f32.mrf.mxu0
  %v1388 = vadd.f32 %v1252, %v1387
  %v1389 = vpop.f32.mrf.mxu0
  %1390 = vmatprep.mubr.bf16.mxu0 %v633
  %1391 = vmatmul.mubr.bf16.gmra.mxu0 %v632
  %v1392 = vpop.f32.mrf.mxu0
  %v1393 = vadd.f32 %v1257, %v1392
  %v1394 = vpop.f32.mrf.mxu0
  %v1395 = vpop.f32.mrf.mxu0
  %v1396 = vadd.f32 %v1260, %v1395
  %v1397 = vpop.f32.mrf.mxu0
  %1398 = vmatprep.mubr.bf16.mxu0 %v641
  %1399 = vmatmul.mubr.bf16.gmra.mxu0 %v640
  %v1400 = vpop.f32.mrf.mxu0
  %v1401 = vadd.f32 %v1265, %v1400
  %v1402 = vpop.f32.mrf.mxu0
  %v1403 = vpop.f32.mrf.mxu0
  %v1404 = vadd.f32 %v1268, %v1403
  %v1405 = vpop.f32.mrf.mxu0
  %1406 = vmatprep.mubr.bf16.mxu0 %v649
  %1407 = vmatmul.mubr.bf16.gmra.mxu0 %v648
  %v1408 = vpop.f32.mrf.mxu0
  %v1409 = vadd.f32 %v1273, %v1408
  %v1410 = vpop.f32.mrf.mxu0
  %v1411 = vpop.f32.mrf.mxu0
  %v1412 = vpop.f32.mrf.mxu0
  %1413 = vdwg.mxu0
  %1414 = vmatprep.subr.bf16.mxu0 0
  %1415 = vmatpush1.bf16.msra.mxu0 %v1053
  %1416 = vmatprep.subr.bf16.mxu0 0
  %1417 = vmatpush1.bf16.msra.mxu0 %v1052
  %1418 = vmatprep.subr.bf16.mxu0 0
  %1419 = vmatpush1.bf16.msra.mxu0 %v1051
  %1420 = vmatprep.subr.bf16.mxu0 0
  %1421 = vmatpush1.bf16.msra.mxu0 %v1050
  %1422 = vmatprep.subr.bf16.mxu0 0
  %1423 = vmatpush1.bf16.msra.mxu0 %v1049
  %1424 = vmatprep.subr.bf16.mxu0 0
  %1425 = vmatpush1.bf16.msra.mxu0 %v1048
  %1426 = vmatprep.subr.bf16.mxu0 0
  %1427 = vmatpush1.bf16.msra.mxu0 %v1047
  %1428 = vmatprep.subr.bf16.mxu0 0
  %1429 = vmatpush1.bf16.msra.mxu0 %v1046
  %1430 = vmatprep.subr.bf16.mxu0 0
  %1431 = vmatpush2.bf16.msra.mxu0 %v1061
  %1432 = vmatprep.subr.bf16.mxu0 0
  %1433 = vmatpush2.bf16.msra.mxu0 %v1060
  %1434 = vmatprep.subr.bf16.mxu0 0
  %1435 = vmatpush2.bf16.msra.mxu0 %v1059
  %1436 = vmatprep.subr.bf16.mxu0 0
  %1437 = vmatpush2.bf16.msra.mxu0 %v1058
  %1438 = vmatprep.subr.bf16.mxu0 0
  %1439 = vmatpush2.bf16.msra.mxu0 %v1057
  %1440 = vmatprep.subr.bf16.mxu0 0
  %1441 = vmatpush2.bf16.msra.mxu0 %v1056
  %1442 = vmatprep.subr.bf16.mxu0 0
  %1443 = vmatpush2.bf16.msra.mxu0 %v1055
  %1444 = vmatprep.subr.bf16.mxu0 0
  %1445 = vmatpush2.bf16.msra.mxu0 %v1054
  %1446 = vmatprep.mubr.bf16.mxu0 %v555
  %1447 = vmatmul.mubr.bf16.gmra.mxu0 %v554
  %v1448 = vpop.f32.mrf.mxu0
  %v1449 = vadd.f32 %v1313, %v1448
  %v1450 = vpop.f32.mrf.mxu0
  %v1451 = vpop.f32.mrf.mxu0
  %v1452 = vadd.f32 %v1316, %v1451
  %v1453 = vpop.f32.mrf.mxu0
  %1454 = vmatprep.mubr.bf16.mxu0 %v563
  %1455 = vmatmul.mubr.bf16.gmra.mxu0 %v562
  %v1456 = vpop.f32.mrf.mxu0
  %v1457 = vadd.f32 %v1321, %v1456
  %v1458 = vpop.f32.mrf.mxu0
  %v1459 = vpop.f32.mrf.mxu0
  %v1460 = vadd.f32 %v1324, %v1459
  %v1461 = vpop.f32.mrf.mxu0
  %1462 = vmatprep.mubr.bf16.mxu0 %v571
  %1463 = vmatmul.mubr.bf16.gmra.mxu0 %v570
  %v1464 = vpop.f32.mrf.mxu0
  %v1465 = vadd.f32 %v1329, %v1464
  %v1466 = vpop.f32.mrf.mxu0
  %v1467 = vpop.f32.mrf.mxu0
  %v1468 = vadd.f32 %v1332, %v1467
  %v1469 = vpop.f32.mrf.mxu0
  %1470 = vmatprep.mubr.bf16.mxu0 %v579
  %1471 = vmatmul.mubr.bf16.gmra.mxu0 %v578
  %v1472 = vpop.f32.mrf.mxu0
  %v1473 = vadd.f32 %v1337, %v1472
  %v1474 = vpop.f32.mrf.mxu0
  %v1475 = vpop.f32.mrf.mxu0
  %v1476 = vadd.f32 %v1340, %v1475
  %v1477 = vpop.f32.mrf.mxu0
  %1478 = vmatprep.mubr.bf16.mxu0 %v587
  %1479 = vmatmul.mubr.bf16.gmra.mxu0 %v586
  %v1480 = vpop.f32.mrf.mxu0
  %v1481 = vadd.f32 %v1345, %v1480
  %v1482 = vpop.f32.mrf.mxu0
  %v1483 = vpop.f32.mrf.mxu0
  %v1484 = vadd.f32 %v1348, %v1483
  %v1485 = vpop.f32.mrf.mxu0
  %1486 = vmatprep.mubr.bf16.mxu0 %v595
  %1487 = vmatmul.mubr.bf16.gmra.mxu0 %v594
  %v1488 = vpop.f32.mrf.mxu0
  %v1489 = vadd.f32 %v1353, %v1488
  %v1490 = vpop.f32.mrf.mxu0
  %v1491 = vpop.f32.mrf.mxu0
  %v1492 = vadd.f32 %v1356, %v1491
  %v1493 = vpop.f32.mrf.mxu0
  %1494 = vmatprep.mubr.bf16.mxu0 %v603
  %1495 = vmatmul.mubr.bf16.gmra.mxu0 %v602
  %v1496 = vpop.f32.mrf.mxu0
  %v1497 = vadd.f32 %v1361, %v1496
  %v1498 = vpop.f32.mrf.mxu0
  %v1499 = vpop.f32.mrf.mxu0
  %v1500 = vadd.f32 %v1364, %v1499
  %v1501 = vpop.f32.mrf.mxu0
  %1502 = vmatprep.mubr.bf16.mxu0 %v611
  %1503 = vmatmul.mubr.bf16.gmra.mxu0 %v610
  %v1504 = vpop.f32.mrf.mxu0
  %v1505 = vadd.f32 %v1369, %v1504
  %v1506 = vpop.f32.mrf.mxu0
  %v1507 = vpop.f32.mrf.mxu0
  %v1508 = vadd.f32 %v1372, %v1507
  %v1509 = vpop.f32.mrf.mxu0
  %1510 = vmatprep.mubr.bf16.mxu0 %v619
  %1511 = vmatmul.mubr.bf16.gmra.mxu0 %v618
  %v1512 = vpop.f32.mrf.mxu0
  %v1513 = vadd.f32 %v1377, %v1512
  %v1514 = vpop.f32.mrf.mxu0
  %v1515 = vpop.f32.mrf.mxu0
  %v1516 = vadd.f32 %v1380, %v1515
  %v1517 = vpop.f32.mrf.mxu0
  %1518 = vmatprep.mubr.bf16.mxu0 %v627
  %1519 = vmatmul.mubr.bf16.gmra.mxu0 %v626
  %v1520 = vpop.f32.mrf.mxu0
  %v1521 = vadd.f32 %v1385, %v1520
  %v1522 = vpop.f32.mrf.mxu0
  %v1523 = vpop.f32.mrf.mxu0
  %v1524 = vadd.f32 %v1388, %v1523
  %v1525 = vpop.f32.mrf.mxu0
  %1526 = vmatprep.mubr.bf16.mxu0 %v635
  %1527 = vmatmul.mubr.bf16.gmra.mxu0 %v634
  %v1528 = vpop.f32.mrf.mxu0
  %v1529 = vadd.f32 %v1393, %v1528
  %v1530 = vpop.f32.mrf.mxu0
  %v1531 = vpop.f32.mrf.mxu0
  %v1532 = vadd.f32 %v1396, %v1531
  %v1533 = vpop.f32.mrf.mxu0
  %1534 = vmatprep.mubr.bf16.mxu0 %v643
  %1535 = vmatmul.mubr.bf16.gmra.mxu0 %v642
  %v1536 = vpop.f32.mrf.mxu0
  %v1537 = vadd.f32 %v1401, %v1536
  %v1538 = vpop.f32.mrf.mxu0
  %v1539 = vpop.f32.mrf.mxu0
  %v1540 = vadd.f32 %v1404, %v1539
  %v1541 = vpop.f32.mrf.mxu0
  %1542 = vmatprep.mubr.bf16.mxu0 %v651
  %1543 = vmatmul.mubr.bf16.gmra.mxu0 %v650
  %v1544 = vpop.f32.mrf.mxu0
  %v1545 = vadd.f32 %v1409, %v1544
  %v1546 = vpop.f32.mrf.mxu0
  %v1547 = vpop.f32.mrf.mxu0
  %v1548 = vpop.f32.mrf.mxu0
  %1549 = vdwg.mxu0
  %1550 = vmatprep.subr.bf16.mxu0 0
  %1551 = vmatpush1.bf16.msra.mxu0 %v1069
  %1552 = vmatprep.subr.bf16.mxu0 0
  %1553 = vmatpush1.bf16.msra.mxu0 %v1068
  %1554 = vmatprep.subr.bf16.mxu0 0
  %1555 = vmatpush1.bf16.msra.mxu0 %v1067
  %1556 = vmatprep.subr.bf16.mxu0 0
  %1557 = vmatpush1.bf16.msra.mxu0 %v1066
  %1558 = vmatprep.subr.bf16.mxu0 0
  %1559 = vmatpush1.bf16.msra.mxu0 %v1065
  %1560 = vmatprep.subr.bf16.mxu0 0
  %1561 = vmatpush1.bf16.msra.mxu0 %v1064
  %1562 = vmatprep.subr.bf16.mxu0 0
  %1563 = vmatpush1.bf16.msra.mxu0 %v1063
  %1564 = vmatprep.subr.bf16.mxu0 0
  %1565 = vmatpush1.bf16.msra.mxu0 %v1062
  %1566 = vmatprep.subr.bf16.mxu0 0
  %1567 = vmatpush2.bf16.msra.mxu0 %v1077
  %1568 = vmatprep.subr.bf16.mxu0 0
  %1569 = vmatpush2.bf16.msra.mxu0 %v1076
  %1570 = vmatprep.subr.bf16.mxu0 0
  %1571 = vmatpush2.bf16.msra.mxu0 %v1075
  %1572 = vmatprep.subr.bf16.mxu0 0
  %1573 = vmatpush2.bf16.msra.mxu0 %v1074
  %1574 = vmatprep.subr.bf16.mxu0 0
  %1575 = vmatpush2.bf16.msra.mxu0 %v1073
  %1576 = vmatprep.subr.bf16.mxu0 0
  %1577 = vmatpush2.bf16.msra.mxu0 %v1072
  %1578 = vmatprep.subr.bf16.mxu0 0
  %1579 = vmatpush2.bf16.msra.mxu0 %v1071
  %1580 = vmatprep.subr.bf16.mxu0 0
  %1581 = vmatpush2.bf16.msra.mxu0 %v1070
  %1582 = vmatprep.mubr.bf16.mxu0 %v557
  %1583 = vmatmul.mubr.bf16.gmra.mxu0 %v556
  %v1584 = vpop.f32.mrf.mxu0
  %v1585 = vadd.f32 %v1449, %v1584
  %v1586 = vpop.f32.mrf.mxu0
  %v1587 = vpop.f32.mrf.mxu0
  %v1588 = vadd.f32 %v1452, %v1587
  %v1589 = vpop.f32.mrf.mxu0
  %1590 = vmatprep.mubr.bf16.mxu0 %v565
  %1591 = vmatmul.mubr.bf16.gmra.mxu0 %v564
  %v1592 = vpop.f32.mrf.mxu0
  %v1593 = vadd.f32 %v1457, %v1592
  %v1594 = vpop.f32.mrf.mxu0
  %v1595 = vpop.f32.mrf.mxu0
  %v1596 = vadd.f32 %v1460, %v1595
  %v1597 = vpop.f32.mrf.mxu0
  %1598 = vmatprep.mubr.bf16.mxu0 %v573
  %1599 = vmatmul.mubr.bf16.gmra.mxu0 %v572
  %v1600 = vpop.f32.mrf.mxu0
  %v1601 = vadd.f32 %v1465, %v1600
  %v1602 = vpop.f32.mrf.mxu0
  %v1603 = vpop.f32.mrf.mxu0
  %v1604 = vadd.f32 %v1468, %v1603
  %v1605 = vpop.f32.mrf.mxu0
  %1606 = vmatprep.mubr.bf16.mxu0 %v581
  %1607 = vmatmul.mubr.bf16.gmra.mxu0 %v580
  %v1608 = vpop.f32.mrf.mxu0
  %v1609 = vadd.f32 %v1473, %v1608
  %v1610 = vpop.f32.mrf.mxu0
  %v1611 = vpop.f32.mrf.mxu0
  %v1612 = vadd.f32 %v1476, %v1611
  %v1613 = vpop.f32.mrf.mxu0
  %1614 = vmatprep.mubr.bf16.mxu0 %v589
  %1615 = vmatmul.mubr.bf16.gmra.mxu0 %v588
  %v1616 = vpop.f32.mrf.mxu0
  %v1617 = vadd.f32 %v1481, %v1616
  %v1618 = vpop.f32.mrf.mxu0
  %v1619 = vpop.f32.mrf.mxu0
  %v1620 = vadd.f32 %v1484, %v1619
  %v1621 = vpop.f32.mrf.mxu0
  %1622 = vmatprep.mubr.bf16.mxu0 %v597
  %1623 = vmatmul.mubr.bf16.gmra.mxu0 %v596
  %v1624 = vpop.f32.mrf.mxu0
  %v1625 = vadd.f32 %v1489, %v1624
  %v1626 = vpop.f32.mrf.mxu0
  %v1627 = vpop.f32.mrf.mxu0
  %v1628 = vadd.f32 %v1492, %v1627
  %v1629 = vpop.f32.mrf.mxu0
  %1630 = vmatprep.mubr.bf16.mxu0 %v605
  %1631 = vmatmul.mubr.bf16.gmra.mxu0 %v604
  %v1632 = vpop.f32.mrf.mxu0
  %v1633 = vadd.f32 %v1497, %v1632
  %v1634 = vpop.f32.mrf.mxu0
  %v1635 = vpop.f32.mrf.mxu0
  %v1636 = vadd.f32 %v1500, %v1635
  %v1637 = vpop.f32.mrf.mxu0
  %1638 = vmatprep.mubr.bf16.mxu0 %v613
  %1639 = vmatmul.mubr.bf16.gmra.mxu0 %v612
  %v1640 = vpop.f32.mrf.mxu0
  %v1641 = vadd.f32 %v1505, %v1640
  %v1642 = vpop.f32.mrf.mxu0
  %v1643 = vpop.f32.mrf.mxu0
  %v1644 = vadd.f32 %v1508, %v1643
  %v1645 = vpop.f32.mrf.mxu0
  %1646 = vmatprep.mubr.bf16.mxu0 %v621
  %1647 = vmatmul.mubr.bf16.gmra.mxu0 %v620
  %v1648 = vpop.f32.mrf.mxu0
  %v1649 = vadd.f32 %v1513, %v1648
  %v1650 = vpop.f32.mrf.mxu0
  %v1651 = vpop.f32.mrf.mxu0
  %v1652 = vadd.f32 %v1516, %v1651
  %v1653 = vpop.f32.mrf.mxu0
  %1654 = vmatprep.mubr.bf16.mxu0 %v629
  %1655 = vmatmul.mubr.bf16.gmra.mxu0 %v628
  %v1656 = vpop.f32.mrf.mxu0
  %v1657 = vadd.f32 %v1521, %v1656
  %v1658 = vpop.f32.mrf.mxu0
  %v1659 = vpop.f32.mrf.mxu0
  %v1660 = vadd.f32 %v1524, %v1659
  %v1661 = vpop.f32.mrf.mxu0
  %1662 = vmatprep.mubr.bf16.mxu0 %v637
  %1663 = vmatmul.mubr.bf16.gmra.mxu0 %v636
  %v1664 = vpop.f32.mrf.mxu0
  %v1665 = vadd.f32 %v1529, %v1664
  %v1666 = vpop.f32.mrf.mxu0
  %v1667 = vpop.f32.mrf.mxu0
  %v1668 = vadd.f32 %v1532, %v1667
  %v1669 = vpop.f32.mrf.mxu0
  %1670 = vmatprep.mubr.bf16.mxu0 %v645
  %1671 = vmatmul.mubr.bf16.gmra.mxu0 %v644
  %v1672 = vpop.f32.mrf.mxu0
  %v1673 = vadd.f32 %v1537, %v1672
  %v1674 = vpop.f32.mrf.mxu0
  %v1675 = vpop.f32.mrf.mxu0
  %v1676 = vadd.f32 %v1540, %v1675
  %v1677 = vpop.f32.mrf.mxu0
  %1678 = vmatprep.mubr.bf16.mxu0 %v653
  %1679 = vmatmul.mubr.bf16.gmra.mxu0 %v652
  %v1680 = vpop.f32.mrf.mxu0
  %v1681 = vadd.f32 %v1545, %v1680
  %v1682 = vpop.f32.mrf.mxu0
  %v1683 = vpop.f32.mrf.mxu0
  %v1684 = vpop.f32.mrf.mxu0
  %1685 = vdwg.mxu0
  %v1686 = vmax.f32 %v1585, 0.0
  %v1687 = vmax.f32 %v1588, 0.0
  %v1688 = vmax.f32 %v1593, 0.0
  %v1689 = vmax.f32 %v1596, 0.0
  %v1690 = vmax.f32 %v1601, 0.0
  %v1691 = vmax.f32 %v1604, 0.0
  %v1692 = vmax.f32 %v1609, 0.0
  %v1693 = vmax.f32 %v1612, 0.0
  %v1694 = vmax.f32 %v1617, 0.0
  %v1695 = vmax.f32 %v1620, 0.0
  %v1696 = vmax.f32 %v1625, 0.0
  %v1697 = vmax.f32 %v1628, 0.0
  %v1698 = vmax.f32 %v1633, 0.0
  %v1699 = vmax.f32 %v1636, 0.0
  %v1700 = vmax.f32 %v1641, 0.0
  %v1701 = vmax.f32 %v1644, 0.0
  %v1702 = vmax.f32 %v1649, 0.0
  %v1703 = vmax.f32 %v1652, 0.0
  %v1704 = vmax.f32 %v1657, 0.0
  %v1705 = vmax.f32 %v1660, 0.0
  %v1706 = vmax.f32 %v1665, 0.0
  %v1707 = vmax.f32 %v1668, 0.0
  %v1708 = vmax.f32 %v1673, 0.0
  %v1709 = vmax.f32 %v1676, 0.0
  %v1710 = vmax.f32 %v1681, 0.0
  %v1711 = vpack.c.bf16 %v1687, %v1686
  %v1712 = vpack.c.bf16 %v1689, %v1688
  %v1713 = vpack.c.bf16 %v1691, %v1690
  %v1714 = vpack.c.bf16 %v1693, %v1692
  %v1715 = vpack.c.bf16 %v1695, %v1694
  %v1716 = vpack.c.bf16 %v1697, %v1696
  %v1717 = vpack.c.bf16 %v1699, %v1698
  %v1718 = vpack.c.bf16 %v1701, %v1700
  %v1719 = vpack.c.bf16 %v1703, %v1702
  %v1720 = vpack.c.bf16 %v1705, %v1704
  %v1721 = vpack.c.bf16 %v1707, %v1706
  %v1722 = vpack.c.bf16 %v1709, %v1708
  %v1723 = vpack.c.bf16 %v1710, %v1710
  %v1737 = vunpack.c.l.b16 %v1711
  %v1738 = vunpack.c.h.b16 %v1711
  %v1739 = vunpack.c.l.b16 %v1712
  %v1740 = vunpack.c.h.b16 %v1712
  %v1741 = vunpack.c.l.b16 %v1713
  %v1742 = vunpack.c.h.b16 %v1713
  %v1743 = vunpack.c.l.b16 %v1714
  %v1744 = vunpack.c.h.b16 %v1714
  %v1745 = vunpack.c.l.b16 %v1715
  %v1746 = vunpack.c.h.b16 %v1715
  %v1747 = vunpack.c.l.b16 %v1716
  %v1748 = vunpack.c.h.b16 %v1716
  %v1749 = vunpack.c.l.b16 %v1717
  %v1750 = vunpack.c.h.b16 %v1717
  %v1751 = vunpack.c.l.b16 %v1718
  %v1752 = vunpack.c.h.b16 %v1718
  %v1753 = vunpack.c.l.b16 %v1719
  %v1754 = vunpack.c.h.b16 %v1719
  %v1755 = vunpack.c.l.b16 %v1720
  %v1756 = vunpack.c.h.b16 %v1720
  %v1757 = vunpack.c.l.b16 %v1721
  %v1758 = vunpack.c.h.b16 %v1721
  %v1759 = vunpack.c.l.b16 %v1722
  %v1760 = vunpack.c.h.b16 %v1722
  %v1761 = vunpack.c.l.b16 %v1723
  %v1762 = vpack.c.b16 %v1737, %v1737
  %v1763 = vpack.c.b16 %v1738, %v1738
  %v1764 = vpack.c.b16 %v1739, %v1739
  %v1765 = vpack.c.b16 %v1740, %v1740
  %v1766 = vpack.c.b16 %v1741, %v1741
  %v1767 = vpack.c.b16 %v1742, %v1742
  %v1768 = vpack.c.b16 %v1743, %v1743
  %v1769 = vpack.c.b16 %v1744, %v1744
  %v1770 = vpack.c.b16 %v1745, %v1745
  %v1771 = vpack.c.b16 %v1746, %v1746
  %v1772 = vpack.c.b16 %v1747, %v1747
  %v1773 = vpack.c.b16 %v1748, %v1748
  %v1774 = vpack.c.b16 %v1749, %v1749
  %v1775 = vpack.c.b16 %v1750, %v1750
  %v1776 = vpack.c.b16 %v1751, %v1751
  %v1777 = vpack.c.b16 %v1752, %v1752
  %v1778 = vpack.c.b16 %v1753, %v1753
  %v1779 = vpack.c.b16 %v1754, %v1754
  %v1780 = vpack.c.b16 %v1755, %v1755
  %v1781 = vpack.c.b16 %v1756, %v1756
  %v1782 = vpack.c.b16 %v1757, %v1757
  %v1783 = vpack.c.b16 %v1758, %v1758
  %v1784 = vpack.c.b16 %v1759, %v1759
  %v1785 = vpack.c.b16 %v1760, %v1760
  %v1786 = vpack.c.b16 %v1761, %v1761
  %1812 = vst [vmem:[%s3] sm:$0xf] %v1762
  %1813 = vst [vmem:[%s3 + $0x4] sm:$0xf] %v1763
  %1814 = vst [vmem:[%s3 + $0x8] sm:$0xf] %v1764
  %1815 = vst [vmem:[%s3 + $0xc] sm:$0xf] %v1765
  %1816 = vst [vmem:[%s3 + $0x10] sm:$0xf] %v1766
  %1817 = vst [vmem:[%s3 + $0x14] sm:$0xf] %v1767
  %1818 = vst [vmem:[%s3 + $0x18] sm:$0xf] %v1768
  %1819 = vst [vmem:[%s3 + $0x1c] sm:$0xf] %v1769
  %1820 = vst [vmem:[%s3 + $0x20] sm:$0xf] %v1770
  %1821 = vst [vmem:[%s3 + $0x24] sm:$0xf] %v1771
  %1822 = vst [vmem:[%s3 + $0x28] sm:$0xf] %v1772
  %1823 = vst [vmem:[%s3 + $0x2c] sm:$0xf] %v1773
  %1824 = vst [vmem:[%s3 + $0x30] sm:$0xf] %v1774
  %1825 = vst [vmem:[%s3 + $0x34] sm:$0xf] %v1775
  %1826 = vst [vmem:[%s3 + $0x38] sm:$0xf] %v1776
  %1827 = vst [vmem:[%s3 + $0x3c] sm:$0xf] %v1777
  %1828 = vst [vmem:[%s3 + $0x40] sm:$0xf] %v1778
  %1829 = vst [vmem:[%s3 + $0x44] sm:$0xf] %v1779
  %1830 = vst [vmem:[%s3 + $0x48] sm:$0xf] %v1780
  %1831 = vst [vmem:[%s3 + $0x4c] sm:$0xf] %v1781
  %1832 = vst [vmem:[%s3 + $0x50] sm:$0xf] %v1782
  %1833 = vst [vmem:[%s3 + $0x54] sm:$0xf] %v1783
  %1834 = vst [vmem:[%s3 + $0x58] sm:$0xf] %v1784
  %1835 = vst [vmem:[%s3 + $0x5c] sm:$0xf] %v1785
  %1836 = vst [vmem:[%s3 + $0x60] sm:$0xf] %v1786
  // Predicated region
  $region14: #{atari_qr_forward.4} parent=0 // pred_check
    _
  $region15: #{atari_qr_forward.4} parent=0 // pred_check_branch
    %1838 = sbr.rel (0) target = $region17
  $region16: #{atari_qr_forward.4} parent=0 // pred_region
    _
  $region17: #{atari_qr_forward.4} parent=0 // pred_fallthru
    _
  // Predicated region
  $region18: #{atari_qr_forward.4} parent=0 // pred_check
    _
  $region19: #{atari_qr_forward.4} parent=0 // pred_check_branch
    %1840 = sbr.rel (0) target = $region21
  $region20: #{atari_qr_forward.4} parent=0 // pred_region
    _
  $region21: #{atari_qr_forward.4} parent=0 // pred_fallthru
    _

// kernel: atari_qr_forward.5
$region0: #{atari_qr_forward.5}
  #allocation0 [shape = 'u32[]', space=smem, size = 0x4, offset = 0x4, fixed_abs, tag = 'smem constant byte address 0x4 - core index']
  #allocation1 [shape = 'u32[144,128]{1,0:T(1,128)}', space=vmem, size = 0x12000, scoped, tag = 'internal scratch']
  %s0 = inlined_call_operand.vmem [shape: bf16[88,1024], index: 0, kind: input, shape index: {}]
  %s1 = inlined_call_operand.vmem [shape: bf16[1024,128], index: 1, kind: input, shape index: {}]
  %s2 = inlined_call_operand.vmem [shape: f32[1,128], index: 2, kind: input, shape index: {}]
  %s3 = inlined_call_operand.vmem [shape: bf16[88,128], index: 3, kind: output, shape index: {}]
  %s4 = sld [smem:[#allocation0]]
  $region22: #{atari_qr_forward.5} parent=0
    _
  %s6 = ssub.s32 1, %s4
  %s7 = scalar_select 0, %s6, %s4
  // Predicated region
  $region2: #{atari_qr_forward.5} parent=0 // pred_check
    _
  $region3: #{atari_qr_forward.5} parent=0 // pred_check_branch
    %9 = sbr.rel (0) target = $region5
  $region4: #{atari_qr_forward.5} parent=0 // pred_region
    _
  $region5: #{atari_qr_forward.5} parent=0 // pred_fallthru
    _
  // Predicated region
  $region6: #{atari_qr_forward.5} parent=0 // pred_check
    _
  $region7: #{atari_qr_forward.5} parent=0 // pred_check_branch
    %11 = sbr.rel (0) target = $region9
  $region8: #{atari_qr_forward.5} parent=0 // pred_region
    _
  $region9: #{atari_qr_forward.5} parent=0 // pred_fallthru
    _
  // Predicated region
  $region10: #{atari_qr_forward.5} parent=0 // pred_check
    _
  $region11: #{atari_qr_forward.5} parent=0 // pred_check_branch
    %13 = sbr.rel (0) target = $region13
  $region12: #{atari_qr_forward.5} parent=0 // pred_region
    _
  $region13: #{atari_qr_forward.5} parent=0 // pred_fallthru
    _
  %v15 = vld [vmem:[%s0] sm:$0xff]
  %v16 = vld [vmem:[%s0 + $0x8] sm:$0xff]
  %v17 = vld [vmem:[%s0 + $0x10] sm:$0xff]
  %v18 = vld [vmem:[%s0 + $0x18] sm:$0xff]
  %v19 = vld [vmem:[%s0 + $0x20] sm:$0xff]
  %v20 = vld [vmem:[%s0 + $0x28] sm:$0xff]
  %v21 = vld [vmem:[%s0 + $0x30] sm:$0xff]
  %v22 = vld [vmem:[%s0 + $0x38] sm:$0xff]
  %v23 = vld [vmem:[%s0 + $0x40] sm:$0xff]
  %v24 = vld [vmem:[%s0 + $0x48] sm:$0xff]
  %v25 = vld [vmem:[%s0 + $0x50] sm:$0xff]
  %v26 = vld [vmem:[%s0 + $0x58] sm:$0xff]
  %v27 = vld [vmem:[%s0 + $0x60] sm:$0xff]
  %v28 = vld [vmem:[%s0 + $0x68] sm:$0xff]
  %v29 = vld [vmem:[%s0 + $0x70] sm:$0xff]
  %v30 = vld [vmem:[%s0 + $0x78] sm:$0xff]
  %v31 = vld [vmem:[%s0 + $0x80] sm:$0xff]
  %v32 = vld [vmem:[%s0 + $0x88] sm:$0xff]
  %v33 = vld [vmem:[%s0 + $0x90] sm:$0xff]
  %v34 = vld [vmem:[%s0 + $0x98] sm:$0xff]
  %v35 = vld [vmem:[%s0 + $0xa0] sm:$0xff]
  %v36 = vld [vmem:[%s0 + $0xa8] sm:$0xff]
  %v37 = vld [vmem:[%s0 + $0xb0] sm:$0xff]
  %v38 = vld [vmem:[%s0 + $0xb8] sm:$0xff]
  %v39 = vld [vmem:[%s0 + $0xc0] sm:$0xff]
  %v40 = vld [vmem:[%s0 + $0xc8] sm:$0xff]
  %v41 = vld [vmem:[%s0 + $0xd0] sm:$0xff]
  %v42 = vld [vmem:[%s0 + $0xd8] sm:$0xff]
  %v43 = vld [vmem:[%s0 + $0xe0] sm:$0xff]
  %v44 = vld [vmem:[%s0 + $0xe8] sm:$0xff]
  %v45 = vld [vmem:[%s0 + $0xf0] sm:$0xff]
  %v46 = vld [vmem:[%s0 + $0xf8] sm:$0xff]
  %v47 = vld [vmem:[%s0 + $0x100] sm:$0xff]
  %v48 = vld [vmem:[%s0 + $0x108] sm:$0xff]
  %v49 = vld [vmem:[%s0 + $0x110] sm:$0xff]
  %v50 = vld [vmem:[%s0 + $0x118] sm:$0xff]
  %v51 = vld [vmem:[%s0 + $0x120] sm:$0xff]
  %v52 = vld [vmem:[%s0 + $0x128] sm:$0xff]
  %v53 = vld [vmem:[%s0 + $0x130] sm:$0xff]
  %v54 = vld [vmem:[%s0 + $0x138] sm:$0xff]
  %v55 = vld [vmem:[%s0 + $0x140] sm:$0xff]
  %v56 = vld [vmem:[%s0 + $0x148] sm:$0xff]
  %v57 = vld [vmem:[%s0 + $0x150] sm:$0xff]
  %v58 = vld [vmem:[%s0 + $0x158] sm:$0xff]
  %v59 = vld [vmem:[%s1] sm:$0xf]
  %v60 = vld [vmem:[%s1 + $0x4] sm:$0xf]
  %v61 = vld [vmem:[%s1 + $0x8] sm:$0xf]
  %v62 = vld [vmem:[%s1 + $0xc] sm:$0xf]
  %v63 = vld [vmem:[%s1 + $0x10] sm:$0xf]
  %v64 = vld [vmem:[%s1 + $0x14] sm:$0xf]
  %v65 = vld [vmem:[%s1 + $0x18] sm:$0xf]
  %v66 = vld [vmem:[%s1 + $0x1c] sm:$0xf]
  %v67 = vld [vmem:[%s1 + $0x20] sm:$0xf]
  %v68 = vld [vmem:[%s1 + $0x24] sm:$0xf]
  %v69 = vld [vmem:[%s1 + $0x28] sm:$0xf]
  %v70 = vld [vmem:[%s1 + $0x2c] sm:$0xf]
  %v71 = vld [vmem:[%s1 + $0x30] sm:$0xf]
  %v72 = vld [vmem:[%s1 + $0x34] sm:$0xf]
  %v73 = vld [vmem:[%s1 + $0x38] sm:$0xf]
  %v74 = vld [vmem:[%s1 + $0x3c] sm:$0xf]
  %v75 = vld [vmem:[%s1 + $0x40] sm:$0xf]
  %v76 = vld [vmem:[%s1 + $0x44] sm:$0xf]
  %v77 = vld [vmem:[%s1 + $0x48] sm:$0xf]
  %v78 = vld [vmem:[%s1 + $0x4c] sm:$0xf]
  %v79 = vld [vmem:[%s1 + $0x50] sm:$0xf]
  %v80 = vld [vmem:[%s1 + $0x54] sm:$0xf]
  %v81 = vld [vmem:[%s1 + $0x58] sm:$0xf]
  %v82 = vld [vmem:[%s1 + $0x5c] sm:$0xf]
  %v83 = vld [vmem:[%s1 + $0x60] sm:$0xf]
  %v84 = vld [vmem:[%s1 + $0x64] sm:$0xf]
  %v85 = vld [vmem:[%s1 + $0x68] sm:$0xf]
  %v86 = vld [vmem:[%s1 + $0x6c] sm:$0xf]
  %v87 = vld [vmem:[%s1 + $0x70] sm:$0xf]
  %v88 = vld [vmem:[%s1 + $0x74] sm:$0xf]
  %v89 = vld [vmem:[%s1 + $0x78] sm:$0xf]
  %v90 = vld [vmem:[%s1 + $0x7c] sm:$0xf]
  %v91 = vld [vmem:[%s1 + $0x80] sm:$0xf]
  %v92 = vld [vmem:[%s1 + $0x84] sm:$0xf]
  %v93 = vld [vmem:[%s1 + $0x88] sm:$0xf]
  %v94 = vld [vmem:[%s1 + $0x8c] sm:$0xf]
  %v95 = vld [vmem:[%s1 + $0x90] sm:$0xf]
  %v96 = vld [vmem:[%s1 + $0x94] sm:$0xf]
  %v97 = vld [vmem:[%s1 + $0x98] sm:$0xf]
  %v98 = vld [vmem:[%s1 + $0x9c] sm:$0xf]
  %v99 = vld [vmem:[%s1 + $0xa0] sm:$0xf]
  %v100 = vld [vmem:[%s1 + $0xa4] sm:$0xf]
  %v101 = vld [vmem:[%s1 + $0xa8] sm:$0xf]
  %v102 = vld [vmem:[%s1 + $0xac] sm:$0xf]
  %v103 = vld [vmem:[%s1 + $0xb0] sm:$0xf]
  %v104 = vld [vmem:[%s1 + $0xb4] sm:$0xf]
  %v105 = vld [vmem:[%s1 + $0xb8] sm:$0xf]
  %v106 = vld [vmem:[%s1 + $0xbc] sm:$0xf]
  %v107 = vld [vmem:[%s1 + $0xc0] sm:$0xf]
  %v108 = vld [vmem:[%s1 + $0xc4] sm:$0xf]
  %v109 = vld [vmem:[%s1 + $0xc8] sm:$0xf]
  %v110 = vld [vmem:[%s1 + $0xcc] sm:$0xf]
  %v111 = vld [vmem:[%s1 + $0xd0] sm:$0xf]
  %v112 = vld [vmem:[%s1 + $0xd4] sm:$0xf]
  %v113 = vld [vmem:[%s1 + $0xd8] sm:$0xf]
  %v114 = vld [vmem:[%s1 + $0xdc] sm:$0xf]
  %v115 = vld [vmem:[%s1 + $0xe0] sm:$0xf]
  %v116 = vld [vmem:[%s1 + $0xe4] sm:$0xf]
  %v117 = vld [vmem:[%s1 + $0xe8] sm:$0xf]
  %v118 = vld [vmem:[%s1 + $0xec] sm:$0xf]
  %v119 = vld [vmem:[%s1 + $0xf0] sm:$0xf]
  %v120 = vld [vmem:[%s1 + $0xf4] sm:$0xf]
  %v121 = vld [vmem:[%s1 + $0xf8] sm:$0xf]
  %v122 = vld [vmem:[%s1 + $0xfc] sm:$0xf]
  %v123 = vld [vmem:[%s1 + $0x100] sm:$0xf]
  %v124 = vld [vmem:[%s1 + $0x104] sm:$0xf]
  %v125 = vld [vmem:[%s1 + $0x108] sm:$0xf]
  %v126 = vld [vmem:[%s1 + $0x10c] sm:$0xf]
  %v127 = vld [vmem:[%s1 + $0x110] sm:$0xf]
  %v128 = vld [vmem:[%s1 + $0x114] sm:$0xf]
  %v129 = vld [vmem:[%s1 + $0x118] sm:$0xf]
  %v130 = vld [vmem:[%s1 + $0x11c] sm:$0xf]
  %v131 = vld [vmem:[%s1 + $0x120] sm:$0xf]
  %v132 = vld [vmem:[%s1 + $0x124] sm:$0xf]
  %v133 = vld [vmem:[%s1 + $0x128] sm:$0xf]
  %v134 = vld [vmem:[%s1 + $0x12c] sm:$0xf]
  %v135 = vld [vmem:[%s1 + $0x130] sm:$0xf]
  %v136 = vld [vmem:[%s1 + $0x134] sm:$0xf]
  %v137 = vld [vmem:[%s1 + $0x138] sm:$0xf]
  %v138 = vld [vmem:[%s1 + $0x13c] sm:$0xf]
  %v139 = vld [vmem:[%s1 + $0x140] sm:$0xf]
  %v140 = vld [vmem:[%s1 + $0x144] sm:$0xf]
  %v141 = vld [vmem:[%s1 + $0x148] sm:$0xf]
  %v142 = vld [vmem:[%s1 + $0x14c] sm:$0xf]
  %v143 = vld [vmem:[%s1 + $0x150] sm:$0xf]
  %v144 = vld [vmem:[%s1 + $0x154] sm:$0xf]
  %v145 = vld [vmem:[%s1 + $0x158] sm:$0xf]
  %v146 = vld [vmem:[%s1 + $0x15c] sm:$0xf]
  %v147 = vld [vmem:[%s1 + $0x160] sm:$0xf]
  %v148 = vld [vmem:[%s1 + $0x164] sm:$0xf]
  %v149 = vld [vmem:[%s1 + $0x168] sm:$0xf]
  %v150 = vld [vmem:[%s1 + $0x16c] sm:$0xf]
  %v151 = vld [vmem:[%s1 + $0x170] sm:$0xf]
  %v152 = vld [vmem:[%s1 + $0x174] sm:$0xf]
  %v153 = vld [vmem:[%s1 + $0x178] sm:$0xf]
  %v154 = vld [vmem:[%s1 + $0x17c] sm:$0xf]
  %v155 = vld [vmem:[%s1 + $0x180] sm:$0xf]
  %v156 = vld [vmem:[%s1 + $0x184] sm:$0xf]
  %v157 = vld [vmem:[%s1 + $0x188] sm:$0xf]
  %v158 = vld [vmem:[%s1 + $0x18c] sm:$0xf]
  %v159 = vld [vmem:[%s1 + $0x190] sm:$0xf]
  %v160 = vld [vmem:[%s1 + $0x194] sm:$0xf]
  %v161 = vld [vmem:[%s1 + $0x198] sm:$0xf]
  %v162 = vld [vmem:[%s1 + $0x19c] sm:$0xf]
  %v163 = vld [vmem:[%s1 + $0x1a0] sm:$0xf]
  %v164 = vld [vmem:[%s1 + $0x1a4] sm:$0xf]
  %v165 = vld [vmem:[%s1 + $0x1a8] sm:$0xf]
  %v166 = vld [vmem:[%s1 + $0x1ac] sm:$0xf]
  %v167 = vld [vmem:[%s1 + $0x1b0] sm:$0xf]
  %v168 = vld [vmem:[%s1 + $0x1b4] sm:$0xf]
  %v169 = vld [vmem:[%s1 + $0x1b8] sm:$0xf]
  %v170 = vld [vmem:[%s1 + $0x1bc] sm:$0xf]
  %v171 = vld [vmem:[%s1 + $0x1c0] sm:$0xf]
  %v172 = vld [vmem:[%s1 + $0x1c4] sm:$0xf]
  %v173 = vld [vmem:[%s1 + $0x1c8] sm:$0xf]
  %v174 = vld [vmem:[%s1 + $0x1cc] sm:$0xf]
  %v175 = vld [vmem:[%s1 + $0x1d0] sm:$0xf]
  %v176 = vld [vmem:[%s1 + $0x1d4] sm:$0xf]
  %v177 = vld [vmem:[%s1 + $0x1d8] sm:$0xf]
  %v178 = vld [vmem:[%s1 + $0x1dc] sm:$0xf]
  %v179 = vld [vmem:[%s1 + $0x1e0] sm:$0xf]
  %v180 = vld [vmem:[%s1 + $0x1e4] sm:$0xf]
  %v181 = vld [vmem:[%s1 + $0x1e8] sm:$0xf]
  %v182 = vld [vmem:[%s1 + $0x1ec] sm:$0xf]
  %v183 = vld [vmem:[%s1 + $0x1f0] sm:$0xf]
  %v184 = vld [vmem:[%s1 + $0x1f4] sm:$0xf]
  %v185 = vld [vmem:[%s1 + $0x1f8] sm:$0xf]
  %v186 = vld [vmem:[%s1 + $0x1fc] sm:$0xf]
  %v187 = vld [vmem:[%s2] sm:$0x1]
  %v189 = vlaneseq
  %v190 = vshrl.u32 %v189, 7
  %v191 = vsub.s32 0, %v190
  %v192 = vrot.slane %v187, %v191
  %v238 = vunpack.c.l.b16 %v15
  %v239 = vunpack.c.h.b16 %v15
  %v240 = vunpack.c.l.b16 %v16
  %v241 = vunpack.c.h.b16 %v16
  %v242 = vunpack.c.l.b16 %v17
  %v243 = vunpack.c.h.b16 %v17
  %v244 = vunpack.c.l.b16 %v18
  %v245 = vunpack.c.h.b16 %v18
  %v246 = vunpack.c.l.b16 %v19
  %v247 = vunpack.c.h.b16 %v19
  %v248 = vunpack.c.l.b16 %v20
  %v249 = vunpack.c.h.b16 %v20
  %v250 = vunpack.c.l.b16 %v21
  %v251 = vunpack.c.h.b16 %v21
  %v252 = vunpack.c.l.b16 %v22
  %v253 = vunpack.c.h.b16 %v22
  %v254 = vunpack.c.l.b16 %v23
  %v255 = vunpack.c.h.b16 %v23
  %v256 = vunpack.c.l.b16 %v24
  %v257 = vunpack.c.h.b16 %v24
  %v258 = vunpack.c.l.b16 %v25
  %v259 = vunpack.c.h.b16 %v25
  %v260 = vunpack.c.l.b16 %v26
  %v261 = vunpack.c.h.b16 %v26
  %v262 = vunpack.c.l.b16 %v27
  %v263 = vunpack.c.h.b16 %v27
  %v264 = vunpack.c.l.b16 %v28
  %v265 = vunpack.c.h.b16 %v28
  %v266 = vunpack.c.l.b16 %v29
  %v267 = vunpack.c.h.b16 %v29
  %v268 = vunpack.c.l.b16 %v30
  %v269 = vunpack.c.h.b16 %v30
  %v270 = vunpack.c.l.b16 %v31
  %v271 = vunpack.c.h.b16 %v31
  %v272 = vunpack.c.l.b16 %v32
  %v273 = vunpack.c.h.b16 %v32
  %v274 = vunpack.c.l.b16 %v33
  %v275 = vunpack.c.h.b16 %v33
  %v276 = vunpack.c.l.b16 %v34
  %v277 = vunpack.c.h.b16 %v34
  %v278 = vunpack.c.l.b16 %v35
  %v279 = vunpack.c.h.b16 %v35
  %v280 = vunpack.c.l.b16 %v36
  %v281 = vunpack.c.h.b16 %v36
  %v282 = vunpack.c.l.b16 %v37
  %v283 = vunpack.c.h.b16 %v37
  %v284 = vunpack.c.l.b16 %v38
  %v285 = vunpack.c.h.b16 %v38
  %v286 = vunpack.c.l.b16 %v39
  %v287 = vunpack.c.h.b16 %v39
  %v288 = vunpack.c.l.b16 %v40
  %v289 = vunpack.c.h.b16 %v40
  %v290 = vunpack.c.l.b16 %v41
  %v291 = vunpack.c.h.b16 %v41
  %v292 = vunpack.c.l.b16 %v42
  %v293 = vunpack.c.h.b16 %v42
  %v294 = vunpack.c.l.b16 %v43
  %v295 = vunpack.c.h.b16 %v43
  %v296 = vunpack.c.l.b16 %v44
  %v297 = vunpack.c.h.b16 %v44
  %v298 = vunpack.c.l.b16 %v45
  %v299 = vunpack.c.h.b16 %v45
  %v300 = vunpack.c.l.b16 %v46
  %v301 = vunpack.c.h.b16 %v46
  %v302 = vunpack.c.l.b16 %v47
  %v303 = vunpack.c.h.b16 %v47
  %v304 = vunpack.c.l.b16 %v48
  %v305 = vunpack.c.h.b16 %v48
  %v306 = vunpack.c.l.b16 %v49
  %v307 = vunpack.c.h.b16 %v49
  %v308 = vunpack.c.l.b16 %v50
  %v309 = vunpack.c.h.b16 %v50
  %v310 = vunpack.c.l.b16 %v51
  %v311 = vunpack.c.h.b16 %v51
  %v312 = vunpack.c.l.b16 %v52
  %v313 = vunpack.c.h.b16 %v52
  %v314 = vunpack.c.l.b16 %v53
  %v315 = vunpack.c.h.b16 %v53
  %v316 = vunpack.c.l.b16 %v54
  %v317 = vunpack.c.h.b16 %v54
  %v318 = vunpack.c.l.b16 %v55
  %v319 = vunpack.c.h.b16 %v55
  %v320 = vunpack.c.l.b16 %v56
  %v321 = vunpack.c.h.b16 %v56
  %v322 = vunpack.c.l.b16 %v57
  %v323 = vunpack.c.h.b16 %v57
  %v324 = vunpack.c.l.b16 %v58
  %v325 = vunpack.c.h.b16 %v58
  %v326 = vpack.c.b16 %v246, %v238
  %v327 = vpack.c.b16 %v247, %v239
  %v328 = vpack.c.b16 %v248, %v240
  %v329 = vpack.c.b16 %v249, %v241
  %v330 = vpack.c.b16 %v250, %v242
  %v331 = vpack.c.b16 %v251, %v243
  %v332 = vpack.c.b16 %v252, %v244
  %v333 = vpack.c.b16 %v253, %v245
  %v334 = vpack.c.b16 %v262, %v254
  %v335 = vpack.c.b16 %v263, %v255
  %v336 = vpack.c.b16 %v264, %v256
  %v337 = vpack.c.b16 %v265, %v257
  %v338 = vpack.c.b16 %v266, %v258
  %v339 = vpack.c.b16 %v267, %v259
  %v340 = vpack.c.b16 %v268, %v260
  %v341 = vpack.c.b16 %v269, %v261
  %v342 = vpack.c.b16 %v278, %v270
  %v343 = vpack.c.b16 %v279, %v271
  %v344 = vpack.c.b16 %v280, %v272
  %v345 = vpack.c.b16 %v281, %v273
  %v346 = vpack.c.b16 %v282, %v274
  %v347 = vpack.c.b16 %v283, %v275
  %v348 = vpack.c.b16 %v284, %v276
  %v349 = vpack.c.b16 %v285, %v277
  %v350 = vpack.c.b16 %v294, %v286
  %v351 = vpack.c.b16 %v295, %v287
  %v352 = vpack.c.b16 %v296, %v288
  %v353 = vpack.c.b16 %v297, %v289
  %v354 = vpack.c.b16 %v298, %v290
  %v355 = vpack.c.b16 %v299, %v291
  %v356 = vpack.c.b16 %v300, %v292
  %v357 = vpack.c.b16 %v301, %v293
  %v358 = vpack.c.b16 %v310, %v302
  %v359 = vpack.c.b16 %v311, %v303
  %v360 = vpack.c.b16 %v312, %v304
  %v361 = vpack.c.b16 %v313, %v305
  %v362 = vpack.c.b16 %v314, %v306
  %v363 = vpack.c.b16 %v315, %v307
  %v364 = vpack.c.b16 %v316, %v308
  %v365 = vpack.c.b16 %v317, %v309
  %v366 = vpack.c.b16 %v318, %v318
  %v367 = vpack.c.b16 %v319, %v319
  %v368 = vpack.c.b16 %v320, %v320
  %v369 = vpack.c.b16 %v321, %v321
  %v370 = vpack.c.b16 %v322, %v322
  %v371 = vpack.c.b16 %v323, %v323
  %v372 = vpack.c.b16 %v324, %v324
  %v373 = vpack.c.b16 %v325, %v325
  %v550 = vunpack.c.l.b16 %v59
  %v551 = vunpack.c.l.b16 %v60
  %v552 = vunpack.c.l.b16 %v61
  %v553 = vunpack.c.l.b16 %v62
  %v554 = vunpack.c.l.b16 %v63
  %v555 = vunpack.c.l.b16 %v64
  %v556 = vunpack.c.l.b16 %v65
  %v557 = vunpack.c.l.b16 %v66
  %v558 = vunpack.c.l.b16 %v67
  %v559 = vunpack.c.l.b16 %v68
  %v560 = vunpack.c.l.b16 %v69
  %v561 = vunpack.c.l.b16 %v70
  %v562 = vunpack.c.l.b16 %v71
  %v563 = vunpack.c.l.b16 %v72
  %v564 = vunpack.c.l.b16 %v73
  %v565 = vunpack.c.l.b16 %v74
  %v566 = vunpack.c.l.b16 %v75
  %v567 = vunpack.c.l.b16 %v76
  %v568 = vunpack.c.l.b16 %v77
  %v569 = vunpack.c.l.b16 %v78
  %v570 = vunpack.c.l.b16 %v79
  %v571 = vunpack.c.l.b16 %v80
  %v572 = vunpack.c.l.b16 %v81
  %v573 = vunpack.c.l.b16 %v82
  %v574 = vunpack.c.l.b16 %v83
  %v575 = vunpack.c.l.b16 %v84
  %v576 = vunpack.c.l.b16 %v85
  %v577 = vunpack.c.l.b16 %v86
  %v578 = vunpack.c.l.b16 %v87
  %v579 = vunpack.c.l.b16 %v88
  %v580 = vunpack.c.l.b16 %v89
  %v581 = vunpack.c.l.b16 %v90
  %v582 = vunpack.c.l.b16 %v91
  %v583 = vunpack.c.l.b16 %v92
  %v584 = vunpack.c.l.b16 %v93
  %v585 = vunpack.c.l.b16 %v94
  %v586 = vunpack.c.l.b16 %v95
  %v587 = vunpack.c.l.b16 %v96
  %v588 = vunpack.c.l.b16 %v97
  %v589 = vunpack.c.l.b16 %v98
  %v590 = vunpack.c.l.b16 %v99
  %v591 = vunpack.c.l.b16 %v100
  %v592 = vunpack.c.l.b16 %v101
  %v593 = vunpack.c.l.b16 %v102
  %v594 = vunpack.c.l.b16 %v103
  %v595 = vunpack.c.l.b16 %v104
  %v596 = vunpack.c.l.b16 %v105
  %v597 = vunpack.c.l.b16 %v106
  %v598 = vunpack.c.l.b16 %v107
  %v599 = vunpack.c.l.b16 %v108
  %v600 = vunpack.c.l.b16 %v109
  %v601 = vunpack.c.l.b16 %v110
  %v602 = vunpack.c.l.b16 %v111
  %v603 = vunpack.c.l.b16 %v112
  %v604 = vunpack.c.l.b16 %v113
  %v605 = vunpack.c.l.b16 %v114
  %v606 = vunpack.c.l.b16 %v115
  %v607 = vunpack.c.l.b16 %v116
  %v608 = vunpack.c.l.b16 %v117
  %v609 = vunpack.c.l.b16 %v118
  %v610 = vunpack.c.l.b16 %v119
  %v611 = vunpack.c.l.b16 %v120
  %v612 = vunpack.c.l.b16 %v121
  %v613 = vunpack.c.l.b16 %v122
  %v614 = vunpack.c.l.b16 %v123
  %v615 = vunpack.c.l.b16 %v124
  %v616 = vunpack.c.l.b16 %v125
  %v617 = vunpack.c.l.b16 %v126
  %v618 = vunpack.c.l.b16 %v127
  %v619 = vunpack.c.l.b16 %v128
  %v620 = vunpack.c.l.b16 %v129
  %v621 = vunpack.c.l.b16 %v130
  %v622 = vunpack.c.l.b16 %v131
  %v623 = vunpack.c.l.b16 %v132
  %v624 = vunpack.c.l.b16 %v133
  %v625 = vunpack.c.l.b16 %v134
  %v626 = vunpack.c.l.b16 %v135
  %v627 = vunpack.c.l.b16 %v136
  %v628 = vunpack.c.l.b16 %v137
  %v629 = vunpack.c.l.b16 %v138
  %v630 = vunpack.c.l.b16 %v139
  %v631 = vunpack.c.l.b16 %v140
  %v632 = vunpack.c.l.b16 %v141
  %v633 = vunpack.c.l.b16 %v142
  %v634 = vunpack.c.l.b16 %v143
  %v635 = vunpack.c.l.b16 %v144
  %v636 = vunpack.c.l.b16 %v145
  %v637 = vunpack.c.l.b16 %v146
  %v638 = vunpack.c.l.b16 %v147
  %v639 = vunpack.c.l.b16 %v148
  %v640 = vunpack.c.l.b16 %v149
  %v641 = vunpack.c.l.b16 %v150
  %v642 = vunpack.c.l.b16 %v151
  %v643 = vunpack.c.l.b16 %v152
  %v644 = vunpack.c.l.b16 %v153
  %v645 = vunpack.c.l.b16 %v154
  %v646 = vunpack.c.l.b16 %v155
  %v647 = vunpack.c.l.b16 %v156
  %v648 = vunpack.c.l.b16 %v157
  %v649 = vunpack.c.l.b16 %v158
  %v650 = vunpack.c.l.b16 %v159
  %v651 = vunpack.c.l.b16 %v160
  %v652 = vunpack.c.l.b16 %v161
  %v653 = vunpack.c.l.b16 %v162
  %v654 = vunpack.c.l.b16 %v163
  %v655 = vunpack.c.l.b16 %v164
  %v656 = vunpack.c.l.b16 %v165
  %v657 = vunpack.c.l.b16 %v166
  %v658 = vunpack.c.l.b16 %v167
  %v659 = vunpack.c.l.b16 %v168
  %v660 = vunpack.c.l.b16 %v169
  %v661 = vunpack.c.l.b16 %v170
  %v662 = vunpack.c.l.b16 %v171
  %v663 = vunpack.c.l.b16 %v172
  %v664 = vunpack.c.l.b16 %v173
  %v665 = vunpack.c.l.b16 %v174
  %v666 = vunpack.c.l.b16 %v175
  %v667 = vunpack.c.l.b16 %v176
  %v668 = vunpack.c.l.b16 %v177
  %v669 = vunpack.c.l.b16 %v178
  %v670 = vunpack.c.l.b16 %v179
  %v671 = vunpack.c.l.b16 %v180
  %v672 = vunpack.c.l.b16 %v181
  %v673 = vunpack.c.l.b16 %v182
  %v674 = vunpack.c.l.b16 %v183
  %v675 = vunpack.c.l.b16 %v184
  %v676 = vunpack.c.l.b16 %v185
  %v677 = vunpack.c.l.b16 %v186
  %v678 = vpack.c.b16 %v551, %v550
  %v679 = vpack.c.b16 %v553, %v552
  %v680 = vpack.c.b16 %v555, %v554
  %v681 = vpack.c.b16 %v557, %v556
  %v682 = vpack.c.b16 %v559, %v558
  %v683 = vpack.c.b16 %v561, %v560
  %v684 = vpack.c.b16 %v563, %v562
  %v685 = vpack.c.b16 %v565, %v564
  %v686 = vpack.c.b16 %v567, %v566
  %v687 = vpack.c.b16 %v569, %v568
  %v688 = vpack.c.b16 %v571, %v570
  %v689 = vpack.c.b16 %v573, %v572
  %v690 = vpack.c.b16 %v575, %v574
  %v691 = vpack.c.b16 %v577, %v576
  %v692 = vpack.c.b16 %v579, %v578
  %v693 = vpack.c.b16 %v581, %v580
  %v694 = vpack.c.b16 %v583, %v582
  %v695 = vpack.c.b16 %v585, %v584
  %v696 = vpack.c.b16 %v587, %v586
  %v697 = vpack.c.b16 %v589, %v588
  %v698 = vpack.c.b16 %v591, %v590
  %v699 = vpack.c.b16 %v593, %v592
  %v700 = vpack.c.b16 %v595, %v594
  %v701 = vpack.c.b16 %v597, %v596
  %v702 = vpack.c.b16 %v599, %v598
  %v703 = vpack.c.b16 %v601, %v600
  %v704 = vpack.c.b16 %v603, %v602
  %v705 = vpack.c.b16 %v605, %v604
  %v706 = vpack.c.b16 %v607, %v606
  %v707 = vpack.c.b16 %v609, %v608
  %v708 = vpack.c.b16 %v611, %v610
  %v709 = vpack.c.b16 %v613, %v612
  %v710 = vpack.c.b16 %v615, %v614
  %v711 = vpack.c.b16 %v617, %v616
  %v712 = vpack.c.b16 %v619, %v618
  %v713 = vpack.c.b16 %v621, %v620
  %v714 = vpack.c.b16 %v623, %v622
  %v715 = vpack.c.b16 %v625, %v624
  %v716 = vpack.c.b16 %v627, %v626
  %v717 = vpack.c.b16 %v629, %v628
  %v718 = vpack.c.b16 %v631, %v630
  %v719 = vpack.c.b16 %v633, %v632
  %v720 = vpack.c.b16 %v635, %v634
  %v721 = vpack.c.b16 %v637, %v636
  %v722 = vpack.c.b16 %v639, %v638
  %v723 = vpack.c.b16 %v641, %v640
  %v724 = vpack.c.b16 %v643, %v642
  %v725 = vpack.c.b16 %v645, %v644
  %v726 = vpack.c.b16 %v647, %v646
  %v727 = vpack.c.b16 %v649, %v648
  %v728 = vpack.c.b16 %v651, %v650
  %v729 = vpack.c.b16 %v653, %v652
  %v730 = vpack.c.b16 %v655, %v654
  %v731 = vpack.c.b16 %v657, %v656
  %v732 = vpack.c.b16 %v659, %v658
  %v733 = vpack.c.b16 %v661, %v660
  %v734 = vpack.c.b16 %v663, %v662
  %v735 = vpack.c.b16 %v665, %v664
  %v736 = vpack.c.b16 %v667, %v666
  %v737 = vpack.c.b16 %v669, %v668
  %v738 = vpack.c.b16 %v671, %v670
  %v739 = vpack.c.b16 %v673, %v672
  %v740 = vpack.c.b16 %v675, %v674
  %v741 = vpack.c.b16 %v677, %v676
  %806 = vmatprep.subr.bf16.mxu0 0
  %807 = vmatpush1.bf16.msra.mxu0 %v685
  %808 = vmatprep.subr.bf16.mxu0 0
  %809 = vmatpush1.bf16.msra.mxu0 %v684
  %810 = vmatprep.subr.bf16.mxu0 0
  %811 = vmatpush1.bf16.msra.mxu0 %v683
  %812 = vmatprep.subr.bf16.mxu0 0
  %813 = vmatpush1.bf16.msra.mxu0 %v682
  %814 = vmatprep.subr.bf16.mxu0 0
  %815 = vmatpush1.bf16.msra.mxu0 %v681
  %816 = vmatprep.subr.bf16.mxu0 0
  %817 = vmatpush1.bf16.msra.mxu0 %v680
  %818 = vmatprep.subr.bf16.mxu0 0
  %819 = vmatpush1.bf16.msra.mxu0 %v679
  %820 = vmatprep.subr.bf16.mxu0 0
  %821 = vmatpush1.bf16.msra.mxu0 %v678
  %822 = vmatprep.subr.bf16.mxu0 0
  %823 = vmatpush2.bf16.msra.mxu0 %v693
  %824 = vmatprep.subr.bf16.mxu0 0
  %825 = vmatpush2.bf16.msra.mxu0 %v692
  %826 = vmatprep.subr.bf16.mxu0 0
  %827 = vmatpush2.bf16.msra.mxu0 %v691
  %828 = vmatprep.subr.bf16.mxu0 0
  %829 = vmatpush2.bf16.msra.mxu0 %v690
  %830 = vmatprep.subr.bf16.mxu0 0
  %831 = vmatpush2.bf16.msra.mxu0 %v689
  %832 = vmatprep.subr.bf16.mxu0 0
  %833 = vmatpush2.bf16.msra.mxu0 %v688
  %834 = vmatprep.subr.bf16.mxu0 0
  %835 = vmatpush2.bf16.msra.mxu0 %v687
  %836 = vmatprep.subr.bf16.mxu0 0
  %837 = vmatpush2.bf16.msra.mxu0 %v686
  %838 = vmatprep.mubr.bf16.mxu0 %v327
  %839 = vmatmul.mubr.bf16.gmra.mxu0 %v326
  %v840 = vpop.f32.mrf.mxu0
  %v841 = vadd.f32 %v192, %v840
  %v842 = vpop.f32.mrf.mxu0
  %v843 = vpop.f32.mrf.mxu0
  %v844 = vadd.f32 %v192, %v843
  %v845 = vpop.f32.mrf.mxu0
  %846 = vmatprep.mubr.bf16.mxu0 %v335
  %847 = vmatmul.mubr.bf16.gmra.mxu0 %v334
  %v848 = vpop.f32.mrf.mxu0
  %v849 = vadd.f32 %v192, %v848
  %v850 = vpop.f32.mrf.mxu0
  %v851 = vpop.f32.mrf.mxu0
  %v852 = vadd.f32 %v192, %v851
  %v853 = vpop.f32.mrf.mxu0
  %854 = vmatprep.mubr.bf16.mxu0 %v343
  %855 = vmatmul.mubr.bf16.gmra.mxu0 %v342
  %v856 = vpop.f32.mrf.mxu0
  %v857 = vadd.f32 %v192, %v856
  %v858 = vpop.f32.mrf.mxu0
  %v859 = vpop.f32.mrf.mxu0
  %v860 = vadd.f32 %v192, %v859
  %v861 = vpop.f32.mrf.mxu0
  %862 = vmatprep.mubr.bf16.mxu0 %v351
  %863 = vmatmul.mubr.bf16.gmra.mxu0 %v350
  %v864 = vpop.f32.mrf.mxu0
  %v865 = vadd.f32 %v192, %v864
  %v866 = vpop.f32.mrf.mxu0
  %v867 = vpop.f32.mrf.mxu0
  %v868 = vadd.f32 %v192, %v867
  %v869 = vpop.f32.mrf.mxu0
  %870 = vmatprep.mubr.bf16.mxu0 %v359
  %871 = vmatmul.mubr.bf16.gmra.mxu0 %v358
  %v872 = vpop.f32.mrf.mxu0
  %v873 = vadd.f32 %v192, %v872
  %v874 = vpop.f32.mrf.mxu0
  %v875 = vpop.f32.mrf.mxu0
  %v876 = vadd.f32 %v192, %v875
  %v877 = vpop.f32.mrf.mxu0
  %878 = vmatprep.mubr.bf16.mxu0 %v367
  %879 = vmatmul.mubr.bf16.gmra.mxu0 %v366
  %v880 = vpop.f32.mrf.mxu0
  %v881 = vadd.f32 %v192, %v880
  %v882 = vpop.f32.mrf.mxu0
  %v883 = vpop.f32.mrf.mxu0
  %v884 = vpop.f32.mrf.mxu0
  %885 = vdwg.mxu0
  %886 = vmatprep.subr.bf16.mxu0 0
  %887 = vmatpush1.bf16.msra.mxu0 %v701
  %888 = vmatprep.subr.bf16.mxu0 0
  %889 = vmatpush1.bf16.msra.mxu0 %v700
  %890 = vmatprep.subr.bf16.mxu0 0
  %891 = vmatpush1.bf16.msra.mxu0 %v699
  %892 = vmatprep.subr.bf16.mxu0 0
  %893 = vmatpush1.bf16.msra.mxu0 %v698
  %894 = vmatprep.subr.bf16.mxu0 0
  %895 = vmatpush1.bf16.msra.mxu0 %v697
  %896 = vmatprep.subr.bf16.mxu0 0
  %897 = vmatpush1.bf16.msra.mxu0 %v696
  %898 = vmatprep.subr.bf16.mxu0 0
  %899 = vmatpush1.bf16.msra.mxu0 %v695
  %900 = vmatprep.subr.bf16.mxu0 0
  %901 = vmatpush1.bf16.msra.mxu0 %v694
  %902 = vmatprep.subr.bf16.mxu0 0
  %903 = vmatpush2.bf16.msra.mxu0 %v709
  %904 = vmatprep.subr.bf16.mxu0 0
  %905 = vmatpush2.bf16.msra.mxu0 %v708
  %906 = vmatprep.subr.bf16.mxu0 0
  %907 = vmatpush2.bf16.msra.mxu0 %v707
  %908 = vmatprep.subr.bf16.mxu0 0
  %909 = vmatpush2.bf16.msra.mxu0 %v706
  %910 = vmatprep.subr.bf16.mxu0 0
  %911 = vmatpush2.bf16.msra.mxu0 %v705
  %912 = vmatprep.subr.bf16.mxu0 0
  %913 = vmatpush2.bf16.msra.mxu0 %v704
  %914 = vmatprep.subr.bf16.mxu0 0
  %915 = vmatpush2.bf16.msra.mxu0 %v703
  %916 = vmatprep.subr.bf16.mxu0 0
  %917 = vmatpush2.bf16.msra.mxu0 %v702
  %918 = vmatprep.mubr.bf16.mxu0 %v329
  %919 = vmatmul.mubr.bf16.gmra.mxu0 %v328
  %v920 = vpop.f32.mrf.mxu0
  %v921 = vadd.f32 %v841, %v920
  %v922 = vpop.f32.mrf.mxu0
  %v923 = vpop.f32.mrf.mxu0
  %v924 = vadd.f32 %v844, %v923
  %v925 = vpop.f32.mrf.mxu0
  %926 = vmatprep.mubr.bf16.mxu0 %v337
  %927 = vmatmul.mubr.bf16.gmra.mxu0 %v336
  %v928 = vpop.f32.mrf.mxu0
  %v929 = vadd.f32 %v849, %v928
  %v930 = vpop.f32.mrf.mxu0
  %v931 = vpop.f32.mrf.mxu0
  %v932 = vadd.f32 %v852, %v931
  %v933 = vpop.f32.mrf.mxu0
  %934 = vmatprep.mubr.bf16.mxu0 %v345
  %935 = vmatmul.mubr.bf16.gmra.mxu0 %v344
  %v936 = vpop.f32.mrf.mxu0
  %v937 = vadd.f32 %v857, %v936
  %v938 = vpop.f32.mrf.mxu0
  %v939 = vpop.f32.mrf.mxu0
  %v940 = vadd.f32 %v860, %v939
  %v941 = vpop.f32.mrf.mxu0
  %942 = vmatprep.mubr.bf16.mxu0 %v353
  %943 = vmatmul.mubr.bf16.gmra.mxu0 %v352
  %v944 = vpop.f32.mrf.mxu0
  %v945 = vadd.f32 %v865, %v944
  %v946 = vpop.f32.mrf.mxu0
  %v947 = vpop.f32.mrf.mxu0
  %v948 = vadd.f32 %v868, %v947
  %v949 = vpop.f32.mrf.mxu0
  %950 = vmatprep.mubr.bf16.mxu0 %v361
  %951 = vmatmul.mubr.bf16.gmra.mxu0 %v360
  %v952 = vpop.f32.mrf.mxu0
  %v953 = vadd.f32 %v873, %v952
  %v954 = vpop.f32.mrf.mxu0
  %v955 = vpop.f32.mrf.mxu0
  %v956 = vadd.f32 %v876, %v955
  %v957 = vpop.f32.mrf.mxu0
  %958 = vmatprep.mubr.bf16.mxu0 %v369
  %959 = vmatmul.mubr.bf16.gmra.mxu0 %v368
  %v960 = vpop.f32.mrf.mxu0
  %v961 = vadd.f32 %v881, %v960
  %v962 = vpop.f32.mrf.mxu0
  %v963 = vpop.f32.mrf.mxu0
  %v964 = vpop.f32.mrf.mxu0
  %965 = vdwg.mxu0
  %966 = vmatprep.subr.bf16.mxu0 0
  %967 = vmatpush1.bf16.msra.mxu0 %v717
  %968 = vmatprep.subr.bf16.mxu0 0
  %969 = vmatpush1.bf16.msra.mxu0 %v716
  %970 = vmatprep.subr.bf16.mxu0 0
  %971 = vmatpush1.bf16.msra.mxu0 %v715
  %972 = vmatprep.subr.bf16.mxu0 0
  %973 = vmatpush1.bf16.msra.mxu0 %v714
  %974 = vmatprep.subr.bf16.mxu0 0
  %975 = vmatpush1.bf16.msra.mxu0 %v713
  %976 = vmatprep.subr.bf16.mxu0 0
  %977 = vmatpush1.bf16.msra.mxu0 %v712
  %978 = vmatprep.subr.bf16.mxu0 0
  %979 = vmatpush1.bf16.msra.mxu0 %v711
  %980 = vmatprep.subr.bf16.mxu0 0
  %981 = vmatpush1.bf16.msra.mxu0 %v710
  %982 = vmatprep.subr.bf16.mxu0 0
  %983 = vmatpush2.bf16.msra.mxu0 %v725
  %984 = vmatprep.subr.bf16.mxu0 0
  %985 = vmatpush2.bf16.msra.mxu0 %v724
  %986 = vmatprep.subr.bf16.mxu0 0
  %987 = vmatpush2.bf16.msra.mxu0 %v723
  %988 = vmatprep.subr.bf16.mxu0 0
  %989 = vmatpush2.bf16.msra.mxu0 %v722
  %990 = vmatprep.subr.bf16.mxu0 0
  %991 = vmatpush2.bf16.msra.mxu0 %v721
  %992 = vmatprep.subr.bf16.mxu0 0
  %993 = vmatpush2.bf16.msra.mxu0 %v720
  %994 = vmatprep.subr.bf16.mxu0 0
  %995 = vmatpush2.bf16.msra.mxu0 %v719
  %996 = vmatprep.subr.bf16.mxu0 0
  %997 = vmatpush2.bf16.msra.mxu0 %v718
  %998 = vmatprep.mubr.bf16.mxu0 %v331
  %999 = vmatmul.mubr.bf16.gmra.mxu0 %v330
  %v1000 = vpop.f32.mrf.mxu0
  %v1001 = vadd.f32 %v921, %v1000
  %v1002 = vpop.f32.mrf.mxu0
  %v1003 = vpop.f32.mrf.mxu0
  %v1004 = vadd.f32 %v924, %v1003
  %v1005 = vpop.f32.mrf.mxu0
  %1006 = vmatprep.mubr.bf16.mxu0 %v339
  %1007 = vmatmul.mubr.bf16.gmra.mxu0 %v338
  %v1008 = vpop.f32.mrf.mxu0
  %v1009 = vadd.f32 %v929, %v1008
  %v1010 = vpop.f32.mrf.mxu0
  %v1011 = vpop.f32.mrf.mxu0
  %v1012 = vadd.f32 %v932, %v1011
  %v1013 = vpop.f32.mrf.mxu0
  %1014 = vmatprep.mubr.bf16.mxu0 %v347
  %1015 = vmatmul.mubr.bf16.gmra.mxu0 %v346
  %v1016 = vpop.f32.mrf.mxu0
  %v1017 = vadd.f32 %v937, %v1016
  %v1018 = vpop.f32.mrf.mxu0
  %v1019 = vpop.f32.mrf.mxu0
  %v1020 = vadd.f32 %v940, %v1019
  %v1021 = vpop.f32.mrf.mxu0
  %1022 = vmatprep.mubr.bf16.mxu0 %v355
  %1023 = vmatmul.mubr.bf16.gmra.mxu0 %v354
  %v1024 = vpop.f32.mrf.mxu0
  %v1025 = vadd.f32 %v945, %v1024
  %v1026 = vpop.f32.mrf.mxu0
  %v1027 = vpop.f32.mrf.mxu0
  %v1028 = vadd.f32 %v948, %v1027
  %v1029 = vpop.f32.mrf.mxu0
  %1030 = vmatprep.mubr.bf16.mxu0 %v363
  %1031 = vmatmul.mubr.bf16.gmra.mxu0 %v362
  %v1032 = vpop.f32.mrf.mxu0
  %v1033 = vadd.f32 %v953, %v1032
  %v1034 = vpop.f32.mrf.mxu0
  %v1035 = vpop.f32.mrf.mxu0
  %v1036 = vadd.f32 %v956, %v1035
  %v1037 = vpop.f32.mrf.mxu0
  %1038 = vmatprep.mubr.bf16.mxu0 %v371
  %1039 = vmatmul.mubr.bf16.gmra.mxu0 %v370
  %v1040 = vpop.f32.mrf.mxu0
  %v1041 = vadd.f32 %v961, %v1040
  %v1042 = vpop.f32.mrf.mxu0
  %v1043 = vpop.f32.mrf.mxu0
  %v1044 = vpop.f32.mrf.mxu0
  %1045 = vdwg.mxu0
  %1046 = vmatprep.subr.bf16.mxu0 0
  %1047 = vmatpush1.bf16.msra.mxu0 %v733
  %1048 = vmatprep.subr.bf16.mxu0 0
  %1049 = vmatpush1.bf16.msra.mxu0 %v732
  %1050 = vmatprep.subr.bf16.mxu0 0
  %1051 = vmatpush1.bf16.msra.mxu0 %v731
  %1052 = vmatprep.subr.bf16.mxu0 0
  %1053 = vmatpush1.bf16.msra.mxu0 %v730
  %1054 = vmatprep.subr.bf16.mxu0 0
  %1055 = vmatpush1.bf16.msra.mxu0 %v729
  %1056 = vmatprep.subr.bf16.mxu0 0
  %1057 = vmatpush1.bf16.msra.mxu0 %v728
  %1058 = vmatprep.subr.bf16.mxu0 0
  %1059 = vmatpush1.bf16.msra.mxu0 %v727
  %1060 = vmatprep.subr.bf16.mxu0 0
  %1061 = vmatpush1.bf16.msra.mxu0 %v726
  %1062 = vmatprep.subr.bf16.mxu0 0
  %1063 = vmatpush2.bf16.msra.mxu0 %v741
  %1064 = vmatprep.subr.bf16.mxu0 0
  %1065 = vmatpush2.bf16.msra.mxu0 %v740
  %1066 = vmatprep.subr.bf16.mxu0 0
  %1067 = vmatpush2.bf16.msra.mxu0 %v739
  %1068 = vmatprep.subr.bf16.mxu0 0
  %1069 = vmatpush2.bf16.msra.mxu0 %v738
  %1070 = vmatprep.subr.bf16.mxu0 0
  %1071 = vmatpush2.bf16.msra.mxu0 %v737
  %1072 = vmatprep.subr.bf16.mxu0 0
  %1073 = vmatpush2.bf16.msra.mxu0 %v736
  %1074 = vmatprep.subr.bf16.mxu0 0
  %1075 = vmatpush2.bf16.msra.mxu0 %v735
  %1076 = vmatprep.subr.bf16.mxu0 0
  %1077 = vmatpush2.bf16.msra.mxu0 %v734
  %1078 = vmatprep.mubr.bf16.mxu0 %v333
  %1079 = vmatmul.mubr.bf16.gmra.mxu0 %v332
  %v1080 = vpop.f32.mrf.mxu0
  %v1081 = vadd.f32 %v1001, %v1080
  %v1082 = vpop.f32.mrf.mxu0
  %v1083 = vpop.f32.mrf.mxu0
  %v1084 = vadd.f32 %v1004, %v1083
  %v1085 = vpop.f32.mrf.mxu0
  %1086 = vmatprep.mubr.bf16.mxu0 %v341
  %1087 = vmatmul.mubr.bf16.gmra.mxu0 %v340
  %v1088 = vpop.f32.mrf.mxu0
  %v1089 = vadd.f32 %v1009, %v1088
  %v1090 = vpop.f32.mrf.mxu0
  %v1091 = vpop.f32.mrf.mxu0
  %v1092 = vadd.f32 %v1012, %v1091
  %v1093 = vpop.f32.mrf.mxu0
  %1094 = vmatprep.mubr.bf16.mxu0 %v349
  %1095 = vmatmul.mubr.bf16.gmra.mxu0 %v348
  %v1096 = vpop.f32.mrf.mxu0
  %v1097 = vadd.f32 %v1017, %v1096
  %v1098 = vpop.f32.mrf.mxu0
  %v1099 = vpop.f32.mrf.mxu0
  %v1100 = vadd.f32 %v1020, %v1099
  %v1101 = vpop.f32.mrf.mxu0
  %1102 = vmatprep.mubr.bf16.mxu0 %v357
  %1103 = vmatmul.mubr.bf16.gmra.mxu0 %v356
  %v1104 = vpop.f32.mrf.mxu0
  %v1105 = vadd.f32 %v1025, %v1104
  %v1106 = vpop.f32.mrf.mxu0
  %v1107 = vpop.f32.mrf.mxu0
  %v1108 = vadd.f32 %v1028, %v1107
  %v1109 = vpop.f32.mrf.mxu0
  %1110 = vmatprep.mubr.bf16.mxu0 %v365
  %1111 = vmatmul.mubr.bf16.gmra.mxu0 %v364
  %v1112 = vpop.f32.mrf.mxu0
  %v1113 = vadd.f32 %v1033, %v1112
  %v1114 = vpop.f32.mrf.mxu0
  %v1115 = vpop.f32.mrf.mxu0
  %v1116 = vadd.f32 %v1036, %v1115
  %v1117 = vpop.f32.mrf.mxu0
  %1118 = vmatprep.mubr.bf16.mxu0 %v373
  %1119 = vmatmul.mubr.bf16.gmra.mxu0 %v372
  %v1120 = vpop.f32.mrf.mxu0
  %v1121 = vadd.f32 %v1041, %v1120
  %v1122 = vpop.f32.mrf.mxu0
  %v1123 = vpop.f32.mrf.mxu0
  %v1124 = vpop.f32.mrf.mxu0
  %1125 = vdwg.mxu0
  %v1126 = vmax.f32 %v1081, 0.0
  %v1127 = vmax.f32 %v1084, 0.0
  %v1128 = vmax.f32 %v1089, 0.0
  %v1129 = vmax.f32 %v1092, 0.0
  %v1130 = vmax.f32 %v1097, 0.0
  %v1131 = vmax.f32 %v1100, 0.0
  %v1132 = vmax.f32 %v1105, 0.0
  %v1133 = vmax.f32 %v1108, 0.0
  %v1134 = vmax.f32 %v1113, 0.0
  %v1135 = vmax.f32 %v1116, 0.0
  %v1136 = vmax.f32 %v1121, 0.0
  %v1137 = vpack.c.bf16 %v1127, %v1126
  %v1138 = vpack.c.bf16 %v1129, %v1128
  %v1139 = vpack.c.bf16 %v1131, %v1130
  %v1140 = vpack.c.bf16 %v1133, %v1132
  %v1141 = vpack.c.bf16 %v1135, %v1134
  %v1142 = vpack.c.bf16 %v1136, %v1136
  %v1149 = vunpack.c.l.b16 %v1137
  %v1150 = vunpack.c.h.b16 %v1137
  %v1151 = vunpack.c.l.b16 %v1138
  %v1152 = vunpack.c.h.b16 %v1138
  %v1153 = vunpack.c.l.b16 %v1139
  %v1154 = vunpack.c.h.b16 %v1139
  %v1155 = vunpack.c.l.b16 %v1140
  %v1156 = vunpack.c.h.b16 %v1140
  %v1157 = vunpack.c.l.b16 %v1141
  %v1158 = vunpack.c.h.b16 %v1141
  %v1159 = vunpack.c.l.b16 %v1142
  %v1160 = vpack.c.b16 %v1149, %v1149
  %v1161 = vpack.c.b16 %v1150, %v1150
  %v1162 = vpack.c.b16 %v1151, %v1151
  %v1163 = vpack.c.b16 %v1152, %v1152
  %v1164 = vpack.c.b16 %v1153, %v1153
  %v1165 = vpack.c.b16 %v1154, %v1154
  %v1166 = vpack.c.b16 %v1155, %v1155
  %v1167 = vpack.c.b16 %v1156, %v1156
  %v1168 = vpack.c.b16 %v1157, %v1157
  %v1169 = vpack.c.b16 %v1158, %v1158
  %v1170 = vpack.c.b16 %v1159, %v1159
  %1182 = vst [vmem:[%s3] sm:$0xf] %v1160
  %1183 = vst [vmem:[%s3 + $0x4] sm:$0xf] %v1161
  %1184 = vst [vmem:[%s3 + $0x8] sm:$0xf] %v1162
  %1185 = vst [vmem:[%s3 + $0xc] sm:$0xf] %v1163
  %1186 = vst [vmem:[%s3 + $0x10] sm:$0xf] %v1164
  %1187 = vst [vmem:[%s3 + $0x14] sm:$0xf] %v1165
  %1188 = vst [vmem:[%s3 + $0x18] sm:$0xf] %v1166
  %1189 = vst [vmem:[%s3 + $0x1c] sm:$0xf] %v1167
  %1190 = vst [vmem:[%s3 + $0x20] sm:$0xf] %v1168
  %1191 = vst [vmem:[%s3 + $0x24] sm:$0xf] %v1169
  %1192 = vst [vmem:[%s3 + $0x28] sm:$0xf] %v1170
  // Predicated region
  $region14: #{atari_qr_forward.5} parent=0 // pred_check
    _
  $region15: #{atari_qr_forward.5} parent=0 // pred_check_branch
    %1194 = sbr.rel (0) target = $region17
  $region16: #{atari_qr_forward.5} parent=0 // pred_region
    _
  $region17: #{atari_qr_forward.5} parent=0 // pred_fallthru
    _
  // Predicated region
  $region18: #{atari_qr_forward.5} parent=0 // pred_check
    _
  $region19: #{atari_qr_forward.5} parent=0 // pred_check_branch
    %1196 = sbr.rel (0) target = $region21
  $region20: #{atari_qr_forward.5} parent=0 // pred_region
    _
  $region21: #{atari_qr_forward.5} parent=0 // pred_fallthru
    _

// kernel: atari_qr_forward.6
$region0: #{atari_qr_forward.6}
  #allocation0 [shape = 'u32[]', space=smem, size = 0x4, offset = 0x4, fixed_abs, tag = 'smem constant byte address 0x4 - core index']
  #allocation1 [shape = 'u32[144,128]{1,0:T(1,128)}', space=vmem, size = 0x12000, scoped, tag = 'internal scratch']
  %s0 = inlined_call_operand.vmem [shape: bf16[56,1152], index: 0, kind: input, shape index: {}]
  %s1 = inlined_call_operand.vmem [shape: bf16[1152,128], index: 1, kind: input, shape index: {}]
  %s2 = inlined_call_operand.vmem [shape: f32[1,128], index: 2, kind: input, shape index: {}]
  %s3 = inlined_call_operand.vmem [shape: bf16[56,128], index: 3, kind: output, shape index: {}]
  %s4 = sld [smem:[#allocation0]]
  $region22: #{atari_qr_forward.6} parent=0
    _
  %s6 = ssub.s32 1, %s4
  %s7 = scalar_select 0, %s6, %s4
  // Predicated region
  $region2: #{atari_qr_forward.6} parent=0 // pred_check
    _
  $region3: #{atari_qr_forward.6} parent=0 // pred_check_branch
    %9 = sbr.rel (0) target = $region5
  $region4: #{atari_qr_forward.6} parent=0 // pred_region
    _
  $region5: #{atari_qr_forward.6} parent=0 // pred_fallthru
    _
  // Predicated region
  $region6: #{atari_qr_forward.6} parent=0 // pred_check
    _
  $region7: #{atari_qr_forward.6} parent=0 // pred_check_branch
    %11 = sbr.rel (0) target = $region9
  $region8: #{atari_qr_forward.6} parent=0 // pred_region
    _
  $region9: #{atari_qr_forward.6} parent=0 // pred_fallthru
    _
  // Predicated region
  $region10: #{atari_qr_forward.6} parent=0 // pred_check
    _
  $region11: #{atari_qr_forward.6} parent=0 // pred_check_branch
    %13 = sbr.rel (0) target = $region13
  $region12: #{atari_qr_forward.6} parent=0 // pred_region
    _
  $region13: #{atari_qr_forward.6} parent=0 // pred_fallthru
    _
  %v15 = vld [vmem:[%s0] sm:$0xff]
  %v16 = vld [vmem:[%s0 + $0x8] sm:$0xff]
  %v17 = vld [vmem:[%s0 + $0x10] sm:$0xff]
  %v18 = vld [vmem:[%s0 + $0x18] sm:$0xff]
  %v19 = vld [vmem:[%s0 + $0x20] sm:$0xf]
  %v20 = vld [vmem:[%s0 + $0x24] sm:$0xff]
  %v21 = vld [vmem:[%s0 + $0x2c] sm:$0xff]
  %v22 = vld [vmem:[%s0 + $0x34] sm:$0xff]
  %v23 = vld [vmem:[%s0 + $0x3c] sm:$0xff]
  %v24 = vld [vmem:[%s0 + $0x44] sm:$0xf]
  %v25 = vld [vmem:[%s0 + $0x48] sm:$0xff]
  %v26 = vld [vmem:[%s0 + $0x50] sm:$0xff]
  %v27 = vld [vmem:[%s0 + $0x58] sm:$0xff]
  %v28 = vld [vmem:[%s0 + $0x60] sm:$0xff]
  %v29 = vld [vmem:[%s0 + $0x68] sm:$0xf]
  %v30 = vld [vmem:[%s0 + $0x6c] sm:$0xff]
  %v31 = vld [vmem:[%s0 + $0x74] sm:$0xff]
  %v32 = vld [vmem:[%s0 + $0x7c] sm:$0xff]
  %v33 = vld [vmem:[%s0 + $0x84] sm:$0xff]
  %v34 = vld [vmem:[%s0 + $0x8c] sm:$0xf]
  %v35 = vld [vmem:[%s0 + $0x90] sm:$0xff]
  %v36 = vld [vmem:[%s0 + $0x98] sm:$0xff]
  %v37 = vld [vmem:[%s0 + $0xa0] sm:$0xff]
  %v38 = vld [vmem:[%s0 + $0xa8] sm:$0xff]
  %v39 = vld [vmem:[%s0 + $0xb0] sm:$0xf]
  %v40 = vld [vmem:[%s0 + $0xb4] sm:$0xff]
  %v41 = vld [vmem:[%s0 + $0xbc] sm:$0xff]
  %v42 = vld [vmem:[%s0 + $0xc4] sm:$0xff]
  %v43 = vld [vmem:[%s0 + $0xcc] sm:$0xff]
  %v44 = vld [vmem:[%s0 + $0xd4] sm:$0xf]
  %v45 = vld [vmem:[%s0 + $0xd8] sm:$0xff]
  %v46 = vld [vmem:[%s0 + $0xe0] sm:$0xff]
  %v47 = vld [vmem:[%s0 + $0xe8] sm:$0xff]
  %v48 = vld [vmem:[%s0 + $0xf0] sm:$0xff]
  %v49 = vld [vmem:[%s0 + $0xf8] sm:$0xf]
  %v50 = vld [vmem:[%s1] sm:$0xf]
  %v51 = vld [vmem:[%s1 + $0x4] sm:$0xf]
  %v52 = vld [vmem:[%s1 + $0x8] sm:$0xf]
  %v53 = vld [vmem:[%s1 + $0xc] sm:$0xf]
  %v54 = vld [vmem:[%s1 + $0x10] sm:$0xf]
  %v55 = vld [vmem:[%s1 + $0x14] sm:$0xf]
  %v56 = vld [vmem:[%s1 + $0x18] sm:$0xf]
  %v57 = vld [vmem:[%s1 + $0x1c] sm:$0xf]
  %v58 = vld [vmem:[%s1 + $0x20] sm:$0xf]
  %v59 = vld [vmem:[%s1 + $0x24] sm:$0xf]
  %v60 = vld [vmem:[%s1 + $0x28] sm:$0xf]
  %v61 = vld [vmem:[%s1 + $0x2c] sm:$0xf]
  %v62 = vld [vmem:[%s1 + $0x30] sm:$0xf]
  %v63 = vld [vmem:[%s1 + $0x34] sm:$0xf]
  %v64 = vld [vmem:[%s1 + $0x38] sm:$0xf]
  %v65 = vld [vmem:[%s1 + $0x3c] sm:$0xf]
  %v66 = vld [vmem:[%s1 + $0x40] sm:$0xf]
  %v67 = vld [vmem:[%s1 + $0x44] sm:$0xf]
  %v68 = vld [vmem:[%s1 + $0x48] sm:$0xf]
  %v69 = vld [vmem:[%s1 + $0x4c] sm:$0xf]
  %v70 = vld [vmem:[%s1 + $0x50] sm:$0xf]
  %v71 = vld [vmem:[%s1 + $0x54] sm:$0xf]
  %v72 = vld [vmem:[%s1 + $0x58] sm:$0xf]
  %v73 = vld [vmem:[%s1 + $0x5c] sm:$0xf]
  %v74 = vld [vmem:[%s1 + $0x60] sm:$0xf]
  %v75 = vld [vmem:[%s1 + $0x64] sm:$0xf]
  %v76 = vld [vmem:[%s1 + $0x68] sm:$0xf]
  %v77 = vld [vmem:[%s1 + $0x6c] sm:$0xf]
  %v78 = vld [vmem:[%s1 + $0x70] sm:$0xf]
  %v79 = vld [vmem:[%s1 + $0x74] sm:$0xf]
  %v80 = vld [vmem:[%s1 + $0x78] sm:$0xf]
  %v81 = vld [vmem:[%s1 + $0x7c] sm:$0xf]
  %v82 = vld [vmem:[%s1 + $0x80] sm:$0xf]
  %v83 = vld [vmem:[%s1 + $0x84] sm:$0xf]
  %v84 = vld [vmem:[%s1 + $0x88] sm:$0xf]
  %v85 = vld [vmem:[%s1 + $0x8c] sm:$0xf]
  %v86 = vld [vmem:[%s1 + $0x90] sm:$0xf]
  %v87 = vld [vmem:[%s1 + $0x94] sm:$0xf]
  %v88 = vld [vmem:[%s1 + $0x98] sm:$0xf]
  %v89 = vld [vmem:[%s1 + $0x9c] sm:$0xf]
  %v90 = vld [vmem:[%s1 + $0xa0] sm:$0xf]
  %v91 = vld [vmem:[%s1 + $0xa4] sm:$0xf]
  %v92 = vld [vmem:[%s1 + $0xa8] sm:$0xf]
  %v93 = vld [vmem:[%s1 + $0xac] sm:$0xf]
  %v94 = vld [vmem:[%s1 + $0xb0] sm:$0xf]
  %v95 = vld [vmem:[%s1 + $0xb4] sm:$0xf]
  %v96 = vld [vmem:[%s1 + $0xb8] sm:$0xf]
  %v97 = vld [vmem:[%s1 + $0xbc] sm:$0xf]
  %v98 = vld [vmem:[%s1 + $0xc0] sm:$0xf]
  %v99 = vld [vmem:[%s1 + $0xc4] sm:$0xf]
  %v100 = vld [vmem:[%s1 + $0xc8] sm:$0xf]
  %v101 = vld [vmem:[%s1 + $0xcc] sm:$0xf]
  %v102 = vld [vmem:[%s1 + $0xd0] sm:$0xf]
  %v103 = vld [vmem:[%s1 + $0xd4] sm:$0xf]
  %v104 = vld [vmem:[%s1 + $0xd8] sm:$0xf]
  %v105 = vld [vmem:[%s1 + $0xdc] sm:$0xf]
  %v106 = vld [vmem:[%s1 + $0xe0] sm:$0xf]
  %v107 = vld [vmem:[%s1 + $0xe4] sm:$0xf]
  %v108 = vld [vmem:[%s1 + $0xe8] sm:$0xf]
  %v109 = vld [vmem:[%s1 + $0xec] sm:$0xf]
  %v110 = vld [vmem:[%s1 + $0xf0] sm:$0xf]
  %v111 = vld [vmem:[%s1 + $0xf4] sm:$0xf]
  %v112 = vld [vmem:[%s1 + $0xf8] sm:$0xf]
  %v113 = vld [vmem:[%s1 + $0xfc] sm:$0xf]
  %v114 = vld [vmem:[%s1 + $0x100] sm:$0xf]
  %v115 = vld [vmem:[%s1 + $0x104] sm:$0xf]
  %v116 = vld [vmem:[%s1 + $0x108] sm:$0xf]
  %v117 = vld [vmem:[%s1 + $0x10c] sm:$0xf]
  %v118 = vld [vmem:[%s1 + $0x110] sm:$0xf]
  %v119 = vld [vmem:[%s1 + $0x114] sm:$0xf]
  %v120 = vld [vmem:[%s1 + $0x118] sm:$0xf]
  %v121 = vld [vmem:[%s1 + $0x11c] sm:$0xf]
  %v122 = vld [vmem:[%s1 + $0x120] sm:$0xf]
  %v123 = vld [vmem:[%s1 + $0x124] sm:$0xf]
  %v124 = vld [vmem:[%s1 + $0x128] sm:$0xf]
  %v125 = vld [vmem:[%s1 + $0x12c] sm:$0xf]
  %v126 = vld [vmem:[%s1 + $0x130] sm:$0xf]
  %v127 = vld [vmem:[%s1 + $0x134] sm:$0xf]
  %v128 = vld [vmem:[%s1 + $0x138] sm:$0xf]
  %v129 = vld [vmem:[%s1 + $0x13c] sm:$0xf]
  %v130 = vld [vmem:[%s1 + $0x140] sm:$0xf]
  %v131 = vld [vmem:[%s1 + $0x144] sm:$0xf]
  %v132 = vld [vmem:[%s1 + $0x148] sm:$0xf]
  %v133 = vld [vmem:[%s1 + $0x14c] sm:$0xf]
  %v134 = vld [vmem:[%s1 + $0x150] sm:$0xf]
  %v135 = vld [vmem:[%s1 + $0x154] sm:$0xf]
  %v136 = vld [vmem:[%s1 + $0x158] sm:$0xf]
  %v137 = vld [vmem:[%s1 + $0x15c] sm:$0xf]
  %v138 = vld [vmem:[%s1 + $0x160] sm:$0xf]
  %v139 = vld [vmem:[%s1 + $0x164] sm:$0xf]
  %v140 = vld [vmem:[%s1 + $0x168] sm:$0xf]
  %v141 = vld [vmem:[%s1 + $0x16c] sm:$0xf]
  %v142 = vld [vmem:[%s1 + $0x170] sm:$0xf]
  %v143 = vld [vmem:[%s1 + $0x174] sm:$0xf]
  %v144 = vld [vmem:[%s1 + $0x178] sm:$0xf]
  %v145 = vld [vmem:[%s1 + $0x17c] sm:$0xf]
  %v146 = vld [vmem:[%s1 + $0x180] sm:$0xf]
  %v147 = vld [vmem:[%s1 + $0x184] sm:$0xf]
  %v148 = vld [vmem:[%s1 + $0x188] sm:$0xf]
  %v149 = vld [vmem:[%s1 + $0x18c] sm:$0xf]
  %v150 = vld [vmem:[%s1 + $0x190] sm:$0xf]
  %v151 = vld [vmem:[%s1 + $0x194] sm:$0xf]
  %v152 = vld [vmem:[%s1 + $0x198] sm:$0xf]
  %v153 = vld [vmem:[%s1 + $0x19c] sm:$0xf]
  %v154 = vld [vmem:[%s1 + $0x1a0] sm:$0xf]
  %v155 = vld [vmem:[%s1 + $0x1a4] sm:$0xf]
  %v156 = vld [vmem:[%s1 + $0x1a8] sm:$0xf]
  %v157 = vld [vmem:[%s1 + $0x1ac] sm:$0xf]
  %v158 = vld [vmem:[%s1 + $0x1b0] sm:$0xf]
  %v159 = vld [vmem:[%s1 + $0x1b4] sm:$0xf]
  %v160 = vld [vmem:[%s1 + $0x1b8] sm:$0xf]
  %v161 = vld [vmem:[%s1 + $0x1bc] sm:$0xf]
  %v162 = vld [vmem:[%s1 + $0x1c0] sm:$0xf]
  %v163 = vld [vmem:[%s1 + $0x1c4] sm:$0xf]
  %v164 = vld [vmem:[%s1 + $0x1c8] sm:$0xf]
  %v165 = vld [vmem:[%s1 + $0x1cc] sm:$0xf]
  %v166 = vld [vmem:[%s1 + $0x1d0] sm:$0xf]
  %v167 = vld [vmem:[%s1 + $0x1d4] sm:$0xf]
  %v168 = vld [vmem:[%s1 + $0x1d8] sm:$0xf]
  %v169 = vld [vmem:[%s1 + $0x1dc] sm:$0xf]
  %v170 = vld [vmem:[%s1 + $0x1e0] sm:$0xf]
  %v171 = vld [vmem:[%s1 + $0x1e4] sm:$0xf]
  %v172 = vld [vmem:[%s1 + $0x1e8] sm:$0xf]
  %v173 = vld [vmem:[%s1 + $0x1ec] sm:$0xf]
  %v174 = vld [vmem:[%s1 + $0x1f0] sm:$0xf]
  %v175 = vld [vmem:[%s1 + $0x1f4] sm:$0xf]
  %v176 = vld [vmem:[%s1 + $0x1f8] sm:$0xf]
  %v177 = vld [vmem:[%s1 + $0x1fc] sm:$0xf]
  %v178 = vld [vmem:[%s1 + $0x200] sm:$0xf]
  %v179 = vld [vmem:[%s1 + $0x204] sm:$0xf]
  %v180 = vld [vmem:[%s1 + $0x208] sm:$0xf]
  %v181 = vld [vmem:[%s1 + $0x20c] sm:$0xf]
  %v182 = vld [vmem:[%s1 + $0x210] sm:$0xf]
  %v183 = vld [vmem:[%s1 + $0x214] sm:$0xf]
  %v184 = vld [vmem:[%s1 + $0x218] sm:$0xf]
  %v185 = vld [vmem:[%s1 + $0x21c] sm:$0xf]
  %v186 = vld [vmem:[%s1 + $0x220] sm:$0xf]
  %v187 = vld [vmem:[%s1 + $0x224] sm:$0xf]
  %v188 = vld [vmem:[%s1 + $0x228] sm:$0xf]
  %v189 = vld [vmem:[%s1 + $0x22c] sm:$0xf]
  %v190 = vld [vmem:[%s1 + $0x230] sm:$0xf]
  %v191 = vld [vmem:[%s1 + $0x234] sm:$0xf]
  %v192 = vld [vmem:[%s1 + $0x238] sm:$0xf]
  %v193 = vld [vmem:[%s1 + $0x23c] sm:$0xf]
  %v194 = vld [vmem:[%s2] sm:$0x1]
  %v196 = vlaneseq
  %v197 = vshrl.u32 %v196, 7
  %v198 = vsub.s32 0, %v197
  %v199 = vrot.slane %v194, %v198
  %v236 = vunpack.c.l.b16 %v15
  %v237 = vunpack.c.h.b16 %v15
  %v238 = vunpack.c.l.b16 %v16
  %v239 = vunpack.c.h.b16 %v16
  %v240 = vunpack.c.l.b16 %v17
  %v241 = vunpack.c.h.b16 %v17
  %v242 = vunpack.c.l.b16 %v18
  %v243 = vunpack.c.h.b16 %v18
  %v244 = vunpack.c.l.b16 %v19
  %v245 = vunpack.c.l.b16 %v20
  %v246 = vunpack.c.h.b16 %v20
  %v247 = vunpack.c.l.b16 %v21
  %v248 = vunpack.c.h.b16 %v21
  %v249 = vunpack.c.l.b16 %v22
  %v250 = vunpack.c.h.b16 %v22
  %v251 = vunpack.c.l.b16 %v23
  %v252 = vunpack.c.h.b16 %v23
  %v253 = vunpack.c.l.b16 %v24
  %v254 = vunpack.c.l.b16 %v25
  %v255 = vunpack.c.h.b16 %v25
  %v256 = vunpack.c.l.b16 %v26
  %v257 = vunpack.c.h.b16 %v26
  %v258 = vunpack.c.l.b16 %v27
  %v259 = vunpack.c.h.b16 %v27
  %v260 = vunpack.c.l.b16 %v28
  %v261 = vunpack.c.h.b16 %v28
  %v262 = vunpack.c.l.b16 %v29
  %v263 = vunpack.c.l.b16 %v30
  %v264 = vunpack.c.h.b16 %v30
  %v265 = vunpack.c.l.b16 %v31
  %v266 = vunpack.c.h.b16 %v31
  %v267 = vunpack.c.l.b16 %v32
  %v268 = vunpack.c.h.b16 %v32
  %v269 = vunpack.c.l.b16 %v33
  %v270 = vunpack.c.h.b16 %v33
  %v271 = vunpack.c.l.b16 %v34
  %v272 = vunpack.c.l.b16 %v35
  %v273 = vunpack.c.h.b16 %v35
  %v274 = vunpack.c.l.b16 %v36
  %v275 = vunpack.c.h.b16 %v36
  %v276 = vunpack.c.l.b16 %v37
  %v277 = vunpack.c.h.b16 %v37
  %v278 = vunpack.c.l.b16 %v38
  %v279 = vunpack.c.h.b16 %v38
  %v280 = vunpack.c.l.b16 %v39
  %v281 = vunpack.c.l.b16 %v40
  %v282 = vunpack.c.h.b16 %v40
  %v283 = vunpack.c.l.b16 %v41
  %v284 = vunpack.c.h.b16 %v41
  %v285 = vunpack.c.l.b16 %v42
  %v286 = vunpack.c.h.b16 %v42
  %v287 = vunpack.c.l.b16 %v43
  %v288 = vunpack.c.h.b16 %v43
  %v289 = vunpack.c.l.b16 %v44
  %v290 = vunpack.c.l.b16 %v45
  %v291 = vunpack.c.h.b16 %v45
  %v292 = vunpack.c.l.b16 %v46
  %v293 = vunpack.c.h.b16 %v46
  %v294 = vunpack.c.l.b16 %v47
  %v295 = vunpack.c.h.b16 %v47
  %v296 = vunpack.c.l.b16 %v48
  %v297 = vunpack.c.h.b16 %v48
  %v298 = vunpack.c.l.b16 %v49
  %v299 = vpack.c.b16 %v245, %v236
  %v300 = vpack.c.b16 %v246, %v237
  %v301 = vpack.c.b16 %v247, %v238
  %v302 = vpack.c.b16 %v248, %v239
  %v303 = vpack.c.b16 %v249, %v240
  %v304 = vpack.c.b16 %v250, %v241
  %v305 = vpack.c.b16 %v251, %v242
  %v306 = vpack.c.b16 %v252, %v243
  %v307 = vpack.c.b16 %v253, %v244
  %v308 = vpack.c.b16 %v263, %v254
  %v309 = vpack.c.b16 %v264, %v255
  %v310 = vpack.c.b16 %v265, %v256
  %v311 = vpack.c.b16 %v266, %v257
  %v312 = vpack.c.b16 %v267, %v258
  %v313 = vpack.c.b16 %v268, %v259
  %v314 = vpack.c.b16 %v269, %v260
  %v315 = vpack.c.b16 %v270, %v261
  %v316 = vpack.c.b16 %v271, %v262
  %v317 = vpack.c.b16 %v281, %v272
  %v318 = vpack.c.b16 %v282, %v273
  %v319 = vpack.c.b16 %v283, %v274
  %v320 = vpack.c.b16 %v284, %v275
  %v321 = vpack.c.b16 %v285, %v276
  %v322 = vpack.c.b16 %v286, %v277
  %v323 = vpack.c.b16 %v287, %v278
  %v324 = vpack.c.b16 %v288, %v279
  %v325 = vpack.c.b16 %v289, %v280
  %v326 = vpack.c.b16 %v290, %v290
  %v327 = vpack.c.b16 %v291, %v291
  %v328 = vpack.c.b16 %v292, %v292
  %v329 = vpack.c.b16 %v293, %v293
  %v330 = vpack.c.b16 %v294, %v294
  %v331 = vpack.c.b16 %v295, %v295
  %v332 = vpack.c.b16 %v296, %v296
  %v333 = vpack.c.b16 %v297, %v297
  %v334 = vpack.c.b16 %v298, %v298
  %v515 = vunpack.c.l.b16 %v50
  %v516 = vunpack.c.l.b16 %v51
  %v517 = vunpack.c.l.b16 %v52
  %v518 = vunpack.c.l.b16 %v53
  %v519 = vunpack.c.l.b16 %v54
  %v520 = vunpack.c.l.b16 %v55
  %v521 = vunpack.c.l.b16 %v56
  %v522 = vunpack.c.l.b16 %v57
  %v523 = vunpack.c.l.b16 %v58
  %v524 = vunpack.c.l.b16 %v59
  %v525 = vunpack.c.l.b16 %v60
  %v526 = vunpack.c.l.b16 %v61
  %v527 = vunpack.c.l.b16 %v62
  %v528 = vunpack.c.l.b16 %v63
  %v529 = vunpack.c.l.b16 %v64
  %v530 = vunpack.c.l.b16 %v65
  %v531 = vunpack.c.l.b16 %v66
  %v532 = vunpack.c.l.b16 %v67
  %v533 = vunpack.c.l.b16 %v68
  %v534 = vunpack.c.l.b16 %v69
  %v535 = vunpack.c.l.b16 %v70
  %v536 = vunpack.c.l.b16 %v71
  %v537 = vunpack.c.l.b16 %v72
  %v538 = vunpack.c.l.b16 %v73
  %v539 = vunpack.c.l.b16 %v74
  %v540 = vunpack.c.l.b16 %v75
  %v541 = vunpack.c.l.b16 %v76
  %v542 = vunpack.c.l.b16 %v77
  %v543 = vunpack.c.l.b16 %v78
  %v544 = vunpack.c.l.b16 %v79
  %v545 = vunpack.c.l.b16 %v80
  %v546 = vunpack.c.l.b16 %v81
  %v547 = vunpack.c.l.b16 %v82
  %v548 = vunpack.c.l.b16 %v83
  %v549 = vunpack.c.l.b16 %v84
  %v550 = vunpack.c.l.b16 %v85
  %v551 = vunpack.c.l.b16 %v86
  %v552 = vunpack.c.l.b16 %v87
  %v553 = vunpack.c.l.b16 %v88
  %v554 = vunpack.c.l.b16 %v89
  %v555 = vunpack.c.l.b16 %v90
  %v556 = vunpack.c.l.b16 %v91
  %v557 = vunpack.c.l.b16 %v92
  %v558 = vunpack.c.l.b16 %v93
  %v559 = vunpack.c.l.b16 %v94
  %v560 = vunpack.c.l.b16 %v95
  %v561 = vunpack.c.l.b16 %v96
  %v562 = vunpack.c.l.b16 %v97
  %v563 = vunpack.c.l.b16 %v98
  %v564 = vunpack.c.l.b16 %v99
  %v565 = vunpack.c.l.b16 %v100
  %v566 = vunpack.c.l.b16 %v101
  %v567 = vunpack.c.l.b16 %v102
  %v568 = vunpack.c.l.b16 %v103
  %v569 = vunpack.c.l.b16 %v104
  %v570 = vunpack.c.l.b16 %v105
  %v571 = vunpack.c.l.b16 %v106
  %v572 = vunpack.c.l.b16 %v107
  %v573 = vunpack.c.l.b16 %v108
  %v574 = vunpack.c.l.b16 %v109
  %v575 = vunpack.c.l.b16 %v110
  %v576 = vunpack.c.l.b16 %v111
  %v577 = vunpack.c.l.b16 %v112
  %v578 = vunpack.c.l.b16 %v113
  %v579 = vunpack.c.l.b16 %v114
  %v580 = vunpack.c.l.b16 %v115
  %v581 = vunpack.c.l.b16 %v116
  %v582 = vunpack.c.l.b16 %v117
  %v583 = vunpack.c.l.b16 %v118
  %v584 = vunpack.c.l.b16 %v119
  %v585 = vunpack.c.l.b16 %v120
  %v586 = vunpack.c.l.b16 %v121
  %v587 = vunpack.c.l.b16 %v122
  %v588 = vunpack.c.l.b16 %v123
  %v589 = vunpack.c.l.b16 %v124
  %v590 = vunpack.c.l.b16 %v125
  %v591 = vunpack.c.l.b16 %v126
  %v592 = vunpack.c.l.b16 %v127
  %v593 = vunpack.c.l.b16 %v128
  %v594 = vunpack.c.l.b16 %v129
  %v595 = vunpack.c.l.b16 %v130
  %v596 = vunpack.c.l.b16 %v131
  %v597 = vunpack.c.l.b16 %v132
  %v598 = vunpack.c.l.b16 %v133
  %v599 = vunpack.c.l.b16 %v134
  %v600 = vunpack.c.l.b16 %v135
  %v601 = vunpack.c.l.b16 %v136
  %v602 = vunpack.c.l.b16 %v137
  %v603 = vunpack.c.l.b16 %v138
  %v604 = vunpack.c.l.b16 %v139
  %v605 = vunpack.c.l.b16 %v140
  %v606 = vunpack.c.l.b16 %v141
  %v607 = vunpack.c.l.b16 %v142
  %v608 = vunpack.c.l.b16 %v143
  %v609 = vunpack.c.l.b16 %v144
  %v610 = vunpack.c.l.b16 %v145
  %v611 = vunpack.c.l.b16 %v146
  %v612 = vunpack.c.l.b16 %v147
  %v613 = vunpack.c.l.b16 %v148
  %v614 = vunpack.c.l.b16 %v149
  %v615 = vunpack.c.l.b16 %v150
  %v616 = vunpack.c.l.b16 %v151
  %v617 = vunpack.c.l.b16 %v152
  %v618 = vunpack.c.l.b16 %v153
  %v619 = vunpack.c.l.b16 %v154
  %v620 = vunpack.c.l.b16 %v155
  %v621 = vunpack.c.l.b16 %v156
  %v622 = vunpack.c.l.b16 %v157
  %v623 = vunpack.c.l.b16 %v158
  %v624 = vunpack.c.l.b16 %v159
  %v625 = vunpack.c.l.b16 %v160
  %v626 = vunpack.c.l.b16 %v161
  %v627 = vunpack.c.l.b16 %v162
  %v628 = vunpack.c.l.b16 %v163
  %v629 = vunpack.c.l.b16 %v164
  %v630 = vunpack.c.l.b16 %v165
  %v631 = vunpack.c.l.b16 %v166
  %v632 = vunpack.c.l.b16 %v167
  %v633 = vunpack.c.l.b16 %v168
  %v634 = vunpack.c.l.b16 %v169
  %v635 = vunpack.c.l.b16 %v170
  %v636 = vunpack.c.l.b16 %v171
  %v637 = vunpack.c.l.b16 %v172
  %v638 = vunpack.c.l.b16 %v173
  %v639 = vunpack.c.l.b16 %v174
  %v640 = vunpack.c.l.b16 %v175
  %v641 = vunpack.c.l.b16 %v176
  %v642 = vunpack.c.l.b16 %v177
  %v643 = vunpack.c.l.b16 %v178
  %v644 = vunpack.c.l.b16 %v179
  %v645 = vunpack.c.l.b16 %v180
  %v646 = vunpack.c.l.b16 %v181
  %v647 = vunpack.c.l.b16 %v182
  %v648 = vunpack.c.l.b16 %v183
  %v649 = vunpack.c.l.b16 %v184
  %v650 = vunpack.c.l.b16 %v185
  %v651 = vunpack.c.l.b16 %v186
  %v652 = vunpack.c.l.b16 %v187
  %v653 = vunpack.c.l.b16 %v188
  %v654 = vunpack.c.l.b16 %v189
  %v655 = vunpack.c.l.b16 %v190
  %v656 = vunpack.c.l.b16 %v191
  %v657 = vunpack.c.l.b16 %v192
  %v658 = vunpack.c.l.b16 %v193
  %v659 = vpack.c.b16 %v516, %v515
  %v660 = vpack.c.b16 %v518, %v517
  %v661 = vpack.c.b16 %v520, %v519
  %v662 = vpack.c.b16 %v522, %v521
  %v663 = vpack.c.b16 %v524, %v523
  %v664 = vpack.c.b16 %v526, %v525
  %v665 = vpack.c.b16 %v528, %v527
  %v666 = vpack.c.b16 %v530, %v529
  %v667 = vpack.c.b16 %v532, %v531
  %v668 = vpack.c.b16 %v534, %v533
  %v669 = vpack.c.b16 %v536, %v535
  %v670 = vpack.c.b16 %v538, %v537
  %v671 = vpack.c.b16 %v540, %v539
  %v672 = vpack.c.b16 %v542, %v541
  %v673 = vpack.c.b16 %v544, %v543
  %v674 = vpack.c.b16 %v546, %v545
  %v675 = vpack.c.b16 %v548, %v547
  %v676 = vpack.c.b16 %v550, %v549
  %v677 = vpack.c.b16 %v552, %v551
  %v678 = vpack.c.b16 %v554, %v553
  %v679 = vpack.c.b16 %v556, %v555
  %v680 = vpack.c.b16 %v558, %v557
  %v681 = vpack.c.b16 %v560, %v559
  %v682 = vpack.c.b16 %v562, %v561
  %v683 = vpack.c.b16 %v564, %v563
  %v684 = vpack.c.b16 %v566, %v565
  %v685 = vpack.c.b16 %v568, %v567
  %v686 = vpack.c.b16 %v570, %v569
  %v687 = vpack.c.b16 %v572, %v571
  %v688 = vpack.c.b16 %v574, %v573
  %v689 = vpack.c.b16 %v576, %v575
  %v690 = vpack.c.b16 %v578, %v577
  %v691 = vpack.c.b16 %v580, %v579
  %v692 = vpack.c.b16 %v582, %v581
  %v693 = vpack.c.b16 %v584, %v583
  %v694 = vpack.c.b16 %v586, %v585
  %v695 = vpack.c.b16 %v588, %v587
  %v696 = vpack.c.b16 %v590, %v589
  %v697 = vpack.c.b16 %v592, %v591
  %v698 = vpack.c.b16 %v594, %v593
  %v699 = vpack.c.b16 %v596, %v595
  %v700 = vpack.c.b16 %v598, %v597
  %v701 = vpack.c.b16 %v600, %v599
  %v702 = vpack.c.b16 %v602, %v601
  %v703 = vpack.c.b16 %v604, %v603
  %v704 = vpack.c.b16 %v606, %v605
  %v705 = vpack.c.b16 %v608, %v607
  %v706 = vpack.c.b16 %v610, %v609
  %v707 = vpack.c.b16 %v612, %v611
  %v708 = vpack.c.b16 %v614, %v613
  %v709 = vpack.c.b16 %v616, %v615
  %v710 = vpack.c.b16 %v618, %v617
  %v711 = vpack.c.b16 %v620, %v619
  %v712 = vpack.c.b16 %v622, %v621
  %v713 = vpack.c.b16 %v624, %v623
  %v714 = vpack.c.b16 %v626, %v625
  %v715 = vpack.c.b16 %v628, %v627
  %v716 = vpack.c.b16 %v630, %v629
  %v717 = vpack.c.b16 %v632, %v631
  %v718 = vpack.c.b16 %v634, %v633
  %v719 = vpack.c.b16 %v636, %v635
  %v720 = vpack.c.b16 %v638, %v637
  %v721 = vpack.c.b16 %v640, %v639
  %v722 = vpack.c.b16 %v642, %v641
  %v723 = vpack.c.b16 %v644, %v643
  %v724 = vpack.c.b16 %v646, %v645
  %v725 = vpack.c.b16 %v648, %v647
  %v726 = vpack.c.b16 %v650, %v649
  %v727 = vpack.c.b16 %v652, %v651
  %v728 = vpack.c.b16 %v654, %v653
  %v729 = vpack.c.b16 %v656, %v655
  %v730 = vpack.c.b16 %v658, %v657
  %803 = vmatprep.subr.bf16.mxu0 0
  %804 = vmatpush1.bf16.msra.mxu0 %v666
  %805 = vmatprep.subr.bf16.mxu0 0
  %806 = vmatpush1.bf16.msra.mxu0 %v665
  %807 = vmatprep.subr.bf16.mxu0 0
  %808 = vmatpush1.bf16.msra.mxu0 %v664
  %809 = vmatprep.subr.bf16.mxu0 0
  %810 = vmatpush1.bf16.msra.mxu0 %v663
  %811 = vmatprep.subr.bf16.mxu0 0
  %812 = vmatpush1.bf16.msra.mxu0 %v662
  %813 = vmatprep.subr.bf16.mxu0 0
  %814 = vmatpush1.bf16.msra.mxu0 %v661
  %815 = vmatprep.subr.bf16.mxu0 0
  %816 = vmatpush1.bf16.msra.mxu0 %v660
  %817 = vmatprep.subr.bf16.mxu0 0
  %818 = vmatpush1.bf16.msra.mxu0 %v659
  %819 = vmatprep.subr.bf16.mxu0 0
  %820 = vmatpush2.bf16.msra.mxu0 %v674
  %821 = vmatprep.subr.bf16.mxu0 0
  %822 = vmatpush2.bf16.msra.mxu0 %v673
  %823 = vmatprep.subr.bf16.mxu0 0
  %824 = vmatpush2.bf16.msra.mxu0 %v672
  %825 = vmatprep.subr.bf16.mxu0 0
  %826 = vmatpush2.bf16.msra.mxu0 %v671
  %827 = vmatprep.subr.bf16.mxu0 0
  %828 = vmatpush2.bf16.msra.mxu0 %v670
  %829 = vmatprep.subr.bf16.mxu0 0
  %830 = vmatpush2.bf16.msra.mxu0 %v669
  %831 = vmatprep.subr.bf16.mxu0 0
  %832 = vmatpush2.bf16.msra.mxu0 %v668
  %833 = vmatprep.subr.bf16.mxu0 0
  %834 = vmatpush2.bf16.msra.mxu0 %v667
  %835 = vmatprep.mubr.bf16.mxu0 %v300
  %836 = vmatmul.mubr.bf16.gmra.mxu0 %v299
  %v837 = vpop.f32.mrf.mxu0
  %v838 = vadd.f32 %v199, %v837
  %v839 = vpop.f32.mrf.mxu0
  %v840 = vpop.f32.mrf.mxu0
  %v841 = vadd.f32 %v199, %v840
  %v842 = vpop.f32.mrf.mxu0
  %843 = vmatprep.mubr.bf16.mxu0 %v309
  %844 = vmatmul.mubr.bf16.gmra.mxu0 %v308
  %v845 = vpop.f32.mrf.mxu0
  %v846 = vadd.f32 %v199, %v845
  %v847 = vpop.f32.mrf.mxu0
  %v848 = vpop.f32.mrf.mxu0
  %v849 = vadd.f32 %v199, %v848
  %v850 = vpop.f32.mrf.mxu0
  %851 = vmatprep.mubr.bf16.mxu0 %v318
  %852 = vmatmul.mubr.bf16.gmra.mxu0 %v317
  %v853 = vpop.f32.mrf.mxu0
  %v854 = vadd.f32 %v199, %v853
  %v855 = vpop.f32.mrf.mxu0
  %v856 = vpop.f32.mrf.mxu0
  %v857 = vadd.f32 %v199, %v856
  %v858 = vpop.f32.mrf.mxu0
  %859 = vmatprep.mubr.bf16.mxu0 %v327
  %860 = vmatmul.mubr.bf16.gmra.mxu0 %v326
  %v861 = vpop.f32.mrf.mxu0
  %v862 = vadd.f32 %v199, %v861
  %v863 = vpop.f32.mrf.mxu0
  %v864 = vpop.f32.mrf.mxu0
  %v865 = vpop.f32.mrf.mxu0
  %866 = vdwg.mxu0
  %867 = vmatprep.subr.bf16.mxu0 0
  %868 = vmatpush1.bf16.msra.mxu0 %v682
  %869 = vmatprep.subr.bf16.mxu0 0
  %870 = vmatpush1.bf16.msra.mxu0 %v681
  %871 = vmatprep.subr.bf16.mxu0 0
  %872 = vmatpush1.bf16.msra.mxu0 %v680
  %873 = vmatprep.subr.bf16.mxu0 0
  %874 = vmatpush1.bf16.msra.mxu0 %v679
  %875 = vmatprep.subr.bf16.mxu0 0
  %876 = vmatpush1.bf16.msra.mxu0 %v678
  %877 = vmatprep.subr.bf16.mxu0 0
  %878 = vmatpush1.bf16.msra.mxu0 %v677
  %879 = vmatprep.subr.bf16.mxu0 0
  %880 = vmatpush1.bf16.msra.mxu0 %v676
  %881 = vmatprep.subr.bf16.mxu0 0
  %882 = vmatpush1.bf16.msra.mxu0 %v675
  %883 = vmatprep.subr.bf16.mxu0 0
  %884 = vmatpush2.bf16.msra.mxu0 %v690
  %885 = vmatprep.subr.bf16.mxu0 0
  %886 = vmatpush2.bf16.msra.mxu0 %v689
  %887 = vmatprep.subr.bf16.mxu0 0
  %888 = vmatpush2.bf16.msra.mxu0 %v688
  %889 = vmatprep.subr.bf16.mxu0 0
  %890 = vmatpush2.bf16.msra.mxu0 %v687
  %891 = vmatprep.subr.bf16.mxu0 0
  %892 = vmatpush2.bf16.msra.mxu0 %v686
  %893 = vmatprep.subr.bf16.mxu0 0
  %894 = vmatpush2.bf16.msra.mxu0 %v685
  %895 = vmatprep.subr.bf16.mxu0 0
  %896 = vmatpush2.bf16.msra.mxu0 %v684
  %897 = vmatprep.subr.bf16.mxu0 0
  %898 = vmatpush2.bf16.msra.mxu0 %v683
  %899 = vmatprep.mubr.bf16.mxu0 %v302
  %900 = vmatmul.mubr.bf16.gmra.mxu0 %v301
  %v901 = vpop.f32.mrf.mxu0
  %v902 = vadd.f32 %v838, %v901
  %v903 = vpop.f32.mrf.mxu0
  %v904 = vpop.f32.mrf.mxu0
  %v905 = vadd.f32 %v841, %v904
  %v906 = vpop.f32.mrf.mxu0
  %907 = vmatprep.mubr.bf16.mxu0 %v311
  %908 = vmatmul.mubr.bf16.gmra.mxu0 %v310
  %v909 = vpop.f32.mrf.mxu0
  %v910 = vadd.f32 %v846, %v909
  %v911 = vpop.f32.mrf.mxu0
  %v912 = vpop.f32.mrf.mxu0
  %v913 = vadd.f32 %v849, %v912
  %v914 = vpop.f32.mrf.mxu0
  %915 = vmatprep.mubr.bf16.mxu0 %v320
  %916 = vmatmul.mubr.bf16.gmra.mxu0 %v319
  %v917 = vpop.f32.mrf.mxu0
  %v918 = vadd.f32 %v854, %v917
  %v919 = vpop.f32.mrf.mxu0
  %v920 = vpop.f32.mrf.mxu0
  %v921 = vadd.f32 %v857, %v920
  %v922 = vpop.f32.mrf.mxu0
  %923 = vmatprep.mubr.bf16.mxu0 %v329
  %924 = vmatmul.mubr.bf16.gmra.mxu0 %v328
  %v925 = vpop.f32.mrf.mxu0
  %v926 = vadd.f32 %v862, %v925
  %v927 = vpop.f32.mrf.mxu0
  %v928 = vpop.f32.mrf.mxu0
  %v929 = vpop.f32.mrf.mxu0
  %930 = vdwg.mxu0
  %931 = vmatprep.subr.bf16.mxu0 0
  %932 = vmatpush1.bf16.msra.mxu0 %v698
  %933 = vmatprep.subr.bf16.mxu0 0
  %934 = vmatpush1.bf16.msra.mxu0 %v697
  %935 = vmatprep.subr.bf16.mxu0 0
  %936 = vmatpush1.bf16.msra.mxu0 %v696
  %937 = vmatprep.subr.bf16.mxu0 0
  %938 = vmatpush1.bf16.msra.mxu0 %v695
  %939 = vmatprep.subr.bf16.mxu0 0
  %940 = vmatpush1.bf16.msra.mxu0 %v694
  %941 = vmatprep.subr.bf16.mxu0 0
  %942 = vmatpush1.bf16.msra.mxu0 %v693
  %943 = vmatprep.subr.bf16.mxu0 0
  %944 = vmatpush1.bf16.msra.mxu0 %v692
  %945 = vmatprep.subr.bf16.mxu0 0
  %946 = vmatpush1.bf16.msra.mxu0 %v691
  %947 = vmatprep.subr.bf16.mxu0 0
  %948 = vmatpush2.bf16.msra.mxu0 %v706
  %949 = vmatprep.subr.bf16.mxu0 0
  %950 = vmatpush2.bf16.msra.mxu0 %v705
  %951 = vmatprep.subr.bf16.mxu0 0
  %952 = vmatpush2.bf16.msra.mxu0 %v704
  %953 = vmatprep.subr.bf16.mxu0 0
  %954 = vmatpush2.bf16.msra.mxu0 %v703
  %955 = vmatprep.subr.bf16.mxu0 0
  %956 = vmatpush2.bf16.msra.mxu0 %v702
  %957 = vmatprep.subr.bf16.mxu0 0
  %958 = vmatpush2.bf16.msra.mxu0 %v701
  %959 = vmatprep.subr.bf16.mxu0 0
  %960 = vmatpush2.bf16.msra.mxu0 %v700
  %961 = vmatprep.subr.bf16.mxu0 0
  %962 = vmatpush2.bf16.msra.mxu0 %v699
  %963 = vmatprep.mubr.bf16.mxu0 %v304
  %964 = vmatmul.mubr.bf16.gmra.mxu0 %v303
  %v965 = vpop.f32.mrf.mxu0
  %v966 = vadd.f32 %v902, %v965
  %v967 = vpop.f32.mrf.mxu0
  %v968 = vpop.f32.mrf.mxu0
  %v969 = vadd.f32 %v905, %v968
  %v970 = vpop.f32.mrf.mxu0
  %971 = vmatprep.mubr.bf16.mxu0 %v313
  %972 = vmatmul.mubr.bf16.gmra.mxu0 %v312
  %v973 = vpop.f32.mrf.mxu0
  %v974 = vadd.f32 %v910, %v973
  %v975 = vpop.f32.mrf.mxu0
  %v976 = vpop.f32.mrf.mxu0
  %v977 = vadd.f32 %v913, %v976
  %v978 = vpop.f32.mrf.mxu0
  %979 = vmatprep.mubr.bf16.mxu0 %v322
  %980 = vmatmul.mubr.bf16.gmra.mxu0 %v321
  %v981 = vpop.f32.mrf.mxu0
  %v982 = vadd.f32 %v918, %v981
  %v983 = vpop.f32.mrf.mxu0
  %v984 = vpop.f32.mrf.mxu0
  %v985 = vadd.f32 %v921, %v984
  %v986 = vpop.f32.mrf.mxu0
  %987 = vmatprep.mubr.bf16.mxu0 %v331
  %988 = vmatmul.mubr.bf16.gmra.mxu0 %v330
  %v989 = vpop.f32.mrf.mxu0
  %v990 = vadd.f32 %v926, %v989
  %v991 = vpop.f32.mrf.mxu0
  %v992 = vpop.f32.mrf.mxu0
  %v993 = vpop.f32.mrf.mxu0
  %994 = vdwg.mxu0
  %995 = vmatprep.subr.bf16.mxu0 0
  %996 = vmatpush1.bf16.msra.mxu0 %v714
  %997 = vmatprep.subr.bf16.mxu0 0
  %998 = vmatpush1.bf16.msra.mxu0 %v713
  %999 = vmatprep.subr.bf16.mxu0 0
  %1000 = vmatpush1.bf16.msra.mxu0 %v712
  %1001 = vmatprep.subr.bf16.mxu0 0
  %1002 = vmatpush1.bf16.msra.mxu0 %v711
  %1003 = vmatprep.subr.bf16.mxu0 0
  %1004 = vmatpush1.bf16.msra.mxu0 %v710
  %1005 = vmatprep.subr.bf16.mxu0 0
  %1006 = vmatpush1.bf16.msra.mxu0 %v709
  %1007 = vmatprep.subr.bf16.mxu0 0
  %1008 = vmatpush1.bf16.msra.mxu0 %v708
  %1009 = vmatprep.subr.bf16.mxu0 0
  %1010 = vmatpush1.bf16.msra.mxu0 %v707
  %1011 = vmatprep.subr.bf16.mxu0 0
  %1012 = vmatpush2.bf16.msra.mxu0 %v722
  %1013 = vmatprep.subr.bf16.mxu0 0
  %1014 = vmatpush2.bf16.msra.mxu0 %v721
  %1015 = vmatprep.subr.bf16.mxu0 0
  %1016 = vmatpush2.bf16.msra.mxu0 %v720
  %1017 = vmatprep.subr.bf16.mxu0 0
  %1018 = vmatpush2.bf16.msra.mxu0 %v719
  %1019 = vmatprep.subr.bf16.mxu0 0
  %1020 = vmatpush2.bf16.msra.mxu0 %v718
  %1021 = vmatprep.subr.bf16.mxu0 0
  %1022 = vmatpush2.bf16.msra.mxu0 %v717
  %1023 = vmatprep.subr.bf16.mxu0 0
  %1024 = vmatpush2.bf16.msra.mxu0 %v716
  %1025 = vmatprep.subr.bf16.mxu0 0
  %1026 = vmatpush2.bf16.msra.mxu0 %v715
  %1027 = vmatprep.mubr.bf16.mxu0 %v306
  %1028 = vmatmul.mubr.bf16.gmra.mxu0 %v305
  %v1029 = vpop.f32.mrf.mxu0
  %v1030 = vadd.f32 %v966, %v1029
  %v1031 = vpop.f32.mrf.mxu0
  %v1032 = vpop.f32.mrf.mxu0
  %v1033 = vadd.f32 %v969, %v1032
  %v1034 = vpop.f32.mrf.mxu0
  %1035 = vmatprep.mubr.bf16.mxu0 %v315
  %1036 = vmatmul.mubr.bf16.gmra.mxu0 %v314
  %v1037 = vpop.f32.mrf.mxu0
  %v1038 = vadd.f32 %v974, %v1037
  %v1039 = vpop.f32.mrf.mxu0
  %v1040 = vpop.f32.mrf.mxu0
  %v1041 = vadd.f32 %v977, %v1040
  %v1042 = vpop.f32.mrf.mxu0
  %1043 = vmatprep.mubr.bf16.mxu0 %v324
  %1044 = vmatmul.mubr.bf16.gmra.mxu0 %v323
  %v1045 = vpop.f32.mrf.mxu0
  %v1046 = vadd.f32 %v982, %v1045
  %v1047 = vpop.f32.mrf.mxu0
  %v1048 = vpop.f32.mrf.mxu0
  %v1049 = vadd.f32 %v985, %v1048
  %v1050 = vpop.f32.mrf.mxu0
  %1051 = vmatprep.mubr.bf16.mxu0 %v333
  %1052 = vmatmul.mubr.bf16.gmra.mxu0 %v332
  %v1053 = vpop.f32.mrf.mxu0
  %v1054 = vadd.f32 %v990, %v1053
  %v1055 = vpop.f32.mrf.mxu0
  %v1056 = vpop.f32.mrf.mxu0
  %v1057 = vpop.f32.mrf.mxu0
  %1058 = vdwg.mxu0
  %1059 = vmatprep.subr.bf16.mxu0 0
  %1060 = vmatpush1.bf16.msra.mxu0 %v730
  %1061 = vmatprep.subr.bf16.mxu0 0
  %1062 = vmatpush1.bf16.msra.mxu0 %v729
  %1063 = vmatprep.subr.bf16.mxu0 0
  %1064 = vmatpush1.bf16.msra.mxu0 %v728
  %1065 = vmatprep.subr.bf16.mxu0 0
  %1066 = vmatpush1.bf16.msra.mxu0 %v727
  %1067 = vmatprep.subr.bf16.mxu0 0
  %1068 = vmatpush1.bf16.msra.mxu0 %v726
  %1069 = vmatprep.subr.bf16.mxu0 0
  %1070 = vmatpush1.bf16.msra.mxu0 %v725
  %1071 = vmatprep.subr.bf16.mxu0 0
  %1072 = vmatpush1.bf16.msra.mxu0 %v724
  %1073 = vmatprep.subr.bf16.mxu0 0
  %1074 = vmatpush1.bf16.msra.mxu0 %v723
  %1075 = vmatprep.subr.bf16.mxu0 0
  %1076 = vmatpush2.bf16.msra.mxu0 0
  %1077 = vmatprep.subr.bf16.mxu0 0
  %1078 = vmatpush2.bf16.msra.mxu0 0
  %1079 = vmatprep.subr.bf16.mxu0 0
  %1080 = vmatpush2.bf16.msra.mxu0 0
  %1081 = vmatprep.subr.bf16.mxu0 0
  %1082 = vmatpush2.bf16.msra.mxu0 0
  %1083 = vmatprep.subr.bf16.mxu0 0
  %1084 = vmatpush2.bf16.msra.mxu0 0
  %1085 = vmatprep.subr.bf16.mxu0 0
  %1086 = vmatpush2.bf16.msra.mxu0 0
  %1087 = vmatprep.subr.bf16.mxu0 0
  %1088 = vmatpush2.bf16.msra.mxu0 0
  %1089 = vmatprep.subr.bf16.mxu0 0
  %1090 = vmatpush2.bf16.msra.mxu0 0
  %1091 = vmatprep.mubr.bf16.mxu0 0
  %1092 = vmatmul.mubr.bf16.gmra.mxu0 %v307
  %v1093 = vpop.f32.mrf.mxu0
  %v1094 = vadd.f32 %v1030, %v1093
  %v1095 = vpop.f32.mrf.mxu0
  %v1096 = vpop.f32.mrf.mxu0
  %v1097 = vadd.f32 %v1033, %v1096
  %v1098 = vpop.f32.mrf.mxu0
  %1099 = vmatprep.mubr.bf16.mxu0 0
  %1100 = vmatmul.mubr.bf16.gmra.mxu0 %v316
  %v1101 = vpop.f32.mrf.mxu0
  %v1102 = vadd.f32 %v1038, %v1101
  %v1103 = vpop.f32.mrf.mxu0
  %v1104 = vpop.f32.mrf.mxu0
  %v1105 = vadd.f32 %v1041, %v1104
  %v1106 = vpop.f32.mrf.mxu0
  %1107 = vmatprep.mubr.bf16.mxu0 0
  %1108 = vmatmul.mubr.bf16.gmra.mxu0 %v325
  %v1109 = vpop.f32.mrf.mxu0
  %v1110 = vadd.f32 %v1046, %v1109
  %v1111 = vpop.f32.mrf.mxu0
  %v1112 = vpop.f32.mrf.mxu0
  %v1113 = vadd.f32 %v1049, %v1112
  %v1114 = vpop.f32.mrf.mxu0
  %1115 = vmatprep.mubr.bf16.mxu0 0
  %1116 = vmatmul.mubr.bf16.gmra.mxu0 %v334
  %v1117 = vpop.f32.mrf.mxu0
  %v1118 = vadd.f32 %v1054, %v1117
  %v1119 = vpop.f32.mrf.mxu0
  %v1120 = vpop.f32.mrf.mxu0
  %v1121 = vpop.f32.mrf.mxu0
  %1122 = vdwg.mxu0
  %v1123 = vmax.f32 %v1094, 0.0
  %v1124 = vmax.f32 %v1097, 0.0
  %v1125 = vmax.f32 %v1102, 0.0
  %v1126 = vmax.f32 %v1105, 0.0
  %v1127 = vmax.f32 %v1110, 0.0
  %v1128 = vmax.f32 %v1113, 0.0
  %v1129 = vmax.f32 %v1118, 0.0
  %v1130 = vpack.c.bf16 %v1124, %v1123
  %v1131 = vpack.c.bf16 %v1126, %v1125
  %v1132 = vpack.c.bf16 %v1128, %v1127
  %v1133 = vpack.c.bf16 %v1129, %v1129
  %v1138 = vunpack.c.l.b16 %v1130
  %v1139 = vunpack.c.h.b16 %v1130
  %v1140 = vunpack.c.l.b16 %v1131
  %v1141 = vunpack.c.h.b16 %v1131
  %v1142 = vunpack.c.l.b16 %v1132
  %v1143 = vunpack.c.h.b16 %v1132
  %v1144 = vunpack.c.l.b16 %v1133
  %v1145 = vpack.c.b16 %v1138, %v1138
  %v1146 = vpack.c.b16 %v1139, %v1139
  %v1147 = vpack.c.b16 %v1140, %v1140
  %v1148 = vpack.c.b16 %v1141, %v1141
  %v1149 = vpack.c.b16 %v1142, %v1142
  %v1150 = vpack.c.b16 %v1143, %v1143
  %v1151 = vpack.c.b16 %v1144, %v1144
  %1159 = vst [vmem:[%s3] sm:$0xf] %v1145
  %1160 = vst [vmem:[%s3 + $0x4] sm:$0xf] %v1146
  %1161 = vst [vmem:[%s3 + $0x8] sm:$0xf] %v1147
  %1162 = vst [vmem:[%s3 + $0xc] sm:$0xf] %v1148
  %1163 = vst [vmem:[%s3 + $0x10] sm:$0xf] %v1149
  %1164 = vst [vmem:[%s3 + $0x14] sm:$0xf] %v1150
  %1165 = vst [vmem:[%s3 + $0x18] sm:$0xf] %v1151
  // Predicated region
  $region14: #{atari_qr_forward.6} parent=0 // pred_check
    _
  $region15: #{atari_qr_forward.6} parent=0 // pred_check_branch
    %1167 = sbr.rel (0) target = $region17
  $region16: #{atari_qr_forward.6} parent=0 // pred_region
    _
  $region17: #{atari_qr_forward.6} parent=0 // pred_fallthru
    _
  // Predicated region
  $region18: #{atari_qr_forward.6} parent=0 // pred_check
    _
  $region19: #{atari_qr_forward.6} parent=0 // pred_check_branch
    %1169 = sbr.rel (0) target = $region21
  $region20: #{atari_qr_forward.6} parent=0 // pred_region
    _
  $region21: #{atari_qr_forward.6} parent=0 // pred_fallthru
    _

// kernel: atari_qr_forward.7
$region0: #{atari_qr_forward.7}
  #allocation0 [shape = 'u32[]', space=smem, size = 0x4, offset = 0x4, fixed_abs, tag = 'smem constant byte address 0x4 - core index']
  #allocation1 [shape = 'u32[144,128]{1,0:T(1,128)}', space=vmem, size = 0x12000, scoped, tag = 'internal scratch']
  %s0 = inlined_call_operand.vmem [shape: bf16[2,3136], index: 0, kind: input, shape index: {}]
  %s1 = inlined_call_operand.vmem [shape: bf16[3136,512], index: 1, kind: input, shape index: {}]
  %s2 = inlined_call_operand.vmem [shape: f32[1,512], index: 2, kind: input, shape index: {}]
  %s3 = inlined_call_operand.vmem [shape: bf16[512,128], index: 3, kind: input, shape index: {}]
  %s4 = inlined_call_operand.vmem [shape: f32[1,128], index: 4, kind: input, shape index: {}]
  %s5 = inlined_call_operand.vmem [shape: f32[2,128], index: 5, kind: output, shape index: {}]
  %s6 = sld [smem:[#allocation0]]
  $region95: #{atari_qr_forward.7} parent=0
    _
  %s8 = ssub.s32 1, %s6
  %s9 = scalar_select 0, %s8, %s6
  $region1: #{atari_qr_forward.7} parent=0
    #allocation2 [shape = 'u8[3211264]{0}', space=vmem, size = 0x310000, scoped, tag = 'input window, operand 1']
    loop: start=0, step=1, limit=4
    $region2: #{atari_qr_forward.7} parent=1 // loop_pre_header
      _
    $region3: #{atari_qr_forward.7} parent=1 // loop_header
      %s11 = sphi 0, %s15
      %p12 = scmp.ge.s32.totalorder %s11, 4
      %s18 = sphi 0, %s30
      %s19 = sphi 0, %s26
      %s20 = sphi 0, %s18
      %s21 = sphi 0, %s19
      %s22 = sphi 0, %s20
      %s23 = sphi 0, %s21
      %s33 = sphi 0, %s35
      %s36 = sphi 0, %s33
      %s37 = sphi 0, %s36
      %s53 = sphi 0, %s37
      %s59 = sphi 0, %s61
      %s62 = sphi 0, %s59
      %s63 = sphi 0, %s62
      %s79 = sphi 0, %s63
      %s85 = sphi 0, %s87
      %s88 = sphi 0, %s85
      %s89 = sphi 0, %s88
      %s105 = sphi 0, %s89
      %s111 = sphi 0, %s113
      %s114 = sphi 0, %s111
      %s115 = sphi 0, %s114
      %s131 = sphi 0, %s115
      %s135 = sphi 0, %s135
      %s137 = sphi 0, %s135
      %s138 = sphi 0, %s137
      %s152 = sphi 0, %s138
      %s158 = sphi 0, %s160
      %s161 = sphi 0, %s158
      %s162 = sphi 0, %s161
      %s178 = sphi 0, %s162
    $region4: #{atari_qr_forward.7} parent=1 // loop_header_branch
      %14 = sbr.rel (%p12) target = $region8
    $region5: #{atari_qr_forward.7} parent=1 // loop_body
      %s16 = ssub.s32 %s11, 1
      %s17 = ssub.s32 %s11, 2
      %s24 = sadd.s32 1, %s19
      %p25 = scmp.ge.s32.totalorder %s24, 2
      %s26 = scalar_select %p25, 0, %s24
      %s27 = sadd.s32 1, %s18
      %s28 = scalar_select %p25, %s27, %s18
      %p29 = scmp.ge.s32.totalorder %s28, 1
      %s30 = scalar_select %p29, 0, %s28
      %s31 = ssub.s32 %s18, %s30
      %p32 = scmp.eq.s32.totalorder %s31, 0
      %s34 = sadd.s32 %s33, 1
      %s35 = scalar_select %p32, %s33, %s34
      %p38 = pneg %p32
      %p39 = scmp.eq.s32.totalorder %s11, 1
      %p40 = por %p38, %p39
      %p41 = scmp.ne.s32.totalorder %s33, %s36
      %p42 = scmp.eq.s32.totalorder %s11, 0
      %p43 = por %p41, %p42
      %p44 = scmp.ne.s32.totalorder %s33, %s36
      %p45 = scmp.eq.s32.totalorder %s16, 1
      %p46 = por %p44, %p45
      %p47 = scmp.ne.s32.totalorder %s36, %s37
      %p48 = scmp.eq.s32.totalorder %s16, 0
      %p49 = por %p47, %p48
      %p50 = scmp.ne.s32.totalorder %s36, %s37
      %p51 = scmp.eq.s32.totalorder %s17, 1
      %p52 = por %p50, %p51
      %p54 = scmp.ne.s32.totalorder %s37, %s53
      %p55 = scmp.eq.s32.totalorder %s17, 0
      %p56 = por %p54, %p55
      %s57 = ssub.s32 %s19, %s26
      %p58 = scmp.eq.s32.totalorder %s57, 0
      %s60 = sadd.s32 %s59, 1
      %s61 = scalar_select %p58, %s59, %s60
      %p64 = pneg %p58
      %p65 = scmp.eq.s32.totalorder %s11, 1
      %p66 = por %p64, %p65
      %p67 = scmp.ne.s32.totalorder %s59, %s62
      %p68 = scmp.eq.s32.totalorder %s11, 0
      %p69 = por %p67, %p68
      %p70 = scmp.ne.s32.totalorder %s59, %s62
      %p71 = scmp.eq.s32.totalorder %s16, 1
      %p72 = por %p70, %p71
      %p73 = scmp.ne.s32.totalorder %s62, %s63
      %p74 = scmp.eq.s32.totalorder %s16, 0
      %p75 = por %p73, %p74
      %p76 = scmp.ne.s32.totalorder %s62, %s63
      %p77 = scmp.eq.s32.totalorder %s17, 1
      %p78 = por %p76, %p77
      %p80 = scmp.ne.s32.totalorder %s63, %s79
      %p81 = scmp.eq.s32.totalorder %s17, 0
      %p82 = por %p80, %p81
      %s83 = ssub.s32 %s19, %s26
      %p84 = scmp.eq.s32.totalorder %s83, 0
      %s86 = sadd.s32 %s85, 1
      %s87 = scalar_select %p84, %s85, %s86
      %p90 = pneg %p84
      %p91 = scmp.eq.s32.totalorder %s11, 1
      %p92 = por %p90, %p91
      %p93 = scmp.ne.s32.totalorder %s85, %s88
      %p94 = scmp.eq.s32.totalorder %s11, 0
      %p95 = por %p93, %p94
      %p96 = scmp.ne.s32.totalorder %s85, %s88
      %p97 = scmp.eq.s32.totalorder %s16, 1
      %p98 = por %p96, %p97
      %p99 = scmp.ne.s32.totalorder %s88, %s89
      %p100 = scmp.eq.s32.totalorder %s16, 0
      %p101 = por %p99, %p100
      %p102 = scmp.ne.s32.totalorder %s88, %s89
      %p103 = scmp.eq.s32.totalorder %s17, 1
      %p104 = por %p102, %p103
      %p106 = scmp.ne.s32.totalorder %s89, %s105
      %p107 = scmp.eq.s32.totalorder %s17, 0
      %p108 = por %p106, %p107
      %s109 = ssub.s32 %s19, %s26
      %p110 = scmp.eq.s32.totalorder %s109, 0
      %s112 = sadd.s32 %s111, 1
      %s113 = scalar_select %p110, %s111, %s112
      %p116 = pneg %p110
      %p117 = scmp.eq.s32.totalorder %s11, 1
      %p118 = por %p116, %p117
      %p119 = scmp.ne.s32.totalorder %s111, %s114
      %p120 = scmp.eq.s32.totalorder %s11, 0
      %p121 = por %p119, %p120
      %p122 = scmp.ne.s32.totalorder %s111, %s114
      %p123 = scmp.eq.s32.totalorder %s16, 1
      %p124 = por %p122, %p123
      %p125 = scmp.ne.s32.totalorder %s114, %s115
      %p126 = scmp.eq.s32.totalorder %s16, 0
      %p127 = por %p125, %p126
      %p128 = scmp.ne.s32.totalorder %s114, %s115
      %p129 = scmp.eq.s32.totalorder %s17, 1
      %p130 = por %p128, %p129
      %p132 = scmp.ne.s32.totalorder %s115, %s131
      %p133 = scmp.eq.s32.totalorder %s17, 0
      %p134 = por %p132, %p133
      %s136 = sadd.s32 %s135, 1
      %p139 = scmp.eq.s32.totalorder %s11, 1
      %p140 = scmp.ne.s32.totalorder %s135, %s137
      %p141 = scmp.eq.s32.totalorder %s11, 0
      %p142 = por %p140, %p141
      %p143 = scmp.ne.s32.totalorder %s135, %s137
      %p144 = scmp.eq.s32.totalorder %s16, 1
      %p145 = por %p143, %p144
      %p146 = scmp.ne.s32.totalorder %s137, %s138
      %p147 = scmp.eq.s32.totalorder %s16, 0
      %p148 = por %p146, %p147
      %p149 = scmp.ne.s32.totalorder %s137, %s138
      %p150 = scmp.eq.s32.totalorder %s17, 1
      %p151 = por %p149, %p150
      %p153 = scmp.ne.s32.totalorder %s138, %s152
      %p154 = scmp.eq.s32.totalorder %s17, 0
      %p155 = por %p153, %p154
      %s156 = ssub.s32 %s18, %s30
      %p157 = scmp.eq.s32.totalorder %s156, 0
      %s159 = sadd.s32 %s158, 1
      %s160 = scalar_select %p157, %s158, %s159
      %p163 = pneg %p157
      %p164 = scmp.eq.s32.totalorder %s11, 1
      %p165 = por %p163, %p164
      %p166 = scmp.ne.s32.totalorder %s158, %s161
      %p167 = scmp.eq.s32.totalorder %s11, 0
      %p168 = por %p166, %p167
      %p169 = scmp.ne.s32.totalorder %s158, %s161
      %p170 = scmp.eq.s32.totalorder %s16, 1
      %p171 = por %p169, %p170
      %p172 = scmp.ne.s32.totalorder %s161, %s162
      %p173 = scmp.eq.s32.totalorder %s16, 0
      %p174 = por %p172, %p173
      %p175 = scmp.ne.s32.totalorder %s161, %s162
      %p176 = scmp.eq.s32.totalorder %s17, 1
      %p177 = por %p175, %p176
      %p179 = scmp.ne.s32.totalorder %s162, %s178
      %p180 = scmp.eq.s32.totalorder %s17, 0
      %p181 = por %p179, %p180
      %p182 = scmp.le.s32.totalorder 1, %s11
      %p183 = scmp.lt.s32.totalorder %s11, 3
      %p184 = pnand %p182, %p183
      %p185 = pneg %p184
      // Predicated region
      $region9: #{atari_qr_forward.7} parent=5 // pred_check
        _
      $region10: #{atari_qr_forward.7} parent=5 // pred_check_branch
        %187 = sbr.rel (%p184) target = $region12
      $region11: #{atari_qr_forward.7} parent=5 // pred_region
        %s188 = ssub.s32 %s11, 1
        // Predicated region
        $region13: #{atari_qr_forward.7} parent=11 // pred_check
          %p189 = pneg %p49
        $region14: #{atari_qr_forward.7} parent=11 // pred_check_branch
          %191 = sbr.rel (%p189) target = $region16
        $region15: #{atari_qr_forward.7} parent=11 // pred_region
          %p192 = scmp.lt.s32.totalorder %s20, 0
          %s193 = scalar_select %p192, %s20, 0
          %s194 = smul.addr %s193, 25
          %s195 = scalar_lea.vmem %s0, %s194
        $region16: #{atari_qr_forward.7} parent=11 // pred_fallthru
          _
        // Predicated region
        $region17: #{atari_qr_forward.7} parent=11 // pred_check
          %p196 = pneg %p148
        $region18: #{atari_qr_forward.7} parent=11 // pred_check_branch
          %198 = sbr.rel (%p196) target = $region20
        $region19: #{atari_qr_forward.7} parent=11 // pred_region
          _
        $region20: #{atari_qr_forward.7} parent=11 // pred_fallthru
          _
      $region12: #{atari_qr_forward.7} parent=5 // pred_fallthru
        _
      %p199 = scmp.lt.s32.totalorder %s11, 2
      // Predicated region
      $region21: #{atari_qr_forward.7} parent=5 // pred_check
        %p200 = pneg %p199
      $region22: #{atari_qr_forward.7} parent=5 // pred_check_branch
        %202 = sbr.rel (%p200) target = $region24
      $region23: #{atari_qr_forward.7} parent=5 // pred_region
        // Predicated region
        $region25: #{atari_qr_forward.7} parent=23 // pred_check
          %p203 = pneg %p69
        $region26: #{atari_qr_forward.7} parent=23 // pred_check_branch
          %205 = sbr.rel (%p203) target = $region28
        $region27: #{atari_qr_forward.7} parent=23 // pred_region
          %s206 = sand.u32 %s59, 1
          %s207 = sand.u32 %s59, 1
          %s208 = smul.addr %s207, 3136
          %s209 = scalar_lea.vmem [#allocation2], %s208
          %s210 = smul.u32 2, %s19
          %s211 = smul.addr %s210, 4
          %s212 = scalar_lea.vmem %s1, %s211
          // Predicated region
          $region29: #{atari_qr_forward.7} parent=27 // pred_check
            _
          $region30: #{atari_qr_forward.7} parent=27 // pred_check_branch
            %214 = sbr.rel (0) target = $region32
          $region31: #{atari_qr_forward.7} parent=27 // pred_region
            // Predicated region
            $region33: #{atari_qr_forward.7} parent=31 // pred_check
              _
            $region34: #{atari_qr_forward.7} parent=31 // pred_check_branch
              %216 = sbr.rel (0) target = $region36
            $region35: #{atari_qr_forward.7} parent=31 // pred_region
              // Predicated region
              $region48: #{atari_qr_forward.7} parent=35 // pred_check
                _
              $region49: #{atari_qr_forward.7} parent=35 // pred_check_branch
                %1014 = sbr.rel (0) target = $region51
              $region50: #{atari_qr_forward.7} parent=35 // pred_region
                loop: start=0, step=1, limit=1
                $region52: #{atari_qr_forward.7} parent=50 // loop_pre_header
                  _
                $region53: #{atari_qr_forward.7} parent=50 // loop_header
                  %s1016 = sphi 0, %s1020
                  %p1017 = scmp.ge.s32.totalorder %s1016, 1
                  %s1021 = sphi %s212, %s212
                  %s1022 = sphi %s209, %s209
                $region54: #{atari_qr_forward.7} parent=50 // loop_header_branch
                  %1019 = sbr.rel (%p1017) target = $region58
                $region55: #{atari_qr_forward.7} parent=50 // loop_body
                  %v1023 = vld [vmem:[%s1021] sm:$0xff]
                  %1024 = vst [vmem:[%s1022] sm:$0xff] %v1023
                  %v1025 = vld [vmem:[%s1021 + $0x10] sm:$0xff]
                  %1026 = vst [vmem:[%s1022 + $0x8] sm:$0xff] %v1025
                  %v1027 = vld [vmem:[%s1021 + $0x20] sm:$0xff]
                  %1028 = vst [vmem:[%s1022 + $0x10] sm:$0xff] %v1027
                  %v1029 = vld [vmem:[%s1021 + $0x30] sm:$0xff]
                  %1030 = vst [vmem:[%s1022 + $0x18] sm:$0xff] %v1029
                  %v1031 = vld [vmem:[%s1021 + $0x40] sm:$0xff]
                  %1032 = vst [vmem:[%s1022 + $0x20] sm:$0xff] %v1031
                  %v1033 = vld [vmem:[%s1021 + $0x50] sm:$0xff]
                  %1034 = vst [vmem:[%s1022 + $0x28] sm:$0xff] %v1033
                  %v1035 = vld [vmem:[%s1021 + $0x60] sm:$0xff]
                  %1036 = vst [vmem:[%s1022 + $0x30] sm:$0xff] %v1035
                  %v1037 = vld [vmem:[%s1021 + $0x70] sm:$0xff]
                  %1038 = vst [vmem:[%s1022 + $0x38] sm:$0xff] %v1037
                  %v1039 = vld [vmem:[%s1021 + $0x80] sm:$0xff]
                  %1040 = vst [vmem:[%s1022 + $0x40] sm:$0xff] %v1039
                  %v1041 = vld [vmem:[%s1021 + $0x90] sm:$0xff]
                  %1042 = vst [vmem:[%s1022 + $0x48] sm:$0xff] %v1041
                  %v1043 = vld [vmem:[%s1021 + $0xa0] sm:$0xff]
                  %1044 = vst [vmem:[%s1022 + $0x50] sm:$0xff] %v1043
                  %v1045 = vld [vmem:[%s1021 + $0xb0] sm:$0xff]
                  %1046 = vst [vmem:[%s1022 + $0x58] sm:$0xff] %v1045
                  %v1047 = vld [vmem:[%s1021 + $0xc0] sm:$0xff]
                  %1048 = vst [vmem:[%s1022 + $0x60] sm:$0xff] %v1047
                  %v1049 = vld [vmem:[%s1021 + $0xd0] sm:$0xff]
                  %1050 = vst [vmem:[%s1022 + $0x68] sm:$0xff] %v1049
                  %v1051 = vld [vmem:[%s1021 + $0xe0] sm:$0xff]
                  %1052 = vst [vmem:[%s1022 + $0x70] sm:$0xff] %v1051
                  %v1053 = vld [vmem:[%s1021 + $0xf0] sm:$0xff]
                  %1054 = vst [vmem:[%s1022 + $0x78] sm:$0xff] %v1053
                  %v1055 = vld [vmem:[%s1021 + $0x100] sm:$0xff]
                  %1056 = vst [vmem:[%s1022 + $0x80] sm:$0xff] %v1055
                  %v1057 = vld [vmem:[%s1021 + $0x110] sm:$0xff]
                  %1058 = vst [vmem:[%s1022 + $0x88] sm:$0xff] %v1057
                  %v1059 = vld [vmem:[%s1021 + $0x120] sm:$0xff]
                  %1060 = vst [vmem:[%s1022 + $0x90] sm:$0xff] %v1059
                  %v1061 = vld [vmem:[%s1021 + $0x130] sm:$0xff]
                  %1062 = vst [vmem:[%s1022 + $0x98] sm:$0xff] %v1061
                  %v1063 = vld [vmem:[%s1021 + $0x140] sm:$0xff]
                  %1064 = vst [vmem:[%s1022 + $0xa0] sm:$0xff] %v1063
                  %v1065 = vld [vmem:[%s1021 + $0x150] sm:$0xff]
                  %1066 = vst [vmem:[%s1022 + $0xa8] sm:$0xff] %v1065
                  %v1067 = vld [vmem:[%s1021 + $0x160] sm:$0xff]
                  %1068 = vst [vmem:[%s1022 + $0xb0] sm:$0xff] %v1067
                  %v1069 = vld [vmem:[%s1021 + $0x170] sm:$0xff]
                  %1070 = vst [vmem:[%s1022 + $0xb8] sm:$0xff] %v1069
                  %v1071 = vld [vmem:[%s1021 + $0x180] sm:$0xff]
                  %1072 = vst [vmem:[%s1022 + $0xc0] sm:$0xff] %v1071
                  %v1073 = vld [vmem:[%s1021 + $0x190] sm:$0xff]
                  %1074 = vst [vmem:[%s1022 + $0xc8] sm:$0xff] %v1073
                  %v1075 = vld [vmem:[%s1021 + $0x1a0] sm:$0xff]
                  %1076 = vst [vmem:[%s1022 + $0xd0] sm:$0xff] %v1075
                  %v1077 = vld [vmem:[%s1021 + $0x1b0] sm:$0xff]
                  %1078 = vst [vmem:[%s1022 + $0xd8] sm:$0xff] %v1077
                  %v1079 = vld [vmem:[%s1021 + $0x1c0] sm:$0xff]
                  %1080 = vst [vmem:[%s1022 + $0xe0] sm:$0xff] %v1079
                  %v1081 = vld [vmem:[%s1021 + $0x1d0] sm:$0xff]
                  %1082 = vst [vmem:[%s1022 + $0xe8] sm:$0xff] %v1081
                  %v1083 = vld [vmem:[%s1021 + $0x1e0] sm:$0xff]
                  %1084 = vst [vmem:[%s1022 + $0xf0] sm:$0xff] %v1083
                  %v1085 = vld [vmem:[%s1021 + $0x1f0] sm:$0xff]
                  %1086 = vst [vmem:[%s1022 + $0xf8] sm:$0xff] %v1085
                  %v1087 = vld [vmem:[%s1021 + $0x200] sm:$0xff]
                  %1088 = vst [vmem:[%s1022 + $0x100] sm:$0xff] %v1087
                  %v1089 = vld [vmem:[%s1021 + $0x210] sm:$0xff]
                  %1090 = vst [vmem:[%s1022 + $0x108] sm:$0xff] %v1089
                  %v1091 = vld [vmem:[%s1021 + $0x220] sm:$0xff]
                  %1092 = vst [vmem:[%s1022 + $0x110] sm:$0xff] %v1091
                  %v1093 = vld [vmem:[%s1021 + $0x230] sm:$0xff]
                  %1094 = vst [vmem:[%s1022 + $0x118] sm:$0xff] %v1093
                  %v1095 = vld [vmem:[%s1021 + $0x240] sm:$0xff]
                  %1096 = vst [vmem:[%s1022 + $0x120] sm:$0xff] %v1095
                  %v1097 = vld [vmem:[%s1021 + $0x250] sm:$0xff]
                  %1098 = vst [vmem:[%s1022 + $0x128] sm:$0xff] %v1097
                  %v1099 = vld [vmem:[%s1021 + $0x260] sm:$0xff]
                  %1100 = vst [vmem:[%s1022 + $0x130] sm:$0xff] %v1099
                  %v1101 = vld [vmem:[%s1021 + $0x270] sm:$0xff]
                  %1102 = vst [vmem:[%s1022 + $0x138] sm:$0xff] %v1101
                  %v1103 = vld [vmem:[%s1021 + $0x280] sm:$0xff]
                  %1104 = vst [vmem:[%s1022 + $0x140] sm:$0xff] %v1103
                  %v1105 = vld [vmem:[%s1021 + $0x290] sm:$0xff]
                  %1106 = vst [vmem:[%s1022 + $0x148] sm:$0xff] %v1105
                  %v1107 = vld [vmem:[%s1021 + $0x2a0] sm:$0xff]
                  %1108 = vst [vmem:[%s1022 + $0x150] sm:$0xff] %v1107
                  %v1109 = vld [vmem:[%s1021 + $0x2b0] sm:$0xff]
                  %1110 = vst [vmem:[%s1022 + $0x158] sm:$0xff] %v1109
                  %v1111 = vld [vmem:[%s1021 + $0x2c0] sm:$0xff]
                  %1112 = vst [vmem:[%s1022 + $0x160] sm:$0xff] %v1111
                  %v1113 = vld [vmem:[%s1021 + $0x2d0] sm:$0xff]
                  %1114 = vst [vmem:[%s1022 + $0x168] sm:$0xff] %v1113
                  %v1115 = vld [vmem:[%s1021 + $0x2e0] sm:$0xff]
                  %1116 = vst [vmem:[%s1022 + $0x170] sm:$0xff] %v1115
                  %v1117 = vld [vmem:[%s1021 + $0x2f0] sm:$0xff]
                  %1118 = vst [vmem:[%s1022 + $0x178] sm:$0xff] %v1117
                  %v1119 = vld [vmem:[%s1021 + $0x300] sm:$0xff]
                  %1120 = vst [vmem:[%s1022 + $0x180] sm:$0xff] %v1119
                  %v1121 = vld [vmem:[%s1021 + $0x310] sm:$0xff]
                  %1122 = vst [vmem:[%s1022 + $0x188] sm:$0xff] %v1121
                  %v1123 = vld [vmem:[%s1021 + $0x320] sm:$0xff]
                  %1124 = vst [vmem:[%s1022 + $0x190] sm:$0xff] %v1123
                  %v1125 = vld [vmem:[%s1021 + $0x330] sm:$0xff]
                  %1126 = vst [vmem:[%s1022 + $0x198] sm:$0xff] %v1125
                  %v1127 = vld [vmem:[%s1021 + $0x340] sm:$0xff]
                  %1128 = vst [vmem:[%s1022 + $0x1a0] sm:$0xff] %v1127
                  %v1129 = vld [vmem:[%s1021 + $0x350] sm:$0xff]
                  %1130 = vst [vmem:[%s1022 + $0x1a8] sm:$0xff] %v1129
                  %v1131 = vld [vmem:[%s1021 + $0x360] sm:$0xff]
                  %1132 = vst [vmem:[%s1022 + $0x1b0] sm:$0xff] %v1131
                  %v1133 = vld [vmem:[%s1021 + $0x370] sm:$0xff]
                  %1134 = vst [vmem:[%s1022 + $0x1b8] sm:$0xff] %v1133
                  %v1135 = vld [vmem:[%s1021 + $0x380] sm:$0xff]
                  %1136 = vst [vmem:[%s1022 + $0x1c0] sm:$0xff] %v1135
                  %v1137 = vld [vmem:[%s1021 + $0x390] sm:$0xff]
                  %1138 = vst [vmem:[%s1022 + $0x1c8] sm:$0xff] %v1137
                  %v1139 = vld [vmem:[%s1021 + $0x3a0] sm:$0xff]
                  %1140 = vst [vmem:[%s1022 + $0x1d0] sm:$0xff] %v1139
                  %v1141 = vld [vmem:[%s1021 + $0x3b0] sm:$0xff]
                  %1142 = vst [vmem:[%s1022 + $0x1d8] sm:$0xff] %v1141
                  %v1143 = vld [vmem:[%s1021 + $0x3c0] sm:$0xff]
                  %1144 = vst [vmem:[%s1022 + $0x1e0] sm:$0xff] %v1143
                  %v1145 = vld [vmem:[%s1021 + $0x3d0] sm:$0xff]
                  %1146 = vst [vmem:[%s1022 + $0x1e8] sm:$0xff] %v1145
                  %v1147 = vld [vmem:[%s1021 + $0x3e0] sm:$0xff]
                  %1148 = vst [vmem:[%s1022 + $0x1f0] sm:$0xff] %v1147
                  %v1149 = vld [vmem:[%s1021 + $0x3f0] sm:$0xff]
                  %1150 = vst [vmem:[%s1022 + $0x1f8] sm:$0xff] %v1149
                  %v1151 = vld [vmem:[%s1021 + $0x400] sm:$0xff]
                  %1152 = vst [vmem:[%s1022 + $0x200] sm:$0xff] %v1151
                  %v1153 = vld [vmem:[%s1021 + $0x410] sm:$0xff]
                  %1154 = vst [vmem:[%s1022 + $0x208] sm:$0xff] %v1153
                  %v1155 = vld [vmem:[%s1021 + $0x420] sm:$0xff]
                  %1156 = vst [vmem:[%s1022 + $0x210] sm:$0xff] %v1155
                  %v1157 = vld [vmem:[%s1021 + $0x430] sm:$0xff]
                  %1158 = vst [vmem:[%s1022 + $0x218] sm:$0xff] %v1157
                  %v1159 = vld [vmem:[%s1021 + $0x440] sm:$0xff]
                  %1160 = vst [vmem:[%s1022 + $0x220] sm:$0xff] %v1159
                  %v1161 = vld [vmem:[%s1021 + $0x450] sm:$0xff]
                  %1162 = vst [vmem:[%s1022 + $0x228] sm:$0xff] %v1161
                  %v1163 = vld [vmem:[%s1021 + $0x460] sm:$0xff]
                  %1164 = vst [vmem:[%s1022 + $0x230] sm:$0xff] %v1163
                  %v1165 = vld [vmem:[%s1021 + $0x470] sm:$0xff]
                  %1166 = vst [vmem:[%s1022 + $0x238] sm:$0xff] %v1165
                  %v1167 = vld [vmem:[%s1021 + $0x480] sm:$0xff]
                  %1168 = vst [vmem:[%s1022 + $0x240] sm:$0xff] %v1167
                  %v1169 = vld [vmem:[%s1021 + $0x490] sm:$0xff]
                  %1170 = vst [vmem:[%s1022 + $0x248] sm:$0xff] %v1169
                  %v1171 = vld [vmem:[%s1021 + $0x4a0] sm:$0xff]
                  %1172 = vst [vmem:[%s1022 + $0x250] sm:$0xff] %v1171
                  %v1173 = vld [vmem:[%s1021 + $0x4b0] sm:$0xff]
                  %1174 = vst [vmem:[%s1022 + $0x258] sm:$0xff] %v1173
                  %v1175 = vld [vmem:[%s1021 + $0x4c0] sm:$0xff]
                  %1176 = vst [vmem:[%s1022 + $0x260] sm:$0xff] %v1175
                  %v1177 = vld [vmem:[%s1021 + $0x4d0] sm:$0xff]
                  %1178 = vst [vmem:[%s1022 + $0x268] sm:$0xff] %v1177
                  %v1179 = vld [vmem:[%s1021 + $0x4e0] sm:$0xff]
                  %1180 = vst [vmem:[%s1022 + $0x270] sm:$0xff] %v1179
                  %v1181 = vld [vmem:[%s1021 + $0x4f0] sm:$0xff]
                  %1182 = vst [vmem:[%s1022 + $0x278] sm:$0xff] %v1181
                  %v1183 = vld [vmem:[%s1021 + $0x500] sm:$0xff]
                  %1184 = vst [vmem:[%s1022 + $0x280] sm:$0xff] %v1183
                  %v1185 = vld [vmem:[%s1021 + $0x510] sm:$0xff]
                  %1186 = vst [vmem:[%s1022 + $0x288] sm:$0xff] %v1185
                  %v1187 = vld [vmem:[%s1021 + $0x520] sm:$0xff]
                  %1188 = vst [vmem:[%s1022 + $0x290] sm:$0xff] %v1187
                  %v1189 = vld [vmem:[%s1021 + $0x530] sm:$0xff]
                  %1190 = vst [vmem:[%s1022 + $0x298] sm:$0xff] %v1189
                  %v1191 = vld [vmem:[%s1021 + $0x540] sm:$0xff]
                  %1192 = vst [vmem:[%s1022 + $0x2a0] sm:$0xff] %v1191
                  %v1193 = vld [vmem:[%s1021 + $0x550] sm:$0xff]
                  %1194 = vst [vmem:[%s1022 + $0x2a8] sm:$0xff] %v1193
                  %v1195 = vld [vmem:[%s1021 + $0x560] sm:$0xff]
                  %1196 = vst [vmem:[%s1022 + $0x2b0] sm:$0xff] %v1195
                  %v1197 = vld [vmem:[%s1021 + $0x570] sm:$0xff]
                  %1198 = vst [vmem:[%s1022 + $0x2b8] sm:$0xff] %v1197
                  %v1199 = vld [vmem:[%s1021 + $0x580] sm:$0xff]
                  %1200 = vst [vmem:[%s1022 + $0x2c0] sm:$0xff] %v1199
                  %v1201 = vld [vmem:[%s1021 + $0x590] sm:$0xff]
                  %1202 = vst [vmem:[%s1022 + $0x2c8] sm:$0xff] %v1201
                  %v1203 = vld [vmem:[%s1021 + $0x5a0] sm:$0xff]
                  %1204 = vst [vmem:[%s1022 + $0x2d0] sm:$0xff] %v1203
                  %v1205 = vld [vmem:[%s1021 + $0x5b0] sm:$0xff]
                  %1206 = vst [vmem:[%s1022 + $0x2d8] sm:$0xff] %v1205
                  %v1207 = vld [vmem:[%s1021 + $0x5c0] sm:$0xff]
                  %1208 = vst [vmem:[%s1022 + $0x2e0] sm:$0xff] %v1207
                  %v1209 = vld [vmem:[%s1021 + $0x5d0] sm:$0xff]
                  %1210 = vst [vmem:[%s1022 + $0x2e8] sm:$0xff] %v1209
                  %v1211 = vld [vmem:[%s1021 + $0x5e0] sm:$0xff]
                  %1212 = vst [vmem:[%s1022 + $0x2f0] sm:$0xff] %v1211
                  %v1213 = vld [vmem:[%s1021 + $0x5f0] sm:$0xff]
                  %1214 = vst [vmem:[%s1022 + $0x2f8] sm:$0xff] %v1213
                  %v1215 = vld [vmem:[%s1021 + $0x600] sm:$0xff]
                  %1216 = vst [vmem:[%s1022 + $0x300] sm:$0xff] %v1215
                  %v1217 = vld [vmem:[%s1021 + $0x610] sm:$0xff]
                  %1218 = vst [vmem:[%s1022 + $0x308] sm:$0xff] %v1217
                  %v1219 = vld [vmem:[%s1021 + $0x620] sm:$0xff]
                  %1220 = vst [vmem:[%s1022 + $0x310] sm:$0xff] %v1219
                  %v1221 = vld [vmem:[%s1021 + $0x630] sm:$0xff]
                  %1222 = vst [vmem:[%s1022 + $0x318] sm:$0xff] %v1221
                  %v1223 = vld [vmem:[%s1021 + $0x640] sm:$0xff]
                  %1224 = vst [vmem:[%s1022 + $0x320] sm:$0xff] %v1223
                  %v1225 = vld [vmem:[%s1021 + $0x650] sm:$0xff]
                  %1226 = vst [vmem:[%s1022 + $0x328] sm:$0xff] %v1225
                  %v1227 = vld [vmem:[%s1021 + $0x660] sm:$0xff]
                  %1228 = vst [vmem:[%s1022 + $0x330] sm:$0xff] %v1227
                  %v1229 = vld [vmem:[%s1021 + $0x670] sm:$0xff]
                  %1230 = vst [vmem:[%s1022 + $0x338] sm:$0xff] %v1229
                  %v1231 = vld [vmem:[%s1021 + $0x680] sm:$0xff]
                  %1232 = vst [vmem:[%s1022 + $0x340] sm:$0xff] %v1231
                  %v1233 = vld [vmem:[%s1021 + $0x690] sm:$0xff]
                  %1234 = vst [vmem:[%s1022 + $0x348] sm:$0xff] %v1233
                  %v1235 = vld [vmem:[%s1021 + $0x6a0] sm:$0xff]
                  %1236 = vst [vmem:[%s1022 + $0x350] sm:$0xff] %v1235
                  %v1237 = vld [vmem:[%s1021 + $0x6b0] sm:$0xff]
                  %1238 = vst [vmem:[%s1022 + $0x358] sm:$0xff] %v1237
                  %v1239 = vld [vmem:[%s1021 + $0x6c0] sm:$0xff]
                  %1240 = vst [vmem:[%s1022 + $0x360] sm:$0xff] %v1239
                  %v1241 = vld [vmem:[%s1021 + $0x6d0] sm:$0xff]
                  %1242 = vst [vmem:[%s1022 + $0x368] sm:$0xff] %v1241
                  %v1243 = vld [vmem:[%s1021 + $0x6e0] sm:$0xff]
                  %1244 = vst [vmem:[%s1022 + $0x370] sm:$0xff] %v1243
                  %v1245 = vld [vmem:[%s1021 + $0x6f0] sm:$0xff]
                  %1246 = vst [vmem:[%s1022 + $0x378] sm:$0xff] %v1245
                  %v1247 = vld [vmem:[%s1021 + $0x700] sm:$0xff]
                  %1248 = vst [vmem:[%s1022 + $0x380] sm:$0xff] %v1247
                  %v1249 = vld [vmem:[%s1021 + $0x710] sm:$0xff]
                  %1250 = vst [vmem:[%s1022 + $0x388] sm:$0xff] %v1249
                  %v1251 = vld [vmem:[%s1021 + $0x720] sm:$0xff]
                  %1252 = vst [vmem:[%s1022 + $0x390] sm:$0xff] %v1251
                  %v1253 = vld [vmem:[%s1021 + $0x730] sm:$0xff]
                  %1254 = vst [vmem:[%s1022 + $0x398] sm:$0xff] %v1253
                  %v1255 = vld [vmem:[%s1021 + $0x740] sm:$0xff]
                  %1256 = vst [vmem:[%s1022 + $0x3a0] sm:$0xff] %v1255
                  %v1257 = vld [vmem:[%s1021 + $0x750] sm:$0xff]
                  %1258 = vst [vmem:[%s1022 + $0x3a8] sm:$0xff] %v1257
                  %v1259 = vld [vmem:[%s1021 + $0x760] sm:$0xff]
                  %1260 = vst [vmem:[%s1022 + $0x3b0] sm:$0xff] %v1259
                  %v1261 = vld [vmem:[%s1021 + $0x770] sm:$0xff]
                  %1262 = vst [vmem:[%s1022 + $0x3b8] sm:$0xff] %v1261
                  %v1263 = vld [vmem:[%s1021 + $0x780] sm:$0xff]
                  %1264 = vst [vmem:[%s1022 + $0x3c0] sm:$0xff] %v1263
                  %v1265 = vld [vmem:[%s1021 + $0x790] sm:$0xff]
                  %1266 = vst [vmem:[%s1022 + $0x3c8] sm:$0xff] %v1265
                  %v1267 = vld [vmem:[%s1021 + $0x7a0] sm:$0xff]
                  %1268 = vst [vmem:[%s1022 + $0x3d0] sm:$0xff] %v1267
                  %v1269 = vld [vmem:[%s1021 + $0x7b0] sm:$0xff]
                  %1270 = vst [vmem:[%s1022 + $0x3d8] sm:$0xff] %v1269
                  %v1271 = vld [vmem:[%s1021 + $0x7c0] sm:$0xff]
                  %1272 = vst [vmem:[%s1022 + $0x3e0] sm:$0xff] %v1271
                  %v1273 = vld [vmem:[%s1021 + $0x7d0] sm:$0xff]
                  %1274 = vst [vmem:[%s1022 + $0x3e8] sm:$0xff] %v1273
                  %v1275 = vld [vmem:[%s1021 + $0x7e0] sm:$0xff]
                  %1276 = vst [vmem:[%s1022 + $0x3f0] sm:$0xff] %v1275
                  %v1277 = vld [vmem:[%s1021 + $0x7f0] sm:$0xff]
                  %1278 = vst [vmem:[%s1022 + $0x3f8] sm:$0xff] %v1277
                  %v1279 = vld [vmem:[%s1021 + $0x800] sm:$0xff]
                  %1280 = vst [vmem:[%s1022 + $0x400] sm:$0xff] %v1279
                  %v1281 = vld [vmem:[%s1021 + $0x810] sm:$0xff]
                  %1282 = vst [vmem:[%s1022 + $0x408] sm:$0xff] %v1281
                  %v1283 = vld [vmem:[%s1021 + $0x820] sm:$0xff]
                  %1284 = vst [vmem:[%s1022 + $0x410] sm:$0xff] %v1283
                  %v1285 = vld [vmem:[%s1021 + $0x830] sm:$0xff]
                  %1286 = vst [vmem:[%s1022 + $0x418] sm:$0xff] %v1285
                  %v1287 = vld [vmem:[%s1021 + $0x840] sm:$0xff]
                  %1288 = vst [vmem:[%s1022 + $0x420] sm:$0xff] %v1287
                  %v1289 = vld [vmem:[%s1021 + $0x850] sm:$0xff]
                  %1290 = vst [vmem:[%s1022 + $0x428] sm:$0xff] %v1289
                  %v1291 = vld [vmem:[%s1021 + $0x860] sm:$0xff]
                  %1292 = vst [vmem:[%s1022 + $0x430] sm:$0xff] %v1291
                  %v1293 = vld [vmem:[%s1021 + $0x870] sm:$0xff]
                  %1294 = vst [vmem:[%s1022 + $0x438] sm:$0xff] %v1293
                  %v1295 = vld [vmem:[%s1021 + $0x880] sm:$0xff]
                  %1296 = vst [vmem:[%s1022 + $0x440] sm:$0xff] %v1295
                  %v1297 = vld [vmem:[%s1021 + $0x890] sm:$0xff]
                  %1298 = vst [vmem:[%s1022 + $0x448] sm:$0xff] %v1297
                  %v1299 = vld [vmem:[%s1021 + $0x8a0] sm:$0xff]
                  %1300 = vst [vmem:[%s1022 + $0x450] sm:$0xff] %v1299
                  %v1301 = vld [vmem:[%s1021 + $0x8b0] sm:$0xff]
                  %1302 = vst [vmem:[%s1022 + $0x458] sm:$0xff] %v1301
                  %v1303 = vld [vmem:[%s1021 + $0x8c0] sm:$0xff]
                  %1304 = vst [vmem:[%s1022 + $0x460] sm:$0xff] %v1303
                  %v1305 = vld [vmem:[%s1021 + $0x8d0] sm:$0xff]
                  %1306 = vst [vmem:[%s1022 + $0x468] sm:$0xff] %v1305
                  %v1307 = vld [vmem:[%s1021 + $0x8e0] sm:$0xff]
                  %1308 = vst [vmem:[%s1022 + $0x470] sm:$0xff] %v1307
                  %v1309 = vld [vmem:[%s1021 + $0x8f0] sm:$0xff]
                  %1310 = vst [vmem:[%s1022 + $0x478] sm:$0xff] %v1309
                  %v1311 = vld [vmem:[%s1021 + $0x900] sm:$0xff]
                  %1312 = vst [vmem:[%s1022 + $0x480] sm:$0xff] %v1311
                  %v1313 = vld [vmem:[%s1021 + $0x910] sm:$0xff]
                  %1314 = vst [vmem:[%s1022 + $0x488] sm:$0xff] %v1313
                  %v1315 = vld [vmem:[%s1021 + $0x920] sm:$0xff]
                  %1316 = vst [vmem:[%s1022 + $0x490] sm:$0xff] %v1315
                  %v1317 = vld [vmem:[%s1021 + $0x930] sm:$0xff]
                  %1318 = vst [vmem:[%s1022 + $0x498] sm:$0xff] %v1317
                  %v1319 = vld [vmem:[%s1021 + $0x940] sm:$0xff]
                  %1320 = vst [vmem:[%s1022 + $0x4a0] sm:$0xff] %v1319
                  %v1321 = vld [vmem:[%s1021 + $0x950] sm:$0xff]
                  %1322 = vst [vmem:[%s1022 + $0x4a8] sm:$0xff] %v1321
                  %v1323 = vld [vmem:[%s1021 + $0x960] sm:$0xff]
                  %1324 = vst [vmem:[%s1022 + $0x4b0] sm:$0xff] %v1323
                  %v1325 = vld [vmem:[%s1021 + $0x970] sm:$0xff]
                  %1326 = vst [vmem:[%s1022 + $0x4b8] sm:$0xff] %v1325
                  %v1327 = vld [vmem:[%s1021 + $0x980] sm:$0xff]
                  %1328 = vst [vmem:[%s1022 + $0x4c0] sm:$0xff] %v1327
                  %v1329 = vld [vmem:[%s1021 + $0x990] sm:$0xff]
                  %1330 = vst [vmem:[%s1022 + $0x4c8] sm:$0xff] %v1329
                  %v1331 = vld [vmem:[%s1021 + $0x9a0] sm:$0xff]
                  %1332 = vst [vmem:[%s1022 + $0x4d0] sm:$0xff] %v1331
                  %v1333 = vld [vmem:[%s1021 + $0x9b0] sm:$0xff]
                  %1334 = vst [vmem:[%s1022 + $0x4d8] sm:$0xff] %v1333
                  %v1335 = vld [vmem:[%s1021 + $0x9c0] sm:$0xff]
                  %1336 = vst [vmem:[%s1022 + $0x4e0] sm:$0xff] %v1335
                  %v1337 = vld [vmem:[%s1021 + $0x9d0] sm:$0xff]
                  %1338 = vst [vmem:[%s1022 + $0x4e8] sm:$0xff] %v1337
                  %v1339 = vld [vmem:[%s1021 + $0x9e0] sm:$0xff]
                  %1340 = vst [vmem:[%s1022 + $0x4f0] sm:$0xff] %v1339
                  %v1341 = vld [vmem:[%s1021 + $0x9f0] sm:$0xff]
                  %1342 = vst [vmem:[%s1022 + $0x4f8] sm:$0xff] %v1341
                  %v1343 = vld [vmem:[%s1021 + $0xa00] sm:$0xff]
                  %1344 = vst [vmem:[%s1022 + $0x500] sm:$0xff] %v1343
                  %v1345 = vld [vmem:[%s1021 + $0xa10] sm:$0xff]
                  %1346 = vst [vmem:[%s1022 + $0x508] sm:$0xff] %v1345
                  %v1347 = vld [vmem:[%s1021 + $0xa20] sm:$0xff]
                  %1348 = vst [vmem:[%s1022 + $0x510] sm:$0xff] %v1347
                  %v1349 = vld [vmem:[%s1021 + $0xa30] sm:$0xff]
                  %1350 = vst [vmem:[%s1022 + $0x518] sm:$0xff] %v1349
                  %v1351 = vld [vmem:[%s1021 + $0xa40] sm:$0xff]
                  %1352 = vst [vmem:[%s1022 + $0x520] sm:$0xff] %v1351
                  %v1353 = vld [vmem:[%s1021 + $0xa50] sm:$0xff]
                  %1354 = vst [vmem:[%s1022 + $0x528] sm:$0xff] %v1353
                  %v1355 = vld [vmem:[%s1021 + $0xa60] sm:$0xff]
                  %1356 = vst [vmem:[%s1022 + $0x530] sm:$0xff] %v1355
                  %v1357 = vld [vmem:[%s1021 + $0xa70] sm:$0xff]
                  %1358 = vst [vmem:[%s1022 + $0x538] sm:$0xff] %v1357
                  %v1359 = vld [vmem:[%s1021 + $0xa80] sm:$0xff]
                  %1360 = vst [vmem:[%s1022 + $0x540] sm:$0xff] %v1359
                  %v1361 = vld [vmem:[%s1021 + $0xa90] sm:$0xff]
                  %1362 = vst [vmem:[%s1022 + $0x548] sm:$0xff] %v1361
                  %v1363 = vld [vmem:[%s1021 + $0xaa0] sm:$0xff]
                  %1364 = vst [vmem:[%s1022 + $0x550] sm:$0xff] %v1363
                  %v1365 = vld [vmem:[%s1021 + $0xab0] sm:$0xff]
                  %1366 = vst [vmem:[%s1022 + $0x558] sm:$0xff] %v1365
                  %v1367 = vld [vmem:[%s1021 + $0xac0] sm:$0xff]
                  %1368 = vst [vmem:[%s1022 + $0x560] sm:$0xff] %v1367
                  %v1369 = vld [vmem:[%s1021 + $0xad0] sm:$0xff]
                  %1370 = vst [vmem:[%s1022 + $0x568] sm:$0xff] %v1369
                  %v1371 = vld [vmem:[%s1021 + $0xae0] sm:$0xff]
                  %1372 = vst [vmem:[%s1022 + $0x570] sm:$0xff] %v1371
                  %v1373 = vld [vmem:[%s1021 + $0xaf0] sm:$0xff]
                  %1374 = vst [vmem:[%s1022 + $0x578] sm:$0xff] %v1373
                  %v1375 = vld [vmem:[%s1021 + $0xb00] sm:$0xff]
                  %1376 = vst [vmem:[%s1022 + $0x580] sm:$0xff] %v1375
                  %v1377 = vld [vmem:[%s1021 + $0xb10] sm:$0xff]
                  %1378 = vst [vmem:[%s1022 + $0x588] sm:$0xff] %v1377
                  %v1379 = vld [vmem:[%s1021 + $0xb20] sm:$0xff]
                  %1380 = vst [vmem:[%s1022 + $0x590] sm:$0xff] %v1379
                  %v1381 = vld [vmem:[%s1021 + $0xb30] sm:$0xff]
                  %1382 = vst [vmem:[%s1022 + $0x598] sm:$0xff] %v1381
                  %v1383 = vld [vmem:[%s1021 + $0xb40] sm:$0xff]
                  %1384 = vst [vmem:[%s1022 + $0x5a0] sm:$0xff] %v1383
                  %v1385 = vld [vmem:[%s1021 + $0xb50] sm:$0xff]
                  %1386 = vst [vmem:[%s1022 + $0x5a8] sm:$0xff] %v1385
                  %v1387 = vld [vmem:[%s1021 + $0xb60] sm:$0xff]
                  %1388 = vst [vmem:[%s1022 + $0x5b0] sm:$0xff] %v1387
                  %v1389 = vld [vmem:[%s1021 + $0xb70] sm:$0xff]
                  %1390 = vst [vmem:[%s1022 + $0x5b8] sm:$0xff] %v1389
                  %v1391 = vld [vmem:[%s1021 + $0xb80] sm:$0xff]
                  %1392 = vst [vmem:[%s1022 + $0x5c0] sm:$0xff] %v1391
                  %v1393 = vld [vmem:[%s1021 + $0xb90] sm:$0xff]
                  %1394 = vst [vmem:[%s1022 + $0x5c8] sm:$0xff] %v1393
                  %v1395 = vld [vmem:[%s1021 + $0xba0] sm:$0xff]
                  %1396 = vst [vmem:[%s1022 + $0x5d0] sm:$0xff] %v1395
                  %v1397 = vld [vmem:[%s1021 + $0xbb0] sm:$0xff]
                  %1398 = vst [vmem:[%s1022 + $0x5d8] sm:$0xff] %v1397
                  %v1399 = vld [vmem:[%s1021 + $0xbc0] sm:$0xff]
                  %1400 = vst [vmem:[%s1022 + $0x5e0] sm:$0xff] %v1399
                  %v1401 = vld [vmem:[%s1021 + $0xbd0] sm:$0xff]
                  %1402 = vst [vmem:[%s1022 + $0x5e8] sm:$0xff] %v1401
                  %v1403 = vld [vmem:[%s1021 + $0xbe0] sm:$0xff]
                  %1404 = vst [vmem:[%s1022 + $0x5f0] sm:$0xff] %v1403
                  %v1405 = vld [vmem:[%s1021 + $0xbf0] sm:$0xff]
                  %1406 = vst [vmem:[%s1022 + $0x5f8] sm:$0xff] %v1405
                  %v1407 = vld [vmem:[%s1021 + $0xc00] sm:$0xff]
                  %1408 = vst [vmem:[%s1022 + $0x600] sm:$0xff] %v1407
                  %v1409 = vld [vmem:[%s1021 + $0xc10] sm:$0xff]
                  %1410 = vst [vmem:[%s1022 + $0x608] sm:$0xff] %v1409
                  %v1411 = vld [vmem:[%s1021 + $0xc20] sm:$0xff]
                  %1412 = vst [vmem:[%s1022 + $0x610] sm:$0xff] %v1411
                  %v1413 = vld [vmem:[%s1021 + $0xc30] sm:$0xff]
                  %1414 = vst [vmem:[%s1022 + $0x618] sm:$0xff] %v1413
                  %v1415 = vld [vmem:[%s1021 + $0xc40] sm:$0xff]
                  %1416 = vst [vmem:[%s1022 + $0x620] sm:$0xff] %v1415
                  %v1417 = vld [vmem:[%s1021 + $0xc50] sm:$0xff]
                  %1418 = vst [vmem:[%s1022 + $0x628] sm:$0xff] %v1417
                  %v1419 = vld [vmem:[%s1021 + $0xc60] sm:$0xff]
                  %1420 = vst [vmem:[%s1022 + $0x630] sm:$0xff] %v1419
                  %v1421 = vld [vmem:[%s1021 + $0xc70] sm:$0xff]
                  %1422 = vst [vmem:[%s1022 + $0x638] sm:$0xff] %v1421
                  %v1423 = vld [vmem:[%s1021 + $0xc80] sm:$0xff]
                  %1424 = vst [vmem:[%s1022 + $0x640] sm:$0xff] %v1423
                  %v1425 = vld [vmem:[%s1021 + $0xc90] sm:$0xff]
                  %1426 = vst [vmem:[%s1022 + $0x648] sm:$0xff] %v1425
                  %v1427 = vld [vmem:[%s1021 + $0xca0] sm:$0xff]
                  %1428 = vst [vmem:[%s1022 + $0x650] sm:$0xff] %v1427
                  %v1429 = vld [vmem:[%s1021 + $0xcb0] sm:$0xff]
                  %1430 = vst [vmem:[%s1022 + $0x658] sm:$0xff] %v1429
                  %v1431 = vld [vmem:[%s1021 + $0xcc0] sm:$0xff]
                  %1432 = vst [vmem:[%s1022 + $0x660] sm:$0xff] %v1431
                  %v1433 = vld [vmem:[%s1021 + $0xcd0] sm:$0xff]
                  %1434 = vst [vmem:[%s1022 + $0x668] sm:$0xff] %v1433
                  %v1435 = vld [vmem:[%s1021 + $0xce0] sm:$0xff]
                  %1436 = vst [vmem:[%s1022 + $0x670] sm:$0xff] %v1435
                  %v1437 = vld [vmem:[%s1021 + $0xcf0] sm:$0xff]
                  %1438 = vst [vmem:[%s1022 + $0x678] sm:$0xff] %v1437
                  %v1439 = vld [vmem:[%s1021 + $0xd00] sm:$0xff]
                  %1440 = vst [vmem:[%s1022 + $0x680] sm:$0xff] %v1439
                  %v1441 = vld [vmem:[%s1021 + $0xd10] sm:$0xff]
                  %1442 = vst [vmem:[%s1022 + $0x688] sm:$0xff] %v1441
                  %v1443 = vld [vmem:[%s1021 + $0xd20] sm:$0xff]
                  %1444 = vst [vmem:[%s1022 + $0x690] sm:$0xff] %v1443
                  %v1445 = vld [vmem:[%s1021 + $0xd30] sm:$0xff]
                  %1446 = vst [vmem:[%s1022 + $0x698] sm:$0xff] %v1445
                  %v1447 = vld [vmem:[%s1021 + $0xd40] sm:$0xff]
                  %1448 = vst [vmem:[%s1022 + $0x6a0] sm:$0xff] %v1447
                  %v1449 = vld [vmem:[%s1021 + $0xd50] sm:$0xff]
                  %1450 = vst [vmem:[%s1022 + $0x6a8] sm:$0xff] %v1449
                  %v1451 = vld [vmem:[%s1021 + $0xd60] sm:$0xff]
                  %1452 = vst [vmem:[%s1022 + $0x6b0] sm:$0xff] %v1451
                  %v1453 = vld [vmem:[%s1021 + $0xd70] sm:$0xff]
                  %1454 = vst [vmem:[%s1022 + $0x6b8] sm:$0xff] %v1453
                  %v1455 = vld [vmem:[%s1021 + $0xd80] sm:$0xff]
                  %1456 = vst [vmem:[%s1022 + $0x6c0] sm:$0xff] %v1455
                  %v1457 = vld [vmem:[%s1021 + $0xd90] sm:$0xff]
                  %1458 = vst [vmem:[%s1022 + $0x6c8] sm:$0xff] %v1457
                  %v1459 = vld [vmem:[%s1021 + $0xda0] sm:$0xff]
                  %1460 = vst [vmem:[%s1022 + $0x6d0] sm:$0xff] %v1459
                  %v1461 = vld [vmem:[%s1021 + $0xdb0] sm:$0xff]
                  %1462 = vst [vmem:[%s1022 + $0x6d8] sm:$0xff] %v1461
                  %v1463 = vld [vmem:[%s1021 + $0xdc0] sm:$0xff]
                  %1464 = vst [vmem:[%s1022 + $0x6e0] sm:$0xff] %v1463
                  %v1465 = vld [vmem:[%s1021 + $0xdd0] sm:$0xff]
                  %1466 = vst [vmem:[%s1022 + $0x6e8] sm:$0xff] %v1465
                  %v1467 = vld [vmem:[%s1021 + $0xde0] sm:$0xff]
                  %1468 = vst [vmem:[%s1022 + $0x6f0] sm:$0xff] %v1467
                  %v1469 = vld [vmem:[%s1021 + $0xdf0] sm:$0xff]
                  %1470 = vst [vmem:[%s1022 + $0x6f8] sm:$0xff] %v1469
                  %v1471 = vld [vmem:[%s1021 + $0xe00] sm:$0xff]
                  %1472 = vst [vmem:[%s1022 + $0x700] sm:$0xff] %v1471
                  %v1473 = vld [vmem:[%s1021 + $0xe10] sm:$0xff]
                  %1474 = vst [vmem:[%s1022 + $0x708] sm:$0xff] %v1473
                  %v1475 = vld [vmem:[%s1021 + $0xe20] sm:$0xff]
                  %1476 = vst [vmem:[%s1022 + $0x710] sm:$0xff] %v1475
                  %v1477 = vld [vmem:[%s1021 + $0xe30] sm:$0xff]
                  %1478 = vst [vmem:[%s1022 + $0x718] sm:$0xff] %v1477
                  %v1479 = vld [vmem:[%s1021 + $0xe40] sm:$0xff]
                  %1480 = vst [vmem:[%s1022 + $0x720] sm:$0xff] %v1479
                  %v1481 = vld [vmem:[%s1021 + $0xe50] sm:$0xff]
                  %1482 = vst [vmem:[%s1022 + $0x728] sm:$0xff] %v1481
                  %v1483 = vld [vmem:[%s1021 + $0xe60] sm:$0xff]
                  %1484 = vst [vmem:[%s1022 + $0x730] sm:$0xff] %v1483
                  %v1485 = vld [vmem:[%s1021 + $0xe70] sm:$0xff]
                  %1486 = vst [vmem:[%s1022 + $0x738] sm:$0xff] %v1485
                  %v1487 = vld [vmem:[%s1021 + $0xe80] sm:$0xff]
                  %1488 = vst [vmem:[%s1022 + $0x740] sm:$0xff] %v1487
                  %v1489 = vld [vmem:[%s1021 + $0xe90] sm:$0xff]
                  %1490 = vst [vmem:[%s1022 + $0x748] sm:$0xff] %v1489
                  %v1491 = vld [vmem:[%s1021 + $0xea0] sm:$0xff]
                  %1492 = vst [vmem:[%s1022 + $0x750] sm:$0xff] %v1491
                  %v1493 = vld [vmem:[%s1021 + $0xeb0] sm:$0xff]
                  %1494 = vst [vmem:[%s1022 + $0x758] sm:$0xff] %v1493
                  %v1495 = vld [vmem:[%s1021 + $0xec0] sm:$0xff]
                  %1496 = vst [vmem:[%s1022 + $0x760] sm:$0xff] %v1495
                  %v1497 = vld [vmem:[%s1021 + $0xed0] sm:$0xff]
                  %1498 = vst [vmem:[%s1022 + $0x768] sm:$0xff] %v1497
                  %v1499 = vld [vmem:[%s1021 + $0xee0] sm:$0xff]
                  %1500 = vst [vmem:[%s1022 + $0x770] sm:$0xff] %v1499
                  %v1501 = vld [vmem:[%s1021 + $0xef0] sm:$0xff]
                  %1502 = vst [vmem:[%s1022 + $0x778] sm:$0xff] %v1501
                  %v1503 = vld [vmem:[%s1021 + $0xf00] sm:$0xff]
                  %1504 = vst [vmem:[%s1022 + $0x780] sm:$0xff] %v1503
                  %v1505 = vld [vmem:[%s1021 + $0xf10] sm:$0xff]
                  %1506 = vst [vmem:[%s1022 + $0x788] sm:$0xff] %v1505
                  %v1507 = vld [vmem:[%s1021 + $0xf20] sm:$0xff]
                  %1508 = vst [vmem:[%s1022 + $0x790] sm:$0xff] %v1507
                  %v1509 = vld [vmem:[%s1021 + $0xf30] sm:$0xff]
                  %1510 = vst [vmem:[%s1022 + $0x798] sm:$0xff] %v1509
                  %v1511 = vld [vmem:[%s1021 + $0xf40] sm:$0xff]
                  %1512 = vst [vmem:[%s1022 + $0x7a0] sm:$0xff] %v1511
                  %v1513 = vld [vmem:[%s1021 + $0xf50] sm:$0xff]
                  %1514 = vst [vmem:[%s1022 + $0x7a8] sm:$0xff] %v1513
                  %v1515 = vld [vmem:[%s1021 + $0xf60] sm:$0xff]
                  %1516 = vst [vmem:[%s1022 + $0x7b0] sm:$0xff] %v1515
                  %v1517 = vld [vmem:[%s1021 + $0xf70] sm:$0xff]
                  %1518 = vst [vmem:[%s1022 + $0x7b8] sm:$0xff] %v1517
                  %v1519 = vld [vmem:[%s1021 + $0xf80] sm:$0xff]
                  %1520 = vst [vmem:[%s1022 + $0x7c0] sm:$0xff] %v1519
                  %v1521 = vld [vmem:[%s1021 + $0xf90] sm:$0xff]
                  %1522 = vst [vmem:[%s1022 + $0x7c8] sm:$0xff] %v1521
                  %v1523 = vld [vmem:[%s1021 + $0xfa0] sm:$0xff]
                  %1524 = vst [vmem:[%s1022 + $0x7d0] sm:$0xff] %v1523
                  %v1525 = vld [vmem:[%s1021 + $0xfb0] sm:$0xff]
                  %1526 = vst [vmem:[%s1022 + $0x7d8] sm:$0xff] %v1525
                  %v1527 = vld [vmem:[%s1021 + $0xfc0] sm:$0xff]
                  %1528 = vst [vmem:[%s1022 + $0x7e0] sm:$0xff] %v1527
                  %v1529 = vld [vmem:[%s1021 + $0xfd0] sm:$0xff]
                  %1530 = vst [vmem:[%s1022 + $0x7e8] sm:$0xff] %v1529
                  %v1531 = vld [vmem:[%s1021 + $0xfe0] sm:$0xff]
                  %1532 = vst [vmem:[%s1022 + $0x7f0] sm:$0xff] %v1531
                  %v1533 = vld [vmem:[%s1021 + $0xff0] sm:$0xff]
                  %1534 = vst [vmem:[%s1022 + $0x7f8] sm:$0xff] %v1533
                  %v1535 = vld [vmem:[%s1021 + $0x1000] sm:$0xff]
                  %1536 = vst [vmem:[%s1022 + $0x800] sm:$0xff] %v1535
                  %v1537 = vld [vmem:[%s1021 + $0x1010] sm:$0xff]
                  %1538 = vst [vmem:[%s1022 + $0x808] sm:$0xff] %v1537
                  %v1539 = vld [vmem:[%s1021 + $0x1020] sm:$0xff]
                  %1540 = vst [vmem:[%s1022 + $0x810] sm:$0xff] %v1539
                  %v1541 = vld [vmem:[%s1021 + $0x1030] sm:$0xff]
                  %1542 = vst [vmem:[%s1022 + $0x818] sm:$0xff] %v1541
                  %v1543 = vld [vmem:[%s1021 + $0x1040] sm:$0xff]
                  %1544 = vst [vmem:[%s1022 + $0x820] sm:$0xff] %v1543
                  %v1545 = vld [vmem:[%s1021 + $0x1050] sm:$0xff]
                  %1546 = vst [vmem:[%s1022 + $0x828] sm:$0xff] %v1545
                  %v1547 = vld [vmem:[%s1021 + $0x1060] sm:$0xff]
                  %1548 = vst [vmem:[%s1022 + $0x830] sm:$0xff] %v1547
                  %v1549 = vld [vmem:[%s1021 + $0x1070] sm:$0xff]
                  %1550 = vst [vmem:[%s1022 + $0x838] sm:$0xff] %v1549
                  %v1551 = vld [vmem:[%s1021 + $0x1080] sm:$0xff]
                  %1552 = vst [vmem:[%s1022 + $0x840] sm:$0xff] %v1551
                  %v1553 = vld [vmem:[%s1021 + $0x1090] sm:$0xff]
                  %1554 = vst [vmem:[%s1022 + $0x848] sm:$0xff] %v1553
                  %v1555 = vld [vmem:[%s1021 + $0x10a0] sm:$0xff]
                  %1556 = vst [vmem:[%s1022 + $0x850] sm:$0xff] %v1555
                  %v1557 = vld [vmem:[%s1021 + $0x10b0] sm:$0xff]
                  %1558 = vst [vmem:[%s1022 + $0x858] sm:$0xff] %v1557
                  %v1559 = vld [vmem:[%s1021 + $0x10c0] sm:$0xff]
                  %1560 = vst [vmem:[%s1022 + $0x860] sm:$0xff] %v1559
                  %v1561 = vld [vmem:[%s1021 + $0x10d0] sm:$0xff]
                  %1562 = vst [vmem:[%s1022 + $0x868] sm:$0xff] %v1561
                  %v1563 = vld [vmem:[%s1021 + $0x10e0] sm:$0xff]
                  %1564 = vst [vmem:[%s1022 + $0x870] sm:$0xff] %v1563
                  %v1565 = vld [vmem:[%s1021 + $0x10f0] sm:$0xff]
                  %1566 = vst [vmem:[%s1022 + $0x878] sm:$0xff] %v1565
                  %v1567 = vld [vmem:[%s1021 + $0x1100] sm:$0xff]
                  %1568 = vst [vmem:[%s1022 + $0x880] sm:$0xff] %v1567
                  %v1569 = vld [vmem:[%s1021 + $0x1110] sm:$0xff]
                  %1570 = vst [vmem:[%s1022 + $0x888] sm:$0xff] %v1569
                  %v1571 = vld [vmem:[%s1021 + $0x1120] sm:$0xff]
                  %1572 = vst [vmem:[%s1022 + $0x890] sm:$0xff] %v1571
                  %v1573 = vld [vmem:[%s1021 + $0x1130] sm:$0xff]
                  %1574 = vst [vmem:[%s1022 + $0x898] sm:$0xff] %v1573
                  %v1575 = vld [vmem:[%s1021 + $0x1140] sm:$0xff]
                  %1576 = vst [vmem:[%s1022 + $0x8a0] sm:$0xff] %v1575
                  %v1577 = vld [vmem:[%s1021 + $0x1150] sm:$0xff]
                  %1578 = vst [vmem:[%s1022 + $0x8a8] sm:$0xff] %v1577
                  %v1579 = vld [vmem:[%s1021 + $0x1160] sm:$0xff]
                  %1580 = vst [vmem:[%s1022 + $0x8b0] sm:$0xff] %v1579
                  %v1581 = vld [vmem:[%s1021 + $0x1170] sm:$0xff]
                  %1582 = vst [vmem:[%s1022 + $0x8b8] sm:$0xff] %v1581
                  %v1583 = vld [vmem:[%s1021 + $0x1180] sm:$0xff]
                  %1584 = vst [vmem:[%s1022 + $0x8c0] sm:$0xff] %v1583
                  %v1585 = vld [vmem:[%s1021 + $0x1190] sm:$0xff]
                  %1586 = vst [vmem:[%s1022 + $0x8c8] sm:$0xff] %v1585
                  %v1587 = vld [vmem:[%s1021 + $0x11a0] sm:$0xff]
                  %1588 = vst [vmem:[%s1022 + $0x8d0] sm:$0xff] %v1587
                  %v1589 = vld [vmem:[%s1021 + $0x11b0] sm:$0xff]
                  %1590 = vst [vmem:[%s1022 + $0x8d8] sm:$0xff] %v1589
                  %v1591 = vld [vmem:[%s1021 + $0x11c0] sm:$0xff]
                  %1592 = vst [vmem:[%s1022 + $0x8e0] sm:$0xff] %v1591
                  %v1593 = vld [vmem:[%s1021 + $0x11d0] sm:$0xff]
                  %1594 = vst [vmem:[%s1022 + $0x8e8] sm:$0xff] %v1593
                  %v1595 = vld [vmem:[%s1021 + $0x11e0] sm:$0xff]
                  %1596 = vst [vmem:[%s1022 + $0x8f0] sm:$0xff] %v1595
                  %v1597 = vld [vmem:[%s1021 + $0x11f0] sm:$0xff]
                  %1598 = vst [vmem:[%s1022 + $0x8f8] sm:$0xff] %v1597
                  %v1599 = vld [vmem:[%s1021 + $0x1200] sm:$0xff]
                  %1600 = vst [vmem:[%s1022 + $0x900] sm:$0xff] %v1599
                  %v1601 = vld [vmem:[%s1021 + $0x1210] sm:$0xff]
                  %1602 = vst [vmem:[%s1022 + $0x908] sm:$0xff] %v1601
                  %v1603 = vld [vmem:[%s1021 + $0x1220] sm:$0xff]
                  %1604 = vst [vmem:[%s1022 + $0x910] sm:$0xff] %v1603
                  %v1605 = vld [vmem:[%s1021 + $0x1230] sm:$0xff]
                  %1606 = vst [vmem:[%s1022 + $0x918] sm:$0xff] %v1605
                  %v1607 = vld [vmem:[%s1021 + $0x1240] sm:$0xff]
                  %1608 = vst [vmem:[%s1022 + $0x920] sm:$0xff] %v1607
                  %v1609 = vld [vmem:[%s1021 + $0x1250] sm:$0xff]
                  %1610 = vst [vmem:[%s1022 + $0x928] sm:$0xff] %v1609
                  %v1611 = vld [vmem:[%s1021 + $0x1260] sm:$0xff]
                  %1612 = vst [vmem:[%s1022 + $0x930] sm:$0xff] %v1611
                  %v1613 = vld [vmem:[%s1021 + $0x1270] sm:$0xff]
                  %1614 = vst [vmem:[%s1022 + $0x938] sm:$0xff] %v1613
                  %v1615 = vld [vmem:[%s1021 + $0x1280] sm:$0xff]
                  %1616 = vst [vmem:[%s1022 + $0x940] sm:$0xff] %v1615
                  %v1617 = vld [vmem:[%s1021 + $0x1290] sm:$0xff]
                  %1618 = vst [vmem:[%s1022 + $0x948] sm:$0xff] %v1617
                  %v1619 = vld [vmem:[%s1021 + $0x12a0] sm:$0xff]
                  %1620 = vst [vmem:[%s1022 + $0x950] sm:$0xff] %v1619
                  %v1621 = vld [vmem:[%s1021 + $0x12b0] sm:$0xff]
                  %1622 = vst [vmem:[%s1022 + $0x958] sm:$0xff] %v1621
                  %v1623 = vld [vmem:[%s1021 + $0x12c0] sm:$0xff]
                  %1624 = vst [vmem:[%s1022 + $0x960] sm:$0xff] %v1623
                  %v1625 = vld [vmem:[%s1021 + $0x12d0] sm:$0xff]
                  %1626 = vst [vmem:[%s1022 + $0x968] sm:$0xff] %v1625
                  %v1627 = vld [vmem:[%s1021 + $0x12e0] sm:$0xff]
                  %1628 = vst [vmem:[%s1022 + $0x970] sm:$0xff] %v1627
                  %v1629 = vld [vmem:[%s1021 + $0x12f0] sm:$0xff]
                  %1630 = vst [vmem:[%s1022 + $0x978] sm:$0xff] %v1629
                  %v1631 = vld [vmem:[%s1021 + $0x1300] sm:$0xff]
                  %1632 = vst [vmem:[%s1022 + $0x980] sm:$0xff] %v1631
                  %v1633 = vld [vmem:[%s1021 + $0x1310] sm:$0xff]
                  %1634 = vst [vmem:[%s1022 + $0x988] sm:$0xff] %v1633
                  %v1635 = vld [vmem:[%s1021 + $0x1320] sm:$0xff]
                  %1636 = vst [vmem:[%s1022 + $0x990] sm:$0xff] %v1635
                  %v1637 = vld [vmem:[%s1021 + $0x1330] sm:$0xff]
                  %1638 = vst [vmem:[%s1022 + $0x998] sm:$0xff] %v1637
                  %v1639 = vld [vmem:[%s1021 + $0x1340] sm:$0xff]
                  %1640 = vst [vmem:[%s1022 + $0x9a0] sm:$0xff] %v1639
                  %v1641 = vld [vmem:[%s1021 + $0x1350] sm:$0xff]
                  %1642 = vst [vmem:[%s1022 + $0x9a8] sm:$0xff] %v1641
                  %v1643 = vld [vmem:[%s1021 + $0x1360] sm:$0xff]
                  %1644 = vst [vmem:[%s1022 + $0x9b0] sm:$0xff] %v1643
                  %v1645 = vld [vmem:[%s1021 + $0x1370] sm:$0xff]
                  %1646 = vst [vmem:[%s1022 + $0x9b8] sm:$0xff] %v1645
                  %v1647 = vld [vmem:[%s1021 + $0x1380] sm:$0xff]
                  %1648 = vst [vmem:[%s1022 + $0x9c0] sm:$0xff] %v1647
                  %v1649 = vld [vmem:[%s1021 + $0x1390] sm:$0xff]
                  %1650 = vst [vmem:[%s1022 + $0x9c8] sm:$0xff] %v1649
                  %v1651 = vld [vmem:[%s1021 + $0x13a0] sm:$0xff]
                  %1652 = vst [vmem:[%s1022 + $0x9d0] sm:$0xff] %v1651
                  %v1653 = vld [vmem:[%s1021 + $0x13b0] sm:$0xff]
                  %1654 = vst [vmem:[%s1022 + $0x9d8] sm:$0xff] %v1653
                  %v1655 = vld [vmem:[%s1021 + $0x13c0] sm:$0xff]
                  %1656 = vst [vmem:[%s1022 + $0x9e0] sm:$0xff] %v1655
                  %v1657 = vld [vmem:[%s1021 + $0x13d0] sm:$0xff]
                  %1658 = vst [vmem:[%s1022 + $0x9e8] sm:$0xff] %v1657
                  %v1659 = vld [vmem:[%s1021 + $0x13e0] sm:$0xff]
                  %1660 = vst [vmem:[%s1022 + $0x9f0] sm:$0xff] %v1659
                  %v1661 = vld [vmem:[%s1021 + $0x13f0] sm:$0xff]
                  %1662 = vst [vmem:[%s1022 + $0x9f8] sm:$0xff] %v1661
                  %v1663 = vld [vmem:[%s1021 + $0x1400] sm:$0xff]
                  %1664 = vst [vmem:[%s1022 + $0xa00] sm:$0xff] %v1663
                  %v1665 = vld [vmem:[%s1021 + $0x1410] sm:$0xff]
                  %1666 = vst [vmem:[%s1022 + $0xa08] sm:$0xff] %v1665
                  %v1667 = vld [vmem:[%s1021 + $0x1420] sm:$0xff]
                  %1668 = vst [vmem:[%s1022 + $0xa10] sm:$0xff] %v1667
                  %v1669 = vld [vmem:[%s1021 + $0x1430] sm:$0xff]
                  %1670 = vst [vmem:[%s1022 + $0xa18] sm:$0xff] %v1669
                  %v1671 = vld [vmem:[%s1021 + $0x1440] sm:$0xff]
                  %1672 = vst [vmem:[%s1022 + $0xa20] sm:$0xff] %v1671
                  %v1673 = vld [vmem:[%s1021 + $0x1450] sm:$0xff]
                  %1674 = vst [vmem:[%s1022 + $0xa28] sm:$0xff] %v1673
                  %v1675 = vld [vmem:[%s1021 + $0x1460] sm:$0xff]
                  %1676 = vst [vmem:[%s1022 + $0xa30] sm:$0xff] %v1675
                  %v1677 = vld [vmem:[%s1021 + $0x1470] sm:$0xff]
                  %1678 = vst [vmem:[%s1022 + $0xa38] sm:$0xff] %v1677
                  %v1679 = vld [vmem:[%s1021 + $0x1480] sm:$0xff]
                  %1680 = vst [vmem:[%s1022 + $0xa40] sm:$0xff] %v1679
                  %v1681 = vld [vmem:[%s1021 + $0x1490] sm:$0xff]
                  %1682 = vst [vmem:[%s1022 + $0xa48] sm:$0xff] %v1681
                  %v1683 = vld [vmem:[%s1021 + $0x14a0] sm:$0xff]
                  %1684 = vst [vmem:[%s1022 + $0xa50] sm:$0xff] %v1683
                  %v1685 = vld [vmem:[%s1021 + $0x14b0] sm:$0xff]
                  %1686 = vst [vmem:[%s1022 + $0xa58] sm:$0xff] %v1685
                  %v1687 = vld [vmem:[%s1021 + $0x14c0] sm:$0xff]
                  %1688 = vst [vmem:[%s1022 + $0xa60] sm:$0xff] %v1687
                  %v1689 = vld [vmem:[%s1021 + $0x14d0] sm:$0xff]
                  %1690 = vst [vmem:[%s1022 + $0xa68] sm:$0xff] %v1689
                  %v1691 = vld [vmem:[%s1021 + $0x14e0] sm:$0xff]
                  %1692 = vst [vmem:[%s1022 + $0xa70] sm:$0xff] %v1691
                  %v1693 = vld [vmem:[%s1021 + $0x14f0] sm:$0xff]
                  %1694 = vst [vmem:[%s1022 + $0xa78] sm:$0xff] %v1693
                  %v1695 = vld [vmem:[%s1021 + $0x1500] sm:$0xff]
                  %1696 = vst [vmem:[%s1022 + $0xa80] sm:$0xff] %v1695
                  %v1697 = vld [vmem:[%s1021 + $0x1510] sm:$0xff]
                  %1698 = vst [vmem:[%s1022 + $0xa88] sm:$0xff] %v1697
                  %v1699 = vld [vmem:[%s1021 + $0x1520] sm:$0xff]
                  %1700 = vst [vmem:[%s1022 + $0xa90] sm:$0xff] %v1699
                  %v1701 = vld [vmem:[%s1021 + $0x1530] sm:$0xff]
                  %1702 = vst [vmem:[%s1022 + $0xa98] sm:$0xff] %v1701
                  %v1703 = vld [vmem:[%s1021 + $0x1540] sm:$0xff]
                  %1704 = vst [vmem:[%s1022 + $0xaa0] sm:$0xff] %v1703
                  %v1705 = vld [vmem:[%s1021 + $0x1550] sm:$0xff]
                  %1706 = vst [vmem:[%s1022 + $0xaa8] sm:$0xff] %v1705
                  %v1707 = vld [vmem:[%s1021 + $0x1560] sm:$0xff]
                  %1708 = vst [vmem:[%s1022 + $0xab0] sm:$0xff] %v1707
                  %v1709 = vld [vmem:[%s1021 + $0x1570] sm:$0xff]
                  %1710 = vst [vmem:[%s1022 + $0xab8] sm:$0xff] %v1709
                  %v1711 = vld [vmem:[%s1021 + $0x1580] sm:$0xff]
                  %1712 = vst [vmem:[%s1022 + $0xac0] sm:$0xff] %v1711
                  %v1713 = vld [vmem:[%s1021 + $0x1590] sm:$0xff]
                  %1714 = vst [vmem:[%s1022 + $0xac8] sm:$0xff] %v1713
                  %v1715 = vld [vmem:[%s1021 + $0x15a0] sm:$0xff]
                  %1716 = vst [vmem:[%s1022 + $0xad0] sm:$0xff] %v1715
                  %v1717 = vld [vmem:[%s1021 + $0x15b0] sm:$0xff]
                  %1718 = vst [vmem:[%s1022 + $0xad8] sm:$0xff] %v1717
                  %v1719 = vld [vmem:[%s1021 + $0x15c0] sm:$0xff]
                  %1720 = vst [vmem:[%s1022 + $0xae0] sm:$0xff] %v1719
                  %v1721 = vld [vmem:[%s1021 + $0x15d0] sm:$0xff]
                  %1722 = vst [vmem:[%s1022 + $0xae8] sm:$0xff] %v1721
                  %v1723 = vld [vmem:[%s1021 + $0x15e0] sm:$0xff]
                  %1724 = vst [vmem:[%s1022 + $0xaf0] sm:$0xff] %v1723
                  %v1725 = vld [vmem:[%s1021 + $0x15f0] sm:$0xff]
                  %1726 = vst [vmem:[%s1022 + $0xaf8] sm:$0xff] %v1725
                  %v1727 = vld [vmem:[%s1021 + $0x1600] sm:$0xff]
                  %1728 = vst [vmem:[%s1022 + $0xb00] sm:$0xff] %v1727
                  %v1729 = vld [vmem:[%s1021 + $0x1610] sm:$0xff]
                  %1730 = vst [vmem:[%s1022 + $0xb08] sm:$0xff] %v1729
                  %v1731 = vld [vmem:[%s1021 + $0x1620] sm:$0xff]
                  %1732 = vst [vmem:[%s1022 + $0xb10] sm:$0xff] %v1731
                  %v1733 = vld [vmem:[%s1021 + $0x1630] sm:$0xff]
                  %1734 = vst [vmem:[%s1022 + $0xb18] sm:$0xff] %v1733
                  %v1735 = vld [vmem:[%s1021 + $0x1640] sm:$0xff]
                  %1736 = vst [vmem:[%s1022 + $0xb20] sm:$0xff] %v1735
                  %v1737 = vld [vmem:[%s1021 + $0x1650] sm:$0xff]
                  %1738 = vst [vmem:[%s1022 + $0xb28] sm:$0xff] %v1737
                  %v1739 = vld [vmem:[%s1021 + $0x1660] sm:$0xff]
                  %1740 = vst [vmem:[%s1022 + $0xb30] sm:$0xff] %v1739
                  %v1741 = vld [vmem:[%s1021 + $0x1670] sm:$0xff]
                  %1742 = vst [vmem:[%s1022 + $0xb38] sm:$0xff] %v1741
                  %v1743 = vld [vmem:[%s1021 + $0x1680] sm:$0xff]
                  %1744 = vst [vmem:[%s1022 + $0xb40] sm:$0xff] %v1743
                  %v1745 = vld [vmem:[%s1021 + $0x1690] sm:$0xff]
                  %1746 = vst [vmem:[%s1022 + $0xb48] sm:$0xff] %v1745
                  %v1747 = vld [vmem:[%s1021 + $0x16a0] sm:$0xff]
                  %1748 = vst [vmem:[%s1022 + $0xb50] sm:$0xff] %v1747
                  %v1749 = vld [vmem:[%s1021 + $0x16b0] sm:$0xff]
                  %1750 = vst [vmem:[%s1022 + $0xb58] sm:$0xff] %v1749
                  %v1751 = vld [vmem:[%s1021 + $0x16c0] sm:$0xff]
                  %1752 = vst [vmem:[%s1022 + $0xb60] sm:$0xff] %v1751
                  %v1753 = vld [vmem:[%s1021 + $0x16d0] sm:$0xff]
                  %1754 = vst [vmem:[%s1022 + $0xb68] sm:$0xff] %v1753
                  %v1755 = vld [vmem:[%s1021 + $0x16e0] sm:$0xff]
                  %1756 = vst [vmem:[%s1022 + $0xb70] sm:$0xff] %v1755
                  %v1757 = vld [vmem:[%s1021 + $0x16f0] sm:$0xff]
                  %1758 = vst [vmem:[%s1022 + $0xb78] sm:$0xff] %v1757
                  %v1759 = vld [vmem:[%s1021 + $0x1700] sm:$0xff]
                  %1760 = vst [vmem:[%s1022 + $0xb80] sm:$0xff] %v1759
                  %v1761 = vld [vmem:[%s1021 + $0x1710] sm:$0xff]
                  %1762 = vst [vmem:[%s1022 + $0xb88] sm:$0xff] %v1761
                  %v1763 = vld [vmem:[%s1021 + $0x1720] sm:$0xff]
                  %1764 = vst [vmem:[%s1022 + $0xb90] sm:$0xff] %v1763
                  %v1765 = vld [vmem:[%s1021 + $0x1730] sm:$0xff]
                  %1766 = vst [vmem:[%s1022 + $0xb98] sm:$0xff] %v1765
                  %v1767 = vld [vmem:[%s1021 + $0x1740] sm:$0xff]
                  %1768 = vst [vmem:[%s1022 + $0xba0] sm:$0xff] %v1767
                  %v1769 = vld [vmem:[%s1021 + $0x1750] sm:$0xff]
                  %1770 = vst [vmem:[%s1022 + $0xba8] sm:$0xff] %v1769
                  %v1771 = vld [vmem:[%s1021 + $0x1760] sm:$0xff]
                  %1772 = vst [vmem:[%s1022 + $0xbb0] sm:$0xff] %v1771
                  %v1773 = vld [vmem:[%s1021 + $0x1770] sm:$0xff]
                  %1774 = vst [vmem:[%s1022 + $0xbb8] sm:$0xff] %v1773
                  %v1775 = vld [vmem:[%s1021 + $0x1780] sm:$0xff]
                  %1776 = vst [vmem:[%s1022 + $0xbc0] sm:$0xff] %v1775
                  %v1777 = vld [vmem:[%s1021 + $0x1790] sm:$0xff]
                  %1778 = vst [vmem:[%s1022 + $0xbc8] sm:$0xff] %v1777
                  %v1779 = vld [vmem:[%s1021 + $0x17a0] sm:$0xff]
                  %1780 = vst [vmem:[%s1022 + $0xbd0] sm:$0xff] %v1779
                  %v1781 = vld [vmem:[%s1021 + $0x17b0] sm:$0xff]
                  %1782 = vst [vmem:[%s1022 + $0xbd8] sm:$0xff] %v1781
                  %v1783 = vld [vmem:[%s1021 + $0x17c0] sm:$0xff]
                  %1784 = vst [vmem:[%s1022 + $0xbe0] sm:$0xff] %v1783
                  %v1785 = vld [vmem:[%s1021 + $0x17d0] sm:$0xff]
                  %1786 = vst [vmem:[%s1022 + $0xbe8] sm:$0xff] %v1785
                  %v1787 = vld [vmem:[%s1021 + $0x17e0] sm:$0xff]
                  %1788 = vst [vmem:[%s1022 + $0xbf0] sm:$0xff] %v1787
                  %v1789 = vld [vmem:[%s1021 + $0x17f0] sm:$0xff]
                  %1790 = vst [vmem:[%s1022 + $0xbf8] sm:$0xff] %v1789
                  %v1791 = vld [vmem:[%s1021 + $0x1800] sm:$0xff]
                  %1792 = vst [vmem:[%s1022 + $0xc00] sm:$0xff] %v1791
                  %v1793 = vld [vmem:[%s1021 + $0x1810] sm:$0xff]
                  %1794 = vst [vmem:[%s1022 + $0xc08] sm:$0xff] %v1793
                  %v1795 = vld [vmem:[%s1021 + $0x1820] sm:$0xff]
                  %1796 = vst [vmem:[%s1022 + $0xc10] sm:$0xff] %v1795
                  %v1797 = vld [vmem:[%s1021 + $0x1830] sm:$0xff]
                  %1798 = vst [vmem:[%s1022 + $0xc18] sm:$0xff] %v1797
                  %v1799 = vld [vmem:[%s1021 + $0x1840] sm:$0xff]
                  %1800 = vst [vmem:[%s1022 + $0xc20] sm:$0xff] %v1799
                  %v1801 = vld [vmem:[%s1021 + $0x1850] sm:$0xff]
                  %1802 = vst [vmem:[%s1022 + $0xc28] sm:$0xff] %v1801
                  %v1803 = vld [vmem:[%s1021 + $0x1860] sm:$0xff]
                  %1804 = vst [vmem:[%s1022 + $0xc30] sm:$0xff] %v1803
                  %v1805 = vld [vmem:[%s1021 + $0x1870] sm:$0xff]
                  %1806 = vst [vmem:[%s1022 + $0xc38] sm:$0xff] %v1805
                $region56: #{atari_qr_forward.7} parent=50 // loop_footer
                  %s1020 = sadd.s32 1, %s1016
                $region57: #{atari_qr_forward.7} parent=50 // loop_footer_branch
                  %1015 = sbr.rel target = $region53
                $region58: #{atari_qr_forward.7} parent=50 // loop_exit
                  _
              $region51: #{atari_qr_forward.7} parent=35 // pred_fallthru
                _
              // Predicated region
              $region59: #{atari_qr_forward.7} parent=35 // pred_check
                _
              $region60: #{atari_qr_forward.7} parent=35 // pred_check_branch
                %1808 = sbr.rel target = $region62
              $region61: #{atari_qr_forward.7} parent=35 // pred_region
                _
              $region62: #{atari_qr_forward.7} parent=35 // pred_fallthru
                _
            $region36: #{atari_qr_forward.7} parent=31 // pred_fallthru
              _
            // Predicated region
            $region37: #{atari_qr_forward.7} parent=31 // pred_check
              _
            $region38: #{atari_qr_forward.7} parent=31 // pred_check_branch
              %218 = sbr.rel target = $region40
            $region39: #{atari_qr_forward.7} parent=31 // pred_region
              %s220 = ssub.s32 256, 1
              loop: start=0, step=1, limit=1
              $region41: #{atari_qr_forward.7} parent=39 // loop_pre_header
                _
              $region42: #{atari_qr_forward.7} parent=39 // loop_header
                %s222 = sphi 0, %s226
                %p223 = scmp.ge.s32.totalorder %s222, 1
                %s227 = sphi %s212, %s212
                %s228 = sphi %s209, %s209
              $region43: #{atari_qr_forward.7} parent=39 // loop_header_branch
                %225 = sbr.rel (%p223) target = $region47
              $region44: #{atari_qr_forward.7} parent=39 // loop_body
                %v229 = vld [vmem:[%s227] sm:%s220]
                %230 = vst [vmem:[%s228] sm:%s220] %v229
                %v231 = vld [vmem:[%s227 + $0x10] sm:%s220]
                %232 = vst [vmem:[%s228 + $0x8] sm:%s220] %v231
                %v233 = vld [vmem:[%s227 + $0x20] sm:%s220]
                %234 = vst [vmem:[%s228 + $0x10] sm:%s220] %v233
                %v235 = vld [vmem:[%s227 + $0x30] sm:%s220]
                %236 = vst [vmem:[%s228 + $0x18] sm:%s220] %v235
                %v237 = vld [vmem:[%s227 + $0x40] sm:%s220]
                %238 = vst [vmem:[%s228 + $0x20] sm:%s220] %v237
                %v239 = vld [vmem:[%s227 + $0x50] sm:%s220]
                %240 = vst [vmem:[%s228 + $0x28] sm:%s220] %v239
                %v241 = vld [vmem:[%s227 + $0x60] sm:%s220]
                %242 = vst [vmem:[%s228 + $0x30] sm:%s220] %v241
                %v243 = vld [vmem:[%s227 + $0x70] sm:%s220]
                %244 = vst [vmem:[%s228 + $0x38] sm:%s220] %v243
                %v245 = vld [vmem:[%s227 + $0x80] sm:%s220]
                %246 = vst [vmem:[%s228 + $0x40] sm:%s220] %v245
                %v247 = vld [vmem:[%s227 + $0x90] sm:%s220]
                %248 = vst [vmem:[%s228 + $0x48] sm:%s220] %v247
                %v249 = vld [vmem:[%s227 + $0xa0] sm:%s220]
                %250 = vst [vmem:[%s228 + $0x50] sm:%s220] %v249
                %v251 = vld [vmem:[%s227 + $0xb0] sm:%s220]
                %252 = vst [vmem:[%s228 + $0x58] sm:%s220] %v251
                %v253 = vld [vmem:[%s227 + $0xc0] sm:%s220]
                %254 = vst [vmem:[%s228 + $0x60] sm:%s220] %v253
                %v255 = vld [vmem:[%s227 + $0xd0] sm:%s220]
                %256 = vst [vmem:[%s228 + $0x68] sm:%s220] %v255
                %v257 = vld [vmem:[%s227 + $0xe0] sm:%s220]
                %258 = vst [vmem:[%s228 + $0x70] sm:%s220] %v257
                %v259 = vld [vmem:[%s227 + $0xf0] sm:%s220]
                %260 = vst [vmem:[%s228 + $0x78] sm:%s220] %v259
                %v261 = vld [vmem:[%s227 + $0x100] sm:%s220]
                %262 = vst [vmem:[%s228 + $0x80] sm:%s220] %v261
                %v263 = vld [vmem:[%s227 + $0x110] sm:%s220]
                %264 = vst [vmem:[%s228 + $0x88] sm:%s220] %v263
                %v265 = vld [vmem:[%s227 + $0x120] sm:%s220]
                %266 = vst [vmem:[%s228 + $0x90] sm:%s220] %v265
                %v267 = vld [vmem:[%s227 + $0x130] sm:%s220]
                %268 = vst [vmem:[%s228 + $0x98] sm:%s220] %v267
                %v269 = vld [vmem:[%s227 + $0x140] sm:%s220]
                %270 = vst [vmem:[%s228 + $0xa0] sm:%s220] %v269
                %v271 = vld [vmem:[%s227 + $0x150] sm:%s220]
                %272 = vst [vmem:[%s228 + $0xa8] sm:%s220] %v271
                %v273 = vld [vmem:[%s227 + $0x160] sm:%s220]
                %274 = vst [vmem:[%s228 + $0xb0] sm:%s220] %v273
                %v275 = vld [vmem:[%s227 + $0x170] sm:%s220]
                %276 = vst [vmem:[%s228 + $0xb8] sm:%s220] %v275
                %v277 = vld [vmem:[%s227 + $0x180] sm:%s220]
                %278 = vst [vmem:[%s228 + $0xc0] sm:%s220] %v277
                %v279 = vld [vmem:[%s227 + $0x190] sm:%s220]
                %280 = vst [vmem:[%s228 + $0xc8] sm:%s220] %v279
                %v281 = vld [vmem:[%s227 + $0x1a0] sm:%s220]
                %282 = vst [vmem:[%s228 + $0xd0] sm:%s220] %v281
                %v283 = vld [vmem:[%s227 + $0x1b0] sm:%s220]
                %284 = vst [vmem:[%s228 + $0xd8] sm:%s220] %v283
                %v285 = vld [vmem:[%s227 + $0x1c0] sm:%s220]
                %286 = vst [vmem:[%s228 + $0xe0] sm:%s220] %v285
                %v287 = vld [vmem:[%s227 + $0x1d0] sm:%s220]
                %288 = vst [vmem:[%s228 + $0xe8] sm:%s220] %v287
                %v289 = vld [vmem:[%s227 + $0x1e0] sm:%s220]
                %290 = vst [vmem:[%s228 + $0xf0] sm:%s220] %v289
                %v291 = vld [vmem:[%s227 + $0x1f0] sm:%s220]
                %292 = vst [vmem:[%s228 + $0xf8] sm:%s220] %v291
                %v293 = vld [vmem:[%s227 + $0x200] sm:%s220]
                %294 = vst [vmem:[%s228 + $0x100] sm:%s220] %v293
                %v295 = vld [vmem:[%s227 + $0x210] sm:%s220]
                %296 = vst [vmem:[%s228 + $0x108] sm:%s220] %v295
                %v297 = vld [vmem:[%s227 + $0x220] sm:%s220]
                %298 = vst [vmem:[%s228 + $0x110] sm:%s220] %v297
                %v299 = vld [vmem:[%s227 + $0x230] sm:%s220]
                %300 = vst [vmem:[%s228 + $0x118] sm:%s220] %v299
                %v301 = vld [vmem:[%s227 + $0x240] sm:%s220]
                %302 = vst [vmem:[%s228 + $0x120] sm:%s220] %v301
                %v303 = vld [vmem:[%s227 + $0x250] sm:%s220]
                %304 = vst [vmem:[%s228 + $0x128] sm:%s220] %v303
                %v305 = vld [vmem:[%s227 + $0x260] sm:%s220]
                %306 = vst [vmem:[%s228 + $0x130] sm:%s220] %v305
                %v307 = vld [vmem:[%s227 + $0x270] sm:%s220]
                %308 = vst [vmem:[%s228 + $0x138] sm:%s220] %v307
                %v309 = vld [vmem:[%s227 + $0x280] sm:%s220]
                %310 = vst [vmem:[%s228 + $0x140] sm:%s220] %v309
                %v311 = vld [vmem:[%s227 + $0x290] sm:%s220]
                %312 = vst [vmem:[%s228 + $0x148] sm:%s220] %v311
                %v313 = vld [vmem:[%s227 + $0x2a0] sm:%s220]
                %314 = vst [vmem:[%s228 + $0x150] sm:%s220] %v313
                %v315 = vld [vmem:[%s227 + $0x2b0] sm:%s220]
                %316 = vst [vmem:[%s228 + $0x158] sm:%s220] %v315
                %v317 = vld [vmem:[%s227 + $0x2c0] sm:%s220]
                %318 = vst [vmem:[%s228 + $0x160] sm:%s220] %v317
                %v319 = vld [vmem:[%s227 + $0x2d0] sm:%s220]
                %320 = vst [vmem:[%s228 + $0x168] sm:%s220] %v319
                %v321 = vld [vmem:[%s227 + $0x2e0] sm:%s220]
                %322 = vst [vmem:[%s228 + $0x170] sm:%s220] %v321
                %v323 = vld [vmem:[%s227 + $0x2f0] sm:%s220]
                %324 = vst [vmem:[%s228 + $0x178] sm:%s220] %v323
                %v325 = vld [vmem:[%s227 + $0x300] sm:%s220]
                %326 = vst [vmem:[%s228 + $0x180] sm:%s220] %v325
                %v327 = vld [vmem:[%s227 + $0x310] sm:%s220]
                %328 = vst [vmem:[%s228 + $0x188] sm:%s220] %v327
                %v329 = vld [vmem:[%s227 + $0x320] sm:%s220]
                %330 = vst [vmem:[%s228 + $0x190] sm:%s220] %v329
                %v331 = vld [vmem:[%s227 + $0x330] sm:%s220]
                %332 = vst [vmem:[%s228 + $0x198] sm:%s220] %v331
                %v333 = vld [vmem:[%s227 + $0x340] sm:%s220]
                %334 = vst [vmem:[%s228 + $0x1a0] sm:%s220] %v333
                %v335 = vld [vmem:[%s227 + $0x350] sm:%s220]
                %336 = vst [vmem:[%s228 + $0x1a8] sm:%s220] %v335
                %v337 = vld [vmem:[%s227 + $0x360] sm:%s220]
                %338 = vst [vmem:[%s228 + $0x1b0] sm:%s220] %v337
                %v339 = vld [vmem:[%s227 + $0x370] sm:%s220]
                %340 = vst [vmem:[%s228 + $0x1b8] sm:%s220] %v339
                %v341 = vld [vmem:[%s227 + $0x380] sm:%s220]
                %342 = vst [vmem:[%s228 + $0x1c0] sm:%s220] %v341
                %v343 = vld [vmem:[%s227 + $0x390] sm:%s220]
                %344 = vst [vmem:[%s228 + $0x1c8] sm:%s220] %v343
                %v345 = vld [vmem:[%s227 + $0x3a0] sm:%s220]
                %346 = vst [vmem:[%s228 + $0x1d0] sm:%s220] %v345
                %v347 = vld [vmem:[%s227 + $0x3b0] sm:%s220]
                %348 = vst [vmem:[%s228 + $0x1d8] sm:%s220] %v347
                %v349 = vld [vmem:[%s227 + $0x3c0] sm:%s220]
                %350 = vst [vmem:[%s228 + $0x1e0] sm:%s220] %v349
                %v351 = vld [vmem:[%s227 + $0x3d0] sm:%s220]
                %352 = vst [vmem:[%s228 + $0x1e8] sm:%s220] %v351
                %v353 = vld [vmem:[%s227 + $0x3e0] sm:%s220]
                %354 = vst [vmem:[%s228 + $0x1f0] sm:%s220] %v353
                %v355 = vld [vmem:[%s227 + $0x3f0] sm:%s220]
                %356 = vst [vmem:[%s228 + $0x1f8] sm:%s220] %v355
                %v357 = vld [vmem:[%s227 + $0x400] sm:%s220]
                %358 = vst [vmem:[%s228 + $0x200] sm:%s220] %v357
                %v359 = vld [vmem:[%s227 + $0x410] sm:%s220]
                %360 = vst [vmem:[%s228 + $0x208] sm:%s220] %v359
                %v361 = vld [vmem:[%s227 + $0x420] sm:%s220]
                %362 = vst [vmem:[%s228 + $0x210] sm:%s220] %v361
                %v363 = vld [vmem:[%s227 + $0x430] sm:%s220]
                %364 = vst [vmem:[%s228 + $0x218] sm:%s220] %v363
                %v365 = vld [vmem:[%s227 + $0x440] sm:%s220]
                %366 = vst [vmem:[%s228 + $0x220] sm:%s220] %v365
                %v367 = vld [vmem:[%s227 + $0x450] sm:%s220]
                %368 = vst [vmem:[%s228 + $0x228] sm:%s220] %v367
                %v369 = vld [vmem:[%s227 + $0x460] sm:%s220]
                %370 = vst [vmem:[%s228 + $0x230] sm:%s220] %v369
                %v371 = vld [vmem:[%s227 + $0x470] sm:%s220]
                %372 = vst [vmem:[%s228 + $0x238] sm:%s220] %v371
                %v373 = vld [vmem:[%s227 + $0x480] sm:%s220]
                %374 = vst [vmem:[%s228 + $0x240] sm:%s220] %v373
                %v375 = vld [vmem:[%s227 + $0x490] sm:%s220]
                %376 = vst [vmem:[%s228 + $0x248] sm:%s220] %v375
                %v377 = vld [vmem:[%s227 + $0x4a0] sm:%s220]
                %378 = vst [vmem:[%s228 + $0x250] sm:%s220] %v377
                %v379 = vld [vmem:[%s227 + $0x4b0] sm:%s220]
                %380 = vst [vmem:[%s228 + $0x258] sm:%s220] %v379
                %v381 = vld [vmem:[%s227 + $0x4c0] sm:%s220]
                %382 = vst [vmem:[%s228 + $0x260] sm:%s220] %v381
                %v383 = vld [vmem:[%s227 + $0x4d0] sm:%s220]
                %384 = vst [vmem:[%s228 + $0x268] sm:%s220] %v383
                %v385 = vld [vmem:[%s227 + $0x4e0] sm:%s220]
                %386 = vst [vmem:[%s228 + $0x270] sm:%s220] %v385
                %v387 = vld [vmem:[%s227 + $0x4f0] sm:%s220]
                %388 = vst [vmem:[%s228 + $0x278] sm:%s220] %v387
                %v389 = vld [vmem:[%s227 + $0x500] sm:%s220]
                %390 = vst [vmem:[%s228 + $0x280] sm:%s220] %v389
                %v391 = vld [vmem:[%s227 + $0x510] sm:%s220]
                %392 = vst [vmem:[%s228 + $0x288] sm:%s220] %v391
                %v393 = vld [vmem:[%s227 + $0x520] sm:%s220]
                %394 = vst [vmem:[%s228 + $0x290] sm:%s220] %v393
                %v395 = vld [vmem:[%s227 + $0x530] sm:%s220]
                %396 = vst [vmem:[%s228 + $0x298] sm:%s220] %v395
                %v397 = vld [vmem:[%s227 + $0x540] sm:%s220]
                %398 = vst [vmem:[%s228 + $0x2a0] sm:%s220] %v397
                %v399 = vld [vmem:[%s227 + $0x550] sm:%s220]
                %400 = vst [vmem:[%s228 + $0x2a8] sm:%s220] %v399
                %v401 = vld [vmem:[%s227 + $0x560] sm:%s220]
                %402 = vst [vmem:[%s228 + $0x2b0] sm:%s220] %v401
                %v403 = vld [vmem:[%s227 + $0x570] sm:%s220]
                %404 = vst [vmem:[%s228 + $0x2b8] sm:%s220] %v403
                %v405 = vld [vmem:[%s227 + $0x580] sm:%s220]
                %406 = vst [vmem:[%s228 + $0x2c0] sm:%s220] %v405
                %v407 = vld [vmem:[%s227 + $0x590] sm:%s220]
                %408 = vst [vmem:[%s228 + $0x2c8] sm:%s220] %v407
                %v409 = vld [vmem:[%s227 + $0x5a0] sm:%s220]
                %410 = vst [vmem:[%s228 + $0x2d0] sm:%s220] %v409
                %v411 = vld [vmem:[%s227 + $0x5b0] sm:%s220]
                %412 = vst [vmem:[%s228 + $0x2d8] sm:%s220] %v411
                %v413 = vld [vmem:[%s227 + $0x5c0] sm:%s220]
                %414 = vst [vmem:[%s228 + $0x2e0] sm:%s220] %v413
                %v415 = vld [vmem:[%s227 + $0x5d0] sm:%s220]
                %416 = vst [vmem:[%s228 + $0x2e8] sm:%s220] %v415
                %v417 = vld [vmem:[%s227 + $0x5e0] sm:%s220]
                %418 = vst [vmem:[%s228 + $0x2f0] sm:%s220] %v417
                %v419 = vld [vmem:[%s227 + $0x5f0] sm:%s220]
                %420 = vst [vmem:[%s228 + $0x2f8] sm:%s220] %v419
                %v421 = vld [vmem:[%s227 + $0x600] sm:%s220]
                %422 = vst [vmem:[%s228 + $0x300] sm:%s220] %v421
                %v423 = vld [vmem:[%s227 + $0x610] sm:%s220]
                %424 = vst [vmem:[%s228 + $0x308] sm:%s220] %v423
                %v425 = vld [vmem:[%s227 + $0x620] sm:%s220]
                %426 = vst [vmem:[%s228 + $0x310] sm:%s220] %v425
                %v427 = vld [vmem:[%s227 + $0x630] sm:%s220]
                %428 = vst [vmem:[%s228 + $0x318] sm:%s220] %v427
                %v429 = vld [vmem:[%s227 + $0x640] sm:%s220]
                %430 = vst [vmem:[%s228 + $0x320] sm:%s220] %v429
                %v431 = vld [vmem:[%s227 + $0x650] sm:%s220]
                %432 = vst [vmem:[%s228 + $0x328] sm:%s220] %v431
                %v433 = vld [vmem:[%s227 + $0x660] sm:%s220]
                %434 = vst [vmem:[%s228 + $0x330] sm:%s220] %v433
                %v435 = vld [vmem:[%s227 + $0x670] sm:%s220]
                %436 = vst [vmem:[%s228 + $0x338] sm:%s220] %v435
                %v437 = vld [vmem:[%s227 + $0x680] sm:%s220]
                %438 = vst [vmem:[%s228 + $0x340] sm:%s220] %v437
                %v439 = vld [vmem:[%s227 + $0x690] sm:%s220]
                %440 = vst [vmem:[%s228 + $0x348] sm:%s220] %v439
                %v441 = vld [vmem:[%s227 + $0x6a0] sm:%s220]
                %442 = vst [vmem:[%s228 + $0x350] sm:%s220] %v441
                %v443 = vld [vmem:[%s227 + $0x6b0] sm:%s220]
                %444 = vst [vmem:[%s228 + $0x358] sm:%s220] %v443
                %v445 = vld [vmem:[%s227 + $0x6c0] sm:%s220]
                %446 = vst [vmem:[%s228 + $0x360] sm:%s220] %v445
                %v447 = vld [vmem:[%s227 + $0x6d0] sm:%s220]
                %448 = vst [vmem:[%s228 + $0x368] sm:%s220] %v447
                %v449 = vld [vmem:[%s227 + $0x6e0] sm:%s220]
                %450 = vst [vmem:[%s228 + $0x370] sm:%s220] %v449
                %v451 = vld [vmem:[%s227 + $0x6f0] sm:%s220]
                %452 = vst [vmem:[%s228 + $0x378] sm:%s220] %v451
                %v453 = vld [vmem:[%s227 + $0x700] sm:%s220]
                %454 = vst [vmem:[%s228 + $0x380] sm:%s220] %v453
                %v455 = vld [vmem:[%s227 + $0x710] sm:%s220]
                %456 = vst [vmem:[%s228 + $0x388] sm:%s220] %v455
                %v457 = vld [vmem:[%s227 + $0x720] sm:%s220]
                %458 = vst [vmem:[%s228 + $0x390] sm:%s220] %v457
                %v459 = vld [vmem:[%s227 + $0x730] sm:%s220]
                %460 = vst [vmem:[%s228 + $0x398] sm:%s220] %v459
                %v461 = vld [vmem:[%s227 + $0x740] sm:%s220]
                %462 = vst [vmem:[%s228 + $0x3a0] sm:%s220] %v461
                %v463 = vld [vmem:[%s227 + $0x750] sm:%s220]
                %464 = vst [vmem:[%s228 + $0x3a8] sm:%s220] %v463
                %v465 = vld [vmem:[%s227 + $0x760] sm:%s220]
                %466 = vst [vmem:[%s228 + $0x3b0] sm:%s220] %v465
                %v467 = vld [vmem:[%s227 + $0x770] sm:%s220]
                %468 = vst [vmem:[%s228 + $0x3b8] sm:%s220] %v467
                %v469 = vld [vmem:[%s227 + $0x780] sm:%s220]
                %470 = vst [vmem:[%s228 + $0x3c0] sm:%s220] %v469
                %v471 = vld [vmem:[%s227 + $0x790] sm:%s220]
                %472 = vst [vmem:[%s228 + $0x3c8] sm:%s220] %v471
                %v473 = vld [vmem:[%s227 + $0x7a0] sm:%s220]
                %474 = vst [vmem:[%s228 + $0x3d0] sm:%s220] %v473
                %v475 = vld [vmem:[%s227 + $0x7b0] sm:%s220]
                %476 = vst [vmem:[%s228 + $0x3d8] sm:%s220] %v475
                %v477 = vld [vmem:[%s227 + $0x7c0] sm:%s220]
                %478 = vst [vmem:[%s228 + $0x3e0] sm:%s220] %v477
                %v479 = vld [vmem:[%s227 + $0x7d0] sm:%s220]
                %480 = vst [vmem:[%s228 + $0x3e8] sm:%s220] %v479
                %v481 = vld [vmem:[%s227 + $0x7e0] sm:%s220]
                %482 = vst [vmem:[%s228 + $0x3f0] sm:%s220] %v481
                %v483 = vld [vmem:[%s227 + $0x7f0] sm:%s220]
                %484 = vst [vmem:[%s228 + $0x3f8] sm:%s220] %v483
                %v485 = vld [vmem:[%s227 + $0x800] sm:%s220]
                %486 = vst [vmem:[%s228 + $0x400] sm:%s220] %v485
                %v487 = vld [vmem:[%s227 + $0x810] sm:%s220]
                %488 = vst [vmem:[%s228 + $0x408] sm:%s220] %v487
                %v489 = vld [vmem:[%s227 + $0x820] sm:%s220]
                %490 = vst [vmem:[%s228 + $0x410] sm:%s220] %v489
                %v491 = vld [vmem:[%s227 + $0x830] sm:%s220]
                %492 = vst [vmem:[%s228 + $0x418] sm:%s220] %v491
                %v493 = vld [vmem:[%s227 + $0x840] sm:%s220]
                %494 = vst [vmem:[%s228 + $0x420] sm:%s220] %v493
                %v495 = vld [vmem:[%s227 + $0x850] sm:%s220]
                %496 = vst [vmem:[%s228 + $0x428] sm:%s220] %v495
                %v497 = vld [vmem:[%s227 + $0x860] sm:%s220]
                %498 = vst [vmem:[%s228 + $0x430] sm:%s220] %v497
                %v499 = vld [vmem:[%s227 + $0x870] sm:%s220]
                %500 = vst [vmem:[%s228 + $0x438] sm:%s220] %v499
                %v501 = vld [vmem:[%s227 + $0x880] sm:%s220]
                %502 = vst [vmem:[%s228 + $0x440] sm:%s220] %v501
                %v503 = vld [vmem:[%s227 + $0x890] sm:%s220]
                %504 = vst [vmem:[%s228 + $0x448] sm:%s220] %v503
                %v505 = vld [vmem:[%s227 + $0x8a0] sm:%s220]
                %506 = vst [vmem:[%s228 + $0x450] sm:%s220] %v505
                %v507 = vld [vmem:[%s227 + $0x8b0] sm:%s220]
                %508 = vst [vmem:[%s228 + $0x458] sm:%s220] %v507
                %v509 = vld [vmem:[%s227 + $0x8c0] sm:%s220]
                %510 = vst [vmem:[%s228 + $0x460] sm:%s220] %v509
                %v511 = vld [vmem:[%s227 + $0x8d0] sm:%s220]
                %512 = vst [vmem:[%s228 + $0x468] sm:%s220] %v511
                %v513 = vld [vmem:[%s227 + $0x8e0] sm:%s220]
                %514 = vst [vmem:[%s228 + $0x470] sm:%s220] %v513
                %v515 = vld [vmem:[%s227 + $0x8f0] sm:%s220]
                %516 = vst [vmem:[%s228 + $0x478] sm:%s220] %v515
                %v517 = vld [vmem:[%s227 + $0x900] sm:%s220]
                %518 = vst [vmem:[%s228 + $0x480] sm:%s220] %v517
                %v519 = vld [vmem:[%s227 + $0x910] sm:%s220]
                %520 = vst [vmem:[%s228 + $0x488] sm:%s220] %v519
                %v521 = vld [vmem:[%s227 + $0x920] sm:%s220]
                %522 = vst [vmem:[%s228 + $0x490] sm:%s220] %v521
                %v523 = vld [vmem:[%s227 + $0x930] sm:%s220]
                %524 = vst [vmem:[%s228 + $0x498] sm:%s220] %v523
                %v525 = vld [vmem:[%s227 + $0x940] sm:%s220]
                %526 = vst [vmem:[%s228 + $0x4a0] sm:%s220] %v525
                %v527 = vld [vmem:[%s227 + $0x950] sm:%s220]
                %528 = vst [vmem:[%s228 + $0x4a8] sm:%s220] %v527
                %v529 = vld [vmem:[%s227 + $0x960] sm:%s220]
                %530 = vst [vmem:[%s228 + $0x4b0] sm:%s220] %v529
                %v531 = vld [vmem:[%s227 + $0x970] sm:%s220]
                %532 = vst [vmem:[%s228 + $0x4b8] sm:%s220] %v531
                %v533 = vld [vmem:[%s227 + $0x980] sm:%s220]
                %534 = vst [vmem:[%s228 + $0x4c0] sm:%s220] %v533
                %v535 = vld [vmem:[%s227 + $0x990] sm:%s220]
                %536 = vst [vmem:[%s228 + $0x4c8] sm:%s220] %v535
                %v537 = vld [vmem:[%s227 + $0x9a0] sm:%s220]
                %538 = vst [vmem:[%s228 + $0x4d0] sm:%s220] %v537
                %v539 = vld [vmem:[%s227 + $0x9b0] sm:%s220]
                %540 = vst [vmem:[%s228 + $0x4d8] sm:%s220] %v539
                %v541 = vld [vmem:[%s227 + $0x9c0] sm:%s220]
                %542 = vst [vmem:[%s228 + $0x4e0] sm:%s220] %v541
                %v543 = vld [vmem:[%s227 + $0x9d0] sm:%s220]
                %544 = vst [vmem:[%s228 + $0x4e8] sm:%s220] %v543
                %v545 = vld [vmem:[%s227 + $0x9e0] sm:%s220]
                %546 = vst [vmem:[%s228 + $0x4f0] sm:%s220] %v545
                %v547 = vld [vmem:[%s227 + $0x9f0] sm:%s220]
                %548 = vst [vmem:[%s228 + $0x4f8] sm:%s220] %v547
                %v549 = vld [vmem:[%s227 + $0xa00] sm:%s220]
                %550 = vst [vmem:[%s228 + $0x500] sm:%s220] %v549
                %v551 = vld [vmem:[%s227 + $0xa10] sm:%s220]
                %552 = vst [vmem:[%s228 + $0x508] sm:%s220] %v551
                %v553 = vld [vmem:[%s227 + $0xa20] sm:%s220]
                %554 = vst [vmem:[%s228 + $0x510] sm:%s220] %v553
                %v555 = vld [vmem:[%s227 + $0xa30] sm:%s220]
                %556 = vst [vmem:[%s228 + $0x518] sm:%s220] %v555
                %v557 = vld [vmem:[%s227 + $0xa40] sm:%s220]
                %558 = vst [vmem:[%s228 + $0x520] sm:%s220] %v557
                %v559 = vld [vmem:[%s227 + $0xa50] sm:%s220]
                %560 = vst [vmem:[%s228 + $0x528] sm:%s220] %v559
                %v561 = vld [vmem:[%s227 + $0xa60] sm:%s220]
                %562 = vst [vmem:[%s228 + $0x530] sm:%s220] %v561
                %v563 = vld [vmem:[%s227 + $0xa70] sm:%s220]
                %564 = vst [vmem:[%s228 + $0x538] sm:%s220] %v563
                %v565 = vld [vmem:[%s227 + $0xa80] sm:%s220]
                %566 = vst [vmem:[%s228 + $0x540] sm:%s220] %v565
                %v567 = vld [vmem:[%s227 + $0xa90] sm:%s220]
                %568 = vst [vmem:[%s228 + $0x548] sm:%s220] %v567
                %v569 = vld [vmem:[%s227 + $0xaa0] sm:%s220]
                %570 = vst [vmem:[%s228 + $0x550] sm:%s220] %v569
                %v571 = vld [vmem:[%s227 + $0xab0] sm:%s220]
                %572 = vst [vmem:[%s228 + $0x558] sm:%s220] %v571
                %v573 = vld [vmem:[%s227 + $0xac0] sm:%s220]
                %574 = vst [vmem:[%s228 + $0x560] sm:%s220] %v573
                %v575 = vld [vmem:[%s227 + $0xad0] sm:%s220]
                %576 = vst [vmem:[%s228 + $0x568] sm:%s220] %v575
                %v577 = vld [vmem:[%s227 + $0xae0] sm:%s220]
                %578 = vst [vmem:[%s228 + $0x570] sm:%s220] %v577
                %v579 = vld [vmem:[%s227 + $0xaf0] sm:%s220]
                %580 = vst [vmem:[%s228 + $0x578] sm:%s220] %v579
                %v581 = vld [vmem:[%s227 + $0xb00] sm:%s220]
                %582 = vst [vmem:[%s228 + $0x580] sm:%s220] %v581
                %v583 = vld [vmem:[%s227 + $0xb10] sm:%s220]
                %584 = vst [vmem:[%s228 + $0x588] sm:%s220] %v583
                %v585 = vld [vmem:[%s227 + $0xb20] sm:%s220]
                %586 = vst [vmem:[%s228 + $0x590] sm:%s220] %v585
                %v587 = vld [vmem:[%s227 + $0xb30] sm:%s220]
                %588 = vst [vmem:[%s228 + $0x598] sm:%s220] %v587
                %v589 = vld [vmem:[%s227 + $0xb40] sm:%s220]
                %590 = vst [vmem:[%s228 + $0x5a0] sm:%s220] %v589
                %v591 = vld [vmem:[%s227 + $0xb50] sm:%s220]
                %592 = vst [vmem:[%s228 + $0x5a8] sm:%s220] %v591
                %v593 = vld [vmem:[%s227 + $0xb60] sm:%s220]
                %594 = vst [vmem:[%s228 + $0x5b0] sm:%s220] %v593
                %v595 = vld [vmem:[%s227 + $0xb70] sm:%s220]
                %596 = vst [vmem:[%s228 + $0x5b8] sm:%s220] %v595
                %v597 = vld [vmem:[%s227 + $0xb80] sm:%s220]
                %598 = vst [vmem:[%s228 + $0x5c0] sm:%s220] %v597
                %v599 = vld [vmem:[%s227 + $0xb90] sm:%s220]
                %600 = vst [vmem:[%s228 + $0x5c8] sm:%s220] %v599
                %v601 = vld [vmem:[%s227 + $0xba0] sm:%s220]
                %602 = vst [vmem:[%s228 + $0x5d0] sm:%s220] %v601
                %v603 = vld [vmem:[%s227 + $0xbb0] sm:%s220]
                %604 = vst [vmem:[%s228 + $0x5d8] sm:%s220] %v603
                %v605 = vld [vmem:[%s227 + $0xbc0] sm:%s220]
                %606 = vst [vmem:[%s228 + $0x5e0] sm:%s220] %v605
                %v607 = vld [vmem:[%s227 + $0xbd0] sm:%s220]
                %608 = vst [vmem:[%s228 + $0x5e8] sm:%s220] %v607
                %v609 = vld [vmem:[%s227 + $0xbe0] sm:%s220]
                %610 = vst [vmem:[%s228 + $0x5f0] sm:%s220] %v609
                %v611 = vld [vmem:[%s227 + $0xbf0] sm:%s220]
                %612 = vst [vmem:[%s228 + $0x5f8] sm:%s220] %v611
                %v613 = vld [vmem:[%s227 + $0xc00] sm:%s220]
                %614 = vst [vmem:[%s228 + $0x600] sm:%s220] %v613
                %v615 = vld [vmem:[%s227 + $0xc10] sm:%s220]
                %616 = vst [vmem:[%s228 + $0x608] sm:%s220] %v615
                %v617 = vld [vmem:[%s227 + $0xc20] sm:%s220]
                %618 = vst [vmem:[%s228 + $0x610] sm:%s220] %v617
                %v619 = vld [vmem:[%s227 + $0xc30] sm:%s220]
                %620 = vst [vmem:[%s228 + $0x618] sm:%s220] %v619
                %v621 = vld [vmem:[%s227 + $0xc40] sm:%s220]
                %622 = vst [vmem:[%s228 + $0x620] sm:%s220] %v621
                %v623 = vld [vmem:[%s227 + $0xc50] sm:%s220]
                %624 = vst [vmem:[%s228 + $0x628] sm:%s220] %v623
                %v625 = vld [vmem:[%s227 + $0xc60] sm:%s220]
                %626 = vst [vmem:[%s228 + $0x630] sm:%s220] %v625
                %v627 = vld [vmem:[%s227 + $0xc70] sm:%s220]
                %628 = vst [vmem:[%s228 + $0x638] sm:%s220] %v627
                %v629 = vld [vmem:[%s227 + $0xc80] sm:%s220]
                %630 = vst [vmem:[%s228 + $0x640] sm:%s220] %v629
                %v631 = vld [vmem:[%s227 + $0xc90] sm:%s220]
                %632 = vst [vmem:[%s228 + $0x648] sm:%s220] %v631
                %v633 = vld [vmem:[%s227 + $0xca0] sm:%s220]
                %634 = vst [vmem:[%s228 + $0x650] sm:%s220] %v633
                %v635 = vld [vmem:[%s227 + $0xcb0] sm:%s220]
                %636 = vst [vmem:[%s228 + $0x658] sm:%s220] %v635
                %v637 = vld [vmem:[%s227 + $0xcc0] sm:%s220]
                %638 = vst [vmem:[%s228 + $0x660] sm:%s220] %v637
                %v639 = vld [vmem:[%s227 + $0xcd0] sm:%s220]
                %640 = vst [vmem:[%s228 + $0x668] sm:%s220] %v639
                %v641 = vld [vmem:[%s227 + $0xce0] sm:%s220]
                %642 = vst [vmem:[%s228 + $0x670] sm:%s220] %v641
                %v643 = vld [vmem:[%s227 + $0xcf0] sm:%s220]
                %644 = vst [vmem:[%s228 + $0x678] sm:%s220] %v643
                %v645 = vld [vmem:[%s227 + $0xd00] sm:%s220]
                %646 = vst [vmem:[%s228 + $0x680] sm:%s220] %v645
                %v647 = vld [vmem:[%s227 + $0xd10] sm:%s220]
                %648 = vst [vmem:[%s228 + $0x688] sm:%s220] %v647
                %v649 = vld [vmem:[%s227 + $0xd20] sm:%s220]
                %650 = vst [vmem:[%s228 + $0x690] sm:%s220] %v649
                %v651 = vld [vmem:[%s227 + $0xd30] sm:%s220]
                %652 = vst [vmem:[%s228 + $0x698] sm:%s220] %v651
                %v653 = vld [vmem:[%s227 + $0xd40] sm:%s220]
                %654 = vst [vmem:[%s228 + $0x6a0] sm:%s220] %v653
                %v655 = vld [vmem:[%s227 + $0xd50] sm:%s220]
                %656 = vst [vmem:[%s228 + $0x6a8] sm:%s220] %v655
                %v657 = vld [vmem:[%s227 + $0xd60] sm:%s220]
                %658 = vst [vmem:[%s228 + $0x6b0] sm:%s220] %v657
                %v659 = vld [vmem:[%s227 + $0xd70] sm:%s220]
                %660 = vst [vmem:[%s228 + $0x6b8] sm:%s220] %v659
                %v661 = vld [vmem:[%s227 + $0xd80] sm:%s220]
                %662 = vst [vmem:[%s228 + $0x6c0] sm:%s220] %v661
                %v663 = vld [vmem:[%s227 + $0xd90] sm:%s220]
                %664 = vst [vmem:[%s228 + $0x6c8] sm:%s220] %v663
                %v665 = vld [vmem:[%s227 + $0xda0] sm:%s220]
                %666 = vst [vmem:[%s228 + $0x6d0] sm:%s220] %v665
                %v667 = vld [vmem:[%s227 + $0xdb0] sm:%s220]
                %668 = vst [vmem:[%s228 + $0x6d8] sm:%s220] %v667
                %v669 = vld [vmem:[%s227 + $0xdc0] sm:%s220]
                %670 = vst [vmem:[%s228 + $0x6e0] sm:%s220] %v669
                %v671 = vld [vmem:[%s227 + $0xdd0] sm:%s220]
                %672 = vst [vmem:[%s228 + $0x6e8] sm:%s220] %v671
                %v673 = vld [vmem:[%s227 + $0xde0] sm:%s220]
                %674 = vst [vmem:[%s228 + $0x6f0] sm:%s220] %v673
                %v675 = vld [vmem:[%s227 + $0xdf0] sm:%s220]
                %676 = vst [vmem:[%s228 + $0x6f8] sm:%s220] %v675
                %v677 = vld [vmem:[%s227 + $0xe00] sm:%s220]
                %678 = vst [vmem:[%s228 + $0x700] sm:%s220] %v677
                %v679 = vld [vmem:[%s227 + $0xe10] sm:%s220]
                %680 = vst [vmem:[%s228 + $0x708] sm:%s220] %v679
                %v681 = vld [vmem:[%s227 + $0xe20] sm:%s220]
                %682 = vst [vmem:[%s228 + $0x710] sm:%s220] %v681
                %v683 = vld [vmem:[%s227 + $0xe30] sm:%s220]
                %684 = vst [vmem:[%s228 + $0x718] sm:%s220] %v683
                %v685 = vld [vmem:[%s227 + $0xe40] sm:%s220]
                %686 = vst [vmem:[%s228 + $0x720] sm:%s220] %v685
                %v687 = vld [vmem:[%s227 + $0xe50] sm:%s220]
                %688 = vst [vmem:[%s228 + $0x728] sm:%s220] %v687
                %v689 = vld [vmem:[%s227 + $0xe60] sm:%s220]
                %690 = vst [vmem:[%s228 + $0x730] sm:%s220] %v689
                %v691 = vld [vmem:[%s227 + $0xe70] sm:%s220]
                %692 = vst [vmem:[%s228 + $0x738] sm:%s220] %v691
                %v693 = vld [vmem:[%s227 + $0xe80] sm:%s220]
                %694 = vst [vmem:[%s228 + $0x740] sm:%s220] %v693
                %v695 = vld [vmem:[%s227 + $0xe90] sm:%s220]
                %696 = vst [vmem:[%s228 + $0x748] sm:%s220] %v695
                %v697 = vld [vmem:[%s227 + $0xea0] sm:%s220]
                %698 = vst [vmem:[%s228 + $0x750] sm:%s220] %v697
                %v699 = vld [vmem:[%s227 + $0xeb0] sm:%s220]
                %700 = vst [vmem:[%s228 + $0x758] sm:%s220] %v699
                %v701 = vld [vmem:[%s227 + $0xec0] sm:%s220]
                %702 = vst [vmem:[%s228 + $0x760] sm:%s220] %v701
                %v703 = vld [vmem:[%s227 + $0xed0] sm:%s220]
                %704 = vst [vmem:[%s228 + $0x768] sm:%s220] %v703
                %v705 = vld [vmem:[%s227 + $0xee0] sm:%s220]
                %706 = vst [vmem:[%s228 + $0x770] sm:%s220] %v705
                %v707 = vld [vmem:[%s227 + $0xef0] sm:%s220]
                %708 = vst [vmem:[%s228 + $0x778] sm:%s220] %v707
                %v709 = vld [vmem:[%s227 + $0xf00] sm:%s220]
                %710 = vst [vmem:[%s228 + $0x780] sm:%s220] %v709
                %v711 = vld [vmem:[%s227 + $0xf10] sm:%s220]
                %712 = vst [vmem:[%s228 + $0x788] sm:%s220] %v711
                %v713 = vld [vmem:[%s227 + $0xf20] sm:%s220]
                %714 = vst [vmem:[%s228 + $0x790] sm:%s220] %v713
                %v715 = vld [vmem:[%s227 + $0xf30] sm:%s220]
                %716 = vst [vmem:[%s228 + $0x798] sm:%s220] %v715
                %v717 = vld [vmem:[%s227 + $0xf40] sm:%s220]
                %718 = vst [vmem:[%s228 + $0x7a0] sm:%s220] %v717
                %v719 = vld [vmem:[%s227 + $0xf50] sm:%s220]
                %720 = vst [vmem:[%s228 + $0x7a8] sm:%s220] %v719
                %v721 = vld [vmem:[%s227 + $0xf60] sm:%s220]
                %722 = vst [vmem:[%s228 + $0x7b0] sm:%s220] %v721
                %v723 = vld [vmem:[%s227 + $0xf70] sm:%s220]
                %724 = vst [vmem:[%s228 + $0x7b8] sm:%s220] %v723
                %v725 = vld [vmem:[%s227 + $0xf80] sm:%s220]
                %726 = vst [vmem:[%s228 + $0x7c0] sm:%s220] %v725
                %v727 = vld [vmem:[%s227 + $0xf90] sm:%s220]
                %728 = vst [vmem:[%s228 + $0x7c8] sm:%s220] %v727
                %v729 = vld [vmem:[%s227 + $0xfa0] sm:%s220]
                %730 = vst [vmem:[%s228 + $0x7d0] sm:%s220] %v729
                %v731 = vld [vmem:[%s227 + $0xfb0] sm:%s220]
                %732 = vst [vmem:[%s228 + $0x7d8] sm:%s220] %v731
                %v733 = vld [vmem:[%s227 + $0xfc0] sm:%s220]
                %734 = vst [vmem:[%s228 + $0x7e0] sm:%s220] %v733
                %v735 = vld [vmem:[%s227 + $0xfd0] sm:%s220]
                %736 = vst [vmem:[%s228 + $0x7e8] sm:%s220] %v735
                %v737 = vld [vmem:[%s227 + $0xfe0] sm:%s220]
                %738 = vst [vmem:[%s228 + $0x7f0] sm:%s220] %v737
                %v739 = vld [vmem:[%s227 + $0xff0] sm:%s220]
                %740 = vst [vmem:[%s228 + $0x7f8] sm:%s220] %v739
                %v741 = vld [vmem:[%s227 + $0x1000] sm:%s220]
                %742 = vst [vmem:[%s228 + $0x800] sm:%s220] %v741
                %v743 = vld [vmem:[%s227 + $0x1010] sm:%s220]
                %744 = vst [vmem:[%s228 + $0x808] sm:%s220] %v743
                %v745 = vld [vmem:[%s227 + $0x1020] sm:%s220]
                %746 = vst [vmem:[%s228 + $0x810] sm:%s220] %v745
                %v747 = vld [vmem:[%s227 + $0x1030] sm:%s220]
                %748 = vst [vmem:[%s228 + $0x818] sm:%s220] %v747
                %v749 = vld [vmem:[%s227 + $0x1040] sm:%s220]
                %750 = vst [vmem:[%s228 + $0x820] sm:%s220] %v749
                %v751 = vld [vmem:[%s227 + $0x1050] sm:%s220]
                %752 = vst [vmem:[%s228 + $0x828] sm:%s220] %v751
                %v753 = vld [vmem:[%s227 + $0x1060] sm:%s220]
                %754 = vst [vmem:[%s228 + $0x830] sm:%s220] %v753
                %v755 = vld [vmem:[%s227 + $0x1070] sm:%s220]
                %756 = vst [vmem:[%s228 + $0x838] sm:%s220] %v755
                %v757 = vld [vmem:[%s227 + $0x1080] sm:%s220]
                %758 = vst [vmem:[%s228 + $0x840] sm:%s220] %v757
                %v759 = vld [vmem:[%s227 + $0x1090] sm:%s220]
                %760 = vst [vmem:[%s228 + $0x848] sm:%s220] %v759
                %v761 = vld [vmem:[%s227 + $0x10a0] sm:%s220]
                %762 = vst [vmem:[%s228 + $0x850] sm:%s220] %v761
                %v763 = vld [vmem:[%s227 + $0x10b0] sm:%s220]
                %764 = vst [vmem:[%s228 + $0x858] sm:%s220] %v763
                %v765 = vld [vmem:[%s227 + $0x10c0] sm:%s220]
                %766 = vst [vmem:[%s228 + $0x860] sm:%s220] %v765
                %v767 = vld [vmem:[%s227 + $0x10d0] sm:%s220]
                %768 = vst [vmem:[%s228 + $0x868] sm:%s220] %v767
                %v769 = vld [vmem:[%s227 + $0x10e0] sm:%s220]
                %770 = vst [vmem:[%s228 + $0x870] sm:%s220] %v769
                %v771 = vld [vmem:[%s227 + $0x10f0] sm:%s220]
                %772 = vst [vmem:[%s228 + $0x878] sm:%s220] %v771
                %v773 = vld [vmem:[%s227 + $0x1100] sm:%s220]
                %774 = vst [vmem:[%s228 + $0x880] sm:%s220] %v773
                %v775 = vld [vmem:[%s227 + $0x1110] sm:%s220]
                %776 = vst [vmem:[%s228 + $0x888] sm:%s220] %v775
                %v777 = vld [vmem:[%s227 + $0x1120] sm:%s220]
                %778 = vst [vmem:[%s228 + $0x890] sm:%s220] %v777
                %v779 = vld [vmem:[%s227 + $0x1130] sm:%s220]
                %780 = vst [vmem:[%s228 + $0x898] sm:%s220] %v779
                %v781 = vld [vmem:[%s227 + $0x1140] sm:%s220]
                %782 = vst [vmem:[%s228 + $0x8a0] sm:%s220] %v781
                %v783 = vld [vmem:[%s227 + $0x1150] sm:%s220]
                %784 = vst [vmem:[%s228 + $0x8a8] sm:%s220] %v783
                %v785 = vld [vmem:[%s227 + $0x1160] sm:%s220]
                %786 = vst [vmem:[%s228 + $0x8b0] sm:%s220] %v785
                %v787 = vld [vmem:[%s227 + $0x1170] sm:%s220]
                %788 = vst [vmem:[%s228 + $0x8b8] sm:%s220] %v787
                %v789 = vld [vmem:[%s227 + $0x1180] sm:%s220]
                %790 = vst [vmem:[%s228 + $0x8c0] sm:%s220] %v789
                %v791 = vld [vmem:[%s227 + $0x1190] sm:%s220]
                %792 = vst [vmem:[%s228 + $0x8c8] sm:%s220] %v791
                %v793 = vld [vmem:[%s227 + $0x11a0] sm:%s220]
                %794 = vst [vmem:[%s228 + $0x8d0] sm:%s220] %v793
                %v795 = vld [vmem:[%s227 + $0x11b0] sm:%s220]
                %796 = vst [vmem:[%s228 + $0x8d8] sm:%s220] %v795
                %v797 = vld [vmem:[%s227 + $0x11c0] sm:%s220]
                %798 = vst [vmem:[%s228 + $0x8e0] sm:%s220] %v797
                %v799 = vld [vmem:[%s227 + $0x11d0] sm:%s220]
                %800 = vst [vmem:[%s228 + $0x8e8] sm:%s220] %v799
                %v801 = vld [vmem:[%s227 + $0x11e0] sm:%s220]
                %802 = vst [vmem:[%s228 + $0x8f0] sm:%s220] %v801
                %v803 = vld [vmem:[%s227 + $0x11f0] sm:%s220]
                %804 = vst [vmem:[%s228 + $0x8f8] sm:%s220] %v803
                %v805 = vld [vmem:[%s227 + $0x1200] sm:%s220]
                %806 = vst [vmem:[%s228 + $0x900] sm:%s220] %v805
                %v807 = vld [vmem:[%s227 + $0x1210] sm:%s220]
                %808 = vst [vmem:[%s228 + $0x908] sm:%s220] %v807
                %v809 = vld [vmem:[%s227 + $0x1220] sm:%s220]
                %810 = vst [vmem:[%s228 + $0x910] sm:%s220] %v809
                %v811 = vld [vmem:[%s227 + $0x1230] sm:%s220]
                %812 = vst [vmem:[%s228 + $0x918] sm:%s220] %v811
                %v813 = vld [vmem:[%s227 + $0x1240] sm:%s220]
                %814 = vst [vmem:[%s228 + $0x920] sm:%s220] %v813
                %v815 = vld [vmem:[%s227 + $0x1250] sm:%s220]
                %816 = vst [vmem:[%s228 + $0x928] sm:%s220] %v815
                %v817 = vld [vmem:[%s227 + $0x1260] sm:%s220]
                %818 = vst [vmem:[%s228 + $0x930] sm:%s220] %v817
                %v819 = vld [vmem:[%s227 + $0x1270] sm:%s220]
                %820 = vst [vmem:[%s228 + $0x938] sm:%s220] %v819
                %v821 = vld [vmem:[%s227 + $0x1280] sm:%s220]
                %822 = vst [vmem:[%s228 + $0x940] sm:%s220] %v821
                %v823 = vld [vmem:[%s227 + $0x1290] sm:%s220]
                %824 = vst [vmem:[%s228 + $0x948] sm:%s220] %v823
                %v825 = vld [vmem:[%s227 + $0x12a0] sm:%s220]
                %826 = vst [vmem:[%s228 + $0x950] sm:%s220] %v825
                %v827 = vld [vmem:[%s227 + $0x12b0] sm:%s220]
                %828 = vst [vmem:[%s228 + $0x958] sm:%s220] %v827
                %v829 = vld [vmem:[%s227 + $0x12c0] sm:%s220]
                %830 = vst [vmem:[%s228 + $0x960] sm:%s220] %v829
                %v831 = vld [vmem:[%s227 + $0x12d0] sm:%s220]
                %832 = vst [vmem:[%s228 + $0x968] sm:%s220] %v831
                %v833 = vld [vmem:[%s227 + $0x12e0] sm:%s220]
                %834 = vst [vmem:[%s228 + $0x970] sm:%s220] %v833
                %v835 = vld [vmem:[%s227 + $0x12f0] sm:%s220]
                %836 = vst [vmem:[%s228 + $0x978] sm:%s220] %v835
                %v837 = vld [vmem:[%s227 + $0x1300] sm:%s220]
                %838 = vst [vmem:[%s228 + $0x980] sm:%s220] %v837
                %v839 = vld [vmem:[%s227 + $0x1310] sm:%s220]
                %840 = vst [vmem:[%s228 + $0x988] sm:%s220] %v839
                %v841 = vld [vmem:[%s227 + $0x1320] sm:%s220]
                %842 = vst [vmem:[%s228 + $0x990] sm:%s220] %v841
                %v843 = vld [vmem:[%s227 + $0x1330] sm:%s220]
                %844 = vst [vmem:[%s228 + $0x998] sm:%s220] %v843
                %v845 = vld [vmem:[%s227 + $0x1340] sm:%s220]
                %846 = vst [vmem:[%s228 + $0x9a0] sm:%s220] %v845
                %v847 = vld [vmem:[%s227 + $0x1350] sm:%s220]
                %848 = vst [vmem:[%s228 + $0x9a8] sm:%s220] %v847
                %v849 = vld [vmem:[%s227 + $0x1360] sm:%s220]
                %850 = vst [vmem:[%s228 + $0x9b0] sm:%s220] %v849
                %v851 = vld [vmem:[%s227 + $0x1370] sm:%s220]
                %852 = vst [vmem:[%s228 + $0x9b8] sm:%s220] %v851
                %v853 = vld [vmem:[%s227 + $0x1380] sm:%s220]
                %854 = vst [vmem:[%s228 + $0x9c0] sm:%s220] %v853
                %v855 = vld [vmem:[%s227 + $0x1390] sm:%s220]
                %856 = vst [vmem:[%s228 + $0x9c8] sm:%s220] %v855
                %v857 = vld [vmem:[%s227 + $0x13a0] sm:%s220]
                %858 = vst [vmem:[%s228 + $0x9d0] sm:%s220] %v857
                %v859 = vld [vmem:[%s227 + $0x13b0] sm:%s220]
                %860 = vst [vmem:[%s228 + $0x9d8] sm:%s220] %v859
                %v861 = vld [vmem:[%s227 + $0x13c0] sm:%s220]
                %862 = vst [vmem:[%s228 + $0x9e0] sm:%s220] %v861
                %v863 = vld [vmem:[%s227 + $0x13d0] sm:%s220]
                %864 = vst [vmem:[%s228 + $0x9e8] sm:%s220] %v863
                %v865 = vld [vmem:[%s227 + $0x13e0] sm:%s220]
                %866 = vst [vmem:[%s228 + $0x9f0] sm:%s220] %v865
                %v867 = vld [vmem:[%s227 + $0x13f0] sm:%s220]
                %868 = vst [vmem:[%s228 + $0x9f8] sm:%s220] %v867
                %v869 = vld [vmem:[%s227 + $0x1400] sm:%s220]
                %870 = vst [vmem:[%s228 + $0xa00] sm:%s220] %v869
                %v871 = vld [vmem:[%s227 + $0x1410] sm:%s220]
                %872 = vst [vmem:[%s228 + $0xa08] sm:%s220] %v871
                %v873 = vld [vmem:[%s227 + $0x1420] sm:%s220]
                %874 = vst [vmem:[%s228 + $0xa10] sm:%s220] %v873
                %v875 = vld [vmem:[%s227 + $0x1430] sm:%s220]
                %876 = vst [vmem:[%s228 + $0xa18] sm:%s220] %v875
                %v877 = vld [vmem:[%s227 + $0x1440] sm:%s220]
                %878 = vst [vmem:[%s228 + $0xa20] sm:%s220] %v877
                %v879 = vld [vmem:[%s227 + $0x1450] sm:%s220]
                %880 = vst [vmem:[%s228 + $0xa28] sm:%s220] %v879
                %v881 = vld [vmem:[%s227 + $0x1460] sm:%s220]
                %882 = vst [vmem:[%s228 + $0xa30] sm:%s220] %v881
                %v883 = vld [vmem:[%s227 + $0x1470] sm:%s220]
                %884 = vst [vmem:[%s228 + $0xa38] sm:%s220] %v883
                %v885 = vld [vmem:[%s227 + $0x1480] sm:%s220]
                %886 = vst [vmem:[%s228 + $0xa40] sm:%s220] %v885
                %v887 = vld [vmem:[%s227 + $0x1490] sm:%s220]
                %888 = vst [vmem:[%s228 + $0xa48] sm:%s220] %v887
                %v889 = vld [vmem:[%s227 + $0x14a0] sm:%s220]
                %890 = vst [vmem:[%s228 + $0xa50] sm:%s220] %v889
                %v891 = vld [vmem:[%s227 + $0x14b0] sm:%s220]
                %892 = vst [vmem:[%s228 + $0xa58] sm:%s220] %v891
                %v893 = vld [vmem:[%s227 + $0x14c0] sm:%s220]
                %894 = vst [vmem:[%s228 + $0xa60] sm:%s220] %v893
                %v895 = vld [vmem:[%s227 + $0x14d0] sm:%s220]
                %896 = vst [vmem:[%s228 + $0xa68] sm:%s220] %v895
                %v897 = vld [vmem:[%s227 + $0x14e0] sm:%s220]
                %898 = vst [vmem:[%s228 + $0xa70] sm:%s220] %v897
                %v899 = vld [vmem:[%s227 + $0x14f0] sm:%s220]
                %900 = vst [vmem:[%s228 + $0xa78] sm:%s220] %v899
                %v901 = vld [vmem:[%s227 + $0x1500] sm:%s220]
                %902 = vst [vmem:[%s228 + $0xa80] sm:%s220] %v901
                %v903 = vld [vmem:[%s227 + $0x1510] sm:%s220]
                %904 = vst [vmem:[%s228 + $0xa88] sm:%s220] %v903
                %v905 = vld [vmem:[%s227 + $0x1520] sm:%s220]
                %906 = vst [vmem:[%s228 + $0xa90] sm:%s220] %v905
                %v907 = vld [vmem:[%s227 + $0x1530] sm:%s220]
                %908 = vst [vmem:[%s228 + $0xa98] sm:%s220] %v907
                %v909 = vld [vmem:[%s227 + $0x1540] sm:%s220]
                %910 = vst [vmem:[%s228 + $0xaa0] sm:%s220] %v909
                %v911 = vld [vmem:[%s227 + $0x1550] sm:%s220]
                %912 = vst [vmem:[%s228 + $0xaa8] sm:%s220] %v911
                %v913 = vld [vmem:[%s227 + $0x1560] sm:%s220]
                %914 = vst [vmem:[%s228 + $0xab0] sm:%s220] %v913
                %v915 = vld [vmem:[%s227 + $0x1570] sm:%s220]
                %916 = vst [vmem:[%s228 + $0xab8] sm:%s220] %v915
                %v917 = vld [vmem:[%s227 + $0x1580] sm:%s220]
                %918 = vst [vmem:[%s228 + $0xac0] sm:%s220] %v917
                %v919 = vld [vmem:[%s227 + $0x1590] sm:%s220]
                %920 = vst [vmem:[%s228 + $0xac8] sm:%s220] %v919
                %v921 = vld [vmem:[%s227 + $0x15a0] sm:%s220]
                %922 = vst [vmem:[%s228 + $0xad0] sm:%s220] %v921
                %v923 = vld [vmem:[%s227 + $0x15b0] sm:%s220]
                %924 = vst [vmem:[%s228 + $0xad8] sm:%s220] %v923
                %v925 = vld [vmem:[%s227 + $0x15c0] sm:%s220]
                %926 = vst [vmem:[%s228 + $0xae0] sm:%s220] %v925
                %v927 = vld [vmem:[%s227 + $0x15d0] sm:%s220]
                %928 = vst [vmem:[%s228 + $0xae8] sm:%s220] %v927
                %v929 = vld [vmem:[%s227 + $0x15e0] sm:%s220]
                %930 = vst [vmem:[%s228 + $0xaf0] sm:%s220] %v929
                %v931 = vld [vmem:[%s227 + $0x15f0] sm:%s220]
                %932 = vst [vmem:[%s228 + $0xaf8] sm:%s220] %v931
                %v933 = vld [vmem:[%s227 + $0x1600] sm:%s220]
                %934 = vst [vmem:[%s228 + $0xb00] sm:%s220] %v933
                %v935 = vld [vmem:[%s227 + $0x1610] sm:%s220]
                %936 = vst [vmem:[%s228 + $0xb08] sm:%s220] %v935
                %v937 = vld [vmem:[%s227 + $0x1620] sm:%s220]
                %938 = vst [vmem:[%s228 + $0xb10] sm:%s220] %v937
                %v939 = vld [vmem:[%s227 + $0x1630] sm:%s220]
                %940 = vst [vmem:[%s228 + $0xb18] sm:%s220] %v939
                %v941 = vld [vmem:[%s227 + $0x1640] sm:%s220]
                %942 = vst [vmem:[%s228 + $0xb20] sm:%s220] %v941
                %v943 = vld [vmem:[%s227 + $0x1650] sm:%s220]
                %944 = vst [vmem:[%s228 + $0xb28] sm:%s220] %v943
                %v945 = vld [vmem:[%s227 + $0x1660] sm:%s220]
                %946 = vst [vmem:[%s228 + $0xb30] sm:%s220] %v945
                %v947 = vld [vmem:[%s227 + $0x1670] sm:%s220]
                %948 = vst [vmem:[%s228 + $0xb38] sm:%s220] %v947
                %v949 = vld [vmem:[%s227 + $0x1680] sm:%s220]
                %950 = vst [vmem:[%s228 + $0xb40] sm:%s220] %v949
                %v951 = vld [vmem:[%s227 + $0x1690] sm:%s220]
                %952 = vst [vmem:[%s228 + $0xb48] sm:%s220] %v951
                %v953 = vld [vmem:[%s227 + $0x16a0] sm:%s220]
                %954 = vst [vmem:[%s228 + $0xb50] sm:%s220] %v953
                %v955 = vld [vmem:[%s227 + $0x16b0] sm:%s220]
                %956 = vst [vmem:[%s228 + $0xb58] sm:%s220] %v955
                %v957 = vld [vmem:[%s227 + $0x16c0] sm:%s220]
                %958 = vst [vmem:[%s228 + $0xb60] sm:%s220] %v957
                %v959 = vld [vmem:[%s227 + $0x16d0] sm:%s220]
                %960 = vst [vmem:[%s228 + $0xb68] sm:%s220] %v959
                %v961 = vld [vmem:[%s227 + $0x16e0] sm:%s220]
                %962 = vst [vmem:[%s228 + $0xb70] sm:%s220] %v961
                %v963 = vld [vmem:[%s227 + $0x16f0] sm:%s220]
                %964 = vst [vmem:[%s228 + $0xb78] sm:%s220] %v963
                %v965 = vld [vmem:[%s227 + $0x1700] sm:%s220]
                %966 = vst [vmem:[%s228 + $0xb80] sm:%s220] %v965
                %v967 = vld [vmem:[%s227 + $0x1710] sm:%s220]
                %968 = vst [vmem:[%s228 + $0xb88] sm:%s220] %v967
                %v969 = vld [vmem:[%s227 + $0x1720] sm:%s220]
                %970 = vst [vmem:[%s228 + $0xb90] sm:%s220] %v969
                %v971 = vld [vmem:[%s227 + $0x1730] sm:%s220]
                %972 = vst [vmem:[%s228 + $0xb98] sm:%s220] %v971
                %v973 = vld [vmem:[%s227 + $0x1740] sm:%s220]
                %974 = vst [vmem:[%s228 + $0xba0] sm:%s220] %v973
                %v975 = vld [vmem:[%s227 + $0x1750] sm:%s220]
                %976 = vst [vmem:[%s228 + $0xba8] sm:%s220] %v975
                %v977 = vld [vmem:[%s227 + $0x1760] sm:%s220]
                %978 = vst [vmem:[%s228 + $0xbb0] sm:%s220] %v977
                %v979 = vld [vmem:[%s227 + $0x1770] sm:%s220]
                %980 = vst [vmem:[%s228 + $0xbb8] sm:%s220] %v979
                %v981 = vld [vmem:[%s227 + $0x1780] sm:%s220]
                %982 = vst [vmem:[%s228 + $0xbc0] sm:%s220] %v981
                %v983 = vld [vmem:[%s227 + $0x1790] sm:%s220]
                %984 = vst [vmem:[%s228 + $0xbc8] sm:%s220] %v983
                %v985 = vld [vmem:[%s227 + $0x17a0] sm:%s220]
                %986 = vst [vmem:[%s228 + $0xbd0] sm:%s220] %v985
                %v987 = vld [vmem:[%s227 + $0x17b0] sm:%s220]
                %988 = vst [vmem:[%s228 + $0xbd8] sm:%s220] %v987
                %v989 = vld [vmem:[%s227 + $0x17c0] sm:%s220]
                %990 = vst [vmem:[%s228 + $0xbe0] sm:%s220] %v989
                %v991 = vld [vmem:[%s227 + $0x17d0] sm:%s220]
                %992 = vst [vmem:[%s228 + $0xbe8] sm:%s220] %v991
                %v993 = vld [vmem:[%s227 + $0x17e0] sm:%s220]
                %994 = vst [vmem:[%s228 + $0xbf0] sm:%s220] %v993
                %v995 = vld [vmem:[%s227 + $0x17f0] sm:%s220]
                %996 = vst [vmem:[%s228 + $0xbf8] sm:%s220] %v995
                %v997 = vld [vmem:[%s227 + $0x1800] sm:%s220]
                %998 = vst [vmem:[%s228 + $0xc00] sm:%s220] %v997
                %v999 = vld [vmem:[%s227 + $0x1810] sm:%s220]
                %1000 = vst [vmem:[%s228 + $0xc08] sm:%s220] %v999
                %v1001 = vld [vmem:[%s227 + $0x1820] sm:%s220]
                %1002 = vst [vmem:[%s228 + $0xc10] sm:%s220] %v1001
                %v1003 = vld [vmem:[%s227 + $0x1830] sm:%s220]
                %1004 = vst [vmem:[%s228 + $0xc18] sm:%s220] %v1003
                %v1005 = vld [vmem:[%s227 + $0x1840] sm:%s220]
                %1006 = vst [vmem:[%s228 + $0xc20] sm:%s220] %v1005
                %v1007 = vld [vmem:[%s227 + $0x1850] sm:%s220]
                %1008 = vst [vmem:[%s228 + $0xc28] sm:%s220] %v1007
                %v1009 = vld [vmem:[%s227 + $0x1860] sm:%s220]
                %1010 = vst [vmem:[%s228 + $0xc30] sm:%s220] %v1009
                %v1011 = vld [vmem:[%s227 + $0x1870] sm:%s220]
                %1012 = vst [vmem:[%s228 + $0xc38] sm:%s220] %v1011
              $region45: #{atari_qr_forward.7} parent=39 // loop_footer
                %s226 = sadd.s32 1, %s222
              $region46: #{atari_qr_forward.7} parent=39 // loop_footer_branch
                %221 = sbr.rel target = $region42
              $region47: #{atari_qr_forward.7} parent=39 // loop_exit
                _
            $region40: #{atari_qr_forward.7} parent=31 // pred_fallthru
              _
          $region32: #{atari_qr_forward.7} parent=27 // pred_fallthru
            _
          %1809 = vnop
        $region28: #{atari_qr_forward.7} parent=23 // pred_fallthru
          _
        // Predicated region
        $region63: #{atari_qr_forward.7} parent=23 // pred_check
          %p1810 = pneg %p95
        $region64: #{atari_qr_forward.7} parent=23 // pred_check_branch
          %1812 = sbr.rel (%p1810) target = $region66
        $region65: #{atari_qr_forward.7} parent=23 // pred_region
          %s1813 = smul.u32 2, %s19
          %p1814 = scmp.lt.s32.totalorder %s1813, 3
          %s1815 = scalar_select %p1814, %s1813, 3
          %s1816 = scalar_lea.vmem %s2, %s1815
          %s1817 = smul.u32 2, %s19
        $region66: #{atari_qr_forward.7} parent=23 // pred_fallthru
          _
        // Predicated region
        $region67: #{atari_qr_forward.7} parent=23 // pred_check
          %p1818 = pneg %p121
        $region68: #{atari_qr_forward.7} parent=23 // pred_check_branch
          %1820 = sbr.rel (%p1818) target = $region70
        $region69: #{atari_qr_forward.7} parent=23 // pred_region
          %s1821 = smul.u32 32, %s19
          %p1822 = scmp.lt.s32.totalorder %s1821, 63
          %s1823 = scalar_select %p1822, %s1821, 63
          %s1824 = smul.addr %s1823, 4
          %s1825 = scalar_lea.vmem %s3, %s1824
          %s1826 = smul.u32 32, %s19
        $region70: #{atari_qr_forward.7} parent=23 // pred_fallthru
          _
      $region24: #{atari_qr_forward.7} parent=5 // pred_fallthru
        _
      %p1827 = scmp.le.s32.totalorder 1, %s11
      %p1828 = scmp.lt.s32.totalorder %s11, 3
      %p1829 = pnand %p1827, %p1828
      %p1830 = pneg %p1829
      // Predicated region
      $region71: #{atari_qr_forward.7} parent=5 // pred_check
        _
      $region72: #{atari_qr_forward.7} parent=5 // pred_check_branch
        %1832 = sbr.rel (%p1829) target = $region74
      $region73: #{atari_qr_forward.7} parent=5 // pred_region
        %s1833 = ssub.s32 %s11, 1
        %s1834 = sand.u32 %s62, 1
        %s1835 = sand.u32 %s62, 1
        %s1836 = smul.addr %s1835, 3136
        %s1837 = scalar_lea.vmem [#allocation2], %s1836
        // Predicated region
        $region75: #{atari_qr_forward.7} parent=73 // pred_check
          %p1838 = pneg %p75
        $region76: #{atari_qr_forward.7} parent=73 // pred_check_branch
          %1840 = sbr.rel (%p1838) target = $region78
        $region77: #{atari_qr_forward.7} parent=73 // pred_region
          _
        $region78: #{atari_qr_forward.7} parent=73 // pred_fallthru
          _
        %p1841 = scmp.lt.s32.totalorder %s20, 0
        %s1842 = scalar_select %p1841, %s20, 0
        %s1843 = smul.addr %s1842, 25
        %s1844 = scalar_lea.vmem %s0, %s1843
        %p1845 = pneg %p49
        %p1846 = pneg %p46
        %s1847 = sand.u32 %s62, 1
        %s1848 = sand.u32 %s62, 1
        %s1849 = smul.addr %s1848, 3136
        %s1850 = scalar_lea.vmem [#allocation2], %s1849
        %p1851 = pneg %p75
        %p1852 = pneg %p72
        %s1853 = smul.u32 2, %s21
        %p1854 = scmp.lt.s32.totalorder %s1853, 3
        %s1855 = scalar_select %p1854, %s1853, 3
        %s1856 = scalar_lea.vmem %s2, %s1855
        %p1857 = pneg %p101
        %p1858 = pneg %p98
        %s1859 = smul.u32 32, %s21
        %p1860 = scmp.lt.s32.totalorder %s1859, 63
        %s1861 = scalar_select %p1860, %s1859, 63
        %s1862 = smul.addr %s1861, 4
        %s1863 = scalar_lea.vmem %s3, %s1862
        %p1864 = pneg %p127
        %p1865 = pneg %p124
        %p1866 = pneg %p148
        %p1867 = pneg %p145
        %p1868 = pneg %p174
        %p1869 = pneg %p171
        %p1870 = scmp.lt.s32.totalorder %s20, 0
        %s1871 = scalar_select %p1870, %s20, 0
        %s1872 = smul.addr %s1871, 2
        %s1873 = scalar_lea.vmem %s5, %s1872
        %p1874 = scmp.lt.s32.totalorder %s20, 0
        %s1875 = scalar_select %p1874, %s20, 0
        %s1876 = smul.addr %s1875, 25
        %s1877 = scalar_lea.vmem %s0, %s1876
        %s1878 = smul.u32 2, %s21
        %s1879 = smul.u32 2, %s21
        %p1880 = scmp.lt.s32.totalorder %s1879, 3
        %s1881 = scalar_select %p1880, %s1879, 3
        %s1882 = scalar_lea.vmem %s2, %s1881
        %s1883 = smul.u32 2, %s21
        %s1884 = smul.u32 32, %s21
        %p1885 = scmp.lt.s32.totalorder %s1884, 63
        %s1886 = scalar_select %p1885, %s1884, 63
        %s1887 = smul.addr %s1886, 4
        %s1888 = scalar_lea.vmem %s3, %s1887
        %s1889 = smul.u32 32, %s21
        %p1890 = scmp.lt.s32.totalorder %s20, 0
        %s1891 = scalar_select %p1890, %s20, 0
        %s1892 = smul.addr %s1891, 2
        %s1893 = scalar_lea.vmem %s5, %s1892
        %p1895 = scmp.eq.s32.totalorder %s21, 0
        // Predicated region
        $region79: #{atari_qr_forward.7} parent=73 // pred_check
          %p1896 = pneg %p1895
        $region80: #{atari_qr_forward.7} parent=73 // pred_check_branch
          %1898 = sbr.rel (%p1896) target = $region82
        $region81: #{atari_qr_forward.7} parent=73 // pred_region
          %v1899 = vld [vmem:[%s4] sm:$0x1]
          %v1901 = vlaneseq
          %v1902 = vshrl.u32 %v1901, 7
          %v1903 = vsub.s32 0, %v1902
          %v1904 = vrot.slane %v1899, %v1903
          %1906 = vst [vmem:[%s1893] sm:$0x3] %v1904
        $region82: #{atari_qr_forward.7} parent=73 // pred_fallthru
          _
        %v1907 = vld [vmem:[%s1877] sm:$0xff]
        %v1908 = vld [vmem:[%s1877 + $0x8] sm:$0xff]
        %v1909 = vld [vmem:[%s1877 + $0x10] sm:$0xff]
        %v1910 = vld [vmem:[%s1877 + $0x18] sm:$0x1]
        %v1911 = vld [vmem:[%s1837] sm:$0xff]
        %v1912 = vld [vmem:[%s1837 + $0x8] sm:$0xff]
        %v1913 = vld [vmem:[%s1837 + $0x10] sm:$0xff]
        %v1914 = vld [vmem:[%s1837 + $0x18] sm:$0xff]
        %v1915 = vld [vmem:[%s1837 + $0x20] sm:$0xff]
        %v1916 = vld [vmem:[%s1837 + $0x28] sm:$0xff]
        %v1917 = vld [vmem:[%s1837 + $0x30] sm:$0xff]
        %v1918 = vld [vmem:[%s1837 + $0x38] sm:$0xff]
        %v1919 = vld [vmem:[%s1837 + $0x40] sm:$0xff]
        %v1920 = vld [vmem:[%s1837 + $0x48] sm:$0xff]
        %v1921 = vld [vmem:[%s1837 + $0x50] sm:$0xff]
        %v1922 = vld [vmem:[%s1837 + $0x58] sm:$0xff]
        %v1923 = vld [vmem:[%s1837 + $0x60] sm:$0xff]
        %v1924 = vld [vmem:[%s1837 + $0x68] sm:$0xff]
        %v1925 = vld [vmem:[%s1837 + $0x70] sm:$0xff]
        %v1926 = vld [vmem:[%s1837 + $0x78] sm:$0xff]
        %v1927 = vld [vmem:[%s1837 + $0x80] sm:$0xff]
        %v1928 = vld [vmem:[%s1837 + $0x88] sm:$0xff]
        %v1929 = vld [vmem:[%s1837 + $0x90] sm:$0xff]
        %v1930 = vld [vmem:[%s1837 + $0x98] sm:$0xff]
        %v1931 = vld [vmem:[%s1837 + $0xa0] sm:$0xff]
        %v1932 = vld [vmem:[%s1837 + $0xa8] sm:$0xff]
        %v1933 = vld [vmem:[%s1837 + $0xb0] sm:$0xff]
        %v1934 = vld [vmem:[%s1837 + $0xb8] sm:$0xff]
        %v1935 = vld [vmem:[%s1837 + $0xc0] sm:$0xff]
        %v1936 = vld [vmem:[%s1837 + $0xc8] sm:$0xff]
        %v1937 = vld [vmem:[%s1837 + $0xd0] sm:$0xff]
        %v1938 = vld [vmem:[%s1837 + $0xd8] sm:$0xff]
        %v1939 = vld [vmem:[%s1837 + $0xe0] sm:$0xff]
        %v1940 = vld [vmem:[%s1837 + $0xe8] sm:$0xff]
        %v1941 = vld [vmem:[%s1837 + $0xf0] sm:$0xff]
        %v1942 = vld [vmem:[%s1837 + $0xf8] sm:$0xff]
        %v1943 = vld [vmem:[%s1837 + $0x100] sm:$0xff]
        %v1944 = vld [vmem:[%s1837 + $0x108] sm:$0xff]
        %v1945 = vld [vmem:[%s1837 + $0x110] sm:$0xff]
        %v1946 = vld [vmem:[%s1837 + $0x118] sm:$0xff]
        %v1947 = vld [vmem:[%s1837 + $0x120] sm:$0xff]
        %v1948 = vld [vmem:[%s1837 + $0x128] sm:$0xff]
        %v1949 = vld [vmem:[%s1837 + $0x130] sm:$0xff]
        %v1950 = vld [vmem:[%s1837 + $0x138] sm:$0xff]
        %v1951 = vld [vmem:[%s1837 + $0x140] sm:$0xff]
        %v1952 = vld [vmem:[%s1837 + $0x148] sm:$0xff]
        %v1953 = vld [vmem:[%s1837 + $0x150] sm:$0xff]
        %v1954 = vld [vmem:[%s1837 + $0x158] sm:$0xff]
        %v1955 = vld [vmem:[%s1837 + $0x160] sm:$0xff]
        %v1956 = vld [vmem:[%s1837 + $0x168] sm:$0xff]
        %v1957 = vld [vmem:[%s1837 + $0x170] sm:$0xff]
        %v1958 = vld [vmem:[%s1837 + $0x178] sm:$0xff]
        %v1959 = vld [vmem:[%s1837 + $0x180] sm:$0xff]
        %v1960 = vld [vmem:[%s1837 + $0x188] sm:$0xff]
        %v1961 = vld [vmem:[%s1837 + $0x190] sm:$0xff]
        %v1962 = vld [vmem:[%s1837 + $0x198] sm:$0xff]
        %v1963 = vld [vmem:[%s1837 + $0x1a0] sm:$0xff]
        %v1964 = vld [vmem:[%s1837 + $0x1a8] sm:$0xff]
        %v1965 = vld [vmem:[%s1837 + $0x1b0] sm:$0xff]
        %v1966 = vld [vmem:[%s1837 + $0x1b8] sm:$0xff]
        %v1967 = vld [vmem:[%s1837 + $0x1c0] sm:$0xff]
        %v1968 = vld [vmem:[%s1837 + $0x1c8] sm:$0xff]
        %v1969 = vld [vmem:[%s1837 + $0x1d0] sm:$0xff]
        %v1970 = vld [vmem:[%s1837 + $0x1d8] sm:$0xff]
        %v1971 = vld [vmem:[%s1837 + $0x1e0] sm:$0xff]
        %v1972 = vld [vmem:[%s1837 + $0x1e8] sm:$0xff]
        %v1973 = vld [vmem:[%s1837 + $0x1f0] sm:$0xff]
        %v1974 = vld [vmem:[%s1837 + $0x1f8] sm:$0xff]
        %v1975 = vld [vmem:[%s1837 + $0x200] sm:$0xff]
        %v1976 = vld [vmem:[%s1837 + $0x208] sm:$0xff]
        %v1977 = vld [vmem:[%s1837 + $0x210] sm:$0xff]
        %v1978 = vld [vmem:[%s1837 + $0x218] sm:$0xff]
        %v1979 = vld [vmem:[%s1837 + $0x220] sm:$0xff]
        %v1980 = vld [vmem:[%s1837 + $0x228] sm:$0xff]
        %v1981 = vld [vmem:[%s1837 + $0x230] sm:$0xff]
        %v1982 = vld [vmem:[%s1837 + $0x238] sm:$0xff]
        %v1983 = vld [vmem:[%s1837 + $0x240] sm:$0xff]
        %v1984 = vld [vmem:[%s1837 + $0x248] sm:$0xff]
        %v1985 = vld [vmem:[%s1837 + $0x250] sm:$0xff]
        %v1986 = vld [vmem:[%s1837 + $0x258] sm:$0xff]
        %v1987 = vld [vmem:[%s1837 + $0x260] sm:$0xff]
        %v1988 = vld [vmem:[%s1837 + $0x268] sm:$0xff]
        %v1989 = vld [vmem:[%s1837 + $0x270] sm:$0xff]
        %v1990 = vld [vmem:[%s1837 + $0x278] sm:$0xff]
        %v1991 = vld [vmem:[%s1837 + $0x280] sm:$0xff]
        %v1992 = vld [vmem:[%s1837 + $0x288] sm:$0xff]
        %v1993 = vld [vmem:[%s1837 + $0x290] sm:$0xff]
        %v1994 = vld [vmem:[%s1837 + $0x298] sm:$0xff]
        %v1995 = vld [vmem:[%s1837 + $0x2a0] sm:$0xff]
        %v1996 = vld [vmem:[%s1837 + $0x2a8] sm:$0xff]
        %v1997 = vld [vmem:[%s1837 + $0x2b0] sm:$0xff]
        %v1998 = vld [vmem:[%s1837 + $0x2b8] sm:$0xff]
        %v1999 = vld [vmem:[%s1837 + $0x2c0] sm:$0xff]
        %v2000 = vld [vmem:[%s1837 + $0x2c8] sm:$0xff]
        %v2001 = vld [vmem:[%s1837 + $0x2d0] sm:$0xff]
        %v2002 = vld [vmem:[%s1837 + $0x2d8] sm:$0xff]
        %v2003 = vld [vmem:[%s1837 + $0x2e0] sm:$0xff]
        %v2004 = vld [vmem:[%s1837 + $0x2e8] sm:$0xff]
        %v2005 = vld [vmem:[%s1837 + $0x2f0] sm:$0xff]
        %v2006 = vld [vmem:[%s1837 + $0x2f8] sm:$0xff]
        %v2007 = vld [vmem:[%s1837 + $0x300] sm:$0xff]
        %v2008 = vld [vmem:[%s1837 + $0x308] sm:$0xff]
        %v2009 = vld [vmem:[%s1837 + $0x310] sm:$0xff]
        %v2010 = vld [vmem:[%s1837 + $0x318] sm:$0xff]
        %v2011 = vld [vmem:[%s1837 + $0x320] sm:$0xff]
        %v2012 = vld [vmem:[%s1837 + $0x328] sm:$0xff]
        %v2013 = vld [vmem:[%s1837 + $0x330] sm:$0xff]
        %v2014 = vld [vmem:[%s1837 + $0x338] sm:$0xff]
        %v2015 = vld [vmem:[%s1837 + $0x340] sm:$0xff]
        %v2016 = vld [vmem:[%s1837 + $0x348] sm:$0xff]
        %v2017 = vld [vmem:[%s1837 + $0x350] sm:$0xff]
        %v2018 = vld [vmem:[%s1837 + $0x358] sm:$0xff]
        %v2019 = vld [vmem:[%s1837 + $0x360] sm:$0xff]
        %v2020 = vld [vmem:[%s1837 + $0x368] sm:$0xff]
        %v2021 = vld [vmem:[%s1837 + $0x370] sm:$0xff]
        %v2022 = vld [vmem:[%s1837 + $0x378] sm:$0xff]
        %v2023 = vld [vmem:[%s1837 + $0x380] sm:$0xff]
        %v2024 = vld [vmem:[%s1837 + $0x388] sm:$0xff]
        %v2025 = vld [vmem:[%s1837 + $0x390] sm:$0xff]
        %v2026 = vld [vmem:[%s1837 + $0x398] sm:$0xff]
        %v2027 = vld [vmem:[%s1837 + $0x3a0] sm:$0xff]
        %v2028 = vld [vmem:[%s1837 + $0x3a8] sm:$0xff]
        %v2029 = vld [vmem:[%s1837 + $0x3b0] sm:$0xff]
        %v2030 = vld [vmem:[%s1837 + $0x3b8] sm:$0xff]
        %v2031 = vld [vmem:[%s1837 + $0x3c0] sm:$0xff]
        %v2032 = vld [vmem:[%s1837 + $0x3c8] sm:$0xff]
        %v2033 = vld [vmem:[%s1837 + $0x3d0] sm:$0xff]
        %v2034 = vld [vmem:[%s1837 + $0x3d8] sm:$0xff]
        %v2035 = vld [vmem:[%s1837 + $0x3e0] sm:$0xff]
        %v2036 = vld [vmem:[%s1837 + $0x3e8] sm:$0xff]
        %v2037 = vld [vmem:[%s1837 + $0x3f0] sm:$0xff]
        %v2038 = vld [vmem:[%s1837 + $0x3f8] sm:$0xff]
        %v2039 = vld [vmem:[%s1837 + $0x400] sm:$0xff]
        %v2040 = vld [vmem:[%s1837 + $0x408] sm:$0xff]
        %v2041 = vld [vmem:[%s1837 + $0x410] sm:$0xff]
        %v2042 = vld [vmem:[%s1837 + $0x418] sm:$0xff]
        %v2043 = vld [vmem:[%s1837 + $0x420] sm:$0xff]
        %v2044 = vld [vmem:[%s1837 + $0x428] sm:$0xff]
        %v2045 = vld [vmem:[%s1837 + $0x430] sm:$0xff]
        %v2046 = vld [vmem:[%s1837 + $0x438] sm:$0xff]
        %v2047 = vld [vmem:[%s1837 + $0x440] sm:$0xff]
        %v2048 = vld [vmem:[%s1837 + $0x448] sm:$0xff]
        %v2049 = vld [vmem:[%s1837 + $0x450] sm:$0xff]
        %v2050 = vld [vmem:[%s1837 + $0x458] sm:$0xff]
        %v2051 = vld [vmem:[%s1837 + $0x460] sm:$0xff]
        %v2052 = vld [vmem:[%s1837 + $0x468] sm:$0xff]
        %v2053 = vld [vmem:[%s1837 + $0x470] sm:$0xff]
        %v2054 = vld [vmem:[%s1837 + $0x478] sm:$0xff]
        %v2055 = vld [vmem:[%s1837 + $0x480] sm:$0xff]
        %v2056 = vld [vmem:[%s1837 + $0x488] sm:$0xff]
        %v2057 = vld [vmem:[%s1837 + $0x490] sm:$0xff]
        %v2058 = vld [vmem:[%s1837 + $0x498] sm:$0xff]
        %v2059 = vld [vmem:[%s1837 + $0x4a0] sm:$0xff]
        %v2060 = vld [vmem:[%s1837 + $0x4a8] sm:$0xff]
        %v2061 = vld [vmem:[%s1837 + $0x4b0] sm:$0xff]
        %v2062 = vld [vmem:[%s1837 + $0x4b8] sm:$0xff]
        %v2063 = vld [vmem:[%s1837 + $0x4c0] sm:$0xff]
        %v2064 = vld [vmem:[%s1837 + $0x4c8] sm:$0xff]
        %v2065 = vld [vmem:[%s1837 + $0x4d0] sm:$0xff]
        %v2066 = vld [vmem:[%s1837 + $0x4d8] sm:$0xff]
        %v2067 = vld [vmem:[%s1837 + $0x4e0] sm:$0xff]
        %v2068 = vld [vmem:[%s1837 + $0x4e8] sm:$0xff]
        %v2069 = vld [vmem:[%s1837 + $0x4f0] sm:$0xff]
        %v2070 = vld [vmem:[%s1837 + $0x4f8] sm:$0xff]
        %v2071 = vld [vmem:[%s1837 + $0x500] sm:$0xff]
        %v2072 = vld [vmem:[%s1837 + $0x508] sm:$0xff]
        %v2073 = vld [vmem:[%s1837 + $0x510] sm:$0xff]
        %v2074 = vld [vmem:[%s1837 + $0x518] sm:$0xff]
        %v2075 = vld [vmem:[%s1837 + $0x520] sm:$0xff]
        %v2076 = vld [vmem:[%s1837 + $0x528] sm:$0xff]
        %v2077 = vld [vmem:[%s1837 + $0x530] sm:$0xff]
        %v2078 = vld [vmem:[%s1837 + $0x538] sm:$0xff]
        %v2079 = vld [vmem:[%s1837 + $0x540] sm:$0xff]
        %v2080 = vld [vmem:[%s1837 + $0x548] sm:$0xff]
        %v2081 = vld [vmem:[%s1837 + $0x550] sm:$0xff]
        %v2082 = vld [vmem:[%s1837 + $0x558] sm:$0xff]
        %v2083 = vld [vmem:[%s1837 + $0x560] sm:$0xff]
        %v2084 = vld [vmem:[%s1837 + $0x568] sm:$0xff]
        %v2085 = vld [vmem:[%s1837 + $0x570] sm:$0xff]
        %v2086 = vld [vmem:[%s1837 + $0x578] sm:$0xff]
        %v2087 = vld [vmem:[%s1837 + $0x580] sm:$0xff]
        %v2088 = vld [vmem:[%s1837 + $0x588] sm:$0xff]
        %v2089 = vld [vmem:[%s1837 + $0x590] sm:$0xff]
        %v2090 = vld [vmem:[%s1837 + $0x598] sm:$0xff]
        %v2091 = vld [vmem:[%s1837 + $0x5a0] sm:$0xff]
        %v2092 = vld [vmem:[%s1837 + $0x5a8] sm:$0xff]
        %v2093 = vld [vmem:[%s1837 + $0x5b0] sm:$0xff]
        %v2094 = vld [vmem:[%s1837 + $0x5b8] sm:$0xff]
        %v2095 = vld [vmem:[%s1837 + $0x5c0] sm:$0xff]
        %v2096 = vld [vmem:[%s1837 + $0x5c8] sm:$0xff]
        %v2097 = vld [vmem:[%s1837 + $0x5d0] sm:$0xff]
        %v2098 = vld [vmem:[%s1837 + $0x5d8] sm:$0xff]
        %v2099 = vld [vmem:[%s1837 + $0x5e0] sm:$0xff]
        %v2100 = vld [vmem:[%s1837 + $0x5e8] sm:$0xff]
        %v2101 = vld [vmem:[%s1837 + $0x5f0] sm:$0xff]
        %v2102 = vld [vmem:[%s1837 + $0x5f8] sm:$0xff]
        %v2103 = vld [vmem:[%s1837 + $0x600] sm:$0xff]
        %v2104 = vld [vmem:[%s1837 + $0x608] sm:$0xff]
        %v2105 = vld [vmem:[%s1837 + $0x610] sm:$0xff]
        %v2106 = vld [vmem:[%s1837 + $0x618] sm:$0xff]
        %v2107 = vld [vmem:[%s1837 + $0x620] sm:$0xff]
        %v2108 = vld [vmem:[%s1837 + $0x628] sm:$0xff]
        %v2109 = vld [vmem:[%s1837 + $0x630] sm:$0xff]
        %v2110 = vld [vmem:[%s1837 + $0x638] sm:$0xff]
        %v2111 = vld [vmem:[%s1837 + $0x640] sm:$0xff]
        %v2112 = vld [vmem:[%s1837 + $0x648] sm:$0xff]
        %v2113 = vld [vmem:[%s1837 + $0x650] sm:$0xff]
        %v2114 = vld [vmem:[%s1837 + $0x658] sm:$0xff]
        %v2115 = vld [vmem:[%s1837 + $0x660] sm:$0xff]
        %v2116 = vld [vmem:[%s1837 + $0x668] sm:$0xff]
        %v2117 = vld [vmem:[%s1837 + $0x670] sm:$0xff]
        %v2118 = vld [vmem:[%s1837 + $0x678] sm:$0xff]
        %v2119 = vld [vmem:[%s1837 + $0x680] sm:$0xff]
        %v2120 = vld [vmem:[%s1837 + $0x688] sm:$0xff]
        %v2121 = vld [vmem:[%s1837 + $0x690] sm:$0xff]
        %v2122 = vld [vmem:[%s1837 + $0x698] sm:$0xff]
        %v2123 = vld [vmem:[%s1837 + $0x6a0] sm:$0xff]
        %v2124 = vld [vmem:[%s1837 + $0x6a8] sm:$0xff]
        %v2125 = vld [vmem:[%s1837 + $0x6b0] sm:$0xff]
        %v2126 = vld [vmem:[%s1837 + $0x6b8] sm:$0xff]
        %v2127 = vld [vmem:[%s1837 + $0x6c0] sm:$0xff]
        %v2128 = vld [vmem:[%s1837 + $0x6c8] sm:$0xff]
        %v2129 = vld [vmem:[%s1837 + $0x6d0] sm:$0xff]
        %v2130 = vld [vmem:[%s1837 + $0x6d8] sm:$0xff]
        %v2131 = vld [vmem:[%s1837 + $0x6e0] sm:$0xff]
        %v2132 = vld [vmem:[%s1837 + $0x6e8] sm:$0xff]
        %v2133 = vld [vmem:[%s1837 + $0x6f0] sm:$0xff]
        %v2134 = vld [vmem:[%s1837 + $0x6f8] sm:$0xff]
        %v2135 = vld [vmem:[%s1837 + $0x700] sm:$0xff]
        %v2136 = vld [vmem:[%s1837 + $0x708] sm:$0xff]
        %v2137 = vld [vmem:[%s1837 + $0x710] sm:$0xff]
        %v2138 = vld [vmem:[%s1837 + $0x718] sm:$0xff]
        %v2139 = vld [vmem:[%s1837 + $0x720] sm:$0xff]
        %v2140 = vld [vmem:[%s1837 + $0x728] sm:$0xff]
        %v2141 = vld [vmem:[%s1837 + $0x730] sm:$0xff]
        %v2142 = vld [vmem:[%s1837 + $0x738] sm:$0xff]
        %v2143 = vld [vmem:[%s1837 + $0x740] sm:$0xff]
        %v2144 = vld [vmem:[%s1837 + $0x748] sm:$0xff]
        %v2145 = vld [vmem:[%s1837 + $0x750] sm:$0xff]
        %v2146 = vld [vmem:[%s1837 + $0x758] sm:$0xff]
        %v2147 = vld [vmem:[%s1837 + $0x760] sm:$0xff]
        %v2148 = vld [vmem:[%s1837 + $0x768] sm:$0xff]
        %v2149 = vld [vmem:[%s1837 + $0x770] sm:$0xff]
        %v2150 = vld [vmem:[%s1837 + $0x778] sm:$0xff]
        %v2151 = vld [vmem:[%s1837 + $0x780] sm:$0xff]
        %v2152 = vld [vmem:[%s1837 + $0x788] sm:$0xff]
        %v2153 = vld [vmem:[%s1837 + $0x790] sm:$0xff]
        %v2154 = vld [vmem:[%s1837 + $0x798] sm:$0xff]
        %v2155 = vld [vmem:[%s1837 + $0x7a0] sm:$0xff]
        %v2156 = vld [vmem:[%s1837 + $0x7a8] sm:$0xff]
        %v2157 = vld [vmem:[%s1837 + $0x7b0] sm:$0xff]
        %v2158 = vld [vmem:[%s1837 + $0x7b8] sm:$0xff]
        %v2159 = vld [vmem:[%s1837 + $0x7c0] sm:$0xff]
        %v2160 = vld [vmem:[%s1837 + $0x7c8] sm:$0xff]
        %v2161 = vld [vmem:[%s1837 + $0x7d0] sm:$0xff]
        %v2162 = vld [vmem:[%s1837 + $0x7d8] sm:$0xff]
        %v2163 = vld [vmem:[%s1837 + $0x7e0] sm:$0xff]
        %v2164 = vld [vmem:[%s1837 + $0x7e8] sm:$0xff]
        %v2165 = vld [vmem:[%s1837 + $0x7f0] sm:$0xff]
        %v2166 = vld [vmem:[%s1837 + $0x7f8] sm:$0xff]
        %v2167 = vld [vmem:[%s1837 + $0x800] sm:$0xff]
        %v2168 = vld [vmem:[%s1837 + $0x808] sm:$0xff]
        %v2169 = vld [vmem:[%s1837 + $0x810] sm:$0xff]
        %v2170 = vld [vmem:[%s1837 + $0x818] sm:$0xff]
        %v2171 = vld [vmem:[%s1837 + $0x820] sm:$0xff]
        %v2172 = vld [vmem:[%s1837 + $0x828] sm:$0xff]
        %v2173 = vld [vmem:[%s1837 + $0x830] sm:$0xff]
        %v2174 = vld [vmem:[%s1837 + $0x838] sm:$0xff]
        %v2175 = vld [vmem:[%s1837 + $0x840] sm:$0xff]
        %v2176 = vld [vmem:[%s1837 + $0x848] sm:$0xff]
        %v2177 = vld [vmem:[%s1837 + $0x850] sm:$0xff]
        %v2178 = vld [vmem:[%s1837 + $0x858] sm:$0xff]
        %v2179 = vld [vmem:[%s1837 + $0x860] sm:$0xff]
        %v2180 = vld [vmem:[%s1837 + $0x868] sm:$0xff]
        %v2181 = vld [vmem:[%s1837 + $0x870] sm:$0xff]
        %v2182 = vld [vmem:[%s1837 + $0x878] sm:$0xff]
        %v2183 = vld [vmem:[%s1837 + $0x880] sm:$0xff]
        %v2184 = vld [vmem:[%s1837 + $0x888] sm:$0xff]
        %v2185 = vld [vmem:[%s1837 + $0x890] sm:$0xff]
        %v2186 = vld [vmem:[%s1837 + $0x898] sm:$0xff]
        %v2187 = vld [vmem:[%s1837 + $0x8a0] sm:$0xff]
        %v2188 = vld [vmem:[%s1837 + $0x8a8] sm:$0xff]
        %v2189 = vld [vmem:[%s1837 + $0x8b0] sm:$0xff]
        %v2190 = vld [vmem:[%s1837 + $0x8b8] sm:$0xff]
        %v2191 = vld [vmem:[%s1837 + $0x8c0] sm:$0xff]
        %v2192 = vld [vmem:[%s1837 + $0x8c8] sm:$0xff]
        %v2193 = vld [vmem:[%s1837 + $0x8d0] sm:$0xff]
        %v2194 = vld [vmem:[%s1837 + $0x8d8] sm:$0xff]
        %v2195 = vld [vmem:[%s1837 + $0x8e0] sm:$0xff]
        %v2196 = vld [vmem:[%s1837 + $0x8e8] sm:$0xff]
        %v2197 = vld [vmem:[%s1837 + $0x8f0] sm:$0xff]
        %v2198 = vld [vmem:[%s1837 + $0x8f8] sm:$0xff]
        %v2199 = vld [vmem:[%s1837 + $0x900] sm:$0xff]
        %v2200 = vld [vmem:[%s1837 + $0x908] sm:$0xff]
        %v2201 = vld [vmem:[%s1837 + $0x910] sm:$0xff]
        %v2202 = vld [vmem:[%s1837 + $0x918] sm:$0xff]
        %v2203 = vld [vmem:[%s1837 + $0x920] sm:$0xff]
        %v2204 = vld [vmem:[%s1837 + $0x928] sm:$0xff]
        %v2205 = vld [vmem:[%s1837 + $0x930] sm:$0xff]
        %v2206 = vld [vmem:[%s1837 + $0x938] sm:$0xff]
        %v2207 = vld [vmem:[%s1837 + $0x940] sm:$0xff]
        %v2208 = vld [vmem:[%s1837 + $0x948] sm:$0xff]
        %v2209 = vld [vmem:[%s1837 + $0x950] sm:$0xff]
        %v2210 = vld [vmem:[%s1837 + $0x958] sm:$0xff]
        %v2211 = vld [vmem:[%s1837 + $0x960] sm:$0xff]
        %v2212 = vld [vmem:[%s1837 + $0x968] sm:$0xff]
        %v2213 = vld [vmem:[%s1837 + $0x970] sm:$0xff]
        %v2214 = vld [vmem:[%s1837 + $0x978] sm:$0xff]
        %v2215 = vld [vmem:[%s1837 + $0x980] sm:$0xff]
        %v2216 = vld [vmem:[%s1837 + $0x988] sm:$0xff]
        %v2217 = vld [vmem:[%s1837 + $0x990] sm:$0xff]
        %v2218 = vld [vmem:[%s1837 + $0x998] sm:$0xff]
        %v2219 = vld [vmem:[%s1837 + $0x9a0] sm:$0xff]
        %v2220 = vld [vmem:[%s1837 + $0x9a8] sm:$0xff]
        %v2221 = vld [vmem:[%s1837 + $0x9b0] sm:$0xff]
        %v2222 = vld [vmem:[%s1837 + $0x9b8] sm:$0xff]
        %v2223 = vld [vmem:[%s1837 + $0x9c0] sm:$0xff]
        %v2224 = vld [vmem:[%s1837 + $0x9c8] sm:$0xff]
        %v2225 = vld [vmem:[%s1837 + $0x9d0] sm:$0xff]
        %v2226 = vld [vmem:[%s1837 + $0x9d8] sm:$0xff]
        %v2227 = vld [vmem:[%s1837 + $0x9e0] sm:$0xff]
        %v2228 = vld [vmem:[%s1837 + $0x9e8] sm:$0xff]
        %v2229 = vld [vmem:[%s1837 + $0x9f0] sm:$0xff]
        %v2230 = vld [vmem:[%s1837 + $0x9f8] sm:$0xff]
        %v2231 = vld [vmem:[%s1837 + $0xa00] sm:$0xff]
        %v2232 = vld [vmem:[%s1837 + $0xa08] sm:$0xff]
        %v2233 = vld [vmem:[%s1837 + $0xa10] sm:$0xff]
        %v2234 = vld [vmem:[%s1837 + $0xa18] sm:$0xff]
        %v2235 = vld [vmem:[%s1837 + $0xa20] sm:$0xff]
        %v2236 = vld [vmem:[%s1837 + $0xa28] sm:$0xff]
        %v2237 = vld [vmem:[%s1837 + $0xa30] sm:$0xff]
        %v2238 = vld [vmem:[%s1837 + $0xa38] sm:$0xff]
        %v2239 = vld [vmem:[%s1837 + $0xa40] sm:$0xff]
        %v2240 = vld [vmem:[%s1837 + $0xa48] sm:$0xff]
        %v2241 = vld [vmem:[%s1837 + $0xa50] sm:$0xff]
        %v2242 = vld [vmem:[%s1837 + $0xa58] sm:$0xff]
        %v2243 = vld [vmem:[%s1837 + $0xa60] sm:$0xff]
        %v2244 = vld [vmem:[%s1837 + $0xa68] sm:$0xff]
        %v2245 = vld [vmem:[%s1837 + $0xa70] sm:$0xff]
        %v2246 = vld [vmem:[%s1837 + $0xa78] sm:$0xff]
        %v2247 = vld [vmem:[%s1837 + $0xa80] sm:$0xff]
        %v2248 = vld [vmem:[%s1837 + $0xa88] sm:$0xff]
        %v2249 = vld [vmem:[%s1837 + $0xa90] sm:$0xff]
        %v2250 = vld [vmem:[%s1837 + $0xa98] sm:$0xff]
        %v2251 = vld [vmem:[%s1837 + $0xaa0] sm:$0xff]
        %v2252 = vld [vmem:[%s1837 + $0xaa8] sm:$0xff]
        %v2253 = vld [vmem:[%s1837 + $0xab0] sm:$0xff]
        %v2254 = vld [vmem:[%s1837 + $0xab8] sm:$0xff]
        %v2255 = vld [vmem:[%s1837 + $0xac0] sm:$0xff]
        %v2256 = vld [vmem:[%s1837 + $0xac8] sm:$0xff]
        %v2257 = vld [vmem:[%s1837 + $0xad0] sm:$0xff]
        %v2258 = vld [vmem:[%s1837 + $0xad8] sm:$0xff]
        %v2259 = vld [vmem:[%s1837 + $0xae0] sm:$0xff]
        %v2260 = vld [vmem:[%s1837 + $0xae8] sm:$0xff]
        %v2261 = vld [vmem:[%s1837 + $0xaf0] sm:$0xff]
        %v2262 = vld [vmem:[%s1837 + $0xaf8] sm:$0xff]
        %v2263 = vld [vmem:[%s1837 + $0xb00] sm:$0xff]
        %v2264 = vld [vmem:[%s1837 + $0xb08] sm:$0xff]
        %v2265 = vld [vmem:[%s1837 + $0xb10] sm:$0xff]
        %v2266 = vld [vmem:[%s1837 + $0xb18] sm:$0xff]
        %v2267 = vld [vmem:[%s1837 + $0xb20] sm:$0xff]
        %v2268 = vld [vmem:[%s1837 + $0xb28] sm:$0xff]
        %v2269 = vld [vmem:[%s1837 + $0xb30] sm:$0xff]
        %v2270 = vld [vmem:[%s1837 + $0xb38] sm:$0xff]
        %v2271 = vld [vmem:[%s1837 + $0xb40] sm:$0xff]
        %v2272 = vld [vmem:[%s1837 + $0xb48] sm:$0xff]
        %v2273 = vld [vmem:[%s1837 + $0xb50] sm:$0xff]
        %v2274 = vld [vmem:[%s1837 + $0xb58] sm:$0xff]
        %v2275 = vld [vmem:[%s1837 + $0xb60] sm:$0xff]
        %v2276 = vld [vmem:[%s1837 + $0xb68] sm:$0xff]
        %v2277 = vld [vmem:[%s1837 + $0xb70] sm:$0xff]
        %v2278 = vld [vmem:[%s1837 + $0xb78] sm:$0xff]
        %v2279 = vld [vmem:[%s1837 + $0xb80] sm:$0xff]
        %v2280 = vld [vmem:[%s1837 + $0xb88] sm:$0xff]
        %v2281 = vld [vmem:[%s1837 + $0xb90] sm:$0xff]
        %v2282 = vld [vmem:[%s1837 + $0xb98] sm:$0xff]
        %v2283 = vld [vmem:[%s1837 + $0xba0] sm:$0xff]
        %v2284 = vld [vmem:[%s1837 + $0xba8] sm:$0xff]
        %v2285 = vld [vmem:[%s1837 + $0xbb0] sm:$0xff]
        %v2286 = vld [vmem:[%s1837 + $0xbb8] sm:$0xff]
        %v2287 = vld [vmem:[%s1837 + $0xbc0] sm:$0xff]
        %v2288 = vld [vmem:[%s1837 + $0xbc8] sm:$0xff]
        %v2289 = vld [vmem:[%s1837 + $0xbd0] sm:$0xff]
        %v2290 = vld [vmem:[%s1837 + $0xbd8] sm:$0xff]
        %v2291 = vld [vmem:[%s1837 + $0xbe0] sm:$0xff]
        %v2292 = vld [vmem:[%s1837 + $0xbe8] sm:$0xff]
        %v2293 = vld [vmem:[%s1837 + $0xbf0] sm:$0xff]
        %v2294 = vld [vmem:[%s1837 + $0xbf8] sm:$0xff]
        %v2295 = vld [vmem:[%s1837 + $0xc00] sm:$0xff]
        %v2296 = vld [vmem:[%s1837 + $0xc08] sm:$0xff]
        %v2297 = vld [vmem:[%s1837 + $0xc10] sm:$0xff]
        %v2298 = vld [vmem:[%s1837 + $0xc18] sm:$0xff]
        %v2299 = vld [vmem:[%s1837 + $0xc20] sm:$0xff]
        %v2300 = vld [vmem:[%s1837 + $0xc28] sm:$0xff]
        %v2301 = vld [vmem:[%s1837 + $0xc30] sm:$0xff]
        %v2302 = vld [vmem:[%s1837 + $0xc38] sm:$0xff]
        %v2303 = vld [vmem:[%s1882] sm:$0x3]
        %v2305 = vlaneseq
        %v2306 = vshrl.u32 %v2305, 7
        %v2307 = vsub.s32 0, %v2306
        %v2308 = vrot.slane %v2303, %v2307
        %v2309 = vlaneseq
        %v2310 = vshrl.u32 %v2309, 7
        %v2311 = vsub.s32 1, %v2310
        %v2312 = vrot.slane %v2303, %v2311
        %v2319 = vcombine.high %v1907, %v1907
        %v2321 = vunpack.c.l.s4 1966171168
        %v2322 = vunpack.c.0.s8 %v2321
        %v2323 = vlaneseq
        %v2324 = vshrl.u32 %v2323, 7
        %v2325 = vsub.s32 %v2322, %v2324
        %v2326 = vrot.slane %v1907, %v2325
        %v2328 = vunpack.c.l.s4 1966171168
        %v2329 = vunpack.c.0.s8 %v2328
        %v2330 = vlaneseq
        %v2331 = vshrl.u32 %v2330, 7
        %v2332 = vsub.s32 %v2329, %v2331
        %v2333 = vrot.slane %v2319, %v2332
        %v2334 = vcombine.high %v2326, %v2326
        %v2335 = vcombine.high %v2333, %v2333
        %v2337 = vunpack.c.l.s4 1966171168
        %v2338 = vunpack.c.0.s8 %v2337
        %v2339 = vlaneseq
        %v2340 = vshrl.u32 %v2339, 7
        %v2341 = vsub.s32 %v2338, %v2340
        %v2342 = vrot.slane %v2326, %v2341
        %v2344 = vunpack.c.l.s4 1966171168
        %v2345 = vunpack.c.0.s8 %v2344
        %v2346 = vlaneseq
        %v2347 = vshrl.u32 %v2346, 7
        %v2348 = vsub.s32 %v2345, %v2347
        %v2349 = vrot.slane %v2333, %v2348
        %v2351 = vunpack.c.l.s4 1966171168
        %v2352 = vunpack.c.0.s8 %v2351
        %v2353 = vlaneseq
        %v2354 = vshrl.u32 %v2353, 7
        %v2355 = vsub.s32 %v2352, %v2354
        %v2356 = vrot.slane %v2334, %v2355
        %v2358 = vunpack.c.l.s4 1966171168
        %v2359 = vunpack.c.0.s8 %v2358
        %v2360 = vlaneseq
        %v2361 = vshrl.u32 %v2360, 7
        %v2362 = vsub.s32 %v2359, %v2361
        %v2363 = vrot.slane %v2335, %v2362
        %v2364 = vcombine.high %v2342, %v2342
        %v2365 = vcombine.high %v2349, %v2349
        %v2366 = vcombine.high %v2356, %v2356
        %v2367 = vcombine.high %v2363, %v2363
        %v2368 = vcombine.high %v1908, %v1908
        %v2370 = vunpack.c.l.s4 1966171168
        %v2371 = vunpack.c.0.s8 %v2370
        %v2372 = vlaneseq
        %v2373 = vshrl.u32 %v2372, 7
        %v2374 = vsub.s32 %v2371, %v2373
        %v2375 = vrot.slane %v1908, %v2374
        %v2377 = vunpack.c.l.s4 1966171168
        %v2378 = vunpack.c.0.s8 %v2377
        %v2379 = vlaneseq
        %v2380 = vshrl.u32 %v2379, 7
        %v2381 = vsub.s32 %v2378, %v2380
        %v2382 = vrot.slane %v2368, %v2381
        %v2383 = vcombine.high %v2375, %v2375
        %v2384 = vcombine.high %v2382, %v2382
        %v2386 = vunpack.c.l.s4 1966171168
        %v2387 = vunpack.c.0.s8 %v2386
        %v2388 = vlaneseq
        %v2389 = vshrl.u32 %v2388, 7
        %v2390 = vsub.s32 %v2387, %v2389
        %v2391 = vrot.slane %v2375, %v2390
        %v2393 = vunpack.c.l.s4 1966171168
        %v2394 = vunpack.c.0.s8 %v2393
        %v2395 = vlaneseq
        %v2396 = vshrl.u32 %v2395, 7
        %v2397 = vsub.s32 %v2394, %v2396
        %v2398 = vrot.slane %v2382, %v2397
        %v2400 = vunpack.c.l.s4 1966171168
        %v2401 = vunpack.c.0.s8 %v2400
        %v2402 = vlaneseq
        %v2403 = vshrl.u32 %v2402, 7
        %v2404 = vsub.s32 %v2401, %v2403
        %v2405 = vrot.slane %v2383, %v2404
        %v2407 = vunpack.c.l.s4 1966171168
        %v2408 = vunpack.c.0.s8 %v2407
        %v2409 = vlaneseq
        %v2410 = vshrl.u32 %v2409, 7
        %v2411 = vsub.s32 %v2408, %v2410
        %v2412 = vrot.slane %v2384, %v2411
        %v2413 = vcombine.high %v2391, %v2391
        %v2414 = vcombine.high %v2398, %v2398
        %v2415 = vcombine.high %v2405, %v2405
        %v2416 = vcombine.high %v2412, %v2412
        %v2417 = vcombine.high %v1909, %v1909
        %v2419 = vunpack.c.l.s4 1966171168
        %v2420 = vunpack.c.0.s8 %v2419
        %v2421 = vlaneseq
        %v2422 = vshrl.u32 %v2421, 7
        %v2423 = vsub.s32 %v2420, %v2422
        %v2424 = vrot.slane %v1909, %v2423
        %v2426 = vunpack.c.l.s4 1966171168
        %v2427 = vunpack.c.0.s8 %v2426
        %v2428 = vlaneseq
        %v2429 = vshrl.u32 %v2428, 7
        %v2430 = vsub.s32 %v2427, %v2429
        %v2431 = vrot.slane %v2417, %v2430
        %v2432 = vcombine.high %v2424, %v2424
        %v2433 = vcombine.high %v2431, %v2431
        %v2435 = vunpack.c.l.s4 1966171168
        %v2436 = vunpack.c.0.s8 %v2435
        %v2437 = vlaneseq
        %v2438 = vshrl.u32 %v2437, 7
        %v2439 = vsub.s32 %v2436, %v2438
        %v2440 = vrot.slane %v2424, %v2439
        %v2442 = vunpack.c.l.s4 1966171168
        %v2443 = vunpack.c.0.s8 %v2442
        %v2444 = vlaneseq
        %v2445 = vshrl.u32 %v2444, 7
        %v2446 = vsub.s32 %v2443, %v2445
        %v2447 = vrot.slane %v2431, %v2446
        %v2449 = vunpack.c.l.s4 1966171168
        %v2450 = vunpack.c.0.s8 %v2449
        %v2451 = vlaneseq
        %v2452 = vshrl.u32 %v2451, 7
        %v2453 = vsub.s32 %v2450, %v2452
        %v2454 = vrot.slane %v2432, %v2453
        %v2456 = vunpack.c.l.s4 1966171168
        %v2457 = vunpack.c.0.s8 %v2456
        %v2458 = vlaneseq
        %v2459 = vshrl.u32 %v2458, 7
        %v2460 = vsub.s32 %v2457, %v2459
        %v2461 = vrot.slane %v2433, %v2460
        %v2462 = vcombine.high %v2440, %v2440
        %v2463 = vcombine.high %v2447, %v2447
        %v2464 = vcombine.high %v2454, %v2454
        %v2465 = vcombine.high %v2461, %v2461
        %v2467 = vunpack.c.l.s4 1966171168
        %v2468 = vunpack.c.0.s8 %v2467
        %v2469 = vlaneseq
        %v2470 = vshrl.u32 %v2469, 7
        %v2471 = vsub.s32 %v2468, %v2470
        %v2472 = vrot.slane %v1910, %v2471
        %v2474 = vunpack.c.l.s4 1966171168
        %v2475 = vunpack.c.0.s8 %v2474
        %v2476 = vlaneseq
        %v2477 = vshrl.u32 %v2476, 7
        %v2478 = vsub.s32 %v2475, %v2477
        %v2479 = vrot.slane %v2472, %v2478
        %v2896 = vunpack.c.l.b16 %v1911
        %v2897 = vunpack.c.h.b16 %v1911
        %v2898 = vunpack.c.l.b16 %v1912
        %v2899 = vunpack.c.h.b16 %v1912
        %v2900 = vunpack.c.l.b16 %v1913
        %v2901 = vunpack.c.h.b16 %v1913
        %v2902 = vunpack.c.l.b16 %v1914
        %v2903 = vunpack.c.h.b16 %v1914
        %v2904 = vunpack.c.l.b16 %v1915
        %v2905 = vunpack.c.h.b16 %v1915
        %v2906 = vunpack.c.l.b16 %v1916
        %v2907 = vunpack.c.h.b16 %v1916
        %v2908 = vunpack.c.l.b16 %v1917
        %v2909 = vunpack.c.h.b16 %v1917
        %v2910 = vunpack.c.l.b16 %v1918
        %v2911 = vunpack.c.h.b16 %v1918
        %v2912 = vunpack.c.l.b16 %v1919
        %v2913 = vunpack.c.h.b16 %v1919
        %v2914 = vunpack.c.l.b16 %v1920
        %v2915 = vunpack.c.h.b16 %v1920
        %v2916 = vunpack.c.l.b16 %v1921
        %v2917 = vunpack.c.h.b16 %v1921
        %v2918 = vunpack.c.l.b16 %v1922
        %v2919 = vunpack.c.h.b16 %v1922
        %v2920 = vunpack.c.l.b16 %v1923
        %v2921 = vunpack.c.h.b16 %v1923
        %v2922 = vunpack.c.l.b16 %v1924
        %v2923 = vunpack.c.h.b16 %v1924
        %v2924 = vunpack.c.l.b16 %v1925
        %v2925 = vunpack.c.h.b16 %v1925
        %v2926 = vunpack.c.l.b16 %v1926
        %v2927 = vunpack.c.h.b16 %v1926
        %v2928 = vunpack.c.l.b16 %v1927
        %v2929 = vunpack.c.h.b16 %v1927
        %v2930 = vunpack.c.l.b16 %v1928
        %v2931 = vunpack.c.h.b16 %v1928
        %v2932 = vunpack.c.l.b16 %v1929
        %v2933 = vunpack.c.h.b16 %v1929
        %v2934 = vunpack.c.l.b16 %v1930
        %v2935 = vunpack.c.h.b16 %v1930
        %v2936 = vunpack.c.l.b16 %v1931
        %v2937 = vunpack.c.h.b16 %v1931
        %v2938 = vunpack.c.l.b16 %v1932
        %v2939 = vunpack.c.h.b16 %v1932
        %v2940 = vunpack.c.l.b16 %v1933
        %v2941 = vunpack.c.h.b16 %v1933
        %v2942 = vunpack.c.l.b16 %v1934
        %v2943 = vunpack.c.h.b16 %v1934
        %v2944 = vunpack.c.l.b16 %v1935
        %v2945 = vunpack.c.h.b16 %v1935
        %v2946 = vunpack.c.l.b16 %v1936
        %v2947 = vunpack.c.h.b16 %v1936
        %v2948 = vunpack.c.l.b16 %v1937
        %v2949 = vunpack.c.h.b16 %v1937
        %v2950 = vunpack.c.l.b16 %v1938
        %v2951 = vunpack.c.h.b16 %v1938
        %v2952 = vunpack.c.l.b16 %v1939
        %v2953 = vunpack.c.h.b16 %v1939
        %v2954 = vunpack.c.l.b16 %v1940
        %v2955 = vunpack.c.h.b16 %v1940
        %v2956 = vunpack.c.l.b16 %v1941
        %v2957 = vunpack.c.h.b16 %v1941
        %v2958 = vunpack.c.l.b16 %v1942
        %v2959 = vunpack.c.h.b16 %v1942
        %v2960 = vunpack.c.l.b16 %v1943
        %v2961 = vunpack.c.h.b16 %v1943
        %v2962 = vunpack.c.l.b16 %v1944
        %v2963 = vunpack.c.h.b16 %v1944
        %v2964 = vunpack.c.l.b16 %v1945
        %v2965 = vunpack.c.h.b16 %v1945
        %v2966 = vunpack.c.l.b16 %v1946
        %v2967 = vunpack.c.h.b16 %v1946
        %v2968 = vunpack.c.l.b16 %v1947
        %v2969 = vunpack.c.h.b16 %v1947
        %v2970 = vunpack.c.l.b16 %v1948
        %v2971 = vunpack.c.h.b16 %v1948
        %v2972 = vunpack.c.l.b16 %v1949
        %v2973 = vunpack.c.h.b16 %v1949
        %v2974 = vunpack.c.l.b16 %v1950
        %v2975 = vunpack.c.h.b16 %v1950
        %v2976 = vunpack.c.l.b16 %v1951
        %v2977 = vunpack.c.h.b16 %v1951
        %v2978 = vunpack.c.l.b16 %v1952
        %v2979 = vunpack.c.h.b16 %v1952
        %v2980 = vunpack.c.l.b16 %v1953
        %v2981 = vunpack.c.h.b16 %v1953
        %v2982 = vunpack.c.l.b16 %v1954
        %v2983 = vunpack.c.h.b16 %v1954
        %v2984 = vunpack.c.l.b16 %v1955
        %v2985 = vunpack.c.h.b16 %v1955
        %v2986 = vunpack.c.l.b16 %v1956
        %v2987 = vunpack.c.h.b16 %v1956
        %v2988 = vunpack.c.l.b16 %v1957
        %v2989 = vunpack.c.h.b16 %v1957
        %v2990 = vunpack.c.l.b16 %v1958
        %v2991 = vunpack.c.h.b16 %v1958
        %v2992 = vunpack.c.l.b16 %v1959
        %v2993 = vunpack.c.h.b16 %v1959
        %v2994 = vunpack.c.l.b16 %v1960
        %v2995 = vunpack.c.h.b16 %v1960
        %v2996 = vunpack.c.l.b16 %v1961
        %v2997 = vunpack.c.h.b16 %v1961
        %v2998 = vunpack.c.l.b16 %v1962
        %v2999 = vunpack.c.h.b16 %v1962
        %v3000 = vunpack.c.l.b16 %v1963
        %v3001 = vunpack.c.h.b16 %v1963
        %v3002 = vunpack.c.l.b16 %v1964
        %v3003 = vunpack.c.h.b16 %v1964
        %v3004 = vunpack.c.l.b16 %v1965
        %v3005 = vunpack.c.h.b16 %v1965
        %v3006 = vunpack.c.l.b16 %v1966
        %v3007 = vunpack.c.h.b16 %v1966
        %v3008 = vunpack.c.l.b16 %v1967
        %v3009 = vunpack.c.h.b16 %v1967
        %v3010 = vunpack.c.l.b16 %v1968
        %v3011 = vunpack.c.h.b16 %v1968
        %v3012 = vunpack.c.l.b16 %v1969
        %v3013 = vunpack.c.h.b16 %v1969
        %v3014 = vunpack.c.l.b16 %v1970
        %v3015 = vunpack.c.h.b16 %v1970
        %v3016 = vunpack.c.l.b16 %v1971
        %v3017 = vunpack.c.h.b16 %v1971
        %v3018 = vunpack.c.l.b16 %v1972
        %v3019 = vunpack.c.h.b16 %v1972
        %v3020 = vunpack.c.l.b16 %v1973
        %v3021 = vunpack.c.h.b16 %v1973
        %v3022 = vunpack.c.l.b16 %v1974
        %v3023 = vunpack.c.h.b16 %v1974
        %v3024 = vunpack.c.l.b16 %v1975
        %v3025 = vunpack.c.h.b16 %v1975
        %v3026 = vunpack.c.l.b16 %v1976
        %v3027 = vunpack.c.h.b16 %v1976
        %v3028 = vunpack.c.l.b16 %v1977
        %v3029 = vunpack.c.h.b16 %v1977
        %v3030 = vunpack.c.l.b16 %v1978
        %v3031 = vunpack.c.h.b16 %v1978
        %v3032 = vunpack.c.l.b16 %v1979
        %v3033 = vunpack.c.h.b16 %v1979
        %v3034 = vunpack.c.l.b16 %v1980
        %v3035 = vunpack.c.h.b16 %v1980
        %v3036 = vunpack.c.l.b16 %v1981
        %v3037 = vunpack.c.h.b16 %v1981
        %v3038 = vunpack.c.l.b16 %v1982
        %v3039 = vunpack.c.h.b16 %v1982
        %v3040 = vunpack.c.l.b16 %v1983
        %v3041 = vunpack.c.h.b16 %v1983
        %v3042 = vunpack.c.l.b16 %v1984
        %v3043 = vunpack.c.h.b16 %v1984
        %v3044 = vunpack.c.l.b16 %v1985
        %v3045 = vunpack.c.h.b16 %v1985
        %v3046 = vunpack.c.l.b16 %v1986
        %v3047 = vunpack.c.h.b16 %v1986
        %v3048 = vunpack.c.l.b16 %v1987
        %v3049 = vunpack.c.h.b16 %v1987
        %v3050 = vunpack.c.l.b16 %v1988
        %v3051 = vunpack.c.h.b16 %v1988
        %v3052 = vunpack.c.l.b16 %v1989
        %v3053 = vunpack.c.h.b16 %v1989
        %v3054 = vunpack.c.l.b16 %v1990
        %v3055 = vunpack.c.h.b16 %v1990
        %v3056 = vunpack.c.l.b16 %v1991
        %v3057 = vunpack.c.h.b16 %v1991
        %v3058 = vunpack.c.l.b16 %v1992
        %v3059 = vunpack.c.h.b16 %v1992
        %v3060 = vunpack.c.l.b16 %v1993
        %v3061 = vunpack.c.h.b16 %v1993
        %v3062 = vunpack.c.l.b16 %v1994
        %v3063 = vunpack.c.h.b16 %v1994
        %v3064 = vunpack.c.l.b16 %v1995
        %v3065 = vunpack.c.h.b16 %v1995
        %v3066 = vunpack.c.l.b16 %v1996
        %v3067 = vunpack.c.h.b16 %v1996
        %v3068 = vunpack.c.l.b16 %v1997
        %v3069 = vunpack.c.h.b16 %v1997
        %v3070 = vunpack.c.l.b16 %v1998
        %v3071 = vunpack.c.h.b16 %v1998
        %v3072 = vunpack.c.l.b16 %v1999
        %v3073 = vunpack.c.h.b16 %v1999
        %v3074 = vunpack.c.l.b16 %v2000
        %v3075 = vunpack.c.h.b16 %v2000
        %v3076 = vunpack.c.l.b16 %v2001
        %v3077 = vunpack.c.h.b16 %v2001
        %v3078 = vunpack.c.l.b16 %v2002
        %v3079 = vunpack.c.h.b16 %v2002
        %v3080 = vunpack.c.l.b16 %v2003
        %v3081 = vunpack.c.h.b16 %v2003
        %v3082 = vunpack.c.l.b16 %v2004
        %v3083 = vunpack.c.h.b16 %v2004
        %v3084 = vunpack.c.l.b16 %v2005
        %v3085 = vunpack.c.h.b16 %v2005
        %v3086 = vunpack.c.l.b16 %v2006
        %v3087 = vunpack.c.h.b16 %v2006
        %v3088 = vunpack.c.l.b16 %v2007
        %v3089 = vunpack.c.h.b16 %v2007
        %v3090 = vunpack.c.l.b16 %v2008
        %v3091 = vunpack.c.h.b16 %v2008
        %v3092 = vunpack.c.l.b16 %v2009
        %v3093 = vunpack.c.h.b16 %v2009
        %v3094 = vunpack.c.l.b16 %v2010
        %v3095 = vunpack.c.h.b16 %v2010
        %v3096 = vunpack.c.l.b16 %v2011
        %v3097 = vunpack.c.h.b16 %v2011
        %v3098 = vunpack.c.l.b16 %v2012
        %v3099 = vunpack.c.h.b16 %v2012
        %v3100 = vunpack.c.l.b16 %v2013
        %v3101 = vunpack.c.h.b16 %v2013
        %v3102 = vunpack.c.l.b16 %v2014
        %v3103 = vunpack.c.h.b16 %v2014
        %v3104 = vunpack.c.l.b16 %v2015
        %v3105 = vunpack.c.h.b16 %v2015
        %v3106 = vunpack.c.l.b16 %v2016
        %v3107 = vunpack.c.h.b16 %v2016
        %v3108 = vunpack.c.l.b16 %v2017
        %v3109 = vunpack.c.h.b16 %v2017
        %v3110 = vunpack.c.l.b16 %v2018
        %v3111 = vunpack.c.h.b16 %v2018
        %v3112 = vunpack.c.l.b16 %v2019
        %v3113 = vunpack.c.h.b16 %v2019
        %v3114 = vunpack.c.l.b16 %v2020
        %v3115 = vunpack.c.h.b16 %v2020
        %v3116 = vunpack.c.l.b16 %v2021
        %v3117 = vunpack.c.h.b16 %v2021
        %v3118 = vunpack.c.l.b16 %v2022
        %v3119 = vunpack.c.h.b16 %v2022
        %v3120 = vunpack.c.l.b16 %v2023
        %v3121 = vunpack.c.h.b16 %v2023
        %v3122 = vunpack.c.l.b16 %v2024
        %v3123 = vunpack.c.h.b16 %v2024
        %v3124 = vunpack.c.l.b16 %v2025
        %v3125 = vunpack.c.h.b16 %v2025
        %v3126 = vunpack.c.l.b16 %v2026
        %v3127 = vunpack.c.h.b16 %v2026
        %v3128 = vunpack.c.l.b16 %v2027
        %v3129 = vunpack.c.h.b16 %v2027
        %v3130 = vunpack.c.l.b16 %v2028
        %v3131 = vunpack.c.h.b16 %v2028
        %v3132 = vunpack.c.l.b16 %v2029
        %v3133 = vunpack.c.h.b16 %v2029
        %v3134 = vunpack.c.l.b16 %v2030
        %v3135 = vunpack.c.h.b16 %v2030
        %v3136 = vunpack.c.l.b16 %v2031
        %v3137 = vunpack.c.h.b16 %v2031
        %v3138 = vunpack.c.l.b16 %v2032
        %v3139 = vunpack.c.h.b16 %v2032
        %v3140 = vunpack.c.l.b16 %v2033
        %v3141 = vunpack.c.h.b16 %v2033
        %v3142 = vunpack.c.l.b16 %v2034
        %v3143 = vunpack.c.h.b16 %v2034
        %v3144 = vunpack.c.l.b16 %v2035
        %v3145 = vunpack.c.h.b16 %v2035
        %v3146 = vunpack.c.l.b16 %v2036
        %v3147 = vunpack.c.h.b16 %v2036
        %v3148 = vunpack.c.l.b16 %v2037
        %v3149 = vunpack.c.h.b16 %v2037
        %v3150 = vunpack.c.l.b16 %v2038
        %v3151 = vunpack.c.h.b16 %v2038
        %v3152 = vunpack.c.l.b16 %v2039
        %v3153 = vunpack.c.h.b16 %v2039
        %v3154 = vunpack.c.l.b16 %v2040
        %v3155 = vunpack.c.h.b16 %v2040
        %v3156 = vunpack.c.l.b16 %v2041
        %v3157 = vunpack.c.h.b16 %v2041
        %v3158 = vunpack.c.l.b16 %v2042
        %v3159 = vunpack.c.h.b16 %v2042
        %v3160 = vunpack.c.l.b16 %v2043
        %v3161 = vunpack.c.h.b16 %v2043
        %v3162 = vunpack.c.l.b16 %v2044
        %v3163 = vunpack.c.h.b16 %v2044
        %v3164 = vunpack.c.l.b16 %v2045
        %v3165 = vunpack.c.h.b16 %v2045
        %v3166 = vunpack.c.l.b16 %v2046
        %v3167 = vunpack.c.h.b16 %v2046
        %v3168 = vunpack.c.l.b16 %v2047
        %v3169 = vunpack.c.h.b16 %v2047
        %v3170 = vunpack.c.l.b16 %v2048
        %v3171 = vunpack.c.h.b16 %v2048
        %v3172 = vunpack.c.l.b16 %v2049
        %v3173 = vunpack.c.h.b16 %v2049
        %v3174 = vunpack.c.l.b16 %v2050
        %v3175 = vunpack.c.h.b16 %v2050
        %v3176 = vunpack.c.l.b16 %v2051
        %v3177 = vunpack.c.h.b16 %v2051
        %v3178 = vunpack.c.l.b16 %v2052
        %v3179 = vunpack.c.h.b16 %v2052
        %v3180 = vunpack.c.l.b16 %v2053
        %v3181 = vunpack.c.h.b16 %v2053
        %v3182 = vunpack.c.l.b16 %v2054
        %v3183 = vunpack.c.h.b16 %v2054
        %v3184 = vunpack.c.l.b16 %v2055
        %v3185 = vunpack.c.h.b16 %v2055
        %v3186 = vunpack.c.l.b16 %v2056
        %v3187 = vunpack.c.h.b16 %v2056
        %v3188 = vunpack.c.l.b16 %v2057
        %v3189 = vunpack.c.h.b16 %v2057
        %v3190 = vunpack.c.l.b16 %v2058
        %v3191 = vunpack.c.h.b16 %v2058
        %v3192 = vunpack.c.l.b16 %v2059
        %v3193 = vunpack.c.h.b16 %v2059
        %v3194 = vunpack.c.l.b16 %v2060
        %v3195 = vunpack.c.h.b16 %v2060
        %v3196 = vunpack.c.l.b16 %v2061
        %v3197 = vunpack.c.h.b16 %v2061
        %v3198 = vunpack.c.l.b16 %v2062
        %v3199 = vunpack.c.h.b16 %v2062
        %v3200 = vunpack.c.l.b16 %v2063
        %v3201 = vunpack.c.h.b16 %v2063
        %v3202 = vunpack.c.l.b16 %v2064
        %v3203 = vunpack.c.h.b16 %v2064
        %v3204 = vunpack.c.l.b16 %v2065
        %v3205 = vunpack.c.h.b16 %v2065
        %v3206 = vunpack.c.l.b16 %v2066
        %v3207 = vunpack.c.h.b16 %v2066
        %v3208 = vunpack.c.l.b16 %v2067
        %v3209 = vunpack.c.h.b16 %v2067
        %v3210 = vunpack.c.l.b16 %v2068
        %v3211 = vunpack.c.h.b16 %v2068
        %v3212 = vunpack.c.l.b16 %v2069
        %v3213 = vunpack.c.h.b16 %v2069
        %v3214 = vunpack.c.l.b16 %v2070
        %v3215 = vunpack.c.h.b16 %v2070
        %v3216 = vunpack.c.l.b16 %v2071
        %v3217 = vunpack.c.h.b16 %v2071
        %v3218 = vunpack.c.l.b16 %v2072
        %v3219 = vunpack.c.h.b16 %v2072
        %v3220 = vunpack.c.l.b16 %v2073
        %v3221 = vunpack.c.h.b16 %v2073
        %v3222 = vunpack.c.l.b16 %v2074
        %v3223 = vunpack.c.h.b16 %v2074
        %v3224 = vunpack.c.l.b16 %v2075
        %v3225 = vunpack.c.h.b16 %v2075
        %v3226 = vunpack.c.l.b16 %v2076
        %v3227 = vunpack.c.h.b16 %v2076
        %v3228 = vunpack.c.l.b16 %v2077
        %v3229 = vunpack.c.h.b16 %v2077
        %v3230 = vunpack.c.l.b16 %v2078
        %v3231 = vunpack.c.h.b16 %v2078
        %v3232 = vunpack.c.l.b16 %v2079
        %v3233 = vunpack.c.h.b16 %v2079
        %v3234 = vunpack.c.l.b16 %v2080
        %v3235 = vunpack.c.h.b16 %v2080
        %v3236 = vunpack.c.l.b16 %v2081
        %v3237 = vunpack.c.h.b16 %v2081
        %v3238 = vunpack.c.l.b16 %v2082
        %v3239 = vunpack.c.h.b16 %v2082
        %v3240 = vunpack.c.l.b16 %v2083
        %v3241 = vunpack.c.h.b16 %v2083
        %v3242 = vunpack.c.l.b16 %v2084
        %v3243 = vunpack.c.h.b16 %v2084
        %v3244 = vunpack.c.l.b16 %v2085
        %v3245 = vunpack.c.h.b16 %v2085
        %v3246 = vunpack.c.l.b16 %v2086
        %v3247 = vunpack.c.h.b16 %v2086
        %v3248 = vunpack.c.l.b16 %v2087
        %v3249 = vunpack.c.h.b16 %v2087
        %v3250 = vunpack.c.l.b16 %v2088
        %v3251 = vunpack.c.h.b16 %v2088
        %v3252 = vunpack.c.l.b16 %v2089
        %v3253 = vunpack.c.h.b16 %v2089
        %v3254 = vunpack.c.l.b16 %v2090
        %v3255 = vunpack.c.h.b16 %v2090
        %v3256 = vunpack.c.l.b16 %v2091
        %v3257 = vunpack.c.h.b16 %v2091
        %v3258 = vunpack.c.l.b16 %v2092
        %v3259 = vunpack.c.h.b16 %v2092
        %v3260 = vunpack.c.l.b16 %v2093
        %v3261 = vunpack.c.h.b16 %v2093
        %v3262 = vunpack.c.l.b16 %v2094
        %v3263 = vunpack.c.h.b16 %v2094
        %v3264 = vunpack.c.l.b16 %v2095
        %v3265 = vunpack.c.h.b16 %v2095
        %v3266 = vunpack.c.l.b16 %v2096
        %v3267 = vunpack.c.h.b16 %v2096
        %v3268 = vunpack.c.l.b16 %v2097
        %v3269 = vunpack.c.h.b16 %v2097
        %v3270 = vunpack.c.l.b16 %v2098
        %v3271 = vunpack.c.h.b16 %v2098
        %v3272 = vunpack.c.l.b16 %v2099
        %v3273 = vunpack.c.h.b16 %v2099
        %v3274 = vunpack.c.l.b16 %v2100
        %v3275 = vunpack.c.h.b16 %v2100
        %v3276 = vunpack.c.l.b16 %v2101
        %v3277 = vunpack.c.h.b16 %v2101
        %v3278 = vunpack.c.l.b16 %v2102
        %v3279 = vunpack.c.h.b16 %v2102
        %v3280 = vunpack.c.l.b16 %v2103
        %v3281 = vunpack.c.h.b16 %v2103
        %v3282 = vunpack.c.l.b16 %v2104
        %v3283 = vunpack.c.h.b16 %v2104
        %v3284 = vunpack.c.l.b16 %v2105
        %v3285 = vunpack.c.h.b16 %v2105
        %v3286 = vunpack.c.l.b16 %v2106
        %v3287 = vunpack.c.h.b16 %v2106
        %v3288 = vunpack.c.l.b16 %v2107
        %v3289 = vunpack.c.h.b16 %v2107
        %v3290 = vunpack.c.l.b16 %v2108
        %v3291 = vunpack.c.h.b16 %v2108
        %v3292 = vunpack.c.l.b16 %v2109
        %v3293 = vunpack.c.h.b16 %v2109
        %v3294 = vunpack.c.l.b16 %v2110
        %v3295 = vunpack.c.h.b16 %v2110
        %v3296 = vunpack.c.l.b16 %v2111
        %v3297 = vunpack.c.h.b16 %v2111
        %v3298 = vunpack.c.l.b16 %v2112
        %v3299 = vunpack.c.h.b16 %v2112
        %v3300 = vunpack.c.l.b16 %v2113
        %v3301 = vunpack.c.h.b16 %v2113
        %v3302 = vunpack.c.l.b16 %v2114
        %v3303 = vunpack.c.h.b16 %v2114
        %v3304 = vunpack.c.l.b16 %v2115
        %v3305 = vunpack.c.h.b16 %v2115
        %v3306 = vunpack.c.l.b16 %v2116
        %v3307 = vunpack.c.h.b16 %v2116
        %v3308 = vunpack.c.l.b16 %v2117
        %v3309 = vunpack.c.h.b16 %v2117
        %v3310 = vunpack.c.l.b16 %v2118
        %v3311 = vunpack.c.h.b16 %v2118
        %v3312 = vunpack.c.l.b16 %v2119
        %v3313 = vunpack.c.h.b16 %v2119
        %v3314 = vunpack.c.l.b16 %v2120
        %v3315 = vunpack.c.h.b16 %v2120
        %v3316 = vunpack.c.l.b16 %v2121
        %v3317 = vunpack.c.h.b16 %v2121
        %v3318 = vunpack.c.l.b16 %v2122
        %v3319 = vunpack.c.h.b16 %v2122
        %v3320 = vunpack.c.l.b16 %v2123
        %v3321 = vunpack.c.h.b16 %v2123
        %v3322 = vunpack.c.l.b16 %v2124
        %v3323 = vunpack.c.h.b16 %v2124
        %v3324 = vunpack.c.l.b16 %v2125
        %v3325 = vunpack.c.h.b16 %v2125
        %v3326 = vunpack.c.l.b16 %v2126
        %v3327 = vunpack.c.h.b16 %v2126
        %v3328 = vunpack.c.l.b16 %v2127
        %v3329 = vunpack.c.h.b16 %v2127
        %v3330 = vunpack.c.l.b16 %v2128
        %v3331 = vunpack.c.h.b16 %v2128
        %v3332 = vunpack.c.l.b16 %v2129
        %v3333 = vunpack.c.h.b16 %v2129
        %v3334 = vunpack.c.l.b16 %v2130
        %v3335 = vunpack.c.h.b16 %v2130
        %v3336 = vunpack.c.l.b16 %v2131
        %v3337 = vunpack.c.h.b16 %v2131
        %v3338 = vunpack.c.l.b16 %v2132
        %v3339 = vunpack.c.h.b16 %v2132
        %v3340 = vunpack.c.l.b16 %v2133
        %v3341 = vunpack.c.h.b16 %v2133
        %v3342 = vunpack.c.l.b16 %v2134
        %v3343 = vunpack.c.h.b16 %v2134
        %v3344 = vunpack.c.l.b16 %v2135
        %v3345 = vunpack.c.h.b16 %v2135
        %v3346 = vunpack.c.l.b16 %v2136
        %v3347 = vunpack.c.h.b16 %v2136
        %v3348 = vunpack.c.l.b16 %v2137
        %v3349 = vunpack.c.h.b16 %v2137
        %v3350 = vunpack.c.l.b16 %v2138
        %v3351 = vunpack.c.h.b16 %v2138
        %v3352 = vunpack.c.l.b16 %v2139
        %v3353 = vunpack.c.h.b16 %v2139
        %v3354 = vunpack.c.l.b16 %v2140
        %v3355 = vunpack.c.h.b16 %v2140
        %v3356 = vunpack.c.l.b16 %v2141
        %v3357 = vunpack.c.h.b16 %v2141
        %v3358 = vunpack.c.l.b16 %v2142
        %v3359 = vunpack.c.h.b16 %v2142
        %v3360 = vunpack.c.l.b16 %v2143
        %v3361 = vunpack.c.h.b16 %v2143
        %v3362 = vunpack.c.l.b16 %v2144
        %v3363 = vunpack.c.h.b16 %v2144
        %v3364 = vunpack.c.l.b16 %v2145
        %v3365 = vunpack.c.h.b16 %v2145
        %v3366 = vunpack.c.l.b16 %v2146
        %v3367 = vunpack.c.h.b16 %v2146
        %v3368 = vunpack.c.l.b16 %v2147
        %v3369 = vunpack.c.h.b16 %v2147
        %v3370 = vunpack.c.l.b16 %v2148
        %v3371 = vunpack.c.h.b16 %v2148
        %v3372 = vunpack.c.l.b16 %v2149
        %v3373 = vunpack.c.h.b16 %v2149
        %v3374 = vunpack.c.l.b16 %v2150
        %v3375 = vunpack.c.h.b16 %v2150
        %v3376 = vunpack.c.l.b16 %v2151
        %v3377 = vunpack.c.h.b16 %v2151
        %v3378 = vunpack.c.l.b16 %v2152
        %v3379 = vunpack.c.h.b16 %v2152
        %v3380 = vunpack.c.l.b16 %v2153
        %v3381 = vunpack.c.h.b16 %v2153
        %v3382 = vunpack.c.l.b16 %v2154
        %v3383 = vunpack.c.h.b16 %v2154
        %v3384 = vunpack.c.l.b16 %v2155
        %v3385 = vunpack.c.h.b16 %v2155
        %v3386 = vunpack.c.l.b16 %v2156
        %v3387 = vunpack.c.h.b16 %v2156
        %v3388 = vunpack.c.l.b16 %v2157
        %v3389 = vunpack.c.h.b16 %v2157
        %v3390 = vunpack.c.l.b16 %v2158
        %v3391 = vunpack.c.h.b16 %v2158
        %v3392 = vunpack.c.l.b16 %v2159
        %v3393 = vunpack.c.h.b16 %v2159
        %v3394 = vunpack.c.l.b16 %v2160
        %v3395 = vunpack.c.h.b16 %v2160
        %v3396 = vunpack.c.l.b16 %v2161
        %v3397 = vunpack.c.h.b16 %v2161
        %v3398 = vunpack.c.l.b16 %v2162
        %v3399 = vunpack.c.h.b16 %v2162
        %v3400 = vunpack.c.l.b16 %v2163
        %v3401 = vunpack.c.h.b16 %v2163
        %v3402 = vunpack.c.l.b16 %v2164
        %v3403 = vunpack.c.h.b16 %v2164
        %v3404 = vunpack.c.l.b16 %v2165
        %v3405 = vunpack.c.h.b16 %v2165
        %v3406 = vunpack.c.l.b16 %v2166
        %v3407 = vunpack.c.h.b16 %v2166
        %v3408 = vunpack.c.l.b16 %v2167
        %v3409 = vunpack.c.h.b16 %v2167
        %v3410 = vunpack.c.l.b16 %v2168
        %v3411 = vunpack.c.h.b16 %v2168
        %v3412 = vunpack.c.l.b16 %v2169
        %v3413 = vunpack.c.h.b16 %v2169
        %v3414 = vunpack.c.l.b16 %v2170
        %v3415 = vunpack.c.h.b16 %v2170
        %v3416 = vunpack.c.l.b16 %v2171
        %v3417 = vunpack.c.h.b16 %v2171
        %v3418 = vunpack.c.l.b16 %v2172
        %v3419 = vunpack.c.h.b16 %v2172
        %v3420 = vunpack.c.l.b16 %v2173
        %v3421 = vunpack.c.h.b16 %v2173
        %v3422 = vunpack.c.l.b16 %v2174
        %v3423 = vunpack.c.h.b16 %v2174
        %v3424 = vunpack.c.l.b16 %v2175
        %v3425 = vunpack.c.h.b16 %v2175
        %v3426 = vunpack.c.l.b16 %v2176
        %v3427 = vunpack.c.h.b16 %v2176
        %v3428 = vunpack.c.l.b16 %v2177
        %v3429 = vunpack.c.h.b16 %v2177
        %v3430 = vunpack.c.l.b16 %v2178
        %v3431 = vunpack.c.h.b16 %v2178
        %v3432 = vunpack.c.l.b16 %v2179
        %v3433 = vunpack.c.h.b16 %v2179
        %v3434 = vunpack.c.l.b16 %v2180
        %v3435 = vunpack.c.h.b16 %v2180
        %v3436 = vunpack.c.l.b16 %v2181
        %v3437 = vunpack.c.h.b16 %v2181
        %v3438 = vunpack.c.l.b16 %v2182
        %v3439 = vunpack.c.h.b16 %v2182
        %v3440 = vunpack.c.l.b16 %v2183
        %v3441 = vunpack.c.h.b16 %v2183
        %v3442 = vunpack.c.l.b16 %v2184
        %v3443 = vunpack.c.h.b16 %v2184
        %v3444 = vunpack.c.l.b16 %v2185
        %v3445 = vunpack.c.h.b16 %v2185
        %v3446 = vunpack.c.l.b16 %v2186
        %v3447 = vunpack.c.h.b16 %v2186
        %v3448 = vunpack.c.l.b16 %v2187
        %v3449 = vunpack.c.h.b16 %v2187
        %v3450 = vunpack.c.l.b16 %v2188
        %v3451 = vunpack.c.h.b16 %v2188
        %v3452 = vunpack.c.l.b16 %v2189
        %v3453 = vunpack.c.h.b16 %v2189
        %v3454 = vunpack.c.l.b16 %v2190
        %v3455 = vunpack.c.h.b16 %v2190
        %v3456 = vunpack.c.l.b16 %v2191
        %v3457 = vunpack.c.h.b16 %v2191
        %v3458 = vunpack.c.l.b16 %v2192
        %v3459 = vunpack.c.h.b16 %v2192
        %v3460 = vunpack.c.l.b16 %v2193
        %v3461 = vunpack.c.h.b16 %v2193
        %v3462 = vunpack.c.l.b16 %v2194
        %v3463 = vunpack.c.h.b16 %v2194
        %v3464 = vunpack.c.l.b16 %v2195
        %v3465 = vunpack.c.h.b16 %v2195
        %v3466 = vunpack.c.l.b16 %v2196
        %v3467 = vunpack.c.h.b16 %v2196
        %v3468 = vunpack.c.l.b16 %v2197
        %v3469 = vunpack.c.h.b16 %v2197
        %v3470 = vunpack.c.l.b16 %v2198
        %v3471 = vunpack.c.h.b16 %v2198
        %v3472 = vunpack.c.l.b16 %v2199
        %v3473 = vunpack.c.h.b16 %v2199
        %v3474 = vunpack.c.l.b16 %v2200
        %v3475 = vunpack.c.h.b16 %v2200
        %v3476 = vunpack.c.l.b16 %v2201
        %v3477 = vunpack.c.h.b16 %v2201
        %v3478 = vunpack.c.l.b16 %v2202
        %v3479 = vunpack.c.h.b16 %v2202
        %v3480 = vunpack.c.l.b16 %v2203
        %v3481 = vunpack.c.h.b16 %v2203
        %v3482 = vunpack.c.l.b16 %v2204
        %v3483 = vunpack.c.h.b16 %v2204
        %v3484 = vunpack.c.l.b16 %v2205
        %v3485 = vunpack.c.h.b16 %v2205
        %v3486 = vunpack.c.l.b16 %v2206
        %v3487 = vunpack.c.h.b16 %v2206
        %v3488 = vunpack.c.l.b16 %v2207
        %v3489 = vunpack.c.h.b16 %v2207
        %v3490 = vunpack.c.l.b16 %v2208
        %v3491 = vunpack.c.h.b16 %v2208
        %v3492 = vunpack.c.l.b16 %v2209
        %v3493 = vunpack.c.h.b16 %v2209
        %v3494 = vunpack.c.l.b16 %v2210
        %v3495 = vunpack.c.h.b16 %v2210
        %v3496 = vunpack.c.l.b16 %v2211
        %v3497 = vunpack.c.h.b16 %v2211
        %v3498 = vunpack.c.l.b16 %v2212
        %v3499 = vunpack.c.h.b16 %v2212
        %v3500 = vunpack.c.l.b16 %v2213
        %v3501 = vunpack.c.h.b16 %v2213
        %v3502 = vunpack.c.l.b16 %v2214
        %v3503 = vunpack.c.h.b16 %v2214
        %v3504 = vunpack.c.l.b16 %v2215
        %v3505 = vunpack.c.h.b16 %v2215
        %v3506 = vunpack.c.l.b16 %v2216
        %v3507 = vunpack.c.h.b16 %v2216
        %v3508 = vunpack.c.l.b16 %v2217
        %v3509 = vunpack.c.h.b16 %v2217
        %v3510 = vunpack.c.l.b16 %v2218
        %v3511 = vunpack.c.h.b16 %v2218
        %v3512 = vunpack.c.l.b16 %v2219
        %v3513 = vunpack.c.h.b16 %v2219
        %v3514 = vunpack.c.l.b16 %v2220
        %v3515 = vunpack.c.h.b16 %v2220
        %v3516 = vunpack.c.l.b16 %v2221
        %v3517 = vunpack.c.h.b16 %v2221
        %v3518 = vunpack.c.l.b16 %v2222
        %v3519 = vunpack.c.h.b16 %v2222
        %v3520 = vunpack.c.l.b16 %v2223
        %v3521 = vunpack.c.h.b16 %v2223
        %v3522 = vunpack.c.l.b16 %v2224
        %v3523 = vunpack.c.h.b16 %v2224
        %v3524 = vunpack.c.l.b16 %v2225
        %v3525 = vunpack.c.h.b16 %v2225
        %v3526 = vunpack.c.l.b16 %v2226
        %v3527 = vunpack.c.h.b16 %v2226
        %v3528 = vunpack.c.l.b16 %v2227
        %v3529 = vunpack.c.h.b16 %v2227
        %v3530 = vunpack.c.l.b16 %v2228
        %v3531 = vunpack.c.h.b16 %v2228
        %v3532 = vunpack.c.l.b16 %v2229
        %v3533 = vunpack.c.h.b16 %v2229
        %v3534 = vunpack.c.l.b16 %v2230
        %v3535 = vunpack.c.h.b16 %v2230
        %v3536 = vunpack.c.l.b16 %v2231
        %v3537 = vunpack.c.h.b16 %v2231
        %v3538 = vunpack.c.l.b16 %v2232
        %v3539 = vunpack.c.h.b16 %v2232
        %v3540 = vunpack.c.l.b16 %v2233
        %v3541 = vunpack.c.h.b16 %v2233
        %v3542 = vunpack.c.l.b16 %v2234
        %v3543 = vunpack.c.h.b16 %v2234
        %v3544 = vunpack.c.l.b16 %v2235
        %v3545 = vunpack.c.h.b16 %v2235
        %v3546 = vunpack.c.l.b16 %v2236
        %v3547 = vunpack.c.h.b16 %v2236
        %v3548 = vunpack.c.l.b16 %v2237
        %v3549 = vunpack.c.h.b16 %v2237
        %v3550 = vunpack.c.l.b16 %v2238
        %v3551 = vunpack.c.h.b16 %v2238
        %v3552 = vunpack.c.l.b16 %v2239
        %v3553 = vunpack.c.h.b16 %v2239
        %v3554 = vunpack.c.l.b16 %v2240
        %v3555 = vunpack.c.h.b16 %v2240
        %v3556 = vunpack.c.l.b16 %v2241
        %v3557 = vunpack.c.h.b16 %v2241
        %v3558 = vunpack.c.l.b16 %v2242
        %v3559 = vunpack.c.h.b16 %v2242
        %v3560 = vunpack.c.l.b16 %v2243
        %v3561 = vunpack.c.h.b16 %v2243
        %v3562 = vunpack.c.l.b16 %v2244
        %v3563 = vunpack.c.h.b16 %v2244
        %v3564 = vunpack.c.l.b16 %v2245
        %v3565 = vunpack.c.h.b16 %v2245
        %v3566 = vunpack.c.l.b16 %v2246
        %v3567 = vunpack.c.h.b16 %v2246
        %v3568 = vunpack.c.l.b16 %v2247
        %v3569 = vunpack.c.h.b16 %v2247
        %v3570 = vunpack.c.l.b16 %v2248
        %v3571 = vunpack.c.h.b16 %v2248
        %v3572 = vunpack.c.l.b16 %v2249
        %v3573 = vunpack.c.h.b16 %v2249
        %v3574 = vunpack.c.l.b16 %v2250
        %v3575 = vunpack.c.h.b16 %v2250
        %v3576 = vunpack.c.l.b16 %v2251
        %v3577 = vunpack.c.h.b16 %v2251
        %v3578 = vunpack.c.l.b16 %v2252
        %v3579 = vunpack.c.h.b16 %v2252
        %v3580 = vunpack.c.l.b16 %v2253
        %v3581 = vunpack.c.h.b16 %v2253
        %v3582 = vunpack.c.l.b16 %v2254
        %v3583 = vunpack.c.h.b16 %v2254
        %v3584 = vunpack.c.l.b16 %v2255
        %v3585 = vunpack.c.h.b16 %v2255
        %v3586 = vunpack.c.l.b16 %v2256
        %v3587 = vunpack.c.h.b16 %v2256
        %v3588 = vunpack.c.l.b16 %v2257
        %v3589 = vunpack.c.h.b16 %v2257
        %v3590 = vunpack.c.l.b16 %v2258
        %v3591 = vunpack.c.h.b16 %v2258
        %v3592 = vunpack.c.l.b16 %v2259
        %v3593 = vunpack.c.h.b16 %v2259
        %v3594 = vunpack.c.l.b16 %v2260
        %v3595 = vunpack.c.h.b16 %v2260
        %v3596 = vunpack.c.l.b16 %v2261
        %v3597 = vunpack.c.h.b16 %v2261
        %v3598 = vunpack.c.l.b16 %v2262
        %v3599 = vunpack.c.h.b16 %v2262
        %v3600 = vunpack.c.l.b16 %v2263
        %v3601 = vunpack.c.h.b16 %v2263
        %v3602 = vunpack.c.l.b16 %v2264
        %v3603 = vunpack.c.h.b16 %v2264
        %v3604 = vunpack.c.l.b16 %v2265
        %v3605 = vunpack.c.h.b16 %v2265
        %v3606 = vunpack.c.l.b16 %v2266
        %v3607 = vunpack.c.h.b16 %v2266
        %v3608 = vunpack.c.l.b16 %v2267
        %v3609 = vunpack.c.h.b16 %v2267
        %v3610 = vunpack.c.l.b16 %v2268
        %v3611 = vunpack.c.h.b16 %v2268
        %v3612 = vunpack.c.l.b16 %v2269
        %v3613 = vunpack.c.h.b16 %v2269
        %v3614 = vunpack.c.l.b16 %v2270
        %v3615 = vunpack.c.h.b16 %v2270
        %v3616 = vunpack.c.l.b16 %v2271
        %v3617 = vunpack.c.h.b16 %v2271
        %v3618 = vunpack.c.l.b16 %v2272
        %v3619 = vunpack.c.h.b16 %v2272
        %v3620 = vunpack.c.l.b16 %v2273
        %v3621 = vunpack.c.h.b16 %v2273
        %v3622 = vunpack.c.l.b16 %v2274
        %v3623 = vunpack.c.h.b16 %v2274
        %v3624 = vunpack.c.l.b16 %v2275
        %v3625 = vunpack.c.h.b16 %v2275
        %v3626 = vunpack.c.l.b16 %v2276
        %v3627 = vunpack.c.h.b16 %v2276
        %v3628 = vunpack.c.l.b16 %v2277
        %v3629 = vunpack.c.h.b16 %v2277
        %v3630 = vunpack.c.l.b16 %v2278
        %v3631 = vunpack.c.h.b16 %v2278
        %v3632 = vunpack.c.l.b16 %v2279
        %v3633 = vunpack.c.h.b16 %v2279
        %v3634 = vunpack.c.l.b16 %v2280
        %v3635 = vunpack.c.h.b16 %v2280
        %v3636 = vunpack.c.l.b16 %v2281
        %v3637 = vunpack.c.h.b16 %v2281
        %v3638 = vunpack.c.l.b16 %v2282
        %v3639 = vunpack.c.h.b16 %v2282
        %v3640 = vunpack.c.l.b16 %v2283
        %v3641 = vunpack.c.h.b16 %v2283
        %v3642 = vunpack.c.l.b16 %v2284
        %v3643 = vunpack.c.h.b16 %v2284
        %v3644 = vunpack.c.l.b16 %v2285
        %v3645 = vunpack.c.h.b16 %v2285
        %v3646 = vunpack.c.l.b16 %v2286
        %v3647 = vunpack.c.h.b16 %v2286
        %v3648 = vunpack.c.l.b16 %v2287
        %v3649 = vunpack.c.h.b16 %v2287
        %v3650 = vunpack.c.l.b16 %v2288
        %v3651 = vunpack.c.h.b16 %v2288
        %v3652 = vunpack.c.l.b16 %v2289
        %v3653 = vunpack.c.h.b16 %v2289
        %v3654 = vunpack.c.l.b16 %v2290
        %v3655 = vunpack.c.h.b16 %v2290
        %v3656 = vunpack.c.l.b16 %v2291
        %v3657 = vunpack.c.h.b16 %v2291
        %v3658 = vunpack.c.l.b16 %v2292
        %v3659 = vunpack.c.h.b16 %v2292
        %v3660 = vunpack.c.l.b16 %v2293
        %v3661 = vunpack.c.h.b16 %v2293
        %v3662 = vunpack.c.l.b16 %v2294
        %v3663 = vunpack.c.h.b16 %v2294
        %v3664 = vunpack.c.l.b16 %v2295
        %v3665 = vunpack.c.h.b16 %v2295
        %v3666 = vunpack.c.l.b16 %v2296
        %v3667 = vunpack.c.h.b16 %v2296
        %v3668 = vunpack.c.l.b16 %v2297
        %v3669 = vunpack.c.h.b16 %v2297
        %v3670 = vunpack.c.l.b16 %v2298
        %v3671 = vunpack.c.h.b16 %v2298
        %v3672 = vunpack.c.l.b16 %v2299
        %v3673 = vunpack.c.h.b16 %v2299
        %v3674 = vunpack.c.l.b16 %v2300
        %v3675 = vunpack.c.h.b16 %v2300
        %v3676 = vunpack.c.l.b16 %v2301
        %v3677 = vunpack.c.h.b16 %v2301
        %v3678 = vunpack.c.l.b16 %v2302
        %v3679 = vunpack.c.h.b16 %v2302
        %v3680 = vpack.c.b16 %v2898, %v2896
        %v3681 = vpack.c.b16 %v2899, %v2897
        %v3682 = vpack.c.b16 %v2902, %v2900
        %v3683 = vpack.c.b16 %v2903, %v2901
        %v3684 = vpack.c.b16 %v2906, %v2904
        %v3685 = vpack.c.b16 %v2907, %v2905
        %v3686 = vpack.c.b16 %v2910, %v2908
        %v3687 = vpack.c.b16 %v2911, %v2909
        %v3688 = vpack.c.b16 %v2914, %v2912
        %v3689 = vpack.c.b16 %v2915, %v2913
        %v3690 = vpack.c.b16 %v2918, %v2916
        %v3691 = vpack.c.b16 %v2919, %v2917
        %v3692 = vpack.c.b16 %v2922, %v2920
        %v3693 = vpack.c.b16 %v2923, %v2921
        %v3694 = vpack.c.b16 %v2926, %v2924
        %v3695 = vpack.c.b16 %v2927, %v2925
        %v3696 = vpack.c.b16 %v2930, %v2928
        %v3697 = vpack.c.b16 %v2931, %v2929
        %v3698 = vpack.c.b16 %v2934, %v2932
        %v3699 = vpack.c.b16 %v2935, %v2933
        %v3700 = vpack.c.b16 %v2938, %v2936
        %v3701 = vpack.c.b16 %v2939, %v2937
        %v3702 = vpack.c.b16 %v2942, %v2940
        %v3703 = vpack.c.b16 %v2943, %v2941
        %v3704 = vpack.c.b16 %v2946, %v2944
        %v3705 = vpack.c.b16 %v2947, %v2945
        %v3706 = vpack.c.b16 %v2950, %v2948
        %v3707 = vpack.c.b16 %v2951, %v2949
        %v3708 = vpack.c.b16 %v2954, %v2952
        %v3709 = vpack.c.b16 %v2955, %v2953
        %v3710 = vpack.c.b16 %v2958, %v2956
        %v3711 = vpack.c.b16 %v2959, %v2957
        %v3712 = vpack.c.b16 %v2962, %v2960
        %v3713 = vpack.c.b16 %v2963, %v2961
        %v3714 = vpack.c.b16 %v2966, %v2964
        %v3715 = vpack.c.b16 %v2967, %v2965
        %v3716 = vpack.c.b16 %v2970, %v2968
        %v3717 = vpack.c.b16 %v2971, %v2969
        %v3718 = vpack.c.b16 %v2974, %v2972
        %v3719 = vpack.c.b16 %v2975, %v2973
        %v3720 = vpack.c.b16 %v2978, %v2976
        %v3721 = vpack.c.b16 %v2979, %v2977
        %v3722 = vpack.c.b16 %v2982, %v2980
        %v3723 = vpack.c.b16 %v2983, %v2981
        %v3724 = vpack.c.b16 %v2986, %v2984
        %v3725 = vpack.c.b16 %v2987, %v2985
        %v3726 = vpack.c.b16 %v2990, %v2988
        %v3727 = vpack.c.b16 %v2991, %v2989
        %v3728 = vpack.c.b16 %v2994, %v2992
        %v3729 = vpack.c.b16 %v2995, %v2993
        %v3730 = vpack.c.b16 %v2998, %v2996
        %v3731 = vpack.c.b16 %v2999, %v2997
        %v3732 = vpack.c.b16 %v3002, %v3000
        %v3733 = vpack.c.b16 %v3003, %v3001
        %v3734 = vpack.c.b16 %v3006, %v3004
        %v3735 = vpack.c.b16 %v3007, %v3005
        %v3736 = vpack.c.b16 %v3010, %v3008
        %v3737 = vpack.c.b16 %v3011, %v3009
        %v3738 = vpack.c.b16 %v3014, %v3012
        %v3739 = vpack.c.b16 %v3015, %v3013
        %v3740 = vpack.c.b16 %v3018, %v3016
        %v3741 = vpack.c.b16 %v3019, %v3017
        %v3742 = vpack.c.b16 %v3022, %v3020
        %v3743 = vpack.c.b16 %v3023, %v3021
        %v3744 = vpack.c.b16 %v3026, %v3024
        %v3745 = vpack.c.b16 %v3027, %v3025
        %v3746 = vpack.c.b16 %v3030, %v3028
        %v3747 = vpack.c.b16 %v3031, %v3029
        %v3748 = vpack.c.b16 %v3034, %v3032
        %v3749 = vpack.c.b16 %v3035, %v3033
        %v3750 = vpack.c.b16 %v3038, %v3036
        %v3751 = vpack.c.b16 %v3039, %v3037
        %v3752 = vpack.c.b16 %v3042, %v3040
        %v3753 = vpack.c.b16 %v3043, %v3041
        %v3754 = vpack.c.b16 %v3046, %v3044
        %v3755 = vpack.c.b16 %v3047, %v3045
        %v3756 = vpack.c.b16 %v3050, %v3048
        %v3757 = vpack.c.b16 %v3051, %v3049
        %v3758 = vpack.c.b16 %v3054, %v3052
        %v3759 = vpack.c.b16 %v3055, %v3053
        %v3760 = vpack.c.b16 %v3058, %v3056
        %v3761 = vpack.c.b16 %v3059, %v3057
        %v3762 = vpack.c.b16 %v3062, %v3060
        %v3763 = vpack.c.b16 %v3063, %v3061
        %v3764 = vpack.c.b16 %v3066, %v3064
        %v3765 = vpack.c.b16 %v3067, %v3065
        %v3766 = vpack.c.b16 %v3070, %v3068
        %v3767 = vpack.c.b16 %v3071, %v3069
        %v3768 = vpack.c.b16 %v3074, %v3072
        %v3769 = vpack.c.b16 %v3075, %v3073
        %v3770 = vpack.c.b16 %v3078, %v3076
        %v3771 = vpack.c.b16 %v3079, %v3077
        %v3772 = vpack.c.b16 %v3082, %v3080
        %v3773 = vpack.c.b16 %v3083, %v3081
        %v3774 = vpack.c.b16 %v3086, %v3084
        %v3775 = vpack.c.b16 %v3087, %v3085
        %v3776 = vpack.c.b16 %v3090, %v3088
        %v3777 = vpack.c.b16 %v3091, %v3089
        %v3778 = vpack.c.b16 %v3094, %v3092
        %v3779 = vpack.c.b16 %v3095, %v3093
        %v3780 = vpack.c.b16 %v3098, %v3096
        %v3781 = vpack.c.b16 %v3099, %v3097
        %v3782 = vpack.c.b16 %v3102, %v3100
        %v3783 = vpack.c.b16 %v3103, %v3101
        %v3784 = vpack.c.b16 %v3106, %v3104
        %v3785 = vpack.c.b16 %v3107, %v3105
        %v3786 = vpack.c.b16 %v3110, %v3108
        %v3787 = vpack.c.b16 %v3111, %v3109
        %v3788 = vpack.c.b16 %v3114, %v3112
        %v3789 = vpack.c.b16 %v3115, %v3113
        %v3790 = vpack.c.b16 %v3118, %v3116
        %v3791 = vpack.c.b16 %v3119, %v3117
        %v3792 = vpack.c.b16 %v3122, %v3120
        %v3793 = vpack.c.b16 %v3123, %v3121
        %v3794 = vpack.c.b16 %v3126, %v3124
        %v3795 = vpack.c.b16 %v3127, %v3125
        %v3796 = vpack.c.b16 %v3130, %v3128
        %v3797 = vpack.c.b16 %v3131, %v3129
        %v3798 = vpack.c.b16 %v3134, %v3132
        %v3799 = vpack.c.b16 %v3135, %v3133
        %v3800 = vpack.c.b16 %v3138, %v3136
        %v3801 = vpack.c.b16 %v3139, %v3137
        %v3802 = vpack.c.b16 %v3142, %v3140
        %v3803 = vpack.c.b16 %v3143, %v3141
        %v3804 = vpack.c.b16 %v3146, %v3144
        %v3805 = vpack.c.b16 %v3147, %v3145
        %v3806 = vpack.c.b16 %v3150, %v3148
        %v3807 = vpack.c.b16 %v3151, %v3149
        %v3808 = vpack.c.b16 %v3154, %v3152
        %v3809 = vpack.c.b16 %v3155, %v3153
        %v3810 = vpack.c.b16 %v3158, %v3156
        %v3811 = vpack.c.b16 %v3159, %v3157
        %v3812 = vpack.c.b16 %v3162, %v3160
        %v3813 = vpack.c.b16 %v3163, %v3161
        %v3814 = vpack.c.b16 %v3166, %v3164
        %v3815 = vpack.c.b16 %v3167, %v3165
        %v3816 = vpack.c.b16 %v3170, %v3168
        %v3817 = vpack.c.b16 %v3171, %v3169
        %v3818 = vpack.c.b16 %v3174, %v3172
        %v3819 = vpack.c.b16 %v3175, %v3173
        %v3820 = vpack.c.b16 %v3178, %v3176
        %v3821 = vpack.c.b16 %v3179, %v3177
        %v3822 = vpack.c.b16 %v3182, %v3180
        %v3823 = vpack.c.b16 %v3183, %v3181
        %v3824 = vpack.c.b16 %v3186, %v3184
        %v3825 = vpack.c.b16 %v3187, %v3185
        %v3826 = vpack.c.b16 %v3190, %v3188
        %v3827 = vpack.c.b16 %v3191, %v3189
        %v3828 = vpack.c.b16 %v3194, %v3192
        %v3829 = vpack.c.b16 %v3195, %v3193
        %v3830 = vpack.c.b16 %v3198, %v3196
        %v3831 = vpack.c.b16 %v3199, %v3197
        %v3832 = vpack.c.b16 %v3202, %v3200
        %v3833 = vpack.c.b16 %v3203, %v3201
        %v3834 = vpack.c.b16 %v3206, %v3204
        %v3835 = vpack.c.b16 %v3207, %v3205
        %v3836 = vpack.c.b16 %v3210, %v3208
        %v3837 = vpack.c.b16 %v3211, %v3209
        %v3838 = vpack.c.b16 %v3214, %v3212
        %v3839 = vpack.c.b16 %v3215, %v3213
        %v3840 = vpack.c.b16 %v3218, %v3216
        %v3841 = vpack.c.b16 %v3219, %v3217
        %v3842 = vpack.c.b16 %v3222, %v3220
        %v3843 = vpack.c.b16 %v3223, %v3221
        %v3844 = vpack.c.b16 %v3226, %v3224
        %v3845 = vpack.c.b16 %v3227, %v3225
        %v3846 = vpack.c.b16 %v3230, %v3228
        %v3847 = vpack.c.b16 %v3231, %v3229
        %v3848 = vpack.c.b16 %v3234, %v3232
        %v3849 = vpack.c.b16 %v3235, %v3233
        %v3850 = vpack.c.b16 %v3238, %v3236
        %v3851 = vpack.c.b16 %v3239, %v3237
        %v3852 = vpack.c.b16 %v3242, %v3240
        %v3853 = vpack.c.b16 %v3243, %v3241
        %v3854 = vpack.c.b16 %v3246, %v3244
        %v3855 = vpack.c.b16 %v3247, %v3245
        %v3856 = vpack.c.b16 %v3250, %v3248
        %v3857 = vpack.c.b16 %v3251, %v3249
        %v3858 = vpack.c.b16 %v3254, %v3252
        %v3859 = vpack.c.b16 %v3255, %v3253
        %v3860 = vpack.c.b16 %v3258, %v3256
        %v3861 = vpack.c.b16 %v3259, %v3257
        %v3862 = vpack.c.b16 %v3262, %v3260
        %v3863 = vpack.c.b16 %v3263, %v3261
        %v3864 = vpack.c.b16 %v3266, %v3264
        %v3865 = vpack.c.b16 %v3267, %v3265
        %v3866 = vpack.c.b16 %v3270, %v3268
        %v3867 = vpack.c.b16 %v3271, %v3269
        %v3868 = vpack.c.b16 %v3274, %v3272
        %v3869 = vpack.c.b16 %v3275, %v3273
        %v3870 = vpack.c.b16 %v3278, %v3276
        %v3871 = vpack.c.b16 %v3279, %v3277
        %v3872 = vpack.c.b16 %v3282, %v3280
        %v3873 = vpack.c.b16 %v3283, %v3281
        %v3874 = vpack.c.b16 %v3286, %v3284
        %v3875 = vpack.c.b16 %v3287, %v3285
        %v3876 = vpack.c.b16 %v3290, %v3288
        %v3877 = vpack.c.b16 %v3291, %v3289
        %v3878 = vpack.c.b16 %v3294, %v3292
        %v3879 = vpack.c.b16 %v3295, %v3293
        %v3880 = vpack.c.b16 %v3298, %v3296
        %v3881 = vpack.c.b16 %v3299, %v3297
        %v3882 = vpack.c.b16 %v3302, %v3300
        %v3883 = vpack.c.b16 %v3303, %v3301
        %v3884 = vpack.c.b16 %v3306, %v3304
        %v3885 = vpack.c.b16 %v3307, %v3305
        %v3886 = vpack.c.b16 %v3310, %v3308
        %v3887 = vpack.c.b16 %v3311, %v3309
        %v3888 = vpack.c.b16 %v3314, %v3312
        %v3889 = vpack.c.b16 %v3315, %v3313
        %v3890 = vpack.c.b16 %v3318, %v3316
        %v3891 = vpack.c.b16 %v3319, %v3317
        %v3892 = vpack.c.b16 %v3322, %v3320
        %v3893 = vpack.c.b16 %v3323, %v3321
        %v3894 = vpack.c.b16 %v3326, %v3324
        %v3895 = vpack.c.b16 %v3327, %v3325
        %v3896 = vpack.c.b16 %v3330, %v3328
        %v3897 = vpack.c.b16 %v3331, %v3329
        %v3898 = vpack.c.b16 %v3334, %v3332
        %v3899 = vpack.c.b16 %v3335, %v3333
        %v3900 = vpack.c.b16 %v3338, %v3336
        %v3901 = vpack.c.b16 %v3339, %v3337
        %v3902 = vpack.c.b16 %v3342, %v3340
        %v3903 = vpack.c.b16 %v3343, %v3341
        %v3904 = vpack.c.b16 %v3346, %v3344
        %v3905 = vpack.c.b16 %v3347, %v3345
        %v3906 = vpack.c.b16 %v3350, %v3348
        %v3907 = vpack.c.b16 %v3351, %v3349
        %v3908 = vpack.c.b16 %v3354, %v3352
        %v3909 = vpack.c.b16 %v3355, %v3353
        %v3910 = vpack.c.b16 %v3358, %v3356
        %v3911 = vpack.c.b16 %v3359, %v3357
        %v3912 = vpack.c.b16 %v3362, %v3360
        %v3913 = vpack.c.b16 %v3363, %v3361
        %v3914 = vpack.c.b16 %v3366, %v3364
        %v3915 = vpack.c.b16 %v3367, %v3365
        %v3916 = vpack.c.b16 %v3370, %v3368
        %v3917 = vpack.c.b16 %v3371, %v3369
        %v3918 = vpack.c.b16 %v3374, %v3372
        %v3919 = vpack.c.b16 %v3375, %v3373
        %v3920 = vpack.c.b16 %v3378, %v3376
        %v3921 = vpack.c.b16 %v3379, %v3377
        %v3922 = vpack.c.b16 %v3382, %v3380
        %v3923 = vpack.c.b16 %v3383, %v3381
        %v3924 = vpack.c.b16 %v3386, %v3384
        %v3925 = vpack.c.b16 %v3387, %v3385
        %v3926 = vpack.c.b16 %v3390, %v3388
        %v3927 = vpack.c.b16 %v3391, %v3389
        %v3928 = vpack.c.b16 %v3394, %v3392
        %v3929 = vpack.c.b16 %v3395, %v3393
        %v3930 = vpack.c.b16 %v3398, %v3396
        %v3931 = vpack.c.b16 %v3399, %v3397
        %v3932 = vpack.c.b16 %v3402, %v3400
        %v3933 = vpack.c.b16 %v3403, %v3401
        %v3934 = vpack.c.b16 %v3406, %v3404
        %v3935 = vpack.c.b16 %v3407, %v3405
        %v3936 = vpack.c.b16 %v3410, %v3408
        %v3937 = vpack.c.b16 %v3411, %v3409
        %v3938 = vpack.c.b16 %v3414, %v3412
        %v3939 = vpack.c.b16 %v3415, %v3413
        %v3940 = vpack.c.b16 %v3418, %v3416
        %v3941 = vpack.c.b16 %v3419, %v3417
        %v3942 = vpack.c.b16 %v3422, %v3420
        %v3943 = vpack.c.b16 %v3423, %v3421
        %v3944 = vpack.c.b16 %v3426, %v3424
        %v3945 = vpack.c.b16 %v3427, %v3425
        %v3946 = vpack.c.b16 %v3430, %v3428
        %v3947 = vpack.c.b16 %v3431, %v3429
        %v3948 = vpack.c.b16 %v3434, %v3432
        %v3949 = vpack.c.b16 %v3435, %v3433
        %v3950 = vpack.c.b16 %v3438, %v3436
        %v3951 = vpack.c.b16 %v3439, %v3437
        %v3952 = vpack.c.b16 %v3442, %v3440
        %v3953 = vpack.c.b16 %v3443, %v3441
        %v3954 = vpack.c.b16 %v3446, %v3444
        %v3955 = vpack.c.b16 %v3447, %v3445
        %v3956 = vpack.c.b16 %v3450, %v3448
        %v3957 = vpack.c.b16 %v3451, %v3449
        %v3958 = vpack.c.b16 %v3454, %v3452
        %v3959 = vpack.c.b16 %v3455, %v3453
        %v3960 = vpack.c.b16 %v3458, %v3456
        %v3961 = vpack.c.b16 %v3459, %v3457
        %v3962 = vpack.c.b16 %v3462, %v3460
        %v3963 = vpack.c.b16 %v3463, %v3461
        %v3964 = vpack.c.b16 %v3466, %v3464
        %v3965 = vpack.c.b16 %v3467, %v3465
        %v3966 = vpack.c.b16 %v3470, %v3468
        %v3967 = vpack.c.b16 %v3471, %v3469
        %v3968 = vpack.c.b16 %v3474, %v3472
        %v3969 = vpack.c.b16 %v3475, %v3473
        %v3970 = vpack.c.b16 %v3478, %v3476
        %v3971 = vpack.c.b16 %v3479, %v3477
        %v3972 = vpack.c.b16 %v3482, %v3480
        %v3973 = vpack.c.b16 %v3483, %v3481
        %v3974 = vpack.c.b16 %v3486, %v3484
        %v3975 = vpack.c.b16 %v3487, %v3485
        %v3976 = vpack.c.b16 %v3490, %v3488
        %v3977 = vpack.c.b16 %v3491, %v3489
        %v3978 = vpack.c.b16 %v3494, %v3492
        %v3979 = vpack.c.b16 %v3495, %v3493
        %v3980 = vpack.c.b16 %v3498, %v3496
        %v3981 = vpack.c.b16 %v3499, %v3497
        %v3982 = vpack.c.b16 %v3502, %v3500
        %v3983 = vpack.c.b16 %v3503, %v3501
        %v3984 = vpack.c.b16 %v3506, %v3504
        %v3985 = vpack.c.b16 %v3507, %v3505
        %v3986 = vpack.c.b16 %v3510, %v3508
        %v3987 = vpack.c.b16 %v3511, %v3509
        %v3988 = vpack.c.b16 %v3514, %v3512
        %v3989 = vpack.c.b16 %v3515, %v3513
        %v3990 = vpack.c.b16 %v3518, %v3516
        %v3991 = vpack.c.b16 %v3519, %v3517
        %v3992 = vpack.c.b16 %v3522, %v3520
        %v3993 = vpack.c.b16 %v3523, %v3521
        %v3994 = vpack.c.b16 %v3526, %v3524
        %v3995 = vpack.c.b16 %v3527, %v3525
        %v3996 = vpack.c.b16 %v3530, %v3528
        %v3997 = vpack.c.b16 %v3531, %v3529
        %v3998 = vpack.c.b16 %v3534, %v3532
        %v3999 = vpack.c.b16 %v3535, %v3533
        %v4000 = vpack.c.b16 %v3538, %v3536
        %v4001 = vpack.c.b16 %v3539, %v3537
        %v4002 = vpack.c.b16 %v3542, %v3540
        %v4003 = vpack.c.b16 %v3543, %v3541
        %v4004 = vpack.c.b16 %v3546, %v3544
        %v4005 = vpack.c.b16 %v3547, %v3545
        %v4006 = vpack.c.b16 %v3550, %v3548
        %v4007 = vpack.c.b16 %v3551, %v3549
        %v4008 = vpack.c.b16 %v3554, %v3552
        %v4009 = vpack.c.b16 %v3555, %v3553
        %v4010 = vpack.c.b16 %v3558, %v3556
        %v4011 = vpack.c.b16 %v3559, %v3557
        %v4012 = vpack.c.b16 %v3562, %v3560
        %v4013 = vpack.c.b16 %v3563, %v3561
        %v4014 = vpack.c.b16 %v3566, %v3564
        %v4015 = vpack.c.b16 %v3567, %v3565
        %v4016 = vpack.c.b16 %v3570, %v3568
        %v4017 = vpack.c.b16 %v3571, %v3569
        %v4018 = vpack.c.b16 %v3574, %v3572
        %v4019 = vpack.c.b16 %v3575, %v3573
        %v4020 = vpack.c.b16 %v3578, %v3576
        %v4021 = vpack.c.b16 %v3579, %v3577
        %v4022 = vpack.c.b16 %v3582, %v3580
        %v4023 = vpack.c.b16 %v3583, %v3581
        %v4024 = vpack.c.b16 %v3586, %v3584
        %v4025 = vpack.c.b16 %v3587, %v3585
        %v4026 = vpack.c.b16 %v3590, %v3588
        %v4027 = vpack.c.b16 %v3591, %v3589
        %v4028 = vpack.c.b16 %v3594, %v3592
        %v4029 = vpack.c.b16 %v3595, %v3593
        %v4030 = vpack.c.b16 %v3598, %v3596
        %v4031 = vpack.c.b16 %v3599, %v3597
        %v4032 = vpack.c.b16 %v3602, %v3600
        %v4033 = vpack.c.b16 %v3603, %v3601
        %v4034 = vpack.c.b16 %v3606, %v3604
        %v4035 = vpack.c.b16 %v3607, %v3605
        %v4036 = vpack.c.b16 %v3610, %v3608
        %v4037 = vpack.c.b16 %v3611, %v3609
        %v4038 = vpack.c.b16 %v3614, %v3612
        %v4039 = vpack.c.b16 %v3615, %v3613
        %v4040 = vpack.c.b16 %v3618, %v3616
        %v4041 = vpack.c.b16 %v3619, %v3617
        %v4042 = vpack.c.b16 %v3622, %v3620
        %v4043 = vpack.c.b16 %v3623, %v3621
        %v4044 = vpack.c.b16 %v3626, %v3624
        %v4045 = vpack.c.b16 %v3627, %v3625
        %v4046 = vpack.c.b16 %v3630, %v3628
        %v4047 = vpack.c.b16 %v3631, %v3629
        %v4048 = vpack.c.b16 %v3634, %v3632
        %v4049 = vpack.c.b16 %v3635, %v3633
        %v4050 = vpack.c.b16 %v3638, %v3636
        %v4051 = vpack.c.b16 %v3639, %v3637
        %v4052 = vpack.c.b16 %v3642, %v3640
        %v4053 = vpack.c.b16 %v3643, %v3641
        %v4054 = vpack.c.b16 %v3646, %v3644
        %v4055 = vpack.c.b16 %v3647, %v3645
        %v4056 = vpack.c.b16 %v3650, %v3648
        %v4057 = vpack.c.b16 %v3651, %v3649
        %v4058 = vpack.c.b16 %v3654, %v3652
        %v4059 = vpack.c.b16 %v3655, %v3653
        %v4060 = vpack.c.b16 %v3658, %v3656
        %v4061 = vpack.c.b16 %v3659, %v3657
        %v4062 = vpack.c.b16 %v3662, %v3660
        %v4063 = vpack.c.b16 %v3663, %v3661
        %v4064 = vpack.c.b16 %v3666, %v3664
        %v4065 = vpack.c.b16 %v3667, %v3665
        %v4066 = vpack.c.b16 %v3670, %v3668
        %v4067 = vpack.c.b16 %v3671, %v3669
        %v4068 = vpack.c.b16 %v3674, %v3672
        %v4069 = vpack.c.b16 %v3675, %v3673
        %v4070 = vpack.c.b16 %v3678, %v3676
        %v4071 = vpack.c.b16 %v3679, %v3677
        %vm4464 = vcmask 523264
        %v4466 = vsel %vm4464, %v2479, 0
        %4468 = vmatprep.subr.bf16.mxu0 %v3695
        %4469 = vmatpush1.bf16.msra.mxu0 %v3694
        %4470 = vmatprep.subr.bf16.mxu0 %v3693
        %4471 = vmatpush1.bf16.msra.mxu0 %v3692
        %4472 = vmatprep.subr.bf16.mxu0 %v3691
        %4473 = vmatpush1.bf16.msra.mxu0 %v3690
        %4474 = vmatprep.subr.bf16.mxu0 %v3689
        %4475 = vmatpush1.bf16.msra.mxu0 %v3688
        %4476 = vmatprep.subr.bf16.mxu0 %v3687
        %4477 = vmatpush1.bf16.msra.mxu0 %v3686
        %4478 = vmatprep.subr.bf16.mxu0 %v3685
        %4479 = vmatpush1.bf16.msra.mxu0 %v3684
        %4480 = vmatprep.subr.bf16.mxu0 %v3683
        %4481 = vmatpush1.bf16.msra.mxu0 %v3682
        %4482 = vmatprep.subr.bf16.mxu0 %v3681
        %4483 = vmatpush1.bf16.msra.mxu0 %v3680
        %4484 = vmatprep.subr.bf16.mxu0 %v3711
        %4485 = vmatpush2.bf16.msra.mxu0 %v3710
        %4486 = vmatprep.subr.bf16.mxu0 %v3709
        %4487 = vmatpush2.bf16.msra.mxu0 %v3708
        %4488 = vmatprep.subr.bf16.mxu0 %v3707
        %4489 = vmatpush2.bf16.msra.mxu0 %v3706
        %4490 = vmatprep.subr.bf16.mxu0 %v3705
        %4491 = vmatpush2.bf16.msra.mxu0 %v3704
        %4492 = vmatprep.subr.bf16.mxu0 %v3703
        %4493 = vmatpush2.bf16.msra.mxu0 %v3702
        %4494 = vmatprep.subr.bf16.mxu0 %v3701
        %4495 = vmatpush2.bf16.msra.mxu0 %v3700
        %4496 = vmatprep.subr.bf16.mxu0 %v3699
        %4497 = vmatpush2.bf16.msra.mxu0 %v3698
        %4498 = vmatprep.subr.bf16.mxu0 %v3697
        %4499 = vmatpush2.bf16.msra.mxu0 %v3696
        %4500 = vmatprep.mubr.bf16.mxu0 %v2356
        %4501 = vmatmul.mubr.bf16.gmra.mxu0 %v2342
        %v4502 = vpop.f32.mrf.mxu0
        %v4503 = vadd.f32 %v2308, %v4502
        %v4504 = vpop.f32.mrf.mxu0
        %v4505 = vadd.f32 %v2312, %v4504
        %v4506 = vpop.f32.mrf.mxu0
        %v4507 = vpop.f32.mrf.mxu0
        %4508 = vdwg.mxu0
        %4509 = vmatprep.subr.bf16.mxu0 %v3727
        %4510 = vmatpush1.bf16.msra.mxu0 %v3726
        %4511 = vmatprep.subr.bf16.mxu0 %v3725
        %4512 = vmatpush1.bf16.msra.mxu0 %v3724
        %4513 = vmatprep.subr.bf16.mxu0 %v3723
        %4514 = vmatpush1.bf16.msra.mxu0 %v3722
        %4515 = vmatprep.subr.bf16.mxu0 %v3721
        %4516 = vmatpush1.bf16.msra.mxu0 %v3720
        %4517 = vmatprep.subr.bf16.mxu0 %v3719
        %4518 = vmatpush1.bf16.msra.mxu0 %v3718
        %4519 = vmatprep.subr.bf16.mxu0 %v3717
        %4520 = vmatpush1.bf16.msra.mxu0 %v3716
        %4521 = vmatprep.subr.bf16.mxu0 %v3715
        %4522 = vmatpush1.bf16.msra.mxu0 %v3714
        %4523 = vmatprep.subr.bf16.mxu0 %v3713
        %4524 = vmatpush1.bf16.msra.mxu0 %v3712
        %4525 = vmatprep.subr.bf16.mxu0 %v3743
        %4526 = vmatpush2.bf16.msra.mxu0 %v3742
        %4527 = vmatprep.subr.bf16.mxu0 %v3741
        %4528 = vmatpush2.bf16.msra.mxu0 %v3740
        %4529 = vmatprep.subr.bf16.mxu0 %v3739
        %4530 = vmatpush2.bf16.msra.mxu0 %v3738
        %4531 = vmatprep.subr.bf16.mxu0 %v3737
        %4532 = vmatpush2.bf16.msra.mxu0 %v3736
        %4533 = vmatprep.subr.bf16.mxu0 %v3735
        %4534 = vmatpush2.bf16.msra.mxu0 %v3734
        %4535 = vmatprep.subr.bf16.mxu0 %v3733
        %4536 = vmatpush2.bf16.msra.mxu0 %v3732
        %4537 = vmatprep.subr.bf16.mxu0 %v3731
        %4538 = vmatpush2.bf16.msra.mxu0 %v3730
        %4539 = vmatprep.subr.bf16.mxu0 %v3729
        %4540 = vmatpush2.bf16.msra.mxu0 %v3728
        %4541 = vmatprep.mubr.bf16.mxu0 %v2366
        %4542 = vmatmul.mubr.bf16.gmra.mxu0 %v2364
        %v4543 = vpop.f32.mrf.mxu0
        %v4544 = vadd.f32 %v4503, %v4543
        %v4545 = vpop.f32.mrf.mxu0
        %v4546 = vadd.f32 %v4505, %v4545
        %v4547 = vpop.f32.mrf.mxu0
        %v4548 = vpop.f32.mrf.mxu0
        %4549 = vdwg.mxu0
        %4550 = vmatprep.subr.bf16.mxu0 %v3759
        %4551 = vmatpush1.bf16.msra.mxu0 %v3758
        %4552 = vmatprep.subr.bf16.mxu0 %v3757
        %4553 = vmatpush1.bf16.msra.mxu0 %v3756
        %4554 = vmatprep.subr.bf16.mxu0 %v3755
        %4555 = vmatpush1.bf16.msra.mxu0 %v3754
        %4556 = vmatprep.subr.bf16.mxu0 %v3753
        %4557 = vmatpush1.bf16.msra.mxu0 %v3752
        %4558 = vmatprep.subr.bf16.mxu0 %v3751
        %4559 = vmatpush1.bf16.msra.mxu0 %v3750
        %4560 = vmatprep.subr.bf16.mxu0 %v3749
        %4561 = vmatpush1.bf16.msra.mxu0 %v3748
        %4562 = vmatprep.subr.bf16.mxu0 %v3747
        %4563 = vmatpush1.bf16.msra.mxu0 %v3746
        %4564 = vmatprep.subr.bf16.mxu0 %v3745
        %4565 = vmatpush1.bf16.msra.mxu0 %v3744
        %4566 = vmatprep.subr.bf16.mxu0 %v3775
        %4567 = vmatpush2.bf16.msra.mxu0 %v3774
        %4568 = vmatprep.subr.bf16.mxu0 %v3773
        %4569 = vmatpush2.bf16.msra.mxu0 %v3772
        %4570 = vmatprep.subr.bf16.mxu0 %v3771
        %4571 = vmatpush2.bf16.msra.mxu0 %v3770
        %4572 = vmatprep.subr.bf16.mxu0 %v3769
        %4573 = vmatpush2.bf16.msra.mxu0 %v3768
        %4574 = vmatprep.subr.bf16.mxu0 %v3767
        %4575 = vmatpush2.bf16.msra.mxu0 %v3766
        %4576 = vmatprep.subr.bf16.mxu0 %v3765
        %4577 = vmatpush2.bf16.msra.mxu0 %v3764
        %4578 = vmatprep.subr.bf16.mxu0 %v3763
        %4579 = vmatpush2.bf16.msra.mxu0 %v3762
        %4580 = vmatprep.subr.bf16.mxu0 %v3761
        %4581 = vmatpush2.bf16.msra.mxu0 %v3760
        %4582 = vmatprep.mubr.bf16.mxu0 %v2363
        %4583 = vmatmul.mubr.bf16.gmra.mxu0 %v2349
        %v4584 = vpop.f32.mrf.mxu0
        %v4585 = vadd.f32 %v4544, %v4584
        %v4586 = vpop.f32.mrf.mxu0
        %v4587 = vadd.f32 %v4546, %v4586
        %v4588 = vpop.f32.mrf.mxu0
        %v4589 = vpop.f32.mrf.mxu0
        %4590 = vdwg.mxu0
        %4591 = vmatprep.subr.bf16.mxu0 %v3791
        %4592 = vmatpush1.bf16.msra.mxu0 %v3790
        %4593 = vmatprep.subr.bf16.mxu0 %v3789
        %4594 = vmatpush1.bf16.msra.mxu0 %v3788
        %4595 = vmatprep.subr.bf16.mxu0 %v3787
        %4596 = vmatpush1.bf16.msra.mxu0 %v3786
        %4597 = vmatprep.subr.bf16.mxu0 %v3785
        %4598 = vmatpush1.bf16.msra.mxu0 %v3784
        %4599 = vmatprep.subr.bf16.mxu0 %v3783
        %4600 = vmatpush1.bf16.msra.mxu0 %v3782
        %4601 = vmatprep.subr.bf16.mxu0 %v3781
        %4602 = vmatpush1.bf16.msra.mxu0 %v3780
        %4603 = vmatprep.subr.bf16.mxu0 %v3779
        %4604 = vmatpush1.bf16.msra.mxu0 %v3778
        %4605 = vmatprep.subr.bf16.mxu0 %v3777
        %4606 = vmatpush1.bf16.msra.mxu0 %v3776
        %4607 = vmatprep.subr.bf16.mxu0 %v3807
        %4608 = vmatpush2.bf16.msra.mxu0 %v3806
        %4609 = vmatprep.subr.bf16.mxu0 %v3805
        %4610 = vmatpush2.bf16.msra.mxu0 %v3804
        %4611 = vmatprep.subr.bf16.mxu0 %v3803
        %4612 = vmatpush2.bf16.msra.mxu0 %v3802
        %4613 = vmatprep.subr.bf16.mxu0 %v3801
        %4614 = vmatpush2.bf16.msra.mxu0 %v3800
        %4615 = vmatprep.subr.bf16.mxu0 %v3799
        %4616 = vmatpush2.bf16.msra.mxu0 %v3798
        %4617 = vmatprep.subr.bf16.mxu0 %v3797
        %4618 = vmatpush2.bf16.msra.mxu0 %v3796
        %4619 = vmatprep.subr.bf16.mxu0 %v3795
        %4620 = vmatpush2.bf16.msra.mxu0 %v3794
        %4621 = vmatprep.subr.bf16.mxu0 %v3793
        %4622 = vmatpush2.bf16.msra.mxu0 %v3792
        %4623 = vmatprep.mubr.bf16.mxu0 %v2367
        %4624 = vmatmul.mubr.bf16.gmra.mxu0 %v2365
        %v4625 = vpop.f32.mrf.mxu0
        %v4626 = vadd.f32 %v4585, %v4625
        %v4627 = vpop.f32.mrf.mxu0
        %v4628 = vadd.f32 %v4587, %v4627
        %v4629 = vpop.f32.mrf.mxu0
        %v4630 = vpop.f32.mrf.mxu0
        %4631 = vdwg.mxu0
        %4632 = vmatprep.subr.bf16.mxu0 %v3823
        %4633 = vmatpush1.bf16.msra.mxu0 %v3822
        %4634 = vmatprep.subr.bf16.mxu0 %v3821
        %4635 = vmatpush1.bf16.msra.mxu0 %v3820
        %4636 = vmatprep.subr.bf16.mxu0 %v3819
        %4637 = vmatpush1.bf16.msra.mxu0 %v3818
        %4638 = vmatprep.subr.bf16.mxu0 %v3817
        %4639 = vmatpush1.bf16.msra.mxu0 %v3816
        %4640 = vmatprep.subr.bf16.mxu0 %v3815
        %4641 = vmatpush1.bf16.msra.mxu0 %v3814
        %4642 = vmatprep.subr.bf16.mxu0 %v3813
        %4643 = vmatpush1.bf16.msra.mxu0 %v3812
        %4644 = vmatprep.subr.bf16.mxu0 %v3811
        %4645 = vmatpush1.bf16.msra.mxu0 %v3810
        %4646 = vmatprep.subr.bf16.mxu0 %v3809
        %4647 = vmatpush1.bf16.msra.mxu0 %v3808
        %4648 = vmatprep.subr.bf16.mxu0 %v3839
        %4649 = vmatpush2.bf16.msra.mxu0 %v3838
        %4650 = vmatprep.subr.bf16.mxu0 %v3837
        %4651 = vmatpush2.bf16.msra.mxu0 %v3836
        %4652 = vmatprep.subr.bf16.mxu0 %v3835
        %4653 = vmatpush2.bf16.msra.mxu0 %v3834
        %4654 = vmatprep.subr.bf16.mxu0 %v3833
        %4655 = vmatpush2.bf16.msra.mxu0 %v3832
        %4656 = vmatprep.subr.bf16.mxu0 %v3831
        %4657 = vmatpush2.bf16.msra.mxu0 %v3830
        %4658 = vmatprep.subr.bf16.mxu0 %v3829
        %4659 = vmatpush2.bf16.msra.mxu0 %v3828
        %4660 = vmatprep.subr.bf16.mxu0 %v3827
        %4661 = vmatpush2.bf16.msra.mxu0 %v3826
        %4662 = vmatprep.subr.bf16.mxu0 %v3825
        %4663 = vmatpush2.bf16.msra.mxu0 %v3824
        %4664 = vmatprep.mubr.bf16.mxu0 %v2405
        %4665 = vmatmul.mubr.bf16.gmra.mxu0 %v2391
        %v4666 = vpop.f32.mrf.mxu0
        %v4667 = vadd.f32 %v4626, %v4666
        %v4668 = vpop.f32.mrf.mxu0
        %v4669 = vadd.f32 %v4628, %v4668
        %v4670 = vpop.f32.mrf.mxu0
        %v4671 = vpop.f32.mrf.mxu0
        %4672 = vdwg.mxu0
        %4673 = vmatprep.subr.bf16.mxu0 %v3855
        %4674 = vmatpush1.bf16.msra.mxu0 %v3854
        %4675 = vmatprep.subr.bf16.mxu0 %v3853
        %4676 = vmatpush1.bf16.msra.mxu0 %v3852
        %4677 = vmatprep.subr.bf16.mxu0 %v3851
        %4678 = vmatpush1.bf16.msra.mxu0 %v3850
        %4679 = vmatprep.subr.bf16.mxu0 %v3849
        %4680 = vmatpush1.bf16.msra.mxu0 %v3848
        %4681 = vmatprep.subr.bf16.mxu0 %v3847
        %4682 = vmatpush1.bf16.msra.mxu0 %v3846
        %4683 = vmatprep.subr.bf16.mxu0 %v3845
        %4684 = vmatpush1.bf16.msra.mxu0 %v3844
        %4685 = vmatprep.subr.bf16.mxu0 %v3843
        %4686 = vmatpush1.bf16.msra.mxu0 %v3842
        %4687 = vmatprep.subr.bf16.mxu0 %v3841
        %4688 = vmatpush1.bf16.msra.mxu0 %v3840
        %4689 = vmatprep.subr.bf16.mxu0 %v3871
        %4690 = vmatpush2.bf16.msra.mxu0 %v3870
        %4691 = vmatprep.subr.bf16.mxu0 %v3869
        %4692 = vmatpush2.bf16.msra.mxu0 %v3868
        %4693 = vmatprep.subr.bf16.mxu0 %v3867
        %4694 = vmatpush2.bf16.msra.mxu0 %v3866
        %4695 = vmatprep.subr.bf16.mxu0 %v3865
        %4696 = vmatpush2.bf16.msra.mxu0 %v3864
        %4697 = vmatprep.subr.bf16.mxu0 %v3863
        %4698 = vmatpush2.bf16.msra.mxu0 %v3862
        %4699 = vmatprep.subr.bf16.mxu0 %v3861
        %4700 = vmatpush2.bf16.msra.mxu0 %v3860
        %4701 = vmatprep.subr.bf16.mxu0 %v3859
        %4702 = vmatpush2.bf16.msra.mxu0 %v3858
        %4703 = vmatprep.subr.bf16.mxu0 %v3857
        %4704 = vmatpush2.bf16.msra.mxu0 %v3856
        %4705 = vmatprep.mubr.bf16.mxu0 %v2415
        %4706 = vmatmul.mubr.bf16.gmra.mxu0 %v2413
        %v4707 = vpop.f32.mrf.mxu0
        %v4708 = vadd.f32 %v4667, %v4707
        %v4709 = vpop.f32.mrf.mxu0
        %v4710 = vadd.f32 %v4669, %v4709
        %v4711 = vpop.f32.mrf.mxu0
        %v4712 = vpop.f32.mrf.mxu0
        %4713 = vdwg.mxu0
        %4714 = vmatprep.subr.bf16.mxu0 %v3887
        %4715 = vmatpush1.bf16.msra.mxu0 %v3886
        %4716 = vmatprep.subr.bf16.mxu0 %v3885
        %4717 = vmatpush1.bf16.msra.mxu0 %v3884
        %4718 = vmatprep.subr.bf16.mxu0 %v3883
        %4719 = vmatpush1.bf16.msra.mxu0 %v3882
        %4720 = vmatprep.subr.bf16.mxu0 %v3881
        %4721 = vmatpush1.bf16.msra.mxu0 %v3880
        %4722 = vmatprep.subr.bf16.mxu0 %v3879
        %4723 = vmatpush1.bf16.msra.mxu0 %v3878
        %4724 = vmatprep.subr.bf16.mxu0 %v3877
        %4725 = vmatpush1.bf16.msra.mxu0 %v3876
        %4726 = vmatprep.subr.bf16.mxu0 %v3875
        %4727 = vmatpush1.bf16.msra.mxu0 %v3874
        %4728 = vmatprep.subr.bf16.mxu0 %v3873
        %4729 = vmatpush1.bf16.msra.mxu0 %v3872
        %4730 = vmatprep.subr.bf16.mxu0 %v3903
        %4731 = vmatpush2.bf16.msra.mxu0 %v3902
        %4732 = vmatprep.subr.bf16.mxu0 %v3901
        %4733 = vmatpush2.bf16.msra.mxu0 %v3900
        %4734 = vmatprep.subr.bf16.mxu0 %v3899
        %4735 = vmatpush2.bf16.msra.mxu0 %v3898
        %4736 = vmatprep.subr.bf16.mxu0 %v3897
        %4737 = vmatpush2.bf16.msra.mxu0 %v3896
        %4738 = vmatprep.subr.bf16.mxu0 %v3895
        %4739 = vmatpush2.bf16.msra.mxu0 %v3894
        %4740 = vmatprep.subr.bf16.mxu0 %v3893
        %4741 = vmatpush2.bf16.msra.mxu0 %v3892
        %4742 = vmatprep.subr.bf16.mxu0 %v3891
        %4743 = vmatpush2.bf16.msra.mxu0 %v3890
        %4744 = vmatprep.subr.bf16.mxu0 %v3889
        %4745 = vmatpush2.bf16.msra.mxu0 %v3888
        %4746 = vmatprep.mubr.bf16.mxu0 %v2412
        %4747 = vmatmul.mubr.bf16.gmra.mxu0 %v2398
        %v4748 = vpop.f32.mrf.mxu0
        %v4749 = vadd.f32 %v4708, %v4748
        %v4750 = vpop.f32.mrf.mxu0
        %v4751 = vadd.f32 %v4710, %v4750
        %v4752 = vpop.f32.mrf.mxu0
        %v4753 = vpop.f32.mrf.mxu0
        %4754 = vdwg.mxu0
        %4755 = vmatprep.subr.bf16.mxu0 %v3919
        %4756 = vmatpush1.bf16.msra.mxu0 %v3918
        %4757 = vmatprep.subr.bf16.mxu0 %v3917
        %4758 = vmatpush1.bf16.msra.mxu0 %v3916
        %4759 = vmatprep.subr.bf16.mxu0 %v3915
        %4760 = vmatpush1.bf16.msra.mxu0 %v3914
        %4761 = vmatprep.subr.bf16.mxu0 %v3913
        %4762 = vmatpush1.bf16.msra.mxu0 %v3912
        %4763 = vmatprep.subr.bf16.mxu0 %v3911
        %4764 = vmatpush1.bf16.msra.mxu0 %v3910
        %4765 = vmatprep.subr.bf16.mxu0 %v3909
        %4766 = vmatpush1.bf16.msra.mxu0 %v3908
        %4767 = vmatprep.subr.bf16.mxu0 %v3907
        %4768 = vmatpush1.bf16.msra.mxu0 %v3906
        %4769 = vmatprep.subr.bf16.mxu0 %v3905
        %4770 = vmatpush1.bf16.msra.mxu0 %v3904
        %4771 = vmatprep.subr.bf16.mxu0 %v3935
        %4772 = vmatpush2.bf16.msra.mxu0 %v3934
        %4773 = vmatprep.subr.bf16.mxu0 %v3933
        %4774 = vmatpush2.bf16.msra.mxu0 %v3932
        %4775 = vmatprep.subr.bf16.mxu0 %v3931
        %4776 = vmatpush2.bf16.msra.mxu0 %v3930
        %4777 = vmatprep.subr.bf16.mxu0 %v3929
        %4778 = vmatpush2.bf16.msra.mxu0 %v3928
        %4779 = vmatprep.subr.bf16.mxu0 %v3927
        %4780 = vmatpush2.bf16.msra.mxu0 %v3926
        %4781 = vmatprep.subr.bf16.mxu0 %v3925
        %4782 = vmatpush2.bf16.msra.mxu0 %v3924
        %4783 = vmatprep.subr.bf16.mxu0 %v3923
        %4784 = vmatpush2.bf16.msra.mxu0 %v3922
        %4785 = vmatprep.subr.bf16.mxu0 %v3921
        %4786 = vmatpush2.bf16.msra.mxu0 %v3920
        %4787 = vmatprep.mubr.bf16.mxu0 %v2416
        %4788 = vmatmul.mubr.bf16.gmra.mxu0 %v2414
        %v4789 = vpop.f32.mrf.mxu0
        %v4790 = vadd.f32 %v4749, %v4789
        %v4791 = vpop.f32.mrf.mxu0
        %v4792 = vadd.f32 %v4751, %v4791
        %v4793 = vpop.f32.mrf.mxu0
        %v4794 = vpop.f32.mrf.mxu0
        %4795 = vdwg.mxu0
        %4796 = vmatprep.subr.bf16.mxu0 %v3951
        %4797 = vmatpush1.bf16.msra.mxu0 %v3950
        %4798 = vmatprep.subr.bf16.mxu0 %v3949
        %4799 = vmatpush1.bf16.msra.mxu0 %v3948
        %4800 = vmatprep.subr.bf16.mxu0 %v3947
        %4801 = vmatpush1.bf16.msra.mxu0 %v3946
        %4802 = vmatprep.subr.bf16.mxu0 %v3945
        %4803 = vmatpush1.bf16.msra.mxu0 %v3944
        %4804 = vmatprep.subr.bf16.mxu0 %v3943
        %4805 = vmatpush1.bf16.msra.mxu0 %v3942
        %4806 = vmatprep.subr.bf16.mxu0 %v3941
        %4807 = vmatpush1.bf16.msra.mxu0 %v3940
        %4808 = vmatprep.subr.bf16.mxu0 %v3939
        %4809 = vmatpush1.bf16.msra.mxu0 %v3938
        %4810 = vmatprep.subr.bf16.mxu0 %v3937
        %4811 = vmatpush1.bf16.msra.mxu0 %v3936
        %4812 = vmatprep.subr.bf16.mxu0 %v3967
        %4813 = vmatpush2.bf16.msra.mxu0 %v3966
        %4814 = vmatprep.subr.bf16.mxu0 %v3965
        %4815 = vmatpush2.bf16.msra.mxu0 %v3964
        %4816 = vmatprep.subr.bf16.mxu0 %v3963
        %4817 = vmatpush2.bf16.msra.mxu0 %v3962
        %4818 = vmatprep.subr.bf16.mxu0 %v3961
        %4819 = vmatpush2.bf16.msra.mxu0 %v3960
        %4820 = vmatprep.subr.bf16.mxu0 %v3959
        %4821 = vmatpush2.bf16.msra.mxu0 %v3958
        %4822 = vmatprep.subr.bf16.mxu0 %v3957
        %4823 = vmatpush2.bf16.msra.mxu0 %v3956
        %4824 = vmatprep.subr.bf16.mxu0 %v3955
        %4825 = vmatpush2.bf16.msra.mxu0 %v3954
        %4826 = vmatprep.subr.bf16.mxu0 %v3953
        %4827 = vmatpush2.bf16.msra.mxu0 %v3952
        %4828 = vmatprep.mubr.bf16.mxu0 %v2454
        %4829 = vmatmul.mubr.bf16.gmra.mxu0 %v2440
        %v4830 = vpop.f32.mrf.mxu0
        %v4831 = vadd.f32 %v4790, %v4830
        %v4832 = vpop.f32.mrf.mxu0
        %v4833 = vadd.f32 %v4792, %v4832
        %v4834 = vpop.f32.mrf.mxu0
        %v4835 = vpop.f32.mrf.mxu0
        %4836 = vdwg.mxu0
        %4837 = vmatprep.subr.bf16.mxu0 %v3983
        %4838 = vmatpush1.bf16.msra.mxu0 %v3982
        %4839 = vmatprep.subr.bf16.mxu0 %v3981
        %4840 = vmatpush1.bf16.msra.mxu0 %v3980
        %4841 = vmatprep.subr.bf16.mxu0 %v3979
        %4842 = vmatpush1.bf16.msra.mxu0 %v3978
        %4843 = vmatprep.subr.bf16.mxu0 %v3977
        %4844 = vmatpush1.bf16.msra.mxu0 %v3976
        %4845 = vmatprep.subr.bf16.mxu0 %v3975
        %4846 = vmatpush1.bf16.msra.mxu0 %v3974
        %4847 = vmatprep.subr.bf16.mxu0 %v3973
        %4848 = vmatpush1.bf16.msra.mxu0 %v3972
        %4849 = vmatprep.subr.bf16.mxu0 %v3971
        %4850 = vmatpush1.bf16.msra.mxu0 %v3970
        %4851 = vmatprep.subr.bf16.mxu0 %v3969
        %4852 = vmatpush1.bf16.msra.mxu0 %v3968
        %4853 = vmatprep.subr.bf16.mxu0 %v3999
        %4854 = vmatpush2.bf16.msra.mxu0 %v3998
        %4855 = vmatprep.subr.bf16.mxu0 %v3997
        %4856 = vmatpush2.bf16.msra.mxu0 %v3996
        %4857 = vmatprep.subr.bf16.mxu0 %v3995
        %4858 = vmatpush2.bf16.msra.mxu0 %v3994
        %4859 = vmatprep.subr.bf16.mxu0 %v3993
        %4860 = vmatpush2.bf16.msra.mxu0 %v3992
        %4861 = vmatprep.subr.bf16.mxu0 %v3991
        %4862 = vmatpush2.bf16.msra.mxu0 %v3990
        %4863 = vmatprep.subr.bf16.mxu0 %v3989
        %4864 = vmatpush2.bf16.msra.mxu0 %v3988
        %4865 = vmatprep.subr.bf16.mxu0 %v3987
        %4866 = vmatpush2.bf16.msra.mxu0 %v3986
        %4867 = vmatprep.subr.bf16.mxu0 %v3985
        %4868 = vmatpush2.bf16.msra.mxu0 %v3984
        %4869 = vmatprep.mubr.bf16.mxu0 %v2464
        %4870 = vmatmul.mubr.bf16.gmra.mxu0 %v2462
        %v4871 = vpop.f32.mrf.mxu0
        %v4872 = vadd.f32 %v4831, %v4871
        %v4873 = vpop.f32.mrf.mxu0
        %v4874 = vadd.f32 %v4833, %v4873
        %v4875 = vpop.f32.mrf.mxu0
        %v4876 = vpop.f32.mrf.mxu0
        %4877 = vdwg.mxu0
        %4878 = vmatprep.subr.bf16.mxu0 %v4015
        %4879 = vmatpush1.bf16.msra.mxu0 %v4014
        %4880 = vmatprep.subr.bf16.mxu0 %v4013
        %4881 = vmatpush1.bf16.msra.mxu0 %v4012
        %4882 = vmatprep.subr.bf16.mxu0 %v4011
        %4883 = vmatpush1.bf16.msra.mxu0 %v4010
        %4884 = vmatprep.subr.bf16.mxu0 %v4009
        %4885 = vmatpush1.bf16.msra.mxu0 %v4008
        %4886 = vmatprep.subr.bf16.mxu0 %v4007
        %4887 = vmatpush1.bf16.msra.mxu0 %v4006
        %4888 = vmatprep.subr.bf16.mxu0 %v4005
        %4889 = vmatpush1.bf16.msra.mxu0 %v4004
        %4890 = vmatprep.subr.bf16.mxu0 %v4003
        %4891 = vmatpush1.bf16.msra.mxu0 %v4002
        %4892 = vmatprep.subr.bf16.mxu0 %v4001
        %4893 = vmatpush1.bf16.msra.mxu0 %v4000
        %4894 = vmatprep.subr.bf16.mxu0 %v4031
        %4895 = vmatpush2.bf16.msra.mxu0 %v4030
        %4896 = vmatprep.subr.bf16.mxu0 %v4029
        %4897 = vmatpush2.bf16.msra.mxu0 %v4028
        %4898 = vmatprep.subr.bf16.mxu0 %v4027
        %4899 = vmatpush2.bf16.msra.mxu0 %v4026
        %4900 = vmatprep.subr.bf16.mxu0 %v4025
        %4901 = vmatpush2.bf16.msra.mxu0 %v4024
        %4902 = vmatprep.subr.bf16.mxu0 %v4023
        %4903 = vmatpush2.bf16.msra.mxu0 %v4022
        %4904 = vmatprep.subr.bf16.mxu0 %v4021
        %4905 = vmatpush2.bf16.msra.mxu0 %v4020
        %4906 = vmatprep.subr.bf16.mxu0 %v4019
        %4907 = vmatpush2.bf16.msra.mxu0 %v4018
        %4908 = vmatprep.subr.bf16.mxu0 %v4017
        %4909 = vmatpush2.bf16.msra.mxu0 %v4016
        %4910 = vmatprep.mubr.bf16.mxu0 %v2461
        %4911 = vmatmul.mubr.bf16.gmra.mxu0 %v2447
        %v4912 = vpop.f32.mrf.mxu0
        %v4913 = vadd.f32 %v4872, %v4912
        %v4914 = vpop.f32.mrf.mxu0
        %v4915 = vadd.f32 %v4874, %v4914
        %v4916 = vpop.f32.mrf.mxu0
        %v4917 = vpop.f32.mrf.mxu0
        %4918 = vdwg.mxu0
        %4919 = vmatprep.subr.bf16.mxu0 %v4047
        %4920 = vmatpush1.bf16.msra.mxu0 %v4046
        %4921 = vmatprep.subr.bf16.mxu0 %v4045
        %4922 = vmatpush1.bf16.msra.mxu0 %v4044
        %4923 = vmatprep.subr.bf16.mxu0 %v4043
        %4924 = vmatpush1.bf16.msra.mxu0 %v4042
        %4925 = vmatprep.subr.bf16.mxu0 %v4041
        %4926 = vmatpush1.bf16.msra.mxu0 %v4040
        %4927 = vmatprep.subr.bf16.mxu0 %v4039
        %4928 = vmatpush1.bf16.msra.mxu0 %v4038
        %4929 = vmatprep.subr.bf16.mxu0 %v4037
        %4930 = vmatpush1.bf16.msra.mxu0 %v4036
        %4931 = vmatprep.subr.bf16.mxu0 %v4035
        %4932 = vmatpush1.bf16.msra.mxu0 %v4034
        %4933 = vmatprep.subr.bf16.mxu0 %v4033
        %4934 = vmatpush1.bf16.msra.mxu0 %v4032
        %4935 = vmatprep.subr.bf16.mxu0 %v4063
        %4936 = vmatpush2.bf16.msra.mxu0 %v4062
        %4937 = vmatprep.subr.bf16.mxu0 %v4061
        %4938 = vmatpush2.bf16.msra.mxu0 %v4060
        %4939 = vmatprep.subr.bf16.mxu0 %v4059
        %4940 = vmatpush2.bf16.msra.mxu0 %v4058
        %4941 = vmatprep.subr.bf16.mxu0 %v4057
        %4942 = vmatpush2.bf16.msra.mxu0 %v4056
        %4943 = vmatprep.subr.bf16.mxu0 %v4055
        %4944 = vmatpush2.bf16.msra.mxu0 %v4054
        %4945 = vmatprep.subr.bf16.mxu0 %v4053
        %4946 = vmatpush2.bf16.msra.mxu0 %v4052
        %4947 = vmatprep.subr.bf16.mxu0 %v4051
        %4948 = vmatpush2.bf16.msra.mxu0 %v4050
        %4949 = vmatprep.subr.bf16.mxu0 %v4049
        %4950 = vmatpush2.bf16.msra.mxu0 %v4048
        %4951 = vmatprep.mubr.bf16.mxu0 %v2465
        %4952 = vmatmul.mubr.bf16.gmra.mxu0 %v2463
        %v4953 = vpop.f32.mrf.mxu0
        %v4954 = vadd.f32 %v4913, %v4953
        %v4955 = vpop.f32.mrf.mxu0
        %v4956 = vadd.f32 %v4915, %v4955
        %v4957 = vpop.f32.mrf.mxu0
        %v4958 = vpop.f32.mrf.mxu0
        %4959 = vdwg.mxu0
        %4960 = vmatprep.subr.bf16.mxu0 0
        %4961 = vmatpush1.bf16.msra.mxu0 0
        %4962 = vmatprep.subr.bf16.mxu0 0
        %4963 = vmatpush1.bf16.msra.mxu0 0
        %4964 = vmatprep.subr.bf16.mxu0 0
        %4965 = vmatpush1.bf16.msra.mxu0 0
        %4966 = vmatprep.subr.bf16.mxu0 0
        %4967 = vmatpush1.bf16.msra.mxu0 0
        %4968 = vmatprep.subr.bf16.mxu0 %v4071
        %4969 = vmatpush1.bf16.msra.mxu0 %v4070
        %4970 = vmatprep.subr.bf16.mxu0 %v4069
        %4971 = vmatpush1.bf16.msra.mxu0 %v4068
        %4972 = vmatprep.subr.bf16.mxu0 %v4067
        %4973 = vmatpush1.bf16.msra.mxu0 %v4066
        %4974 = vmatprep.subr.bf16.mxu0 %v4065
        %4975 = vmatpush1.bf16.msra.mxu0 %v4064
        %4976 = vmatprep.subr.bf16.mxu0 0
        %4977 = vmatpush2.bf16.msra.mxu0 0
        %4978 = vmatprep.subr.bf16.mxu0 0
        %4979 = vmatpush2.bf16.msra.mxu0 0
        %4980 = vmatprep.subr.bf16.mxu0 0
        %4981 = vmatpush2.bf16.msra.mxu0 0
        %4982 = vmatprep.subr.bf16.mxu0 0
        %4983 = vmatpush2.bf16.msra.mxu0 0
        %4984 = vmatprep.subr.bf16.mxu0 0
        %4985 = vmatpush2.bf16.msra.mxu0 0
        %4986 = vmatprep.subr.bf16.mxu0 0
        %4987 = vmatpush2.bf16.msra.mxu0 0
        %4988 = vmatprep.subr.bf16.mxu0 0
        %4989 = vmatpush2.bf16.msra.mxu0 0
        %4990 = vmatprep.subr.bf16.mxu0 0
        %4991 = vmatpush2.bf16.msra.mxu0 0
        %4992 = vmatprep.mubr.bf16.mxu0 0
        %4993 = vmatmul.mubr.bf16.gmra.mxu0 %v4466
        %v4994 = vpop.f32.mrf.mxu0
        %v4995 = vadd.f32 %v4954, %v4994
        %v4996 = vpop.f32.mrf.mxu0
        %v4997 = vadd.f32 %v4956, %v4996
        %v4998 = vpop.f32.mrf.mxu0
        %v4999 = vpop.f32.mrf.mxu0
        %5000 = vdwg.mxu0
        %v5001 = vmax.f32 %v4995, 0.0
        %v5002 = vmax.f32 %v4997, 0.0
        %v5003 = vld [vmem:[%s1893] sm:$0x3]
        %v5004 = vpack.c.bf16 %v5001, %v5001
        %v5005 = vpack.c.bf16 %v5002, %v5002
        %v5006 = vld [vmem:[%s1888] sm:$0xf]
        %v5007 = vld [vmem:[%s1888 + $0x4] sm:$0xf]
        %v5008 = vld [vmem:[%s1888 + $0x8] sm:$0xf]
        %v5009 = vld [vmem:[%s1888 + $0xc] sm:$0xf]
        %v5010 = vld [vmem:[%s1888 + $0x10] sm:$0xf]
        %v5011 = vld [vmem:[%s1888 + $0x14] sm:$0xf]
        %v5012 = vld [vmem:[%s1888 + $0x18] sm:$0xf]
        %v5013 = vld [vmem:[%s1888 + $0x1c] sm:$0xf]
        %v5014 = vld [vmem:[%s1888 + $0x20] sm:$0xf]
        %v5015 = vld [vmem:[%s1888 + $0x24] sm:$0xf]
        %v5016 = vld [vmem:[%s1888 + $0x28] sm:$0xf]
        %v5017 = vld [vmem:[%s1888 + $0x2c] sm:$0xf]
        %v5018 = vld [vmem:[%s1888 + $0x30] sm:$0xf]
        %v5019 = vld [vmem:[%s1888 + $0x34] sm:$0xf]
        %v5020 = vld [vmem:[%s1888 + $0x38] sm:$0xf]
        %v5021 = vld [vmem:[%s1888 + $0x3c] sm:$0xf]
        %v5022 = vld [vmem:[%s1888 + $0x40] sm:$0xf]
        %v5023 = vld [vmem:[%s1888 + $0x44] sm:$0xf]
        %v5024 = vld [vmem:[%s1888 + $0x48] sm:$0xf]
        %v5025 = vld [vmem:[%s1888 + $0x4c] sm:$0xf]
        %v5026 = vld [vmem:[%s1888 + $0x50] sm:$0xf]
        %v5027 = vld [vmem:[%s1888 + $0x54] sm:$0xf]
        %v5028 = vld [vmem:[%s1888 + $0x58] sm:$0xf]
        %v5029 = vld [vmem:[%s1888 + $0x5c] sm:$0xf]
        %v5030 = vld [vmem:[%s1888 + $0x60] sm:$0xf]
        %v5031 = vld [vmem:[%s1888 + $0x64] sm:$0xf]
        %v5032 = vld [vmem:[%s1888 + $0x68] sm:$0xf]
        %v5033 = vld [vmem:[%s1888 + $0x6c] sm:$0xf]
        %v5034 = vld [vmem:[%s1888 + $0x70] sm:$0xf]
        %v5035 = vld [vmem:[%s1888 + $0x74] sm:$0xf]
        %v5036 = vld [vmem:[%s1888 + $0x78] sm:$0xf]
        %v5037 = vld [vmem:[%s1888 + $0x7c] sm:$0xf]
        %v5070 = vunpack.c.l.b16 %v5006
        %v5071 = vunpack.c.l.b16 %v5007
        %v5072 = vunpack.c.l.b16 %v5008
        %v5073 = vunpack.c.l.b16 %v5009
        %v5074 = vunpack.c.l.b16 %v5010
        %v5075 = vunpack.c.l.b16 %v5011
        %v5076 = vunpack.c.l.b16 %v5012
        %v5077 = vunpack.c.l.b16 %v5013
        %v5078 = vunpack.c.l.b16 %v5014
        %v5079 = vunpack.c.l.b16 %v5015
        %v5080 = vunpack.c.l.b16 %v5016
        %v5081 = vunpack.c.l.b16 %v5017
        %v5082 = vunpack.c.l.b16 %v5018
        %v5083 = vunpack.c.l.b16 %v5019
        %v5084 = vunpack.c.l.b16 %v5020
        %v5085 = vunpack.c.l.b16 %v5021
        %v5086 = vunpack.c.l.b16 %v5022
        %v5087 = vunpack.c.l.b16 %v5023
        %v5088 = vunpack.c.l.b16 %v5024
        %v5089 = vunpack.c.l.b16 %v5025
        %v5090 = vunpack.c.l.b16 %v5026
        %v5091 = vunpack.c.l.b16 %v5027
        %v5092 = vunpack.c.l.b16 %v5028
        %v5093 = vunpack.c.l.b16 %v5029
        %v5094 = vunpack.c.l.b16 %v5030
        %v5095 = vunpack.c.l.b16 %v5031
        %v5096 = vunpack.c.l.b16 %v5032
        %v5097 = vunpack.c.l.b16 %v5033
        %v5098 = vunpack.c.l.b16 %v5034
        %v5099 = vunpack.c.l.b16 %v5035
        %v5100 = vunpack.c.l.b16 %v5036
        %v5101 = vunpack.c.l.b16 %v5037
        %v5102 = vpack.c.b16 %v5071, %v5070
        %v5103 = vpack.c.b16 %v5073, %v5072
        %v5104 = vpack.c.b16 %v5075, %v5074
        %v5105 = vpack.c.b16 %v5077, %v5076
        %v5106 = vpack.c.b16 %v5079, %v5078
        %v5107 = vpack.c.b16 %v5081, %v5080
        %v5108 = vpack.c.b16 %v5083, %v5082
        %v5109 = vpack.c.b16 %v5085, %v5084
        %v5110 = vpack.c.b16 %v5087, %v5086
        %v5111 = vpack.c.b16 %v5089, %v5088
        %v5112 = vpack.c.b16 %v5091, %v5090
        %v5113 = vpack.c.b16 %v5093, %v5092
        %v5114 = vpack.c.b16 %v5095, %v5094
        %v5115 = vpack.c.b16 %v5097, %v5096
        %v5116 = vpack.c.b16 %v5099, %v5098
        %v5117 = vpack.c.b16 %v5101, %v5100
        %5134 = vmatprep.subr.bf16.mxu0 0
        %5135 = vmatpush1.bf16.msra.mxu0 %v5109
        %5136 = vmatprep.subr.bf16.mxu0 0
        %5137 = vmatpush1.bf16.msra.mxu0 %v5108
        %5138 = vmatprep.subr.bf16.mxu0 0
        %5139 = vmatpush1.bf16.msra.mxu0 %v5107
        %5140 = vmatprep.subr.bf16.mxu0 0
        %5141 = vmatpush1.bf16.msra.mxu0 %v5106
        %5142 = vmatprep.subr.bf16.mxu0 0
        %5143 = vmatpush1.bf16.msra.mxu0 %v5105
        %5144 = vmatprep.subr.bf16.mxu0 0
        %5145 = vmatpush1.bf16.msra.mxu0 %v5104
        %5146 = vmatprep.subr.bf16.mxu0 0
        %5147 = vmatpush1.bf16.msra.mxu0 %v5103
        %5148 = vmatprep.subr.bf16.mxu0 0
        %5149 = vmatpush1.bf16.msra.mxu0 %v5102
        %5150 = vmatprep.subr.bf16.mxu0 0
        %5151 = vmatpush2.bf16.msra.mxu0 %v5117
        %5152 = vmatprep.subr.bf16.mxu0 0
        %5153 = vmatpush2.bf16.msra.mxu0 %v5116
        %5154 = vmatprep.subr.bf16.mxu0 0
        %5155 = vmatpush2.bf16.msra.mxu0 %v5115
        %5156 = vmatprep.subr.bf16.mxu0 0
        %5157 = vmatpush2.bf16.msra.mxu0 %v5114
        %5158 = vmatprep.subr.bf16.mxu0 0
        %5159 = vmatpush2.bf16.msra.mxu0 %v5113
        %5160 = vmatprep.subr.bf16.mxu0 0
        %5161 = vmatpush2.bf16.msra.mxu0 %v5112
        %5162 = vmatprep.subr.bf16.mxu0 0
        %5163 = vmatpush2.bf16.msra.mxu0 %v5111
        %5164 = vmatprep.subr.bf16.mxu0 0
        %5165 = vmatpush2.bf16.msra.mxu0 %v5110
        %5166 = vmatprep.mubr.bf16.mxu0 %v5005
        %5167 = vmatmul.mubr.bf16.gmra.mxu0 %v5004
        %v5168 = vpop.f32.mrf.mxu0
        %v5169 = vadd.f32 0.0, %v5168
        %v5170 = vpop.f32.mrf.mxu0
        %v5171 = vpop.f32.mrf.mxu0
        %v5172 = vpop.f32.mrf.mxu0
        %5173 = vdwg.mxu0
        %v5174 = vadd.f32 %v5003, %v5169
        %5175 = vst [vmem:[%s1893] sm:$0x3] %v5174
        %p5176 = scmp.lt.s32.totalorder %s20, 0
        %s5177 = scalar_select %p5176, %s20, 0
        %s5178 = smul.addr %s5177, 2
        %s5179 = scalar_lea.vmem %s5, %s5178
        // Predicated region
        $region83: #{atari_qr_forward.7} parent=73 // pred_check
          %p5180 = pneg %p171
        $region84: #{atari_qr_forward.7} parent=73 // pred_check_branch
          %5182 = sbr.rel (%p5180) target = $region86
        $region85: #{atari_qr_forward.7} parent=73 // pred_region
          _
        $region86: #{atari_qr_forward.7} parent=73 // pred_fallthru
          _
        // Predicated region
        $region87: #{atari_qr_forward.7} parent=73 // pred_check
          %p5183 = pneg %p171
        $region88: #{atari_qr_forward.7} parent=73 // pred_check_branch
          %5185 = sbr.rel (%p5183) target = $region90
        $region89: #{atari_qr_forward.7} parent=73 // pred_region
          %p5186 = scmp.lt.s32.totalorder %s20, 0
          %s5187 = scalar_select %p5186, %s20, 0
          %s5188 = smul.addr %s5187, 2
          %s5189 = scalar_lea.vmem %s5, %s5188
        $region90: #{atari_qr_forward.7} parent=73 // pred_fallthru
          _
      $region74: #{atari_qr_forward.7} parent=5 // pred_fallthru
        _
      %p5190 = scmp.le.s32.totalorder 2, %s11
      // Predicated region
      $region91: #{atari_qr_forward.7} parent=5 // pred_check
        %p5191 = pneg %p5190
      $region92: #{atari_qr_forward.7} parent=5 // pred_check_branch
        %5193 = sbr.rel (%p5191) target = $region94
      $region93: #{atari_qr_forward.7} parent=5 // pred_region
        %s5194 = ssub.s32 %s11, 2
      $region94: #{atari_qr_forward.7} parent=5 // pred_fallthru
        _
    $region6: #{atari_qr_forward.7} parent=1 // loop_footer
      %s15 = sadd.s32 1, %s11
    $region7: #{atari_qr_forward.7} parent=1 // loop_footer_branch
      %10 = sbr.rel target = $region3
    $region8: #{atari_qr_forward.7} parent=1 // loop_exit
      _

</llo_original>
